<compile_context>
chip_gen: v7x
topology: tpu7x:2x2x1
jax: 0.10.0
libtpu: 0.0.40
codegen_flags: <defaults>
</compile_context>

<pallas_src>
import functools

import numpy as np
import jax
import jax.numpy as jnp
from jax.experimental import pallas as pl
from jax.experimental.pallas import tpu as pltpu


# ----------------------------- Pallas kernels -----------------------------

def _mm_bias_act_kernel(a_ref, b_ref, bias_ref, o_ref, acc_ref, *, negative_slope):
    """Tiled  patches[M,K] @ W[K,OC] + bias,  optional fused LeakyReLU.

    Grid = (Mt, Nt, Kt); f32 accumulator lives in VMEM scratch across the K axis.
    """
    @pl.when(pl.program_id(2) == 0)
    def _():
        acc_ref[...] = jnp.zeros_like(acc_ref)

    acc_ref[...] += jnp.dot(a_ref[...], b_ref[...],
                            preferred_element_type=jnp.float32)

    @pl.when(pl.program_id(2) == pl.num_programs(2) - 1)
    def _():
        y = acc_ref[...] + bias_ref[...]          # f32 epilogue (v5e-friendly)
        if negative_slope is not None:
            y = jnp.where(y >= 0.0, y, y * negative_slope)
        o_ref[...] = y.astype(o_ref.dtype)


def _bn_stats_kernel(x_ref, sum_ref, ssq_ref, *, m_total, tm):
    """Per-channel sum / sum-of-squares over the M axis (tiled, masked ragged edge)."""
    i = pl.program_id(0)

    @pl.when(i == 0)
    def _():
        sum_ref[...] = jnp.zeros_like(sum_ref)
        ssq_ref[...] = jnp.zeros_like(ssq_ref)

    x = x_ref[...].astype(jnp.float32)
    rows = i * tm + jax.lax.broadcasted_iota(jnp.int32, x.shape, 0)
    x = jnp.where(rows < m_total, x, 0.0)         # mask garbage rows of ragged tile
    sum_ref[...] += jnp.sum(x, axis=0, keepdims=True)
    ssq_ref[...] += jnp.sum(x * x, axis=0, keepdims=True)


def _affine_lrelu_kernel(x_ref, sc_ref, sh_ref, o_ref, *, negative_slope):
    """Per-channel affine (folded BatchNorm) + LeakyReLU, tiled over rows."""
    y = x_ref[...].astype(jnp.float32) * sc_ref[...] + sh_ref[...]
    y = jnp.where(y >= 0.0, y, y * negative_slope)
    o_ref[...] = y.astype(o_ref.dtype)


def _avgpool_kernel(p00_ref, p01_ref, p10_ref, p11_ref, inv_ref, o_ref, *, oh, ow):
    """3x3/s2/p1 average pool from phase-split slabs: 9 shifted VPU adds, NHWC."""
    p00 = p00_ref[...]
    p01 = p01_ref[...]
    p10 = p10_ref[...]
    p11 = p11_ref[...]
    s = (p00[:, :oh, :ow, :] + p00[:, :oh, 1:ow + 1, :]
         + p00[:, 1:oh + 1, :ow, :] + p00[:, 1:oh + 1, 1:ow + 1, :]
         + p01[:, :oh, :ow, :] + p01[:, 1:oh + 1, :ow, :]
         + p10[:, :oh, :ow, :] + p10[:, :oh, 1:ow + 1, :]
         + p11[:, :oh, :ow, :])
    o_ref[...] = (s * inv_ref[...]).astype(o_ref.dtype)


# --------------------------- helpers / weight prep --------------------------

def _round_up(x, m):
    return (x + m - 1) // m * m


def _pad_oc(oc):
    # OC already lane friendly -> keep; tiny OC (final 1-channel conv) -> pad to
    # 128 for lane-dense stores; otherwise full-dim output block.
    if oc % 128 == 0:
        return oc
    if oc >= 8:
        return oc
    return 128


def _prep_conv_weight(w, b):
    """PyTorch [OC,C,kh,kw] -> bf16 [Kp, OCp] (K ordered (kh,kw,C)) + f32 bias [1,OCp]."""
    oc, c, kh, kw = w.shape
    K = kh * kw * c
    Kp = _round_up(K, 128)
    OCp = _pad_oc(oc)
    wm = jnp.transpose(w, (2, 3, 1, 0)).reshape(K, oc)
    wm = jnp.pad(wm, ((0, Kp - K), (0, OCp - oc))).astype(jnp.bfloat16)
    bias = jnp.pad(b, (0, OCp - oc)).astype(jnp.float32).reshape(1, OCp)
    return wm, bias


# --------------------------- layer wrappers (NHWC) --------------------------

def conv2d_nhwc(x, wm, bias, *, stride, pad, negative_slope):
    """Conv2d on NHWC input via im2col + tiled/pipelined Pallas matmul.

    Returns (y [M, OCp] f32, OH, OW) with M = N*OH*OW (no M padding; ragged tiles
    are handled by the grid)."""
    N, H, W, C = x.shape
    Kp, OCp = wm.shape
    k = 4
    OH = (H + 2 * pad - k) // stride + 1
    OW = (W + 2 * pad - k) // stride + 1

    # TODO(synk): fuse this im2col into the kernel via shifted-window DMA.
    xp = jnp.pad(x, ((0, 0), (pad, pad), (pad, pad), (0, 0)))
    cols = [xp[:, i:i + stride * (OH - 1) + 1:stride,
               j:j + stride * (OW - 1) + 1:stride, :]
            for i in range(k) for j in range(k)]
    a = jnp.concatenate(cols, axis=-1).reshape(N * OH * OW, k * k * C)
    if Kp > k * k * C:
        a = jnp.pad(a, ((0, 0), (0, Kp - k * k * C)))
    a = a.astype(jnp.bfloat16)                     # bf16 MXU inputs, f32 accum

    M = N * OH * OW
    tm = min(256, M)
    tn = 256 if OCp % 256 == 0 else (128 if OCp % 128 == 0 else OCp)
    tk = 512 if Kp % 512 == 0 else (256 if Kp % 256 == 0 else 128)
    grid = (pl.cdiv(M, tm), OCp // tn, Kp // tk)

    y = pl.pallas_call(
        functools.partial(_mm_bias_act_kernel, negative_slope=negative_slope),
        out_shape=jax.ShapeDtypeStruct((M, OCp), jnp.float32),
        grid_spec=pltpu.PrefetchScalarGridSpec(
            num_scalar_prefetch=0,
            grid=grid,
            in_specs=[
                pl.BlockSpec((tm, tk), lambda i, j, kk: (i, kk)),
                pl.BlockSpec((tk, tn), lambda i, j, kk: (kk, j)),
                pl.BlockSpec((1, tn), lambda i, j, kk: (0, j)),
            ],
            out_specs=pl.BlockSpec((tm, tn), lambda i, j, kk: (i, j)),
            scratch_shapes=[pltpu.VMEM((tm, tn), jnp.float32)],
        ),
        compiler_params=pltpu.CompilerParams(
            dimension_semantics=("parallel", "parallel", "arbitrary"),
            vmem_limit_bytes=32 * 1024 * 1024,
        ),
    )(a, wm, bias)
    return y, OH, OW


def batchnorm_lrelu_rows(y, gamma, beta, eps=1e-5, negative_slope=0.2):
    """Training-mode BatchNorm over rows of y [M, C] + LeakyReLU (both tiled)."""
    M, C = y.shape
    tmb = min(512, M)
    grid = (pl.cdiv(M, tmb),)

    s, ssq = pl.pallas_call(
        functools.partial(_bn_stats_kernel, m_total=M, tm=tmb),
        out_shape=(jax.ShapeDtypeStruct((1, C), jnp.float32),
                   jax.ShapeDtypeStruct((1, C), jnp.float32)),
        grid_spec=pltpu.PrefetchScalarGridSpec(
            num_scalar_prefetch=0,
            grid=grid,
            in_specs=[pl.BlockSpec((tmb, C), lambda i: (i, 0))],
            out_specs=[pl.BlockSpec((1, C), lambda i: (0, 0)),
                       pl.BlockSpec((1, C), lambda i: (0, 0))],
        ),
        compiler_params=pltpu.CompilerParams(dimension_semantics=("arbitrary",)),
    )(y)

    mean = s / M
    var = jnp.maximum(ssq / M - mean * mean, 0.0)   # biased variance (PyTorch fwd)
    inv = jax.lax.rsqrt(var + eps)
    scale = gamma.reshape(1, C).astype(jnp.float32) * inv
    shift = beta.reshape(1, C).astype(jnp.float32) - mean * scale

    out = pl.pallas_call(
        functools.partial(_affine_lrelu_kernel, negative_slope=negative_slope),
        out_shape=jax.ShapeDtypeStruct((M, C), jnp.float32),
        grid_spec=pltpu.PrefetchScalarGridSpec(
            num_scalar_prefetch=0,
            grid=grid,
            in_specs=[pl.BlockSpec((tmb, C), lambda i: (i, 0)),
                      pl.BlockSpec((1, C), lambda i: (0, 0)),
                      pl.BlockSpec((1, C), lambda i: (0, 0))],
            out_specs=pl.BlockSpec((tmb, C), lambda i: (i, 0)),
        ),
        compiler_params=pltpu.CompilerParams(dimension_semantics=("parallel",)),
    )(y, scale, shift)
    return out


def avgpool_3x3_s2_p1_nhwc(x):
    """nn.AvgPool2d(3, stride=2, padding=1, count_include_pad=False) on NHWC."""
    N, H, W, C = x.shape
    OH = (H - 1) // 2 + 1
    OW = (W - 1) // 2 + 1
    xp = jnp.pad(x, ((0, 0), (1, 1), (1, 1), (0, 0)))

    def phase(a, b):
        p = xp[:, a::2, b::2, :]
        return jnp.pad(p, ((0, 0), (0, OH + 1 - p.shape[1]),
                           (0, OW + 1 - p.shape[2]), (0, 0)))

    p00, p01, p10, p11 = phase(0, 0), phase(0, 1), phase(1, 0), phase(1, 1)

    # count_include_pad=False divisor (depends only on the border distance).
    r = 2 * jnp.arange(OH)[:, None] + jnp.arange(3)[None, :]
    c = 2 * jnp.arange(OW)[:, None] + jnp.arange(3)[None, :]
    rcnt = jnp.sum((r >= 1) & (r <= H), axis=1)
    ccnt = jnp.sum((c >= 1) & (c <= W), axis=1)
    inv = 1.0 / (rcnt[:, None] * ccnt[None, :]).astype(jnp.float32)
    inv = jnp.broadcast_to(inv.reshape(1, OH, OW, 1), (1, OH, OW, C))

    out = pl.pallas_call(
        functools.partial(_avgpool_kernel, oh=OH, ow=OW),
        out_shape=jax.ShapeDtypeStruct((N, OH, OW, C), x.dtype),
        grid_spec=pltpu.PrefetchScalarGridSpec(
            num_scalar_prefetch=0,
            grid=(N,),
            in_specs=[pl.BlockSpec((1, OH + 1, OW + 1, C), lambda n: (n, 0, 0, 0))] * 4
                     + [pl.BlockSpec((1, OH, OW, C), lambda n: (0, 0, 0, 0))],
            out_specs=pl.BlockSpec((1, OH, OW, C), lambda n: (n, 0, 0, 0)),
        ),
        compiler_params=pltpu.CompilerParams(dimension_semantics=("parallel",)),
    )(p00, p01, p10, p11, inv)
    return out


# ----------------------- parameters & model forward ------------------------

def _make_layer(w, b, stride, bn, act):
    wm, bias = _prep_conv_weight(w, b)
    d = dict(wm=wm, bias=bias, stride=stride, bn=bn, act=act, oc=w.shape[0])
    if bn:
        d['gamma'] = jnp.ones((w.shape[0],), jnp.float32)
        d['beta'] = jnp.zeros((w.shape[0],), jnp.float32)
    return d


def init_nlayer_params(key, input_nc, ndf=8, n_layers=3):
    """Mirror NLayerDiscriminator.__init__ (getIntermFeat=False, use_sigmoid=False)."""
    kw = 4

    def conv_init(k, oc, ic):
        k1, k2 = jax.random.split(k)
        bound = 1.0 / np.sqrt(ic * kw * kw)
        w = jax.random.uniform(k1, (oc, ic, kw, kw), jnp.float32, -bound, bound)
        b = jax.random.uniform(k2, (oc,), jnp.float32, -bound, bound)
        return w, b

    keys = jax.random.split(key, n_layers + 2)
    layers = []
    nf = ndf
    w, b = conv_init(keys[0], nf, input_nc)
    layers.append(_make_layer(w, b, stride=2, bn=False, act=True))
    for n in range(1, n_layers):
        nf_prev, nf = nf, min(nf * 2, 512)
        w, b = conv_init(keys[n], nf, nf_prev)
        layers.append(_make_layer(w, b, stride=2, bn=True, act=True))
    nf_prev, nf = nf, min(nf * 2, 512)
    w, b = conv_init(keys[n_layers], nf, nf_prev)
    layers.append(_make_layer(w, b, stride=1, bn=True, act=True))
    w, b = conv_init(keys[n_layers + 1], 1, nf)
    layers.append(_make_layer(w, b, stride=1, bn=False, act=False))
    return layers


def nlayer_forward_nhwc(layers, x):
    padw = 2  # int(np.ceil((4 - 1.0) / 2)) as in the PyTorch module
    N = x.shape[0]
    for lp in layers:
        slope = 0.2 if (lp['act'] and not lp['bn']) else None
        y, OH, OW = conv2d_nhwc(x, lp['wm'], lp['bias'], stride=lp['stride'],
                                pad=padw, negative_slope=slope)
        if lp['bn']:
            y = batchnorm_lrelu_rows(y, lp['gamma'], lp['beta'])
        oc = lp['oc']
        if y.shape[1] != oc:             # drop lane-padded output channels
            y = y[:, :oc]
        x = y.reshape(N, OH, OW, oc)
    return x


def multiscale_forward(params_per_D, x_nchw):
    """MultiscaleDiscriminator.forward (getIntermFeat=False); NCHW at the boundary."""
    num_D = len(params_per_D)
    x = jnp.transpose(x_nchw, (0, 2, 3, 1))        # NCHW -> NHWC once
    result = []
    for i in range(num_D):
        layers = params_per_D[num_D - 1 - i]
        out = nlayer_forward_nhwc(layers, x)
        result.append([jnp.transpose(out, (0, 3, 1, 2))])   # back to NCHW
        if i != num_D - 1:
            x = avgpool_3x3_s2_p1_nhwc(x)
    return result


# --------------------------------- main -------------------------------------

if __name__ == "__main__":
    key = jax.random.PRNGKey(0)
    kx, kp = jax.random.split(key)

    # Small, forward-consistent shapes: batch=2, input_nc=4, 16x16 spatial,
    # ndf=8 (scaled-down analogue of the default 64), n_layers=3, num_D=3.
    N, input_nc, H, W = 2, 4, 16, 16
    ndf, n_layers, num_D = 8, 3, 3

    x = jax.random.normal(kx, (N, input_nc, H, W), jnp.float32)
    pkeys = jax.random.split(kp, num_D)
    params_per_D = [init_nlayer_params(pkeys[i], input_nc, ndf, n_layers)
                    for i in range(num_D)]

    fwd = jax.jit(functools.partial(multiscale_forward, params_per_D))
    result = fwd(x)
    jax.block_until_ready(result)
    print("KERNEL_OK")
</pallas_src>

<mosaic_0001>
module attributes {stable_mosaic.version = 11 : i64} {
  func.func @_avgpool_kernel(%arg0: i32, %arg1: memref<1x9x9x4xf32, #tpu.memory_space<vmem>>, %arg2: memref<1x9x9x4xf32, #tpu.memory_space<vmem>>, %arg3: memref<1x9x9x4xf32, #tpu.memory_space<vmem>>, %arg4: memref<1x9x9x4xf32, #tpu.memory_space<vmem>>, %arg5: memref<1x8x8x4xf32, #tpu.memory_space<vmem>>, %arg6: memref<1x8x8x4xf32, #tpu.memory_space<vmem>>) attributes {dimension_semantics = [#tpu.dimension_semantics<parallel>], iteration_bounds = array<i64: 2>, scalar_prefetch = 0 : i64, scratch_operands = 0 : i64, tpu.core_type = #tpu.core_type<tc>, window_params = [{transform_indices = @transform_0, window_bounds = array<i64: 1, 9, 9, 4>}, {transform_indices = @transform_1, window_bounds = array<i64: 1, 9, 9, 4>}, {transform_indices = @transform_2, window_bounds = array<i64: 1, 9, 9, 4>}, {transform_indices = @transform_3, window_bounds = array<i64: 1, 9, 9, 4>}, {pipeline_mode = #tpu.pipeline_mode<synchronous>, transform_indices = @transform_4, window_bounds = array<i64: 1, 8, 8, 4>}, {transform_indices = @transform_5, window_bounds = array<i64: 1, 8, 8, 4>}]} {
    %c0 = arith.constant 0 : index
    %c0_0 = arith.constant 0 : index
    %c0_1 = arith.constant 0 : index
    %c0_2 = arith.constant 0 : index
    %0 = vector.load %arg1[%c0, %c0_0, %c0_1, %c0_2] : memref<1x9x9x4xf32, #tpu.memory_space<vmem>>, vector<1x9x9x4xf32>
    %c0_3 = arith.constant 0 : index
    %c0_4 = arith.constant 0 : index
    %c0_5 = arith.constant 0 : index
    %c0_6 = arith.constant 0 : index
    %1 = vector.load %arg2[%c0_3, %c0_4, %c0_5, %c0_6] : memref<1x9x9x4xf32, #tpu.memory_space<vmem>>, vector<1x9x9x4xf32>
    %c0_7 = arith.constant 0 : index
    %c0_8 = arith.constant 0 : index
    %c0_9 = arith.constant 0 : index
    %c0_10 = arith.constant 0 : index
    %2 = vector.load %arg3[%c0_7, %c0_8, %c0_9, %c0_10] : memref<1x9x9x4xf32, #tpu.memory_space<vmem>>, vector<1x9x9x4xf32>
    %c0_11 = arith.constant 0 : index
    %c0_12 = arith.constant 0 : index
    %c0_13 = arith.constant 0 : index
    %c0_14 = arith.constant 0 : index
    %3 = vector.load %arg4[%c0_11, %c0_12, %c0_13, %c0_14] : memref<1x9x9x4xf32, #tpu.memory_space<vmem>>, vector<1x9x9x4xf32>
    %4 = vector.extract_strided_slice %0 {offsets = [0, 0, 0, 0], sizes = [1, 8, 8, 4], strides = [1, 1, 1, 1]} : vector<1x9x9x4xf32> to vector<1x8x8x4xf32>
    %5 = vector.extract_strided_slice %0 {offsets = [0, 0, 1, 0], sizes = [1, 8, 8, 4], strides = [1, 1, 1, 1]} : vector<1x9x9x4xf32> to vector<1x8x8x4xf32>
    %6 = arith.addf %4, %5 : vector<1x8x8x4xf32>
    %7 = vector.extract_strided_slice %0 {offsets = [0, 1, 0, 0], sizes = [1, 8, 8, 4], strides = [1, 1, 1, 1]} : vector<1x9x9x4xf32> to vector<1x8x8x4xf32>
    %8 = arith.addf %6, %7 : vector<1x8x8x4xf32>
    %9 = vector.extract_strided_slice %0 {offsets = [0, 1, 1, 0], sizes = [1, 8, 8, 4], strides = [1, 1, 1, 1]} : vector<1x9x9x4xf32> to vector<1x8x8x4xf32>
    %10 = arith.addf %8, %9 : vector<1x8x8x4xf32>
    %11 = vector.extract_strided_slice %1 {offsets = [0, 0, 0, 0], sizes = [1, 8, 8, 4], strides = [1, 1, 1, 1]} : vector<1x9x9x4xf32> to vector<1x8x8x4xf32>
    %12 = arith.addf %10, %11 : vector<1x8x8x4xf32>
    %13 = vector.extract_strided_slice %1 {offsets = [0, 1, 0, 0], sizes = [1, 8, 8, 4], strides = [1, 1, 1, 1]} : vector<1x9x9x4xf32> to vector<1x8x8x4xf32>
    %14 = arith.addf %12, %13 : vector<1x8x8x4xf32>
    %15 = vector.extract_strided_slice %2 {offsets = [0, 0, 0, 0], sizes = [1, 8, 8, 4], strides = [1, 1, 1, 1]} : vector<1x9x9x4xf32> to vector<1x8x8x4xf32>
    %16 = arith.addf %14, %15 : vector<1x8x8x4xf32>
    %17 = vector.extract_strided_slice %2 {offsets = [0, 0, 1, 0], sizes = [1, 8, 8, 4], strides = [1, 1, 1, 1]} : vector<1x9x9x4xf32> to vector<1x8x8x4xf32>
    %18 = arith.addf %16, %17 : vector<1x8x8x4xf32>
    %19 = vector.extract_strided_slice %3 {offsets = [0, 0, 0, 0], sizes = [1, 8, 8, 4], strides = [1, 1, 1, 1]} : vector<1x9x9x4xf32> to vector<1x8x8x4xf32>
    %20 = arith.addf %18, %19 : vector<1x8x8x4xf32>
    %c0_15 = arith.constant 0 : index
    %c0_16 = arith.constant 0 : index
    %c0_17 = arith.constant 0 : index
    %c0_18 = arith.constant 0 : index
    %21 = vector.load %arg5[%c0_15, %c0_16, %c0_17, %c0_18] : memref<1x8x8x4xf32, #tpu.memory_space<vmem>>, vector<1x8x8x4xf32>
    %22 = arith.mulf %20, %21 : vector<1x8x8x4xf32>
    %c0_19 = arith.constant 0 : index
    %c0_20 = arith.constant 0 : index
    %c0_21 = arith.constant 0 : index
    %c0_22 = arith.constant 0 : index
    %23 = vector.load %arg6[%c0_19, %c0_20, %c0_21, %c0_22] : memref<1x8x8x4xf32, #tpu.memory_space<vmem>>, vector<1x8x8x4xf32>
    tpu.vector_store %arg6[%c0_19, %c0_20, %c0_21, %c0_22], %22 {strides = array<i32>} : memref<1x8x8x4xf32, #tpu.memory_space<vmem>>, vector<1x8x8x4xf32>,
    return
  }
  func.func @transform_0(%arg0: i32) -> (i32, i32, i32, i32) {
    %c0_i32 = arith.constant 0 : i32
    %c0_i32_0 = arith.constant 0 : i32
    %c0_i32_1 = arith.constant 0 : i32
    %c0_i32_2 = arith.constant 0 : i32
    return %arg0, %c0_i32, %c0_i32_0, %c0_i32_1 : i32, i32, i32, i32
  }
  func.func @transform_1(%arg0: i32) -> (i32, i32, i32, i32) {
    %c0_i32 = arith.constant 0 : i32
    %c0_i32_0 = arith.constant 0 : i32
    %c0_i32_1 = arith.constant 0 : i32
    %c0_i32_2 = arith.constant 0 : i32
    return %arg0, %c0_i32, %c0_i32_0, %c0_i32_1 : i32, i32, i32, i32
  }
  func.func @transform_2(%arg0: i32) -> (i32, i32, i32, i32) {
    %c0_i32 = arith.constant 0 : i32
    %c0_i32_0 = arith.constant 0 : i32
    %c0_i32_1 = arith.constant 0 : i32
    %c0_i32_2 = arith.constant 0 : i32
    return %arg0, %c0_i32, %c0_i32_0, %c0_i32_1 : i32, i32, i32, i32
  }
  func.func @transform_3(%arg0: i32) -> (i32, i32, i32, i32) {
    %c0_i32 = arith.constant 0 : i32
    %c0_i32_0 = arith.constant 0 : i32
    %c0_i32_1 = arith.constant 0 : i32
    %c0_i32_2 = arith.constant 0 : i32
    return %arg0, %c0_i32, %c0_i32_0, %c0_i32_1 : i32, i32, i32, i32
  }
  func.func @transform_4(%arg0: i32) -> (i32, i32, i32, i32) {
    %c0_i32 = arith.constant 0 : i32
    %c0_i32_0 = arith.constant 0 : i32
    %c0_i32_1 = arith.constant 0 : i32
    %c0_i32_2 = arith.constant 0 : i32
    %c0_i32_3 = arith.constant 0 : i32
    return %c0_i32, %c0_i32_0, %c0_i32_1, %c0_i32_2 : i32, i32, i32, i32
  }
  func.func @transform_5(%arg0: i32) -> (i32, i32, i32, i32) {
    %c0_i32 = arith.constant 0 : i32
    %c0_i32_0 = arith.constant 0 : i32
    %c0_i32_1 = arith.constant 0 : i32
    %c0_i32_2 = arith.constant 0 : i32
    return %arg0, %c0_i32, %c0_i32_0, %c0_i32_1 : i32, i32, i32, i32
  }
}

module attributes {stable_mosaic.version = 11 : i64} {
  func.func @_avgpool_kernel(%arg0: i32, %arg1: memref<1x5x5x4xf32, #tpu.memory_space<vmem>>, %arg2: memref<1x5x5x4xf32, #tpu.memory_space<vmem>>, %arg3: memref<1x5x5x4xf32, #tpu.memory_space<vmem>>, %arg4: memref<1x5x5x4xf32, #tpu.memory_space<vmem>>, %arg5: memref<1x4x4x4xf32, #tpu.memory_space<vmem>>, %arg6: memref<1x4x4x4xf32, #tpu.memory_space<vmem>>) attributes {dimension_semantics = [#tpu.dimension_semantics<parallel>], iteration_bounds = array<i64: 2>, scalar_prefetch = 0 : i64, scratch_operands = 0 : i64, tpu.core_type = #tpu.core_type<tc>, window_params = [{transform_indices = @transform_0, window_bounds = array<i64: 1, 5, 5, 4>}, {transform_indices = @transform_1, window_bounds = array<i64: 1, 5, 5, 4>}, {transform_indices = @transform_2, window_bounds = array<i64: 1, 5, 5, 4>}, {transform_indices = @transform_3, window_bounds = array<i64: 1, 5, 5, 4>}, {pipeline_mode = #tpu.pipeline_mode<synchronous>, transform_indices = @transform_4, window_bounds = array<i64: 1, 4, 4, 4>}, {transform_indices = @transform_5, window_bounds = array<i64: 1, 4, 4, 4>}]} {
    %c0 = arith.constant 0 : index
    %c0_0 = arith.constant 0 : index
    %c0_1 = arith.constant 0 : index
    %c0_2 = arith.constant 0 : index
    %0 = vector.load %arg1[%c0, %c0_0, %c0_1, %c0_2] : memref<1x5x5x4xf32, #tpu.memory_space<vmem>>, vector<1x5x5x4xf32>
    %c0_3 = arith.constant 0 : index
    %c0_4 = arith.constant 0 : index
    %c0_5 = arith.constant 0 : index
    %c0_6 = arith.constant 0 : index
    %1 = vector.load %arg2[%c0_3, %c0_4, %c0_5, %c0_6] : memref<1x5x5x4xf32, #tpu.memory_space<vmem>>, vector<1x5x5x4xf32>
    %c0_7 = arith.constant 0 : index
    %c0_8 = arith.constant 0 : index
    %c0_9 = arith.constant 0 : index
    %c0_10 = arith.constant 0 : index
    %2 = vector.load %arg3[%c0_7, %c0_8, %c0_9, %c0_10] : memref<1x5x5x4xf32, #tpu.memory_space<vmem>>, vector<1x5x5x4xf32>
    %c0_11 = arith.constant 0 : index
    %c0_12 = arith.constant 0 : index
    %c0_13 = arith.constant 0 : index
    %c0_14 = arith.constant 0 : index
    %3 = vector.load %arg4[%c0_11, %c0_12, %c0_13, %c0_14] : memref<1x5x5x4xf32, #tpu.memory_space<vmem>>, vector<1x5x5x4xf32>
    %4 = vector.extract_strided_slice %0 {offsets = [0, 0, 0, 0], sizes = [1, 4, 4, 4], strides = [1, 1, 1, 1]} : vector<1x5x5x4xf32> to vector<1x4x4x4xf32>
    %5 = vector.extract_strided_slice %0 {offsets = [0, 0, 1, 0], sizes = [1, 4, 4, 4], strides = [1, 1, 1, 1]} : vector<1x5x5x4xf32> to vector<1x4x4x4xf32>
    %6 = arith.addf %4, %5 : vector<1x4x4x4xf32>
    %7 = vector.extract_strided_slice %0 {offsets = [0, 1, 0, 0], sizes = [1, 4, 4, 4], strides = [1, 1, 1, 1]} : vector<1x5x5x4xf32> to vector<1x4x4x4xf32>
    %8 = arith.addf %6, %7 : vector<1x4x4x4xf32>
    %9 = vector.extract_strided_slice %0 {offsets = [0, 1, 1, 0], sizes = [1, 4, 4, 4], strides = [1, 1, 1, 1]} : vector<1x5x5x4xf32> to vector<1x4x4x4xf32>
    %10 = arith.addf %8, %9 : vector<1x4x4x4xf32>
    %11 = vector.extract_strided_slice %1 {offsets = [0, 0, 0, 0], sizes = [1, 4, 4, 4], strides = [1, 1, 1, 1]} : vector<1x5x5x4xf32> to vector<1x4x4x4xf32>
    %12 = arith.addf %10, %11 : vector<1x4x4x4xf32>
    %13 = vector.extract_strided_slice %1 {offsets = [0, 1, 0, 0], sizes = [1, 4, 4, 4], strides = [1, 1, 1, 1]} : vector<1x5x5x4xf32> to vector<1x4x4x4xf32>
    %14 = arith.addf %12, %13 : vector<1x4x4x4xf32>
    %15 = vector.extract_strided_slice %2 {offsets = [0, 0, 0, 0], sizes = [1, 4, 4, 4], strides = [1, 1, 1, 1]} : vector<1x5x5x4xf32> to vector<1x4x4x4xf32>
    %16 = arith.addf %14, %15 : vector<1x4x4x4xf32>
    %17 = vector.extract_strided_slice %2 {offsets = [0, 0, 1, 0], sizes = [1, 4, 4, 4], strides = [1, 1, 1, 1]} : vector<1x5x5x4xf32> to vector<1x4x4x4xf32>
    %18 = arith.addf %16, %17 : vector<1x4x4x4xf32>
    %19 = vector.extract_strided_slice %3 {offsets = [0, 0, 0, 0], sizes = [1, 4, 4, 4], strides = [1, 1, 1, 1]} : vector<1x5x5x4xf32> to vector<1x4x4x4xf32>
    %20 = arith.addf %18, %19 : vector<1x4x4x4xf32>
    %c0_15 = arith.constant 0 : index
    %c0_16 = arith.constant 0 : index
    %c0_17 = arith.constant 0 : index
    %c0_18 = arith.constant 0 : index
    %21 = vector.load %arg5[%c0_15, %c0_16, %c0_17, %c0_18] : memref<1x4x4x4xf32, #tpu.memory_space<vmem>>, vector<1x4x4x4xf32>
    %22 = arith.mulf %20, %21 : vector<1x4x4x4xf32>
    %c0_19 = arith.constant 0 : index
    %c0_20 = arith.constant 0 : index
    %c0_21 = arith.constant 0 : index
    %c0_22 = arith.constant 0 : index
    %23 = vector.load %arg6[%c0_19, %c0_20, %c0_21, %c0_22] : memref<1x4x4x4xf32, #tpu.memory_space<vmem>>, vector<1x4x4x4xf32>
    tpu.vector_store %arg6[%c0_19, %c0_20, %c0_21, %c0_22], %22 {strides = array<i32>} : memref<1x4x4x4xf32, #tpu.memory_space<vmem>>, vector<1x4x4x4xf32>,
    return
  }
  func.func @transform_0(%arg0: i32) -> (i32, i32, i32, i32) {
    %c0_i32 = arith.constant 0 : i32
    %c0_i32_0 = arith.constant 0 : i32
    %c0_i32_1 = arith.constant 0 : i32
    %c0_i32_2 = arith.constant 0 : i32
    return %arg0, %c0_i32, %c0_i32_0, %c0_i32_1 : i32, i32, i32, i32
  }
  func.func @transform_1(%arg0: i32) -> (i32, i32, i32, i32) {
    %c0_i32 = arith.constant 0 : i32
    %c0_i32_0 = arith.constant 0 : i32
    %c0_i32_1 = arith.constant 0 : i32
    %c0_i32_2 = arith.constant 0 : i32
    return %arg0, %c0_i32, %c0_i32_0, %c0_i32_1 : i32, i32, i32, i32
  }
  func.func @transform_2(%arg0: i32) -> (i32, i32, i32, i32) {
    %c0_i32 = arith.constant 0 : i32
    %c0_i32_0 = arith.constant 0 : i32
    %c0_i32_1 = arith.constant 0 : i32
    %c0_i32_2 = arith.constant 0 : i32
    return %arg0, %c0_i32, %c0_i32_0, %c0_i32_1 : i32, i32, i32, i32
  }
  func.func @transform_3(%arg0: i32) -> (i32, i32, i32, i32) {
    %c0_i32 = arith.constant 0 : i32
    %c0_i32_0 = arith.constant 0 : i32
    %c0_i32_1 = arith.constant 0 : i32
    %c0_i32_2 = arith.constant 0 : i32
    return %arg0, %c0_i32, %c0_i32_0, %c0_i32_1 : i32, i32, i32, i32
  }
  func.func @transform_4(%arg0: i32) -> (i32, i32, i32, i32) {
    %c0_i32 = arith.constant 0 : i32
    %c0_i32_0 = arith.constant 0 : i32
    %c0_i32_1 = arith.constant 0 : i32
    %c0_i32_2 = arith.constant 0 : i32
    %c0_i32_3 = arith.constant 0 : i32
    return %c0_i32, %c0_i32_0, %c0_i32_1, %c0_i32_2 : i32, i32, i32, i32
  }
  func.func @transform_5(%arg0: i32) -> (i32, i32, i32, i32) {
    %c0_i32 = arith.constant 0 : i32
    %c0_i32_0 = arith.constant 0 : i32
    %c0_i32_1 = arith.constant 0 : i32
    %c0_i32_2 = arith.constant 0 : i32
    return %arg0, %c0_i32, %c0_i32_0, %c0_i32_1 : i32, i32, i32, i32
  }
}

module attributes {stable_mosaic.version = 11 : i64} {
  func.func @_mm_bias_act_kernel(%arg0: i32, %arg1: i32, %arg2: i32, %arg3: memref<18x128xbf16, #tpu.memory_space<vmem>>, %arg4: memref<128x8xbf16, #tpu.memory_space<vmem>>, %arg5: memref<1x8xf32, #tpu.memory_space<vmem>>, %arg6: memref<18x8xf32, #tpu.memory_space<vmem>>, %arg7: memref<18x8xf32, #tpu.memory_space<vmem>>) attributes {dimension_semantics = [#tpu.dimension_semantics<parallel>, #tpu.dimension_semantics<parallel>, #tpu.dimension_semantics<arbitrary>], iteration_bounds = array<i64: 1, 1, 1>, scalar_prefetch = 0 : i64, scratch_operands = 1 : i64, tpu.core_type = #tpu.core_type<tc>, window_params = [{transform_indices = @transform_0, window_bounds = array<i64: 18, 128>}, {transform_indices = @transform_1, window_bounds = array<i64: 128, 8>}, {transform_indices = @transform_2, window_bounds = array<i64: 1, 8>}, {transform_indices = @transform_3, window_bounds = array<i64: 18, 8>}]} {
    %c0_i32 = arith.constant 0 : i32
    %0 = arith.cmpi eq, %arg2, %c0_i32 : i32
    %1 = arith.extui %0 : i1 to i32
    %c0_i32_0 = arith.constant 0 : i32
    %2 = arith.cmpi ne, %1, %c0_i32_0 : i32
    scf.if %2 {
      %cst_10 = arith.constant 0.000000e+00 : f32
      %12 = vector.broadcast %cst_10 : f32 to vector<18x8xf32>
      %c0_11 = arith.constant 0 : index
      %c0_12 = arith.constant 0 : index
      %13 = vector.load %arg7[%c0_11, %c0_12] : memref<18x8xf32, #tpu.memory_space<vmem>>, vector<18x8xf32>
      tpu.vector_store %arg7[%c0_11, %c0_12], %12 {strides = array<i32>} : memref<18x8xf32, #tpu.memory_space<vmem>>, vector<18x8xf32>,
    } else {
    }
    %c0 = arith.constant 0 : index
    %c0_1 = arith.constant 0 : index
    %3 = vector.load %arg7[%c0, %c0_1] : memref<18x8xf32, #tpu.memory_space<vmem>>, vector<18x8xf32>
    %c0_2 = arith.constant 0 : index
    %c0_3 = arith.constant 0 : index
    %4 = vector.load %arg3[%c0_2, %c0_3] : memref<18x128xbf16, #tpu.memory_space<vmem>>, vector<18x128xbf16>
    %c0_4 = arith.constant 0 : index
    %c0_5 = arith.constant 0 : index
    %5 = vector.load %arg4[%c0_4, %c0_5] : memref<128x8xbf16, #tpu.memory_space<vmem>>, vector<128x8xbf16>
    %cst = arith.constant dense<0.000000e+00> : vector<18x8xf32>
    %6 = tpu.matmul %4, %5, %cst {dimension_numbers = #tpu.dot_dimension_numbers<[1], [0], [0], [1], [0, 0, 1, 1], [], []>} : vector<18x128xbf16>, vector<128x8xbf16>, vector<18x8xf32> -> vector<18x8xf32>
    %7 = arith.addf %3, %6 : vector<18x8xf32>
    %c0_6 = arith.constant 0 : index
    %c0_7 = arith.constant 0 : index
    %8 = vector.load %arg7[%c0_6, %c0_7] : memref<18x8xf32, #tpu.memory_space<vmem>>, vector<18x8xf32>
    tpu.vector_store %arg7[%c0_6, %c0_7], %7 {strides = array<i32>} : memref<18x8xf32, #tpu.memory_space<vmem>>, vector<18x8xf32>,
    %c0_i32_8 = arith.constant 0 : i32
    %9 = arith.cmpi eq, %arg2, %c0_i32_8 : i32
    %10 = arith.extui %9 : i1 to i32
    %c0_i32_9 = arith.constant 0 : i32
    %11 = arith.cmpi ne, %10, %c0_i32_9 : i32
    scf.if %11 {
      %c0_10 = arith.constant 0 : index
      %c0_11 = arith.constant 0 : index
      %12 = vector.load %arg7[%c0_10, %c0_11] : memref<18x8xf32, #tpu.memory_space<vmem>>, vector<18x8xf32>
      %c0_12 = arith.constant 0 : index
      %c0_13 = arith.constant 0 : index
      %13 = vector.load %arg5[%c0_12, %c0_13] : memref<1x8xf32, #tpu.memory_space<vmem>>, vector<1x8xf32>
      %14 = vector.broadcast %13 : vector<1x8xf32> to vector<18x8xf32>
      %15 = arith.addf %12, %14 : vector<18x8xf32>
      %cst_14 = arith.constant 0.000000e+00 : f32
      %16 = vector.broadcast %cst_14 : f32 to vector<18x8xf32>
      %17 = arith.cmpf oge, %15, %16 : vector<18x8xf32>
      %cst_15 = arith.constant 2.000000e-01 : f32
      %18 = vector.broadcast %cst_15 : f32 to vector<18x8xf32>
      %19 = arith.mulf %15, %18 : vector<18x8xf32>
      %20 = arith.select %17, %15, %19 : vector<18x8xi1>, vector<18x8xf32>
      %c0_16 = arith.constant 0 : index
      %c0_17 = arith.constant 0 : index
      %21 = vector.load %arg6[%c0_16, %c0_17] : memref<18x8xf32, #tpu.memory_space<vmem>>, vector<18x8xf32>
      tpu.vector_store %arg6[%c0_16, %c0_17], %20 {strides = array<i32>} : memref<18x8xf32, #tpu.memory_space<vmem>>, vector<18x8xf32>,
    } else {
    }
    return
  }
  func.func @transform_0(%arg0: i32, %arg1: i32, %arg2: i32) -> (i32, i32) {
    %c0_i32 = arith.constant 0 : i32
    return %arg0, %arg2 : i32, i32
  }
  func.func @transform_1(%arg0: i32, %arg1: i32, %arg2: i32) -> (i32, i32) {
    %c0_i32 = arith.constant 0 : i32
    return %arg2, %arg1 : i32, i32
  }
  func.func @transform_2(%arg0: i32, %arg1: i32, %arg2: i32) -> (i32, i32) {
    %c0_i32 = arith.constant 0 : i32
    %c0_i32_0 = arith.constant 0 : i32
    return %c0_i32, %arg1 : i32, i32
  }
  func.func @transform_3(%arg0: i32, %arg1: i32, %arg2: i32) -> (i32, i32) {
    %c0_i32 = arith.constant 0 : i32
    return %arg0, %arg1 : i32, i32
  }
}

module attributes {stable_mosaic.version = 11 : i64} {
  func.func @_mm_bias_act_kernel(%arg0: i32, %arg1: i32, %arg2: i32, %arg3: memref<8x128xbf16, #tpu.memory_space<vmem>>, %arg4: memref<128x16xbf16, #tpu.memory_space<vmem>>, %arg5: memref<1x16xf32, #tpu.memory_space<vmem>>, %arg6: memref<8x16xf32, #tpu.memory_space<vmem>>, %arg7: memref<8x16xf32, #tpu.memory_space<vmem>>) attributes {dimension_semantics = [#tpu.dimension_semantics<parallel>, #tpu.dimension_semantics<parallel>, #tpu.dimension_semantics<arbitrary>], iteration_bounds = array<i64: 1, 1, 1>, scalar_prefetch = 0 : i64, scratch_operands = 1 : i64, tpu.core_type = #tpu.core_type<tc>, window_params = [{transform_indices = @transform_0, window_bounds = array<i64: 8, 128>}, {transform_indices = @transform_1, window_bounds = array<i64: 128, 16>}, {transform_indices = @transform_2, window_bounds = array<i64: 1, 16>}, {transform_indices = @transform_3, window_bounds = array<i64: 8, 16>}]} {
    %c0_i32 = arith.constant 0 : i32
    %0 = arith.cmpi eq, %arg2, %c0_i32 : i32
    %1 = arith.extui %0 : i1 to i32
    %c0_i32_0 = arith.constant 0 : i32
    %2 = arith.cmpi ne, %1, %c0_i32_0 : i32
    scf.if %2 {
      %cst_10 = arith.constant 0.000000e+00 : f32
      %12 = vector.broadcast %cst_10 : f32 to vector<8x16xf32>
      %c0_11 = arith.constant 0 : index
      %c0_12 = arith.constant 0 : index
      %13 = vector.load %arg7[%c0_11, %c0_12] : memref<8x16xf32, #tpu.memory_space<vmem>>, vector<8x16xf32>
      tpu.vector_store %arg7[%c0_11, %c0_12], %12 {strides = array<i32>} : memref<8x16xf32, #tpu.memory_space<vmem>>, vector<8x16xf32>,
    } else {
    }
    %c0 = arith.constant 0 : index
    %c0_1 = arith.constant 0 : index
    %3 = vector.load %arg7[%c0, %c0_1] : memref<8x16xf32, #tpu.memory_space<vmem>>, vector<8x16xf32>
    %c0_2 = arith.constant 0 : index
    %c0_3 = arith.constant 0 : index
    %4 = vector.load %arg3[%c0_2, %c0_3] : memref<8x128xbf16, #tpu.memory_space<vmem>>, vector<8x128xbf16>
    %c0_4 = arith.constant 0 : index
    %c0_5 = arith.constant 0 : index
    %5 = vector.load %arg4[%c0_4, %c0_5] : memref<128x16xbf16, #tpu.memory_space<vmem>>, vector<128x16xbf16>
    %cst = arith.constant dense<0.000000e+00> : vector<8x16xf32>
    %6 = tpu.matmul %4, %5, %cst {dimension_numbers = #tpu.dot_dimension_numbers<[1], [0], [0], [1], [0, 0, 1, 1], [], []>} : vector<8x128xbf16>, vector<128x16xbf16>, vector<8x16xf32> -> vector<8x16xf32>
    %7 = arith.addf %3, %6 : vector<8x16xf32>
    %c0_6 = arith.constant 0 : index
    %c0_7 = arith.constant 0 : index
    %8 = vector.load %arg7[%c0_6, %c0_7] : memref<8x16xf32, #tpu.memory_space<vmem>>, vector<8x16xf32>
    tpu.vector_store %arg7[%c0_6, %c0_7], %7 {strides = array<i32>} : memref<8x16xf32, #tpu.memory_space<vmem>>, vector<8x16xf32>,
    %c0_i32_8 = arith.constant 0 : i32
    %9 = arith.cmpi eq, %arg2, %c0_i32_8 : i32
    %10 = arith.extui %9 : i1 to i32
    %c0_i32_9 = arith.constant 0 : i32
    %11 = arith.cmpi ne, %10, %c0_i32_9 : i32
    scf.if %11 {
      %c0_10 = arith.constant 0 : index
      %c0_11 = arith.constant 0 : index
      %12 = vector.load %arg7[%c0_10, %c0_11] : memref<8x16xf32, #tpu.memory_space<vmem>>, vector<8x16xf32>
      %c0_12 = arith.constant 0 : index
      %c0_13 = arith.constant 0 : index
      %13 = vector.load %arg5[%c0_12, %c0_13] : memref<1x16xf32, #tpu.memory_space<vmem>>, vector<1x16xf32>
      %14 = vector.broadcast %13 : vector<1x16xf32> to vector<8x16xf32>
      %15 = arith.addf %12, %14 : vector<8x16xf32>
      %c0_14 = arith.constant 0 : index
      %c0_15 = arith.constant 0 : index
      %16 = vector.load %arg6[%c0_14, %c0_15] : memref<8x16xf32, #tpu.memory_space<vmem>>, vector<8x16xf32>
      tpu.vector_store %arg6[%c0_14, %c0_15], %15 {strides = array<i32>} : memref<8x16xf32, #tpu.memory_space<vmem>>, vector<8x16xf32>,
    } else {
    }
    return
  }
  func.func @transform_0(%arg0: i32, %arg1: i32, %arg2: i32) -> (i32, i32) {
    %c0_i32 = arith.constant 0 : i32
    return %arg0, %arg2 : i32, i32
  }
  func.func @transform_1(%arg0: i32, %arg1: i32, %arg2: i32) -> (i32, i32) {
    %c0_i32 = arith.constant 0 : i32
    return %arg2, %arg1 : i32, i32
  }
  func.func @transform_2(%arg0: i32, %arg1: i32, %arg2: i32) -> (i32, i32) {
    %c0_i32 = arith.constant 0 : i32
    %c0_i32_0 = arith.constant 0 : i32
    return %c0_i32, %arg1 : i32, i32
  }
  func.func @transform_3(%arg0: i32, %arg1: i32, %arg2: i32) -> (i32, i32) {
    %c0_i32 = arith.constant 0 : i32
    return %arg0, %arg1 : i32, i32
  }
}

module attributes {stable_mosaic.version = 11 : i64} {
  func.func @_bn_stats_kernel(%arg0: i32, %arg1: memref<8x16xf32, #tpu.memory_space<vmem>>, %arg2: memref<1x16xf32, #tpu.memory_space<vmem>>, %arg3: memref<1x16xf32, #tpu.memory_space<vmem>>) attributes {dimension_semantics = [#tpu.dimension_semantics<arbitrary>], iteration_bounds = array<i64: 1>, scalar_prefetch = 0 : i64, scratch_operands = 0 : i64, tpu.core_type = #tpu.core_type<tc>, window_params = [{transform_indices = @transform_0, window_bounds = array<i64: 8, 16>}, {pipeline_mode = #tpu.pipeline_mode<synchronous>, transform_indices = @transform_1, window_bounds = array<i64: 1, 16>}, {pipeline_mode = #tpu.pipeline_mode<synchronous>, transform_indices = @transform_2, window_bounds = array<i64: 1, 16>}]} {
    %c0_i32 = arith.constant 0 : i32
    %0 = arith.cmpi eq, %arg0, %c0_i32 : i32
    %1 = arith.extui %0 : i1 to i32
    %c0_i32_0 = arith.constant 0 : i32
    %2 = arith.cmpi ne, %1, %c0_i32_0 : i32
    scf.if %2 {
      %cst_13 = arith.constant 0.000000e+00 : f32
      %23 = vector.broadcast %cst_13 : f32 to vector<1x16xf32>
      %c0_14 = arith.constant 0 : index
      %c0_15 = arith.constant 0 : index
      %24 = vector.load %arg2[%c0_14, %c0_15] : memref<1x16xf32, #tpu.memory_space<vmem>>, vector<1x16xf32>
      tpu.vector_store %arg2[%c0_14, %c0_15], %23 {strides = array<i32>} : memref<1x16xf32, #tpu.memory_space<vmem>>, vector<1x16xf32>,
      %cst_16 = arith.constant 0.000000e+00 : f32
      %25 = vector.broadcast %cst_16 : f32 to vector<1x16xf32>
      %c0_17 = arith.constant 0 : index
      %c0_18 = arith.constant 0 : index
      %26 = vector.load %arg3[%c0_17, %c0_18] : memref<1x16xf32, #tpu.memory_space<vmem>>, vector<1x16xf32>
      tpu.vector_store %arg3[%c0_17, %c0_18], %25 {strides = array<i32>} : memref<1x16xf32, #tpu.memory_space<vmem>>, vector<1x16xf32>,
    } else {
    }
    %c0 = arith.constant 0 : index
    %c0_1 = arith.constant 0 : index
    %3 = vector.load %arg1[%c0, %c0_1] : memref<8x16xf32, #tpu.memory_space<vmem>>, vector<8x16xf32>
    %c8_i32 = arith.constant 8 : i32
    %4 = arith.muli %arg0, %c8_i32 : i32
    %5 = tpu.iota {dimensions = array<i32: 0>} : vector<8x16xi32>
    %6 = vector.broadcast %4 : i32 to vector<8x16xi32>
    %7 = arith.addi %6, %5 : vector<8x16xi32>
    %c8_i32_2 = arith.constant 8 : i32
    %8 = vector.broadcast %c8_i32_2 : i32 to vector<8x16xi32>
    %9 = arith.cmpi slt, %7, %8 : vector<8x16xi32>
    %cst = arith.constant 0.000000e+00 : f32
    %10 = vector.broadcast %cst : f32 to vector<8x16xf32>
    %11 = arith.select %9, %3, %10 : vector<8x16xi1>, vector<8x16xf32>
    %c0_3 = arith.constant 0 : index
    %c0_4 = arith.constant 0 : index
    %12 = vector.load %arg2[%c0_3, %c0_4] : memref<1x16xf32, #tpu.memory_space<vmem>>, vector<1x16xf32>
    %cst_5 = arith.constant dense<0.000000e+00> : vector<16xf32>
    %13 = vector.multi_reduction <add>, %11, %cst_5 [0] : vector<8x16xf32> to vector<16xf32>
    %14 = vector.shape_cast %13 : vector<16xf32> to vector<1x16xf32>
    %15 = arith.addf %12, %14 : vector<1x16xf32>
    %c0_6 = arith.constant 0 : index
    %c0_7 = arith.constant 0 : index
    %16 = vector.load %arg2[%c0_6, %c0_7] : memref<1x16xf32, #tpu.memory_space<vmem>>, vector<1x16xf32>
    tpu.vector_store %arg2[%c0_6, %c0_7], %15 {strides = array<i32>} : memref<1x16xf32, #tpu.memory_space<vmem>>, vector<1x16xf32>,
    %c0_8 = arith.constant 0 : index
    %c0_9 = arith.constant 0 : index
    %17 = vector.load %arg3[%c0_8, %c0_9] : memref<1x16xf32, #tpu.memory_space<vmem>>, vector<1x16xf32>
    %18 = arith.mulf %11, %11 : vector<8x16xf32>
    %cst_10 = arith.constant dense<0.000000e+00> : vector<16xf32>
    %19 = vector.multi_reduction <add>, %18, %cst_10 [0] : vector<8x16xf32> to vector<16xf32>
    %20 = vector.shape_cast %19 : vector<16xf32> to vector<1x16xf32>
    %21 = arith.addf %17, %20 : vector<1x16xf32>
    %c0_11 = arith.constant 0 : index
    %c0_12 = arith.constant 0 : index
    %22 = vector.load %arg3[%c0_11, %c0_12] : memref<1x16xf32, #tpu.memory_space<vmem>>, vector<1x16xf32>
    tpu.vector_store %arg3[%c0_11, %c0_12], %21 {strides = array<i32>} : memref<1x16xf32, #tpu.memory_space<vmem>>, vector<1x16xf32>,
    return
  }
  func.func @transform_0(%arg0: i32) -> (i32, i32) {
    %c0_i32 = arith.constant 0 : i32
    %c0_i32_0 = arith.constant 0 : i32
    return %arg0, %c0_i32 : i32, i32
  }
  func.func @transform_1(%arg0: i32) -> (i32, i32) {
    %c0_i32 = arith.constant 0 : i32
    %c0_i32_0 = arith.constant 0 : i32
    %c0_i32_1 = arith.constant 0 : i32
    return %c0_i32, %c0_i32_0 : i32, i32
  }
  func.func @transform_2(%arg0: i32) -> (i32, i32) {
    %c0_i32 = arith.constant 0 : i32
    %c0_i32_0 = arith.constant 0 : i32
    %c0_i32_1 = arith.constant 0 : i32
    return %c0_i32, %c0_i32_0 : i32, i32
  }
}

module attributes {stable_mosaic.version = 11 : i64} {
  func.func @_affine_lrelu_kernel(%arg0: i32, %arg1: memref<8x16xf32, #tpu.memory_space<vmem>>, %arg2: memref<1x16xf32, #tpu.memory_space<vmem>>, %arg3: memref<1x16xf32, #tpu.memory_space<vmem>>, %arg4: memref<8x16xf32, #tpu.memory_space<vmem>>) attributes {dimension_semantics = [#tpu.dimension_semantics<parallel>], iteration_bounds = array<i64: 1>, scalar_prefetch = 0 : i64, scratch_operands = 0 : i64, tpu.core_type = #tpu.core_type<tc>, window_params = [{transform_indices = @transform_0, window_bounds = array<i64: 8, 16>}, {pipeline_mode = #tpu.pipeline_mode<synchronous>, transform_indices = @transform_1, window_bounds = array<i64: 1, 16>}, {pipeline_mode = #tpu.pipeline_mode<synchronous>, transform_indices = @transform_2, window_bounds = array<i64: 1, 16>}, {transform_indices = @transform_3, window_bounds = array<i64: 8, 16>}]} {
    %c0 = arith.constant 0 : index
    %c0_0 = arith.constant 0 : index
    %0 = vector.load %arg1[%c0, %c0_0] : memref<8x16xf32, #tpu.memory_space<vmem>>, vector<8x16xf32>
    %c0_1 = arith.constant 0 : index
    %c0_2 = arith.constant 0 : index
    %1 = vector.load %arg2[%c0_1, %c0_2] : memref<1x16xf32, #tpu.memory_space<vmem>>, vector<1x16xf32>
    %2 = vector.broadcast %1 : vector<1x16xf32> to vector<8x16xf32>
    %3 = arith.mulf %0, %2 : vector<8x16xf32>
    %c0_3 = arith.constant 0 : index
    %c0_4 = arith.constant 0 : index
    %4 = vector.load %arg3[%c0_3, %c0_4] : memref<1x16xf32, #tpu.memory_space<vmem>>, vector<1x16xf32>
    %5 = vector.broadcast %4 : vector<1x16xf32> to vector<8x16xf32>
    %6 = arith.addf %3, %5 : vector<8x16xf32>
    %cst = arith.constant 0.000000e+00 : f32
    %7 = vector.broadcast %cst : f32 to vector<8x16xf32>
    %8 = arith.cmpf oge, %6, %7 : vector<8x16xf32>
    %cst_5 = arith.constant 2.000000e-01 : f32
    %9 = vector.broadcast %cst_5 : f32 to vector<8x16xf32>
    %10 = arith.mulf %6, %9 : vector<8x16xf32>
    %11 = arith.select %8, %6, %10 : vector<8x16xi1>, vector<8x16xf32>
    %c0_6 = arith.constant 0 : index
    %c0_7 = arith.constant 0 : index
    %12 = vector.load %arg4[%c0_6, %c0_7] : memref<8x16xf32, #tpu.memory_space<vmem>>, vector<8x16xf32>
    tpu.vector_store %arg4[%c0_6, %c0_7], %11 {strides = array<i32>} : memref<8x16xf32, #tpu.memory_space<vmem>>, vector<8x16xf32>,
    return
  }
  func.func @transform_0(%arg0: i32) -> (i32, i32) {
    %c0_i32 = arith.constant 0 : i32
    %c0_i32_0 = arith.constant 0 : i32
    return %arg0, %c0_i32 : i32, i32
  }
  func.func @transform_1(%arg0: i32) -> (i32, i32) {
    %c0_i32 = arith.constant 0 : i32
    %c0_i32_0 = arith.constant 0 : i32
    %c0_i32_1 = arith.constant 0 : i32
    return %c0_i32, %c0_i32_0 : i32, i32
  }
  func.func @transform_2(%arg0: i32) -> (i32, i32) {
    %c0_i32 = arith.constant 0 : i32
    %c0_i32_0 = arith.constant 0 : i32
    %c0_i32_1 = arith.constant 0 : i32
    return %c0_i32, %c0_i32_0 : i32, i32
  }
  func.func @transform_3(%arg0: i32) -> (i32, i32) {
    %c0_i32 = arith.constant 0 : i32
    %c0_i32_0 = arith.constant 0 : i32
    return %arg0, %c0_i32 : i32, i32
  }
}

module attributes {stable_mosaic.version = 11 : i64} {
  func.func @_mm_bias_act_kernel(%arg0: i32, %arg1: i32, %arg2: i32, %arg3: memref<8x256xbf16, #tpu.memory_space<vmem>>, %arg4: memref<256x32xbf16, #tpu.memory_space<vmem>>, %arg5: memref<1x32xf32, #tpu.memory_space<vmem>>, %arg6: memref<8x32xf32, #tpu.memory_space<vmem>>, %arg7: memref<8x32xf32, #tpu.memory_space<vmem>>) attributes {dimension_semantics = [#tpu.dimension_semantics<parallel>, #tpu.dimension_semantics<parallel>, #tpu.dimension_semantics<arbitrary>], iteration_bounds = array<i64: 1, 1, 1>, scalar_prefetch = 0 : i64, scratch_operands = 1 : i64, tpu.core_type = #tpu.core_type<tc>, window_params = [{transform_indices = @transform_0, window_bounds = array<i64: 8, 256>}, {transform_indices = @transform_1, window_bounds = array<i64: 256, 32>}, {transform_indices = @transform_2, window_bounds = array<i64: 1, 32>}, {transform_indices = @transform_3, window_bounds = array<i64: 8, 32>}]} {
    %c0_i32 = arith.constant 0 : i32
    %0 = arith.cmpi eq, %arg2, %c0_i32 : i32
    %1 = arith.extui %0 : i1 to i32
    %c0_i32_0 = arith.constant 0 : i32
    %2 = arith.cmpi ne, %1, %c0_i32_0 : i32
    scf.if %2 {
      %cst_10 = arith.constant 0.000000e+00 : f32
      %12 = vector.broadcast %cst_10 : f32 to vector<8x32xf32>
      %c0_11 = arith.constant 0 : index
      %c0_12 = arith.constant 0 : index
      %13 = vector.load %arg7[%c0_11, %c0_12] : memref<8x32xf32, #tpu.memory_space<vmem>>, vector<8x32xf32>
      tpu.vector_store %arg7[%c0_11, %c0_12], %12 {strides = array<i32>} : memref<8x32xf32, #tpu.memory_space<vmem>>, vector<8x32xf32>,
    } else {
    }
    %c0 = arith.constant 0 : index
    %c0_1 = arith.constant 0 : index
    %3 = vector.load %arg7[%c0, %c0_1] : memref<8x32xf32, #tpu.memory_space<vmem>>, vector<8x32xf32>
    %c0_2 = arith.constant 0 : index
    %c0_3 = arith.constant 0 : index
    %4 = vector.load %arg3[%c0_2, %c0_3] : memref<8x256xbf16, #tpu.memory_space<vmem>>, vector<8x256xbf16>
    %c0_4 = arith.constant 0 : index
    %c0_5 = arith.constant 0 : index
    %5 = vector.load %arg4[%c0_4, %c0_5] : memref<256x32xbf16, #tpu.memory_space<vmem>>, vector<256x32xbf16>
    %cst = arith.constant dense<0.000000e+00> : vector<8x32xf32>
    %6 = tpu.matmul %4, %5, %cst {dimension_numbers = #tpu.dot_dimension_numbers<[1], [0], [0], [1], [0, 0, 1, 1], [], []>} : vector<8x256xbf16>, vector<256x32xbf16>, vector<8x32xf32> -> vector<8x32xf32>
    %7 = arith.addf %3, %6 : vector<8x32xf32>
    %c0_6 = arith.constant 0 : index
    %c0_7 = arith.constant 0 : index
    %8 = vector.load %arg7[%c0_6, %c0_7] : memref<8x32xf32, #tpu.memory_space<vmem>>, vector<8x32xf32>
    tpu.vector_store %arg7[%c0_6, %c0_7], %7 {strides = array<i32>} : memref<8x32xf32, #tpu.memory_space<vmem>>, vector<8x32xf32>,
    %c0_i32_8 = arith.constant 0 : i32
    %9 = arith.cmpi eq, %arg2, %c0_i32_8 : i32
    %10 = arith.extui %9 : i1 to i32
    %c0_i32_9 = arith.constant 0 : i32
    %11 = arith.cmpi ne, %10, %c0_i32_9 : i32
    scf.if %11 {
      %c0_10 = arith.constant 0 : index
      %c0_11 = arith.constant 0 : index
      %12 = vector.load %arg7[%c0_10, %c0_11] : memref<8x32xf32, #tpu.memory_space<vmem>>, vector<8x32xf32>
      %c0_12 = arith.constant 0 : index
      %c0_13 = arith.constant 0 : index
      %13 = vector.load %arg5[%c0_12, %c0_13] : memref<1x32xf32, #tpu.memory_space<vmem>>, vector<1x32xf32>
      %14 = vector.broadcast %13 : vector<1x32xf32> to vector<8x32xf32>
      %15 = arith.addf %12, %14 : vector<8x32xf32>
      %c0_14 = arith.constant 0 : index
      %c0_15 = arith.constant 0 : index
      %16 = vector.load %arg6[%c0_14, %c0_15] : memref<8x32xf32, #tpu.memory_space<vmem>>, vector<8x32xf32>
      tpu.vector_store %arg6[%c0_14, %c0_15], %15 {strides = array<i32>} : memref<8x32xf32, #tpu.memory_space<vmem>>, vector<8x32xf32>,
    } else {
    }
    return
  }
  func.func @transform_0(%arg0: i32, %arg1: i32, %arg2: i32) -> (i32, i32) {
    %c0_i32 = arith.constant 0 : i32
    return %arg0, %arg2 : i32, i32
  }
  func.func @transform_1(%arg0: i32, %arg1: i32, %arg2: i32) -> (i32, i32) {
    %c0_i32 = arith.constant 0 : i32
    return %arg2, %arg1 : i32, i32
  }
  func.func @transform_2(%arg0: i32, %arg1: i32, %arg2: i32) -> (i32, i32) {
    %c0_i32 = arith.constant 0 : i32
    %c0_i32_0 = arith.constant 0 : i32
    return %c0_i32, %arg1 : i32, i32
  }
  func.func @transform_3(%arg0: i32, %arg1: i32, %arg2: i32) -> (i32, i32) {
    %c0_i32 = arith.constant 0 : i32
    return %arg0, %arg1 : i32, i32
  }
}

module attributes {stable_mosaic.version = 11 : i64} {
  func.func @_bn_stats_kernel(%arg0: i32, %arg1: memref<8x32xf32, #tpu.memory_space<vmem>>, %arg2: memref<1x32xf32, #tpu.memory_space<vmem>>, %arg3: memref<1x32xf32, #tpu.memory_space<vmem>>) attributes {dimension_semantics = [#tpu.dimension_semantics<arbitrary>], iteration_bounds = array<i64: 1>, scalar_prefetch = 0 : i64, scratch_operands = 0 : i64, tpu.core_type = #tpu.core_type<tc>, window_params = [{transform_indices = @transform_0, window_bounds = array<i64: 8, 32>}, {pipeline_mode = #tpu.pipeline_mode<synchronous>, transform_indices = @transform_1, window_bounds = array<i64: 1, 32>}, {pipeline_mode = #tpu.pipeline_mode<synchronous>, transform_indices = @transform_2, window_bounds = array<i64: 1, 32>}]} {
    %c0_i32 = arith.constant 0 : i32
    %0 = arith.cmpi eq, %arg0, %c0_i32 : i32
    %1 = arith.extui %0 : i1 to i32
    %c0_i32_0 = arith.constant 0 : i32
    %2 = arith.cmpi ne, %1, %c0_i32_0 : i32
    scf.if %2 {
      %cst_13 = arith.constant 0.000000e+00 : f32
      %23 = vector.broadcast %cst_13 : f32 to vector<1x32xf32>
      %c0_14 = arith.constant 0 : index
      %c0_15 = arith.constant 0 : index
      %24 = vector.load %arg2[%c0_14, %c0_15] : memref<1x32xf32, #tpu.memory_space<vmem>>, vector<1x32xf32>
      tpu.vector_store %arg2[%c0_14, %c0_15], %23 {strides = array<i32>} : memref<1x32xf32, #tpu.memory_space<vmem>>, vector<1x32xf32>,
      %cst_16 = arith.constant 0.000000e+00 : f32
      %25 = vector.broadcast %cst_16 : f32 to vector<1x32xf32>
      %c0_17 = arith.constant 0 : index
      %c0_18 = arith.constant 0 : index
      %26 = vector.load %arg3[%c0_17, %c0_18] : memref<1x32xf32, #tpu.memory_space<vmem>>, vector<1x32xf32>
      tpu.vector_store %arg3[%c0_17, %c0_18], %25 {strides = array<i32>} : memref<1x32xf32, #tpu.memory_space<vmem>>, vector<1x32xf32>,
    } else {
    }
    %c0 = arith.constant 0 : index
    %c0_1 = arith.constant 0 : index
    %3 = vector.load %arg1[%c0, %c0_1] : memref<8x32xf32, #tpu.memory_space<vmem>>, vector<8x32xf32>
    %c8_i32 = arith.constant 8 : i32
    %4 = arith.muli %arg0, %c8_i32 : i32
    %5 = tpu.iota {dimensions = array<i32: 0>} : vector<8x32xi32>
    %6 = vector.broadcast %4 : i32 to vector<8x32xi32>
    %7 = arith.addi %6, %5 : vector<8x32xi32>
    %c8_i32_2 = arith.constant 8 : i32
    %8 = vector.broadcast %c8_i32_2 : i32 to vector<8x32xi32>
    %9 = arith.cmpi slt, %7, %8 : vector<8x32xi32>
    %cst = arith.constant 0.000000e+00 : f32
    %10 = vector.broadcast %cst : f32 to vector<8x32xf32>
    %11 = arith.select %9, %3, %10 : vector<8x32xi1>, vector<8x32xf32>
    %c0_3 = arith.constant 0 : index
    %c0_4 = arith.constant 0 : index
    %12 = vector.load %arg2[%c0_3, %c0_4] : memref<1x32xf32, #tpu.memory_space<vmem>>, vector<1x32xf32>
    %cst_5 = arith.constant dense<0.000000e+00> : vector<32xf32>
    %13 = vector.multi_reduction <add>, %11, %cst_5 [0] : vector<8x32xf32> to vector<32xf32>
    %14 = vector.shape_cast %13 : vector<32xf32> to vector<1x32xf32>
    %15 = arith.addf %12, %14 : vector<1x32xf32>
    %c0_6 = arith.constant 0 : index
    %c0_7 = arith.constant 0 : index
    %16 = vector.load %arg2[%c0_6, %c0_7] : memref<1x32xf32, #tpu.memory_space<vmem>>, vector<1x32xf32>
    tpu.vector_store %arg2[%c0_6, %c0_7], %15 {strides = array<i32>} : memref<1x32xf32, #tpu.memory_space<vmem>>, vector<1x32xf32>,
    %c0_8 = arith.constant 0 : index
    %c0_9 = arith.constant 0 : index
    %17 = vector.load %arg3[%c0_8, %c0_9] : memref<1x32xf32, #tpu.memory_space<vmem>>, vector<1x32xf32>
    %18 = arith.mulf %11, %11 : vector<8x32xf32>
    %cst_10 = arith.constant dense<0.000000e+00> : vector<32xf32>
    %19 = vector.multi_reduction <add>, %18, %cst_10 [0] : vector<8x32xf32> to vector<32xf32>
    %20 = vector.shape_cast %19 : vector<32xf32> to vector<1x32xf32>
    %21 = arith.addf %17, %20 : vector<1x32xf32>
    %c0_11 = arith.constant 0 : index
    %c0_12 = arith.constant 0 : index
    %22 = vector.load %arg3[%c0_11, %c0_12] : memref<1x32xf32, #tpu.memory_space<vmem>>, vector<1x32xf32>
    tpu.vector_store %arg3[%c0_11, %c0_12], %21 {strides = array<i32>} : memref<1x32xf32, #tpu.memory_space<vmem>>, vector<1x32xf32>,
    return
  }
  func.func @transform_0(%arg0: i32) -> (i32, i32) {
    %c0_i32 = arith.constant 0 : i32
    %c0_i32_0 = arith.constant 0 : i32
    return %arg0, %c0_i32 : i32, i32
  }
  func.func @transform_1(%arg0: i32) -> (i32, i32) {
    %c0_i32 = arith.constant 0 : i32
    %c0_i32_0 = arith.constant 0 : i32
    %c0_i32_1 = arith.constant 0 : i32
    return %c0_i32, %c0_i32_0 : i32, i32
  }
  func.func @transform_2(%arg0: i32) -> (i32, i32) {
    %c0_i32 = arith.constant 0 : i32
    %c0_i32_0 = arith.constant 0 : i32
    %c0_i32_1 = arith.constant 0 : i32
    return %c0_i32, %c0_i32_0 : i32, i32
  }
}

module attributes {stable_mosaic.version = 11 : i64} {
  func.func @_affine_lrelu_kernel(%arg0: i32, %arg1: memref<8x32xf32, #tpu.memory_space<vmem>>, %arg2: memref<1x32xf32, #tpu.memory_space<vmem>>, %arg3: memref<1x32xf32, #tpu.memory_space<vmem>>, %arg4: memref<8x32xf32, #tpu.memory_space<vmem>>) attributes {dimension_semantics = [#tpu.dimension_semantics<parallel>], iteration_bounds = array<i64: 1>, scalar_prefetch = 0 : i64, scratch_operands = 0 : i64, tpu.core_type = #tpu.core_type<tc>, window_params = [{transform_indices = @transform_0, window_bounds = array<i64: 8, 32>}, {pipeline_mode = #tpu.pipeline_mode<synchronous>, transform_indices = @transform_1, window_bounds = array<i64: 1, 32>}, {pipeline_mode = #tpu.pipeline_mode<synchronous>, transform_indices = @transform_2, window_bounds = array<i64: 1, 32>}, {transform_indices = @transform_3, window_bounds = array<i64: 8, 32>}]} {
    %c0 = arith.constant 0 : index
    %c0_0 = arith.constant 0 : index
    %0 = vector.load %arg1[%c0, %c0_0] : memref<8x32xf32, #tpu.memory_space<vmem>>, vector<8x32xf32>
    %c0_1 = arith.constant 0 : index
    %c0_2 = arith.constant 0 : index
    %1 = vector.load %arg2[%c0_1, %c0_2] : memref<1x32xf32, #tpu.memory_space<vmem>>, vector<1x32xf32>
    %2 = vector.broadcast %1 : vector<1x32xf32> to vector<8x32xf32>
    %3 = arith.mulf %0, %2 : vector<8x32xf32>
    %c0_3 = arith.constant 0 : index
    %c0_4 = arith.constant 0 : index
    %4 = vector.load %arg3[%c0_3, %c0_4] : memref<1x32xf32, #tpu.memory_space<vmem>>, vector<1x32xf32>
    %5 = vector.broadcast %4 : vector<1x32xf32> to vector<8x32xf32>
    %6 = arith.addf %3, %5 : vector<8x32xf32>
    %cst = arith.constant 0.000000e+00 : f32
    %7 = vector.broadcast %cst : f32 to vector<8x32xf32>
    %8 = arith.cmpf oge, %6, %7 : vector<8x32xf32>
    %cst_5 = arith.constant 2.000000e-01 : f32
    %9 = vector.broadcast %cst_5 : f32 to vector<8x32xf32>
    %10 = arith.mulf %6, %9 : vector<8x32xf32>
    %11 = arith.select %8, %6, %10 : vector<8x32xi1>, vector<8x32xf32>
    %c0_6 = arith.constant 0 : index
    %c0_7 = arith.constant 0 : index
    %12 = vector.load %arg4[%c0_6, %c0_7] : memref<8x32xf32, #tpu.memory_space<vmem>>, vector<8x32xf32>
    tpu.vector_store %arg4[%c0_6, %c0_7], %11 {strides = array<i32>} : memref<8x32xf32, #tpu.memory_space<vmem>>, vector<8x32xf32>,
    return
  }
  func.func @transform_0(%arg0: i32) -> (i32, i32) {
    %c0_i32 = arith.constant 0 : i32
    %c0_i32_0 = arith.constant 0 : i32
    return %arg0, %c0_i32 : i32, i32
  }
  func.func @transform_1(%arg0: i32) -> (i32, i32) {
    %c0_i32 = arith.constant 0 : i32
    %c0_i32_0 = arith.constant 0 : i32
    %c0_i32_1 = arith.constant 0 : i32
    return %c0_i32, %c0_i32_0 : i32, i32
  }
  func.func @transform_2(%arg0: i32) -> (i32, i32) {
    %c0_i32 = arith.constant 0 : i32
    %c0_i32_0 = arith.constant 0 : i32
    %c0_i32_1 = arith.constant 0 : i32
    return %c0_i32, %c0_i32_0 : i32, i32
  }
  func.func @transform_3(%arg0: i32) -> (i32, i32) {
    %c0_i32 = arith.constant 0 : i32
    %c0_i32_0 = arith.constant 0 : i32
    return %arg0, %c0_i32 : i32, i32
  }
}

module attributes {stable_mosaic.version = 11 : i64} {
  func.func @_mm_bias_act_kernel(%arg0: i32, %arg1: i32, %arg2: i32, %arg3: memref<18x512xbf16, #tpu.memory_space<vmem>>, %arg4: memref<512x64xbf16, #tpu.memory_space<vmem>>, %arg5: memref<1x64xf32, #tpu.memory_space<vmem>>, %arg6: memref<18x64xf32, #tpu.memory_space<vmem>>, %arg7: memref<18x64xf32, #tpu.memory_space<vmem>>) attributes {dimension_semantics = [#tpu.dimension_semantics<parallel>, #tpu.dimension_semantics<parallel>, #tpu.dimension_semantics<arbitrary>], iteration_bounds = array<i64: 1, 1, 1>, scalar_prefetch = 0 : i64, scratch_operands = 1 : i64, tpu.core_type = #tpu.core_type<tc>, window_params = [{transform_indices = @transform_0, window_bounds = array<i64: 18, 512>}, {transform_indices = @transform_1, window_bounds = array<i64: 512, 64>}, {transform_indices = @transform_2, window_bounds = array<i64: 1, 64>}, {transform_indices = @transform_3, window_bounds = array<i64: 18, 64>}]} {
    %c0_i32 = arith.constant 0 : i32
    %0 = arith.cmpi eq, %arg2, %c0_i32 : i32
    %1 = arith.extui %0 : i1 to i32
    %c0_i32_0 = arith.constant 0 : i32
    %2 = arith.cmpi ne, %1, %c0_i32_0 : i32
    scf.if %2 {
      %cst_10 = arith.constant 0.000000e+00 : f32
      %12 = vector.broadcast %cst_10 : f32 to vector<18x64xf32>
      %c0_11 = arith.constant 0 : index
      %c0_12 = arith.constant 0 : index
      %13 = vector.load %arg7[%c0_11, %c0_12] : memref<18x64xf32, #tpu.memory_space<vmem>>, vector<18x64xf32>
      tpu.vector_store %arg7[%c0_11, %c0_12], %12 {strides = array<i32>} : memref<18x64xf32, #tpu.memory_space<vmem>>, vector<18x64xf32>,
    } else {
    }
    %c0 = arith.constant 0 : index
    %c0_1 = arith.constant 0 : index
    %3 = vector.load %arg7[%c0, %c0_1] : memref<18x64xf32, #tpu.memory_space<vmem>>, vector<18x64xf32>
    %c0_2 = arith.constant 0 : index
    %c0_3 = arith.constant 0 : index
    %4 = vector.load %arg3[%c0_2, %c0_3] : memref<18x512xbf16, #tpu.memory_space<vmem>>, vector<18x512xbf16>
    %c0_4 = arith.constant 0 : index
    %c0_5 = arith.constant 0 : index
    %5 = vector.load %arg4[%c0_4, %c0_5] : memref<512x64xbf16, #tpu.memory_space<vmem>>, vector<512x64xbf16>
    %cst = arith.constant dense<0.000000e+00> : vector<18x64xf32>
    %6 = tpu.matmul %4, %5, %cst {dimension_numbers = #tpu.dot_dimension_numbers<[1], [0], [0], [1], [0, 0, 1, 1], [], []>} : vector<18x512xbf16>, vector<512x64xbf16>, vector<18x64xf32> -> vector<18x64xf32>
    %7 = arith.addf %3, %6 : vector<18x64xf32>
    %c0_6 = arith.constant 0 : index
    %c0_7 = arith.constant 0 : index
    %8 = vector.load %arg7[%c0_6, %c0_7] : memref<18x64xf32, #tpu.memory_space<vmem>>, vector<18x64xf32>
    tpu.vector_store %arg7[%c0_6, %c0_7], %7 {strides = array<i32>} : memref<18x64xf32, #tpu.memory_space<vmem>>, vector<18x64xf32>,
    %c0_i32_8 = arith.constant 0 : i32
    %9 = arith.cmpi eq, %arg2, %c0_i32_8 : i32
    %10 = arith.extui %9 : i1 to i32
    %c0_i32_9 = arith.constant 0 : i32
    %11 = arith.cmpi ne, %10, %c0_i32_9 : i32
    scf.if %11 {
      %c0_10 = arith.constant 0 : index
      %c0_11 = arith.constant 0 : index
      %12 = vector.load %arg7[%c0_10, %c0_11] : memref<18x64xf32, #tpu.memory_space<vmem>>, vector<18x64xf32>
      %c0_12 = arith.constant 0 : index
      %c0_13 = arith.constant 0 : index
      %13 = vector.load %arg5[%c0_12, %c0_13] : memref<1x64xf32, #tpu.memory_space<vmem>>, vector<1x64xf32>
      %14 = vector.broadcast %13 : vector<1x64xf32> to vector<18x64xf32>
      %15 = arith.addf %12, %14 : vector<18x64xf32>
      %c0_14 = arith.constant 0 : index
      %c0_15 = arith.constant 0 : index
      %16 = vector.load %arg6[%c0_14, %c0_15] : memref<18x64xf32, #tpu.memory_space<vmem>>, vector<18x64xf32>
      tpu.vector_store %arg6[%c0_14, %c0_15], %15 {strides = array<i32>} : memref<18x64xf32, #tpu.memory_space<vmem>>, vector<18x64xf32>,
    } else {
    }
    return
  }
  func.func @transform_0(%arg0: i32, %arg1: i32, %arg2: i32) -> (i32, i32) {
    %c0_i32 = arith.constant 0 : i32
    return %arg0, %arg2 : i32, i32
  }
  func.func @transform_1(%arg0: i32, %arg1: i32, %arg2: i32) -> (i32, i32) {
    %c0_i32 = arith.constant 0 : i32
    return %arg2, %arg1 : i32, i32
  }
  func.func @transform_2(%arg0: i32, %arg1: i32, %arg2: i32) -> (i32, i32) {
    %c0_i32 = arith.constant 0 : i32
    %c0_i32_0 = arith.constant 0 : i32
    return %c0_i32, %arg1 : i32, i32
  }
  func.func @transform_3(%arg0: i32, %arg1: i32, %arg2: i32) -> (i32, i32) {
    %c0_i32 = arith.constant 0 : i32
    return %arg0, %arg1 : i32, i32
  }
}

module attributes {stable_mosaic.version = 11 : i64} {
  func.func @_bn_stats_kernel(%arg0: i32, %arg1: memref<18x64xf32, #tpu.memory_space<vmem>>, %arg2: memref<1x64xf32, #tpu.memory_space<vmem>>, %arg3: memref<1x64xf32, #tpu.memory_space<vmem>>) attributes {dimension_semantics = [#tpu.dimension_semantics<arbitrary>], iteration_bounds = array<i64: 1>, scalar_prefetch = 0 : i64, scratch_operands = 0 : i64, tpu.core_type = #tpu.core_type<tc>, window_params = [{transform_indices = @transform_0, window_bounds = array<i64: 18, 64>}, {pipeline_mode = #tpu.pipeline_mode<synchronous>, transform_indices = @transform_1, window_bounds = array<i64: 1, 64>}, {pipeline_mode = #tpu.pipeline_mode<synchronous>, transform_indices = @transform_2, window_bounds = array<i64: 1, 64>}]} {
    %c0_i32 = arith.constant 0 : i32
    %0 = arith.cmpi eq, %arg0, %c0_i32 : i32
    %1 = arith.extui %0 : i1 to i32
    %c0_i32_0 = arith.constant 0 : i32
    %2 = arith.cmpi ne, %1, %c0_i32_0 : i32
    scf.if %2 {
      %cst_13 = arith.constant 0.000000e+00 : f32
      %23 = vector.broadcast %cst_13 : f32 to vector<1x64xf32>
      %c0_14 = arith.constant 0 : index
      %c0_15 = arith.constant 0 : index
      %24 = vector.load %arg2[%c0_14, %c0_15] : memref<1x64xf32, #tpu.memory_space<vmem>>, vector<1x64xf32>
      tpu.vector_store %arg2[%c0_14, %c0_15], %23 {strides = array<i32>} : memref<1x64xf32, #tpu.memory_space<vmem>>, vector<1x64xf32>,
      %cst_16 = arith.constant 0.000000e+00 : f32
      %25 = vector.broadcast %cst_16 : f32 to vector<1x64xf32>
      %c0_17 = arith.constant 0 : index
      %c0_18 = arith.constant 0 : index
      %26 = vector.load %arg3[%c0_17, %c0_18] : memref<1x64xf32, #tpu.memory_space<vmem>>, vector<1x64xf32>
      tpu.vector_store %arg3[%c0_17, %c0_18], %25 {strides = array<i32>} : memref<1x64xf32, #tpu.memory_space<vmem>>, vector<1x64xf32>,
    } else {
    }
    %c0 = arith.constant 0 : index
    %c0_1 = arith.constant 0 : index
    %3 = vector.load %arg1[%c0, %c0_1] : memref<18x64xf32, #tpu.memory_space<vmem>>, vector<18x64xf32>
    %c18_i32 = arith.constant 18 : i32
    %4 = arith.muli %arg0, %c18_i32 : i32
    %5 = tpu.iota {dimensions = array<i32: 0>} : vector<18x64xi32>
    %6 = vector.broadcast %4 : i32 to vector<18x64xi32>
    %7 = arith.addi %6, %5 : vector<18x64xi32>
    %c18_i32_2 = arith.constant 18 : i32
    %8 = vector.broadcast %c18_i32_2 : i32 to vector<18x64xi32>
    %9 = arith.cmpi slt, %7, %8 : vector<18x64xi32>
    %cst = arith.constant 0.000000e+00 : f32
    %10 = vector.broadcast %cst : f32 to vector<18x64xf32>
    %11 = arith.select %9, %3, %10 : vector<18x64xi1>, vector<18x64xf32>
    %c0_3 = arith.constant 0 : index
    %c0_4 = arith.constant 0 : index
    %12 = vector.load %arg2[%c0_3, %c0_4] : memref<1x64xf32, #tpu.memory_space<vmem>>, vector<1x64xf32>
    %cst_5 = arith.constant dense<0.000000e+00> : vector<64xf32>
    %13 = vector.multi_reduction <add>, %11, %cst_5 [0] : vector<18x64xf32> to vector<64xf32>
    %14 = vector.shape_cast %13 : vector<64xf32> to vector<1x64xf32>
    %15 = arith.addf %12, %14 : vector<1x64xf32>
    %c0_6 = arith.constant 0 : index
    %c0_7 = arith.constant 0 : index
    %16 = vector.load %arg2[%c0_6, %c0_7] : memref<1x64xf32, #tpu.memory_space<vmem>>, vector<1x64xf32>
    tpu.vector_store %arg2[%c0_6, %c0_7], %15 {strides = array<i32>} : memref<1x64xf32, #tpu.memory_space<vmem>>, vector<1x64xf32>,
    %c0_8 = arith.constant 0 : index
    %c0_9 = arith.constant 0 : index
    %17 = vector.load %arg3[%c0_8, %c0_9] : memref<1x64xf32, #tpu.memory_space<vmem>>, vector<1x64xf32>
    %18 = arith.mulf %11, %11 : vector<18x64xf32>
    %cst_10 = arith.constant dense<0.000000e+00> : vector<64xf32>
    %19 = vector.multi_reduction <add>, %18, %cst_10 [0] : vector<18x64xf32> to vector<64xf32>
    %20 = vector.shape_cast %19 : vector<64xf32> to vector<1x64xf32>
    %21 = arith.addf %17, %20 : vector<1x64xf32>
    %c0_11 = arith.constant 0 : index
    %c0_12 = arith.constant 0 : index
    %22 = vector.load %arg3[%c0_11, %c0_12] : memref<1x64xf32, #tpu.memory_space<vmem>>, vector<1x64xf32>
    tpu.vector_store %arg3[%c0_11, %c0_12], %21 {strides = array<i32>} : memref<1x64xf32, #tpu.memory_space<vmem>>, vector<1x64xf32>,
    return
  }
  func.func @transform_0(%arg0: i32) -> (i32, i32) {
    %c0_i32 = arith.constant 0 : i32
    %c0_i32_0 = arith.constant 0 : i32
    return %arg0, %c0_i32 : i32, i32
  }
  func.func @transform_1(%arg0: i32) -> (i32, i32) {
    %c0_i32 = arith.constant 0 : i32
    %c0_i32_0 = arith.constant 0 : i32
    %c0_i32_1 = arith.constant 0 : i32
    return %c0_i32, %c0_i32_0 : i32, i32
  }
  func.func @transform_2(%arg0: i32) -> (i32, i32) {
    %c0_i32 = arith.constant 0 : i32
    %c0_i32_0 = arith.constant 0 : i32
    %c0_i32_1 = arith.constant 0 : i32
    return %c0_i32, %c0_i32_0 : i32, i32
  }
}

module attributes {stable_mosaic.version = 11 : i64} {
  func.func @_affine_lrelu_kernel(%arg0: i32, %arg1: memref<18x64xf32, #tpu.memory_space<vmem>>, %arg2: memref<1x64xf32, #tpu.memory_space<vmem>>, %arg3: memref<1x64xf32, #tpu.memory_space<vmem>>, %arg4: memref<18x64xf32, #tpu.memory_space<vmem>>) attributes {dimension_semantics = [#tpu.dimension_semantics<parallel>], iteration_bounds = array<i64: 1>, scalar_prefetch = 0 : i64, scratch_operands = 0 : i64, tpu.core_type = #tpu.core_type<tc>, window_params = [{transform_indices = @transform_0, window_bounds = array<i64: 18, 64>}, {pipeline_mode = #tpu.pipeline_mode<synchronous>, transform_indices = @transform_1, window_bounds = array<i64: 1, 64>}, {pipeline_mode = #tpu.pipeline_mode<synchronous>, transform_indices = @transform_2, window_bounds = array<i64: 1, 64>}, {transform_indices = @transform_3, window_bounds = array<i64: 18, 64>}]} {
    %c0 = arith.constant 0 : index
    %c0_0 = arith.constant 0 : index
    %0 = vector.load %arg1[%c0, %c0_0] : memref<18x64xf32, #tpu.memory_space<vmem>>, vector<18x64xf32>
    %c0_1 = arith.constant 0 : index
    %c0_2 = arith.constant 0 : index
    %1 = vector.load %arg2[%c0_1, %c0_2] : memref<1x64xf32, #tpu.memory_space<vmem>>, vector<1x64xf32>
    %2 = vector.broadcast %1 : vector<1x64xf32> to vector<18x64xf32>
    %3 = arith.mulf %0, %2 : vector<18x64xf32>
    %c0_3 = arith.constant 0 : index
    %c0_4 = arith.constant 0 : index
    %4 = vector.load %arg3[%c0_3, %c0_4] : memref<1x64xf32, #tpu.memory_space<vmem>>, vector<1x64xf32>
    %5 = vector.broadcast %4 : vector<1x64xf32> to vector<18x64xf32>
    %6 = arith.addf %3, %5 : vector<18x64xf32>
    %cst = arith.constant 0.000000e+00 : f32
    %7 = vector.broadcast %cst : f32 to vector<18x64xf32>
    %8 = arith.cmpf oge, %6, %7 : vector<18x64xf32>
    %cst_5 = arith.constant 2.000000e-01 : f32
    %9 = vector.broadcast %cst_5 : f32 to vector<18x64xf32>
    %10 = arith.mulf %6, %9 : vector<18x64xf32>
    %11 = arith.select %8, %6, %10 : vector<18x64xi1>, vector<18x64xf32>
    %c0_6 = arith.constant 0 : index
    %c0_7 = arith.constant 0 : index
    %12 = vector.load %arg4[%c0_6, %c0_7] : memref<18x64xf32, #tpu.memory_space<vmem>>, vector<18x64xf32>
    tpu.vector_store %arg4[%c0_6, %c0_7], %11 {strides = array<i32>} : memref<18x64xf32, #tpu.memory_space<vmem>>, vector<18x64xf32>,
    return
  }
  func.func @transform_0(%arg0: i32) -> (i32, i32) {
    %c0_i32 = arith.constant 0 : i32
    %c0_i32_0 = arith.constant 0 : i32
    return %arg0, %c0_i32 : i32, i32
  }
  func.func @transform_1(%arg0: i32) -> (i32, i32) {
    %c0_i32 = arith.constant 0 : i32
    %c0_i32_0 = arith.constant 0 : i32
    %c0_i32_1 = arith.constant 0 : i32
    return %c0_i32, %c0_i32_0 : i32, i32
  }
  func.func @transform_2(%arg0: i32) -> (i32, i32) {
    %c0_i32 = arith.constant 0 : i32
    %c0_i32_0 = arith.constant 0 : i32
    %c0_i32_1 = arith.constant 0 : i32
    return %c0_i32, %c0_i32_0 : i32, i32
  }
  func.func @transform_3(%arg0: i32) -> (i32, i32) {
    %c0_i32 = arith.constant 0 : i32
    %c0_i32_0 = arith.constant 0 : i32
    return %arg0, %c0_i32 : i32, i32
  }
}

module attributes {stable_mosaic.version = 11 : i64} {
  func.func @_mm_bias_act_kernel(%arg0: i32, %arg1: i32, %arg2: i32, %arg3: memref<32x512xbf16, #tpu.memory_space<vmem>>, %arg4: memref<512x128xbf16, #tpu.memory_space<vmem>>, %arg5: memref<1x128xf32, #tpu.memory_space<vmem>>, %arg6: memref<32x128xf32, #tpu.memory_space<vmem>>, %arg7: memref<32x128xf32, #tpu.memory_space<vmem>>) attributes {dimension_semantics = [#tpu.dimension_semantics<parallel>, #tpu.dimension_semantics<parallel>, #tpu.dimension_semantics<arbitrary>], iteration_bounds = array<i64: 1, 1, 2>, scalar_prefetch = 0 : i64, scratch_operands = 1 : i64, tpu.core_type = #tpu.core_type<tc>, window_params = [{transform_indices = @transform_0, window_bounds = array<i64: 32, 512>}, {transform_indices = @transform_1, window_bounds = array<i64: 512, 128>}, {transform_indices = @transform_2, window_bounds = array<i64: 1, 128>}, {transform_indices = @transform_3, window_bounds = array<i64: 32, 128>}]} {
    %c0_i32 = arith.constant 0 : i32
    %0 = arith.cmpi eq, %arg2, %c0_i32 : i32
    %1 = arith.extui %0 : i1 to i32
    %c0_i32_0 = arith.constant 0 : i32
    %2 = arith.cmpi ne, %1, %c0_i32_0 : i32
    scf.if %2 {
      %cst_9 = arith.constant 0.000000e+00 : f32
      %12 = vector.broadcast %cst_9 : f32 to vector<32x128xf32>
      %c0_10 = arith.constant 0 : index
      %c0_11 = arith.constant 0 : index
      %13 = vector.load %arg7[%c0_10, %c0_11] : memref<32x128xf32, #tpu.memory_space<vmem>>, vector<32x128xf32>
      tpu.vector_store %arg7[%c0_10, %c0_11], %12 {strides = array<i32>} : memref<32x128xf32, #tpu.memory_space<vmem>>, vector<32x128xf32>,
    } else {
    }
    %c0 = arith.constant 0 : index
    %c0_1 = arith.constant 0 : index
    %3 = vector.load %arg7[%c0, %c0_1] : memref<32x128xf32, #tpu.memory_space<vmem>>, vector<32x128xf32>
    %c0_2 = arith.constant 0 : index
    %c0_3 = arith.constant 0 : index
    %4 = vector.load %arg3[%c0_2, %c0_3] : memref<32x512xbf16, #tpu.memory_space<vmem>>, vector<32x512xbf16>
    %c0_4 = arith.constant 0 : index
    %c0_5 = arith.constant 0 : index
    %5 = vector.load %arg4[%c0_4, %c0_5] : memref<512x128xbf16, #tpu.memory_space<vmem>>, vector<512x128xbf16>
    %cst = arith.constant dense<0.000000e+00> : vector<32x128xf32>
    %6 = tpu.matmul %4, %5, %cst {dimension_numbers = #tpu.dot_dimension_numbers<[1], [0], [0], [1], [0, 0, 1, 1], [], []>} : vector<32x512xbf16>, vector<512x128xbf16>, vector<32x128xf32> -> vector<32x128xf32>
    %7 = arith.addf %3, %6 : vector<32x128xf32>
    %c0_6 = arith.constant 0 : index
    %c0_7 = arith.constant 0 : index
    %8 = vector.load %arg7[%c0_6, %c0_7] : memref<32x128xf32, #tpu.memory_space<vmem>>, vector<32x128xf32>
    tpu.vector_store %arg7[%c0_6, %c0_7], %7 {strides = array<i32>} : memref<32x128xf32, #tpu.memory_space<vmem>>, vector<32x128xf32>,
    %c1_i32 = arith.constant 1 : i32
    %9 = arith.cmpi eq, %arg2, %c1_i32 : i32
    %10 = arith.extui %9 : i1 to i32
    %c0_i32_8 = arith.constant 0 : i32
    %11 = arith.cmpi ne, %10, %c0_i32_8 : i32
    scf.if %11 {
      %c0_9 = arith.constant 0 : index
      %c0_10 = arith.constant 0 : index
      %12 = vector.load %arg7[%c0_9, %c0_10] : memref<32x128xf32, #tpu.memory_space<vmem>>, vector<32x128xf32>
      %c0_11 = arith.constant 0 : index
      %c0_12 = arith.constant 0 : index
      %13 = vector.load %arg5[%c0_11, %c0_12] : memref<1x128xf32, #tpu.memory_space<vmem>>, vector<1x128xf32>
      %14 = vector.broadcast %13 : vector<1x128xf32> to vector<32x128xf32>
      %15 = arith.addf %12, %14 : vector<32x128xf32>
      %c0_13 = arith.constant 0 : index
      %c0_14 = arith.constant 0 : index
      %16 = vector.load %arg6[%c0_13, %c0_14] : memref<32x128xf32, #tpu.memory_space<vmem>>, vector<32x128xf32>
      tpu.vector_store %arg6[%c0_13, %c0_14], %15 {strides = array<i32>} : memref<32x128xf32, #tpu.memory_space<vmem>>, vector<32x128xf32>,
    } else {
    }
    return
  }
  func.func @transform_0(%arg0: i32, %arg1: i32, %arg2: i32) -> (i32, i32) {
    %c0_i32 = arith.constant 0 : i32
    return %arg0, %arg2 : i32, i32
  }
  func.func @transform_1(%arg0: i32, %arg1: i32, %arg2: i32) -> (i32, i32) {
    %c0_i32 = arith.constant 0 : i32
    return %arg2, %arg1 : i32, i32
  }
  func.func @transform_2(%arg0: i32, %arg1: i32, %arg2: i32) -> (i32, i32) {
    %c0_i32 = arith.constant 0 : i32
    %c0_i32_0 = arith.constant 0 : i32
    return %c0_i32, %arg1 : i32, i32
  }
  func.func @transform_3(%arg0: i32, %arg1: i32, %arg2: i32) -> (i32, i32) {
    %c0_i32 = arith.constant 0 : i32
    return %arg0, %arg1 : i32, i32
  }
}

module attributes {stable_mosaic.version = 11 : i64} {
  func.func @_mm_bias_act_kernel(%arg0: i32, %arg1: i32, %arg2: i32, %arg3: memref<50x128xbf16, #tpu.memory_space<vmem>>, %arg4: memref<128x8xbf16, #tpu.memory_space<vmem>>, %arg5: memref<1x8xf32, #tpu.memory_space<vmem>>, %arg6: memref<50x8xf32, #tpu.memory_space<vmem>>, %arg7: memref<50x8xf32, #tpu.memory_space<vmem>>) attributes {dimension_semantics = [#tpu.dimension_semantics<parallel>, #tpu.dimension_semantics<parallel>, #tpu.dimension_semantics<arbitrary>], iteration_bounds = array<i64: 1, 1, 1>, scalar_prefetch = 0 : i64, scratch_operands = 1 : i64, tpu.core_type = #tpu.core_type<tc>, window_params = [{transform_indices = @transform_0, window_bounds = array<i64: 50, 128>}, {transform_indices = @transform_1, window_bounds = array<i64: 128, 8>}, {transform_indices = @transform_2, window_bounds = array<i64: 1, 8>}, {transform_indices = @transform_3, window_bounds = array<i64: 50, 8>}]} {
    %c0_i32 = arith.constant 0 : i32
    %0 = arith.cmpi eq, %arg2, %c0_i32 : i32
    %1 = arith.extui %0 : i1 to i32
    %c0_i32_0 = arith.constant 0 : i32
    %2 = arith.cmpi ne, %1, %c0_i32_0 : i32
    scf.if %2 {
      %cst_10 = arith.constant 0.000000e+00 : f32
      %12 = vector.broadcast %cst_10 : f32 to vector<50x8xf32>
      %c0_11 = arith.constant 0 : index
      %c0_12 = arith.constant 0 : index
      %13 = vector.load %arg7[%c0_11, %c0_12] : memref<50x8xf32, #tpu.memory_space<vmem>>, vector<50x8xf32>
      tpu.vector_store %arg7[%c0_11, %c0_12], %12 {strides = array<i32>} : memref<50x8xf32, #tpu.memory_space<vmem>>, vector<50x8xf32>,
    } else {
    }
    %c0 = arith.constant 0 : index
    %c0_1 = arith.constant 0 : index
    %3 = vector.load %arg7[%c0, %c0_1] : memref<50x8xf32, #tpu.memory_space<vmem>>, vector<50x8xf32>
    %c0_2 = arith.constant 0 : index
    %c0_3 = arith.constant 0 : index
    %4 = vector.load %arg3[%c0_2, %c0_3] : memref<50x128xbf16, #tpu.memory_space<vmem>>, vector<50x128xbf16>
    %c0_4 = arith.constant 0 : index
    %c0_5 = arith.constant 0 : index
    %5 = vector.load %arg4[%c0_4, %c0_5] : memref<128x8xbf16, #tpu.memory_space<vmem>>, vector<128x8xbf16>
    %cst = arith.constant dense<0.000000e+00> : vector<50x8xf32>
    %6 = tpu.matmul %4, %5, %cst {dimension_numbers = #tpu.dot_dimension_numbers<[1], [0], [0], [1], [0, 0, 1, 1], [], []>} : vector<50x128xbf16>, vector<128x8xbf16>, vector<50x8xf32> -> vector<50x8xf32>
    %7 = arith.addf %3, %6 : vector<50x8xf32>
    %c0_6 = arith.constant 0 : index
    %c0_7 = arith.constant 0 : index
    %8 = vector.load %arg7[%c0_6, %c0_7] : memref<50x8xf32, #tpu.memory_space<vmem>>, vector<50x8xf32>
    tpu.vector_store %arg7[%c0_6, %c0_7], %7 {strides = array<i32>} : memref<50x8xf32, #tpu.memory_space<vmem>>, vector<50x8xf32>,
    %c0_i32_8 = arith.constant 0 : i32
    %9 = arith.cmpi eq, %arg2, %c0_i32_8 : i32
    %10 = arith.extui %9 : i1 to i32
    %c0_i32_9 = arith.constant 0 : i32
    %11 = arith.cmpi ne, %10, %c0_i32_9 : i32
    scf.if %11 {
      %c0_10 = arith.constant 0 : index
      %c0_11 = arith.constant 0 : index
      %12 = vector.load %arg7[%c0_10, %c0_11] : memref<50x8xf32, #tpu.memory_space<vmem>>, vector<50x8xf32>
      %c0_12 = arith.constant 0 : index
      %c0_13 = arith.constant 0 : index
      %13 = vector.load %arg5[%c0_12, %c0_13] : memref<1x8xf32, #tpu.memory_space<vmem>>, vector<1x8xf32>
      %14 = vector.broadcast %13 : vector<1x8xf32> to vector<50x8xf32>
      %15 = arith.addf %12, %14 : vector<50x8xf32>
      %cst_14 = arith.constant 0.000000e+00 : f32
      %16 = vector.broadcast %cst_14 : f32 to vector<50x8xf32>
      %17 = arith.cmpf oge, %15, %16 : vector<50x8xf32>
      %cst_15 = arith.constant 2.000000e-01 : f32
      %18 = vector.broadcast %cst_15 : f32 to vector<50x8xf32>
      %19 = arith.mulf %15, %18 : vector<50x8xf32>
      %20 = arith.select %17, %15, %19 : vector<50x8xi1>, vector<50x8xf32>
      %c0_16 = arith.constant 0 : index
      %c0_17 = arith.constant 0 : index
      %21 = vector.load %arg6[%c0_16, %c0_17] : memref<50x8xf32, #tpu.memory_space<vmem>>, vector<50x8xf32>
      tpu.vector_store %arg6[%c0_16, %c0_17], %20 {strides = array<i32>} : memref<50x8xf32, #tpu.memory_space<vmem>>, vector<50x8xf32>,
    } else {
    }
    return
  }
  func.func @transform_0(%arg0: i32, %arg1: i32, %arg2: i32) -> (i32, i32) {
    %c0_i32 = arith.constant 0 : i32
    return %arg0, %arg2 : i32, i32
  }
  func.func @transform_1(%arg0: i32, %arg1: i32, %arg2: i32) -> (i32, i32) {
    %c0_i32 = arith.constant 0 : i32
    return %arg2, %arg1 : i32, i32
  }
  func.func @transform_2(%arg0: i32, %arg1: i32, %arg2: i32) -> (i32, i32) {
    %c0_i32 = arith.constant 0 : i32
    %c0_i32_0 = arith.constant 0 : i32
    return %c0_i32, %arg1 : i32, i32
  }
  func.func @transform_3(%arg0: i32, %arg1: i32, %arg2: i32) -> (i32, i32) {
    %c0_i32 = arith.constant 0 : i32
    return %arg0, %arg1 : i32, i32
  }
}

module attributes {stable_mosaic.version = 11 : i64} {
  func.func @_bn_stats_kernel(%arg0: i32, %arg1: memref<18x16xf32, #tpu.memory_space<vmem>>, %arg2: memref<1x16xf32, #tpu.memory_space<vmem>>, %arg3: memref<1x16xf32, #tpu.memory_space<vmem>>) attributes {dimension_semantics = [#tpu.dimension_semantics<arbitrary>], iteration_bounds = array<i64: 1>, scalar_prefetch = 0 : i64, scratch_operands = 0 : i64, tpu.core_type = #tpu.core_type<tc>, window_params = [{transform_indices = @transform_0, window_bounds = array<i64: 18, 16>}, {pipeline_mode = #tpu.pipeline_mode<synchronous>, transform_indices = @transform_1, window_bounds = array<i64: 1, 16>}, {pipeline_mode = #tpu.pipeline_mode<synchronous>, transform_indices = @transform_2, window_bounds = array<i64: 1, 16>}]} {
    %c0_i32 = arith.constant 0 : i32
    %0 = arith.cmpi eq, %arg0, %c0_i32 : i32
    %1 = arith.extui %0 : i1 to i32
    %c0_i32_0 = arith.constant 0 : i32
    %2 = arith.cmpi ne, %1, %c0_i32_0 : i32
    scf.if %2 {
      %cst_13 = arith.constant 0.000000e+00 : f32
      %23 = vector.broadcast %cst_13 : f32 to vector<1x16xf32>
      %c0_14 = arith.constant 0 : index
      %c0_15 = arith.constant 0 : index
      %24 = vector.load %arg2[%c0_14, %c0_15] : memref<1x16xf32, #tpu.memory_space<vmem>>, vector<1x16xf32>
      tpu.vector_store %arg2[%c0_14, %c0_15], %23 {strides = array<i32>} : memref<1x16xf32, #tpu.memory_space<vmem>>, vector<1x16xf32>,
      %cst_16 = arith.constant 0.000000e+00 : f32
      %25 = vector.broadcast %cst_16 : f32 to vector<1x16xf32>
      %c0_17 = arith.constant 0 : index
      %c0_18 = arith.constant 0 : index
      %26 = vector.load %arg3[%c0_17, %c0_18] : memref<1x16xf32, #tpu.memory_space<vmem>>, vector<1x16xf32>
      tpu.vector_store %arg3[%c0_17, %c0_18], %25 {strides = array<i32>} : memref<1x16xf32, #tpu.memory_space<vmem>>, vector<1x16xf32>,
    } else {
    }
    %c0 = arith.constant 0 : index
    %c0_1 = arith.constant 0 : index
    %3 = vector.load %arg1[%c0, %c0_1] : memref<18x16xf32, #tpu.memory_space<vmem>>, vector<18x16xf32>
    %c18_i32 = arith.constant 18 : i32
    %4 = arith.muli %arg0, %c18_i32 : i32
    %5 = tpu.iota {dimensions = array<i32: 0>} : vector<18x16xi32>
    %6 = vector.broadcast %4 : i32 to vector<18x16xi32>
    %7 = arith.addi %6, %5 : vector<18x16xi32>
    %c18_i32_2 = arith.constant 18 : i32
    %8 = vector.broadcast %c18_i32_2 : i32 to vector<18x16xi32>
    %9 = arith.cmpi slt, %7, %8 : vector<18x16xi32>
    %cst = arith.constant 0.000000e+00 : f32
    %10 = vector.broadcast %cst : f32 to vector<18x16xf32>
    %11 = arith.select %9, %3, %10 : vector<18x16xi1>, vector<18x16xf32>
    %c0_3 = arith.constant 0 : index
    %c0_4 = arith.constant 0 : index
    %12 = vector.load %arg2[%c0_3, %c0_4] : memref<1x16xf32, #tpu.memory_space<vmem>>, vector<1x16xf32>
    %cst_5 = arith.constant dense<0.000000e+00> : vector<16xf32>
    %13 = vector.multi_reduction <add>, %11, %cst_5 [0] : vector<18x16xf32> to vector<16xf32>
    %14 = vector.shape_cast %13 : vector<16xf32> to vector<1x16xf32>
    %15 = arith.addf %12, %14 : vector<1x16xf32>
    %c0_6 = arith.constant 0 : index
    %c0_7 = arith.constant 0 : index
    %16 = vector.load %arg2[%c0_6, %c0_7] : memref<1x16xf32, #tpu.memory_space<vmem>>, vector<1x16xf32>
    tpu.vector_store %arg2[%c0_6, %c0_7], %15 {strides = array<i32>} : memref<1x16xf32, #tpu.memory_space<vmem>>, vector<1x16xf32>,
    %c0_8 = arith.constant 0 : index
    %c0_9 = arith.constant 0 : index
    %17 = vector.load %arg3[%c0_8, %c0_9] : memref<1x16xf32, #tpu.memory_space<vmem>>, vector<1x16xf32>
    %18 = arith.mulf %11, %11 : vector<18x16xf32>
    %cst_10 = arith.constant dense<0.000000e+00> : vector<16xf32>
    %19 = vector.multi_reduction <add>, %18, %cst_10 [0] : vector<18x16xf32> to vector<16xf32>
    %20 = vector.shape_cast %19 : vector<16xf32> to vector<1x16xf32>
    %21 = arith.addf %17, %20 : vector<1x16xf32>
    %c0_11 = arith.constant 0 : index
    %c0_12 = arith.constant 0 : index
    %22 = vector.load %arg3[%c0_11, %c0_12] : memref<1x16xf32, #tpu.memory_space<vmem>>, vector<1x16xf32>
    tpu.vector_store %arg3[%c0_11, %c0_12], %21 {strides = array<i32>} : memref<1x16xf32, #tpu.memory_space<vmem>>, vector<1x16xf32>,
    return
  }
  func.func @transform_0(%arg0: i32) -> (i32, i32) {
    %c0_i32 = arith.constant 0 : i32
    %c0_i32_0 = arith.constant 0 : i32
    return %arg0, %c0_i32 : i32, i32
  }
  func.func @transform_1(%arg0: i32) -> (i32, i32) {
    %c0_i32 = arith.constant 0 : i32
    %c0_i32_0 = arith.constant 0 : i32
    %c0_i32_1 = arith.constant 0 : i32
    return %c0_i32, %c0_i32_0 : i32, i32
  }
  func.func @transform_2(%arg0: i32) -> (i32, i32) {
    %c0_i32 = arith.constant 0 : i32
    %c0_i32_0 = arith.constant 0 : i32
    %c0_i32_1 = arith.constant 0 : i32
    return %c0_i32, %c0_i32_0 : i32, i32
  }
}

module attributes {stable_mosaic.version = 11 : i64} {
  func.func @_mm_bias_act_kernel(%arg0: i32, %arg1: i32, %arg2: i32, %arg3: memref<18x128xbf16, #tpu.memory_space<vmem>>, %arg4: memref<128x16xbf16, #tpu.memory_space<vmem>>, %arg5: memref<1x16xf32, #tpu.memory_space<vmem>>, %arg6: memref<18x16xf32, #tpu.memory_space<vmem>>, %arg7: memref<18x16xf32, #tpu.memory_space<vmem>>) attributes {dimension_semantics = [#tpu.dimension_semantics<parallel>, #tpu.dimension_semantics<parallel>, #tpu.dimension_semantics<arbitrary>], iteration_bounds = array<i64: 1, 1, 1>, scalar_prefetch = 0 : i64, scratch_operands = 1 : i64, tpu.core_type = #tpu.core_type<tc>, window_params = [{transform_indices = @transform_0, window_bounds = array<i64: 18, 128>}, {transform_indices = @transform_1, window_bounds = array<i64: 128, 16>}, {transform_indices = @transform_2, window_bounds = array<i64: 1, 16>}, {transform_indices = @transform_3, window_bounds = array<i64: 18, 16>}]} {
    %c0_i32 = arith.constant 0 : i32
    %0 = arith.cmpi eq, %arg2, %c0_i32 : i32
    %1 = arith.extui %0 : i1 to i32
    %c0_i32_0 = arith.constant 0 : i32
    %2 = arith.cmpi ne, %1, %c0_i32_0 : i32
    scf.if %2 {
      %cst_10 = arith.constant 0.000000e+00 : f32
      %12 = vector.broadcast %cst_10 : f32 to vector<18x16xf32>
      %c0_11 = arith.constant 0 : index
      %c0_12 = arith.constant 0 : index
      %13 = vector.load %arg7[%c0_11, %c0_12] : memref<18x16xf32, #tpu.memory_space<vmem>>, vector<18x16xf32>
      tpu.vector_store %arg7[%c0_11, %c0_12], %12 {strides = array<i32>} : memref<18x16xf32, #tpu.memory_space<vmem>>, vector<18x16xf32>,
    } else {
    }
    %c0 = arith.constant 0 : index
    %c0_1 = arith.constant 0 : index
    %3 = vector.load %arg7[%c0, %c0_1] : memref<18x16xf32, #tpu.memory_space<vmem>>, vector<18x16xf32>
    %c0_2 = arith.constant 0 : index
    %c0_3 = arith.constant 0 : index
    %4 = vector.load %arg3[%c0_2, %c0_3] : memref<18x128xbf16, #tpu.memory_space<vmem>>, vector<18x128xbf16>
    %c0_4 = arith.constant 0 : index
    %c0_5 = arith.constant 0 : index
    %5 = vector.load %arg4[%c0_4, %c0_5] : memref<128x16xbf16, #tpu.memory_space<vmem>>, vector<128x16xbf16>
    %cst = arith.constant dense<0.000000e+00> : vector<18x16xf32>
    %6 = tpu.matmul %4, %5, %cst {dimension_numbers = #tpu.dot_dimension_numbers<[1], [0], [0], [1], [0, 0, 1, 1], [], []>} : vector<18x128xbf16>, vector<128x16xbf16>, vector<18x16xf32> -> vector<18x16xf32>
    %7 = arith.addf %3, %6 : vector<18x16xf32>
    %c0_6 = arith.constant 0 : index
    %c0_7 = arith.constant 0 : index
    %8 = vector.load %arg7[%c0_6, %c0_7] : memref<18x16xf32, #tpu.memory_space<vmem>>, vector<18x16xf32>
    tpu.vector_store %arg7[%c0_6, %c0_7], %7 {strides = array<i32>} : memref<18x16xf32, #tpu.memory_space<vmem>>, vector<18x16xf32>,
    %c0_i32_8 = arith.constant 0 : i32
    %9 = arith.cmpi eq, %arg2, %c0_i32_8 : i32
    %10 = arith.extui %9 : i1 to i32
    %c0_i32_9 = arith.constant 0 : i32
    %11 = arith.cmpi ne, %10, %c0_i32_9 : i32
    scf.if %11 {
      %c0_10 = arith.constant 0 : index
      %c0_11 = arith.constant 0 : index
      %12 = vector.load %arg7[%c0_10, %c0_11] : memref<18x16xf32, #tpu.memory_space<vmem>>, vector<18x16xf32>
      %c0_12 = arith.constant 0 : index
      %c0_13 = arith.constant 0 : index
      %13 = vector.load %arg5[%c0_12, %c0_13] : memref<1x16xf32, #tpu.memory_space<vmem>>, vector<1x16xf32>
      %14 = vector.broadcast %13 : vector<1x16xf32> to vector<18x16xf32>
      %15 = arith.addf %12, %14 : vector<18x16xf32>
      %c0_14 = arith.constant 0 : index
      %c0_15 = arith.constant 0 : index
      %16 = vector.load %arg6[%c0_14, %c0_15] : memref<18x16xf32, #tpu.memory_space<vmem>>, vector<18x16xf32>
      tpu.vector_store %arg6[%c0_14, %c0_15], %15 {strides = array<i32>} : memref<18x16xf32, #tpu.memory_space<vmem>>, vector<18x16xf32>,
    } else {
    }
    return
  }
  func.func @transform_0(%arg0: i32, %arg1: i32, %arg2: i32) -> (i32, i32) {
    %c0_i32 = arith.constant 0 : i32
    return %arg0, %arg2 : i32, i32
  }
  func.func @transform_1(%arg0: i32, %arg1: i32, %arg2: i32) -> (i32, i32) {
    %c0_i32 = arith.constant 0 : i32
    return %arg2, %arg1 : i32, i32
  }
  func.func @transform_2(%arg0: i32, %arg1: i32, %arg2: i32) -> (i32, i32) {
    %c0_i32 = arith.constant 0 : i32
    %c0_i32_0 = arith.constant 0 : i32
    return %c0_i32, %arg1 : i32, i32
  }
  func.func @transform_3(%arg0: i32, %arg1: i32, %arg2: i32) -> (i32, i32) {
    %c0_i32 = arith.constant 0 : i32
    return %arg0, %arg1 : i32, i32
  }
}

module attributes {stable_mosaic.version = 11 : i64} {
  func.func @_affine_lrelu_kernel(%arg0: i32, %arg1: memref<18x16xf32, #tpu.memory_space<vmem>>, %arg2: memref<1x16xf32, #tpu.memory_space<vmem>>, %arg3: memref<1x16xf32, #tpu.memory_space<vmem>>, %arg4: memref<18x16xf32, #tpu.memory_space<vmem>>) attributes {dimension_semantics = [#tpu.dimension_semantics<parallel>], iteration_bounds = array<i64: 1>, scalar_prefetch = 0 : i64, scratch_operands = 0 : i64, tpu.core_type = #tpu.core_type<tc>, window_params = [{transform_indices = @transform_0, window_bounds = array<i64: 18, 16>}, {pipeline_mode = #tpu.pipeline_mode<synchronous>, transform_indices = @transform_1, window_bounds = array<i64: 1, 16>}, {pipeline_mode = #tpu.pipeline_mode<synchronous>, transform_indices = @transform_2, window_bounds = array<i64: 1, 16>}, {transform_indices = @transform_3, window_bounds = array<i64: 18, 16>}]} {
    %c0 = arith.constant 0 : index
    %c0_0 = arith.constant 0 : index
    %0 = vector.load %arg1[%c0, %c0_0] : memref<18x16xf32, #tpu.memory_space<vmem>>, vector<18x16xf32>
    %c0_1 = arith.constant 0 : index
    %c0_2 = arith.constant 0 : index
    %1 = vector.load %arg2[%c0_1, %c0_2] : memref<1x16xf32, #tpu.memory_space<vmem>>, vector<1x16xf32>
    %2 = vector.broadcast %1 : vector<1x16xf32> to vector<18x16xf32>
    %3 = arith.mulf %0, %2 : vector<18x16xf32>
    %c0_3 = arith.constant 0 : index
    %c0_4 = arith.constant 0 : index
    %4 = vector.load %arg3[%c0_3, %c0_4] : memref<1x16xf32, #tpu.memory_space<vmem>>, vector<1x16xf32>
    %5 = vector.broadcast %4 : vector<1x16xf32> to vector<18x16xf32>
    %6 = arith.addf %3, %5 : vector<18x16xf32>
    %cst = arith.constant 0.000000e+00 : f32
    %7 = vector.broadcast %cst : f32 to vector<18x16xf32>
    %8 = arith.cmpf oge, %6, %7 : vector<18x16xf32>
    %cst_5 = arith.constant 2.000000e-01 : f32
    %9 = vector.broadcast %cst_5 : f32 to vector<18x16xf32>
    %10 = arith.mulf %6, %9 : vector<18x16xf32>
    %11 = arith.select %8, %6, %10 : vector<18x16xi1>, vector<18x16xf32>
    %c0_6 = arith.constant 0 : index
    %c0_7 = arith.constant 0 : index
    %12 = vector.load %arg4[%c0_6, %c0_7] : memref<18x16xf32, #tpu.memory_space<vmem>>, vector<18x16xf32>
    tpu.vector_store %arg4[%c0_6, %c0_7], %11 {strides = array<i32>} : memref<18x16xf32, #tpu.memory_space<vmem>>, vector<18x16xf32>,
    return
  }
  func.func @transform_0(%arg0: i32) -> (i32, i32) {
    %c0_i32 = arith.constant 0 : i32
    %c0_i32_0 = arith.constant 0 : i32
    return %arg0, %c0_i32 : i32, i32
  }
  func.func @transform_1(%arg0: i32) -> (i32, i32) {
    %c0_i32 = arith.constant 0 : i32
    %c0_i32_0 = arith.constant 0 : i32
    %c0_i32_1 = arith.constant 0 : i32
    return %c0_i32, %c0_i32_0 : i32, i32
  }
  func.func @transform_2(%arg0: i32) -> (i32, i32) {
    %c0_i32 = arith.constant 0 : i32
    %c0_i32_0 = arith.constant 0 : i32
    %c0_i32_1 = arith.constant 0 : i32
    return %c0_i32, %c0_i32_0 : i32, i32
  }
  func.func @transform_3(%arg0: i32) -> (i32, i32) {
    %c0_i32 = arith.constant 0 : i32
    %c0_i32_0 = arith.constant 0 : i32
    return %arg0, %c0_i32 : i32, i32
  }
}

module attributes {stable_mosaic.version = 11 : i64} {
  func.func @_mm_bias_act_kernel(%arg0: i32, %arg1: i32, %arg2: i32, %arg3: memref<162x128xbf16, #tpu.memory_space<vmem>>, %arg4: memref<128x8xbf16, #tpu.memory_space<vmem>>, %arg5: memref<1x8xf32, #tpu.memory_space<vmem>>, %arg6: memref<162x8xf32, #tpu.memory_space<vmem>>, %arg7: memref<162x8xf32, #tpu.memory_space<vmem>>) attributes {dimension_semantics = [#tpu.dimension_semantics<parallel>, #tpu.dimension_semantics<parallel>, #tpu.dimension_semantics<arbitrary>], iteration_bounds = array<i64: 1, 1, 1>, scalar_prefetch = 0 : i64, scratch_operands = 1 : i64, tpu.core_type = #tpu.core_type<tc>, window_params = [{transform_indices = @transform_0, window_bounds = array<i64: 162, 128>}, {transform_indices = @transform_1, window_bounds = array<i64: 128, 8>}, {transform_indices = @transform_2, window_bounds = array<i64: 1, 8>}, {transform_indices = @transform_3, window_bounds = array<i64: 162, 8>}]} {
    %c0_i32 = arith.constant 0 : i32
    %0 = arith.cmpi eq, %arg2, %c0_i32 : i32
    %1 = arith.extui %0 : i1 to i32
    %c0_i32_0 = arith.constant 0 : i32
    %2 = arith.cmpi ne, %1, %c0_i32_0 : i32
    scf.if %2 {
      %cst_10 = arith.constant 0.000000e+00 : f32
      %12 = vector.broadcast %cst_10 : f32 to vector<162x8xf32>
      %c0_11 = arith.constant 0 : index
      %c0_12 = arith.constant 0 : index
      %13 = vector.load %arg7[%c0_11, %c0_12] : memref<162x8xf32, #tpu.memory_space<vmem>>, vector<162x8xf32>
      tpu.vector_store %arg7[%c0_11, %c0_12], %12 {strides = array<i32>} : memref<162x8xf32, #tpu.memory_space<vmem>>, vector<162x8xf32>,
    } else {
    }
    %c0 = arith.constant 0 : index
    %c0_1 = arith.constant 0 : index
    %3 = vector.load %arg7[%c0, %c0_1] : memref<162x8xf32, #tpu.memory_space<vmem>>, vector<162x8xf32>
    %c0_2 = arith.constant 0 : index
    %c0_3 = arith.constant 0 : index
    %4 = vector.load %arg3[%c0_2, %c0_3] : memref<162x128xbf16, #tpu.memory_space<vmem>>, vector<162x128xbf16>
    %c0_4 = arith.constant 0 : index
    %c0_5 = arith.constant 0 : index
    %5 = vector.load %arg4[%c0_4, %c0_5] : memref<128x8xbf16, #tpu.memory_space<vmem>>, vector<128x8xbf16>
    %cst = arith.constant dense<0.000000e+00> : vector<162x8xf32>
    %6 = tpu.matmul %4, %5, %cst {dimension_numbers = #tpu.dot_dimension_numbers<[1], [0], [0], [1], [0, 0, 1, 1], [], []>} : vector<162x128xbf16>, vector<128x8xbf16>, vector<162x8xf32> -> vector<162x8xf32>
    %7 = arith.addf %3, %6 : vector<162x8xf32>
    %c0_6 = arith.constant 0 : index
    %c0_7 = arith.constant 0 : index
    %8 = vector.load %arg7[%c0_6, %c0_7] : memref<162x8xf32, #tpu.memory_space<vmem>>, vector<162x8xf32>
    tpu.vector_store %arg7[%c0_6, %c0_7], %7 {strides = array<i32>} : memref<162x8xf32, #tpu.memory_space<vmem>>, vector<162x8xf32>,
    %c0_i32_8 = arith.constant 0 : i32
    %9 = arith.cmpi eq, %arg2, %c0_i32_8 : i32
    %10 = arith.extui %9 : i1 to i32
    %c0_i32_9 = arith.constant 0 : i32
    %11 = arith.cmpi ne, %10, %c0_i32_9 : i32
    scf.if %11 {
      %c0_10 = arith.constant 0 : index
      %c0_11 = arith.constant 0 : index
      %12 = vector.load %arg7[%c0_10, %c0_11] : memref<162x8xf32, #tpu.memory_space<vmem>>, vector<162x8xf32>
      %c0_12 = arith.constant 0 : index
      %c0_13 = arith.constant 0 : index
      %13 = vector.load %arg5[%c0_12, %c0_13] : memref<1x8xf32, #tpu.memory_space<vmem>>, vector<1x8xf32>
      %14 = vector.broadcast %13 : vector<1x8xf32> to vector<162x8xf32>
      %15 = arith.addf %12, %14 : vector<162x8xf32>
      %cst_14 = arith.constant 0.000000e+00 : f32
      %16 = vector.broadcast %cst_14 : f32 to vector<162x8xf32>
      %17 = arith.cmpf oge, %15, %16 : vector<162x8xf32>
      %cst_15 = arith.constant 2.000000e-01 : f32
      %18 = vector.broadcast %cst_15 : f32 to vector<162x8xf32>
      %19 = arith.mulf %15, %18 : vector<162x8xf32>
      %20 = arith.select %17, %15, %19 : vector<162x8xi1>, vector<162x8xf32>
      %c0_16 = arith.constant 0 : index
      %c0_17 = arith.constant 0 : index
      %21 = vector.load %arg6[%c0_16, %c0_17] : memref<162x8xf32, #tpu.memory_space<vmem>>, vector<162x8xf32>
      tpu.vector_store %arg6[%c0_16, %c0_17], %20 {strides = array<i32>} : memref<162x8xf32, #tpu.memory_space<vmem>>, vector<162x8xf32>,
    } else {
    }
    return
  }
  func.func @transform_0(%arg0: i32, %arg1: i32, %arg2: i32) -> (i32, i32) {
    %c0_i32 = arith.constant 0 : i32
    return %arg0, %arg2 : i32, i32
  }
  func.func @transform_1(%arg0: i32, %arg1: i32, %arg2: i32) -> (i32, i32) {
    %c0_i32 = arith.constant 0 : i32
    return %arg2, %arg1 : i32, i32
  }
  func.func @transform_2(%arg0: i32, %arg1: i32, %arg2: i32) -> (i32, i32) {
    %c0_i32 = arith.constant 0 : i32
    %c0_i32_0 = arith.constant 0 : i32
    return %c0_i32, %arg1 : i32, i32
  }
  func.func @transform_3(%arg0: i32, %arg1: i32, %arg2: i32) -> (i32, i32) {
    %c0_i32 = arith.constant 0 : i32
    return %arg0, %arg1 : i32, i32
  }
}

module attributes {stable_mosaic.version = 11 : i64} {
  func.func @_mm_bias_act_kernel(%arg0: i32, %arg1: i32, %arg2: i32, %arg3: memref<50x128xbf16, #tpu.memory_space<vmem>>, %arg4: memref<128x16xbf16, #tpu.memory_space<vmem>>, %arg5: memref<1x16xf32, #tpu.memory_space<vmem>>, %arg6: memref<50x16xf32, #tpu.memory_space<vmem>>, %arg7: memref<50x16xf32, #tpu.memory_space<vmem>>) attributes {dimension_semantics = [#tpu.dimension_semantics<parallel>, #tpu.dimension_semantics<parallel>, #tpu.dimension_semantics<arbitrary>], iteration_bounds = array<i64: 1, 1, 1>, scalar_prefetch = 0 : i64, scratch_operands = 1 : i64, tpu.core_type = #tpu.core_type<tc>, window_params = [{transform_indices = @transform_0, window_bounds = array<i64: 50, 128>}, {transform_indices = @transform_1, window_bounds = array<i64: 128, 16>}, {transform_indices = @transform_2, window_bounds = array<i64: 1, 16>}, {transform_indices = @transform_3, window_bounds = array<i64: 50, 16>}]} {
    %c0_i32 = arith.constant 0 : i32
    %0 = arith.cmpi eq, %arg2, %c0_i32 : i32
    %1 = arith.extui %0 : i1 to i32
    %c0_i32_0 = arith.constant 0 : i32
    %2 = arith.cmpi ne, %1, %c0_i32_0 : i32
    scf.if %2 {
      %cst_10 = arith.constant 0.000000e+00 : f32
      %12 = vector.broadcast %cst_10 : f32 to vector<50x16xf32>
      %c0_11 = arith.constant 0 : index
      %c0_12 = arith.constant 0 : index
      %13 = vector.load %arg7[%c0_11, %c0_12] : memref<50x16xf32, #tpu.memory_space<vmem>>, vector<50x16xf32>
      tpu.vector_store %arg7[%c0_11, %c0_12], %12 {strides = array<i32>} : memref<50x16xf32, #tpu.memory_space<vmem>>, vector<50x16xf32>,
    } else {
    }
    %c0 = arith.constant 0 : index
    %c0_1 = arith.constant 0 : index
    %3 = vector.load %arg7[%c0, %c0_1] : memref<50x16xf32, #tpu.memory_space<vmem>>, vector<50x16xf32>
    %c0_2 = arith.constant 0 : index
    %c0_3 = arith.constant 0 : index
    %4 = vector.load %arg3[%c0_2, %c0_3] : memref<50x128xbf16, #tpu.memory_space<vmem>>, vector<50x128xbf16>
    %c0_4 = arith.constant 0 : index
    %c0_5 = arith.constant 0 : index
    %5 = vector.load %arg4[%c0_4, %c0_5] : memref<128x16xbf16, #tpu.memory_space<vmem>>, vector<128x16xbf16>
    %cst = arith.constant dense<0.000000e+00> : vector<50x16xf32>
    %6 = tpu.matmul %4, %5, %cst {dimension_numbers = #tpu.dot_dimension_numbers<[1], [0], [0], [1], [0, 0, 1, 1], [], []>} : vector<50x128xbf16>, vector<128x16xbf16>, vector<50x16xf32> -> vector<50x16xf32>
    %7 = arith.addf %3, %6 : vector<50x16xf32>
    %c0_6 = arith.constant 0 : index
    %c0_7 = arith.constant 0 : index
    %8 = vector.load %arg7[%c0_6, %c0_7] : memref<50x16xf32, #tpu.memory_space<vmem>>, vector<50x16xf32>
    tpu.vector_store %arg7[%c0_6, %c0_7], %7 {strides = array<i32>} : memref<50x16xf32, #tpu.memory_space<vmem>>, vector<50x16xf32>,
    %c0_i32_8 = arith.constant 0 : i32
    %9 = arith.cmpi eq, %arg2, %c0_i32_8 : i32
    %10 = arith.extui %9 : i1 to i32
    %c0_i32_9 = arith.constant 0 : i32
    %11 = arith.cmpi ne, %10, %c0_i32_9 : i32
    scf.if %11 {
      %c0_10 = arith.constant 0 : index
      %c0_11 = arith.constant 0 : index
      %12 = vector.load %arg7[%c0_10, %c0_11] : memref<50x16xf32, #tpu.memory_space<vmem>>, vector<50x16xf32>
      %c0_12 = arith.constant 0 : index
      %c0_13 = arith.constant 0 : index
      %13 = vector.load %arg5[%c0_12, %c0_13] : memref<1x16xf32, #tpu.memory_space<vmem>>, vector<1x16xf32>
      %14 = vector.broadcast %13 : vector<1x16xf32> to vector<50x16xf32>
      %15 = arith.addf %12, %14 : vector<50x16xf32>
      %c0_14 = arith.constant 0 : index
      %c0_15 = arith.constant 0 : index
      %16 = vector.load %arg6[%c0_14, %c0_15] : memref<50x16xf32, #tpu.memory_space<vmem>>, vector<50x16xf32>
      tpu.vector_store %arg6[%c0_14, %c0_15], %15 {strides = array<i32>} : memref<50x16xf32, #tpu.memory_space<vmem>>, vector<50x16xf32>,
    } else {
    }
    return
  }
  func.func @transform_0(%arg0: i32, %arg1: i32, %arg2: i32) -> (i32, i32) {
    %c0_i32 = arith.constant 0 : i32
    return %arg0, %arg2 : i32, i32
  }
  func.func @transform_1(%arg0: i32, %arg1: i32, %arg2: i32) -> (i32, i32) {
    %c0_i32 = arith.constant 0 : i32
    return %arg2, %arg1 : i32, i32
  }
  func.func @transform_2(%arg0: i32, %arg1: i32, %arg2: i32) -> (i32, i32) {
    %c0_i32 = arith.constant 0 : i32
    %c0_i32_0 = arith.constant 0 : i32
    return %c0_i32, %arg1 : i32, i32
  }
  func.func @transform_3(%arg0: i32, %arg1: i32, %arg2: i32) -> (i32, i32) {
    %c0_i32 = arith.constant 0 : i32
    return %arg0, %arg1 : i32, i32
  }
}

module attributes {stable_mosaic.version = 11 : i64} {
  func.func @_affine_lrelu_kernel(%arg0: i32, %arg1: memref<50x16xf32, #tpu.memory_space<vmem>>, %arg2: memref<1x16xf32, #tpu.memory_space<vmem>>, %arg3: memref<1x16xf32, #tpu.memory_space<vmem>>, %arg4: memref<50x16xf32, #tpu.memory_space<vmem>>) attributes {dimension_semantics = [#tpu.dimension_semantics<parallel>], iteration_bounds = array<i64: 1>, scalar_prefetch = 0 : i64, scratch_operands = 0 : i64, tpu.core_type = #tpu.core_type<tc>, window_params = [{transform_indices = @transform_0, window_bounds = array<i64: 50, 16>}, {pipeline_mode = #tpu.pipeline_mode<synchronous>, transform_indices = @transform_1, window_bounds = array<i64: 1, 16>}, {pipeline_mode = #tpu.pipeline_mode<synchronous>, transform_indices = @transform_2, window_bounds = array<i64: 1, 16>}, {transform_indices = @transform_3, window_bounds = array<i64: 50, 16>}]} {
    %c0 = arith.constant 0 : index
    %c0_0 = arith.constant 0 : index
    %0 = vector.load %arg1[%c0, %c0_0] : memref<50x16xf32, #tpu.memory_space<vmem>>, vector<50x16xf32>
    %c0_1 = arith.constant 0 : index
    %c0_2 = arith.constant 0 : index
    %1 = vector.load %arg2[%c0_1, %c0_2] : memref<1x16xf32, #tpu.memory_space<vmem>>, vector<1x16xf32>
    %2 = vector.broadcast %1 : vector<1x16xf32> to vector<50x16xf32>
    %3 = arith.mulf %0, %2 : vector<50x16xf32>
    %c0_3 = arith.constant 0 : index
    %c0_4 = arith.constant 0 : index
    %4 = vector.load %arg3[%c0_3, %c0_4] : memref<1x16xf32, #tpu.memory_space<vmem>>, vector<1x16xf32>
    %5 = vector.broadcast %4 : vector<1x16xf32> to vector<50x16xf32>
    %6 = arith.addf %3, %5 : vector<50x16xf32>
    %cst = arith.constant 0.000000e+00 : f32
    %7 = vector.broadcast %cst : f32 to vector<50x16xf32>
    %8 = arith.cmpf oge, %6, %7 : vector<50x16xf32>
    %cst_5 = arith.constant 2.000000e-01 : f32
    %9 = vector.broadcast %cst_5 : f32 to vector<50x16xf32>
    %10 = arith.mulf %6, %9 : vector<50x16xf32>
    %11 = arith.select %8, %6, %10 : vector<50x16xi1>, vector<50x16xf32>
    %c0_6 = arith.constant 0 : index
    %c0_7 = arith.constant 0 : index
    %12 = vector.load %arg4[%c0_6, %c0_7] : memref<50x16xf32, #tpu.memory_space<vmem>>, vector<50x16xf32>
    tpu.vector_store %arg4[%c0_6, %c0_7], %11 {strides = array<i32>} : memref<50x16xf32, #tpu.memory_space<vmem>>, vector<50x16xf32>,
    return
  }
  func.func @transform_0(%arg0: i32) -> (i32, i32) {
    %c0_i32 = arith.constant 0 : i32
    %c0_i32_0 = arith.constant 0 : i32
    return %arg0, %c0_i32 : i32, i32
  }
  func.func @transform_1(%arg0: i32) -> (i32, i32) {
    %c0_i32 = arith.constant 0 : i32
    %c0_i32_0 = arith.constant 0 : i32
    %c0_i32_1 = arith.constant 0 : i32
    return %c0_i32, %c0_i32_0 : i32, i32
  }
  func.func @transform_2(%arg0: i32) -> (i32, i32) {
    %c0_i32 = arith.constant 0 : i32
    %c0_i32_0 = arith.constant 0 : i32
    %c0_i32_1 = arith.constant 0 : i32
    return %c0_i32, %c0_i32_0 : i32, i32
  }
  func.func @transform_3(%arg0: i32) -> (i32, i32) {
    %c0_i32 = arith.constant 0 : i32
    %c0_i32_0 = arith.constant 0 : i32
    return %arg0, %c0_i32 : i32, i32
  }
}

module attributes {stable_mosaic.version = 11 : i64} {
  func.func @_bn_stats_kernel(%arg0: i32, %arg1: memref<50x16xf32, #tpu.memory_space<vmem>>, %arg2: memref<1x16xf32, #tpu.memory_space<vmem>>, %arg3: memref<1x16xf32, #tpu.memory_space<vmem>>) attributes {dimension_semantics = [#tpu.dimension_semantics<arbitrary>], iteration_bounds = array<i64: 1>, scalar_prefetch = 0 : i64, scratch_operands = 0 : i64, tpu.core_type = #tpu.core_type<tc>, window_params = [{transform_indices = @transform_0, window_bounds = array<i64: 50, 16>}, {pipeline_mode = #tpu.pipeline_mode<synchronous>, transform_indices = @transform_1, window_bounds = array<i64: 1, 16>}, {pipeline_mode = #tpu.pipeline_mode<synchronous>, transform_indices = @transform_2, window_bounds = array<i64: 1, 16>}]} {
    %c0_i32 = arith.constant 0 : i32
    %0 = arith.cmpi eq, %arg0, %c0_i32 : i32
    %1 = arith.extui %0 : i1 to i32
    %c0_i32_0 = arith.constant 0 : i32
    %2 = arith.cmpi ne, %1, %c0_i32_0 : i32
    scf.if %2 {
      %cst_13 = arith.constant 0.000000e+00 : f32
      %23 = vector.broadcast %cst_13 : f32 to vector<1x16xf32>
      %c0_14 = arith.constant 0 : index
      %c0_15 = arith.constant 0 : index
      %24 = vector.load %arg2[%c0_14, %c0_15] : memref<1x16xf32, #tpu.memory_space<vmem>>, vector<1x16xf32>
      tpu.vector_store %arg2[%c0_14, %c0_15], %23 {strides = array<i32>} : memref<1x16xf32, #tpu.memory_space<vmem>>, vector<1x16xf32>,
      %cst_16 = arith.constant 0.000000e+00 : f32
      %25 = vector.broadcast %cst_16 : f32 to vector<1x16xf32>
      %c0_17 = arith.constant 0 : index
      %c0_18 = arith.constant 0 : index
      %26 = vector.load %arg3[%c0_17, %c0_18] : memref<1x16xf32, #tpu.memory_space<vmem>>, vector<1x16xf32>
      tpu.vector_store %arg3[%c0_17, %c0_18], %25 {strides = array<i32>} : memref<1x16xf32, #tpu.memory_space<vmem>>, vector<1x16xf32>,
    } else {
    }
    %c0 = arith.constant 0 : index
    %c0_1 = arith.constant 0 : index
    %3 = vector.load %arg1[%c0, %c0_1] : memref<50x16xf32, #tpu.memory_space<vmem>>, vector<50x16xf32>
    %c50_i32 = arith.constant 50 : i32
    %4 = arith.muli %arg0, %c50_i32 : i32
    %5 = tpu.iota {dimensions = array<i32: 0>} : vector<50x16xi32>
    %6 = vector.broadcast %4 : i32 to vector<50x16xi32>
    %7 = arith.addi %6, %5 : vector<50x16xi32>
    %c50_i32_2 = arith.constant 50 : i32
    %8 = vector.broadcast %c50_i32_2 : i32 to vector<50x16xi32>
    %9 = arith.cmpi slt, %7, %8 : vector<50x16xi32>
    %cst = arith.constant 0.000000e+00 : f32
    %10 = vector.broadcast %cst : f32 to vector<50x16xf32>
    %11 = arith.select %9, %3, %10 : vector<50x16xi1>, vector<50x16xf32>
    %c0_3 = arith.constant 0 : index
    %c0_4 = arith.constant 0 : index
    %12 = vector.load %arg2[%c0_3, %c0_4] : memref<1x16xf32, #tpu.memory_space<vmem>>, vector<1x16xf32>
    %cst_5 = arith.constant dense<0.000000e+00> : vector<16xf32>
    %13 = vector.multi_reduction <add>, %11, %cst_5 [0] : vector<50x16xf32> to vector<16xf32>
    %14 = vector.shape_cast %13 : vector<16xf32> to vector<1x16xf32>
    %15 = arith.addf %12, %14 : vector<1x16xf32>
    %c0_6 = arith.constant 0 : index
    %c0_7 = arith.constant 0 : index
    %16 = vector.load %arg2[%c0_6, %c0_7] : memref<1x16xf32, #tpu.memory_space<vmem>>, vector<1x16xf32>
    tpu.vector_store %arg2[%c0_6, %c0_7], %15 {strides = array<i32>} : memref<1x16xf32, #tpu.memory_space<vmem>>, vector<1x16xf32>,
    %c0_8 = arith.constant 0 : index
    %c0_9 = arith.constant 0 : index
    %17 = vector.load %arg3[%c0_8, %c0_9] : memref<1x16xf32, #tpu.memory_space<vmem>>, vector<1x16xf32>
    %18 = arith.mulf %11, %11 : vector<50x16xf32>
    %cst_10 = arith.constant dense<0.000000e+00> : vector<16xf32>
    %19 = vector.multi_reduction <add>, %18, %cst_10 [0] : vector<50x16xf32> to vector<16xf32>
    %20 = vector.shape_cast %19 : vector<16xf32> to vector<1x16xf32>
    %21 = arith.addf %17, %20 : vector<1x16xf32>
    %c0_11 = arith.constant 0 : index
    %c0_12 = arith.constant 0 : index
    %22 = vector.load %arg3[%c0_11, %c0_12] : memref<1x16xf32, #tpu.memory_space<vmem>>, vector<1x16xf32>
    tpu.vector_store %arg3[%c0_11, %c0_12], %21 {strides = array<i32>} : memref<1x16xf32, #tpu.memory_space<vmem>>, vector<1x16xf32>,
    return
  }
  func.func @transform_0(%arg0: i32) -> (i32, i32) {
    %c0_i32 = arith.constant 0 : i32
    %c0_i32_0 = arith.constant 0 : i32
    return %arg0, %c0_i32 : i32, i32
  }
  func.func @transform_1(%arg0: i32) -> (i32, i32) {
    %c0_i32 = arith.constant 0 : i32
    %c0_i32_0 = arith.constant 0 : i32
    %c0_i32_1 = arith.constant 0 : i32
    return %c0_i32, %c0_i32_0 : i32, i32
  }
  func.func @transform_2(%arg0: i32) -> (i32, i32) {
    %c0_i32 = arith.constant 0 : i32
    %c0_i32_0 = arith.constant 0 : i32
    %c0_i32_1 = arith.constant 0 : i32
    return %c0_i32, %c0_i32_0 : i32, i32
  }
}

module attributes {stable_mosaic.version = 11 : i64} {
  func.func @_mm_bias_act_kernel(%arg0: i32, %arg1: i32, %arg2: i32, %arg3: memref<18x256xbf16, #tpu.memory_space<vmem>>, %arg4: memref<256x32xbf16, #tpu.memory_space<vmem>>, %arg5: memref<1x32xf32, #tpu.memory_space<vmem>>, %arg6: memref<18x32xf32, #tpu.memory_space<vmem>>, %arg7: memref<18x32xf32, #tpu.memory_space<vmem>>) attributes {dimension_semantics = [#tpu.dimension_semantics<parallel>, #tpu.dimension_semantics<parallel>, #tpu.dimension_semantics<arbitrary>], iteration_bounds = array<i64: 1, 1, 1>, scalar_prefetch = 0 : i64, scratch_operands = 1 : i64, tpu.core_type = #tpu.core_type<tc>, window_params = [{transform_indices = @transform_0, window_bounds = array<i64: 18, 256>}, {transform_indices = @transform_1, window_bounds = array<i64: 256, 32>}, {transform_indices = @transform_2, window_bounds = array<i64: 1, 32>}, {transform_indices = @transform_3, window_bounds = array<i64: 18, 32>}]} {
    %c0_i32 = arith.constant 0 : i32
    %0 = arith.cmpi eq, %arg2, %c0_i32 : i32
    %1 = arith.extui %0 : i1 to i32
    %c0_i32_0 = arith.constant 0 : i32
    %2 = arith.cmpi ne, %1, %c0_i32_0 : i32
    scf.if %2 {
      %cst_10 = arith.constant 0.000000e+00 : f32
      %12 = vector.broadcast %cst_10 : f32 to vector<18x32xf32>
      %c0_11 = arith.constant 0 : index
      %c0_12 = arith.constant 0 : index
      %13 = vector.load %arg7[%c0_11, %c0_12] : memref<18x32xf32, #tpu.memory_space<vmem>>, vector<18x32xf32>
      tpu.vector_store %arg7[%c0_11, %c0_12], %12 {strides = array<i32>} : memref<18x32xf32, #tpu.memory_space<vmem>>, vector<18x32xf32>,
    } else {
    }
    %c0 = arith.constant 0 : index
    %c0_1 = arith.constant 0 : index
    %3 = vector.load %arg7[%c0, %c0_1] : memref<18x32xf32, #tpu.memory_space<vmem>>, vector<18x32xf32>
    %c0_2 = arith.constant 0 : index
    %c0_3 = arith.constant 0 : index
    %4 = vector.load %arg3[%c0_2, %c0_3] : memref<18x256xbf16, #tpu.memory_space<vmem>>, vector<18x256xbf16>
    %c0_4 = arith.constant 0 : index
    %c0_5 = arith.constant 0 : index
    %5 = vector.load %arg4[%c0_4, %c0_5] : memref<256x32xbf16, #tpu.memory_space<vmem>>, vector<256x32xbf16>
    %cst = arith.constant dense<0.000000e+00> : vector<18x32xf32>
    %6 = tpu.matmul %4, %5, %cst {dimension_numbers = #tpu.dot_dimension_numbers<[1], [0], [0], [1], [0, 0, 1, 1], [], []>} : vector<18x256xbf16>, vector<256x32xbf16>, vector<18x32xf32> -> vector<18x32xf32>
    %7 = arith.addf %3, %6 : vector<18x32xf32>
    %c0_6 = arith.constant 0 : index
    %c0_7 = arith.constant 0 : index
    %8 = vector.load %arg7[%c0_6, %c0_7] : memref<18x32xf32, #tpu.memory_space<vmem>>, vector<18x32xf32>
    tpu.vector_store %arg7[%c0_6, %c0_7], %7 {strides = array<i32>} : memref<18x32xf32, #tpu.memory_space<vmem>>, vector<18x32xf32>,
    %c0_i32_8 = arith.constant 0 : i32
    %9 = arith.cmpi eq, %arg2, %c0_i32_8 : i32
    %10 = arith.extui %9 : i1 to i32
    %c0_i32_9 = arith.constant 0 : i32
    %11 = arith.cmpi ne, %10, %c0_i32_9 : i32
    scf.if %11 {
      %c0_10 = arith.constant 0 : index
      %c0_11 = arith.constant 0 : index
      %12 = vector.load %arg7[%c0_10, %c0_11] : memref<18x32xf32, #tpu.memory_space<vmem>>, vector<18x32xf32>
      %c0_12 = arith.constant 0 : index
      %c0_13 = arith.constant 0 : index
      %13 = vector.load %arg5[%c0_12, %c0_13] : memref<1x32xf32, #tpu.memory_space<vmem>>, vector<1x32xf32>
      %14 = vector.broadcast %13 : vector<1x32xf32> to vector<18x32xf32>
      %15 = arith.addf %12, %14 : vector<18x32xf32>
      %c0_14 = arith.constant 0 : index
      %c0_15 = arith.constant 0 : index
      %16 = vector.load %arg6[%c0_14, %c0_15] : memref<18x32xf32, #tpu.memory_space<vmem>>, vector<18x32xf32>
      tpu.vector_store %arg6[%c0_14, %c0_15], %15 {strides = array<i32>} : memref<18x32xf32, #tpu.memory_space<vmem>>, vector<18x32xf32>,
    } else {
    }
    return
  }
  func.func @transform_0(%arg0: i32, %arg1: i32, %arg2: i32) -> (i32, i32) {
    %c0_i32 = arith.constant 0 : i32
    return %arg0, %arg2 : i32, i32
  }
  func.func @transform_1(%arg0: i32, %arg1: i32, %arg2: i32) -> (i32, i32) {
    %c0_i32 = arith.constant 0 : i32
    return %arg2, %arg1 : i32, i32
  }
  func.func @transform_2(%arg0: i32, %arg1: i32, %arg2: i32) -> (i32, i32) {
    %c0_i32 = arith.constant 0 : i32
    %c0_i32_0 = arith.constant 0 : i32
    return %c0_i32, %arg1 : i32, i32
  }
  func.func @transform_3(%arg0: i32, %arg1: i32, %arg2: i32) -> (i32, i32) {
    %c0_i32 = arith.constant 0 : i32
    return %arg0, %arg1 : i32, i32
  }
}

module attributes {stable_mosaic.version = 11 : i64} {
  func.func @_bn_stats_kernel(%arg0: i32, %arg1: memref<18x32xf32, #tpu.memory_space<vmem>>, %arg2: memref<1x32xf32, #tpu.memory_space<vmem>>, %arg3: memref<1x32xf32, #tpu.memory_space<vmem>>) attributes {dimension_semantics = [#tpu.dimension_semantics<arbitrary>], iteration_bounds = array<i64: 1>, scalar_prefetch = 0 : i64, scratch_operands = 0 : i64, tpu.core_type = #tpu.core_type<tc>, window_params = [{transform_indices = @transform_0, window_bounds = array<i64: 18, 32>}, {pipeline_mode = #tpu.pipeline_mode<synchronous>, transform_indices = @transform_1, window_bounds = array<i64: 1, 32>}, {pipeline_mode = #tpu.pipeline_mode<synchronous>, transform_indices = @transform_2, window_bounds = array<i64: 1, 32>}]} {
    %c0_i32 = arith.constant 0 : i32
    %0 = arith.cmpi eq, %arg0, %c0_i32 : i32
    %1 = arith.extui %0 : i1 to i32
    %c0_i32_0 = arith.constant 0 : i32
    %2 = arith.cmpi ne, %1, %c0_i32_0 : i32
    scf.if %2 {
      %cst_13 = arith.constant 0.000000e+00 : f32
      %23 = vector.broadcast %cst_13 : f32 to vector<1x32xf32>
      %c0_14 = arith.constant 0 : index
      %c0_15 = arith.constant 0 : index
      %24 = vector.load %arg2[%c0_14, %c0_15] : memref<1x32xf32, #tpu.memory_space<vmem>>, vector<1x32xf32>
      tpu.vector_store %arg2[%c0_14, %c0_15], %23 {strides = array<i32>} : memref<1x32xf32, #tpu.memory_space<vmem>>, vector<1x32xf32>,
      %cst_16 = arith.constant 0.000000e+00 : f32
      %25 = vector.broadcast %cst_16 : f32 to vector<1x32xf32>
      %c0_17 = arith.constant 0 : index
      %c0_18 = arith.constant 0 : index
      %26 = vector.load %arg3[%c0_17, %c0_18] : memref<1x32xf32, #tpu.memory_space<vmem>>, vector<1x32xf32>
      tpu.vector_store %arg3[%c0_17, %c0_18], %25 {strides = array<i32>} : memref<1x32xf32, #tpu.memory_space<vmem>>, vector<1x32xf32>,
    } else {
    }
    %c0 = arith.constant 0 : index
    %c0_1 = arith.constant 0 : index
    %3 = vector.load %arg1[%c0, %c0_1] : memref<18x32xf32, #tpu.memory_space<vmem>>, vector<18x32xf32>
    %c18_i32 = arith.constant 18 : i32
    %4 = arith.muli %arg0, %c18_i32 : i32
    %5 = tpu.iota {dimensions = array<i32: 0>} : vector<18x32xi32>
    %6 = vector.broadcast %4 : i32 to vector<18x32xi32>
    %7 = arith.addi %6, %5 : vector<18x32xi32>
    %c18_i32_2 = arith.constant 18 : i32
    %8 = vector.broadcast %c18_i32_2 : i32 to vector<18x32xi32>
    %9 = arith.cmpi slt, %7, %8 : vector<18x32xi32>
    %cst = arith.constant 0.000000e+00 : f32
    %10 = vector.broadcast %cst : f32 to vector<18x32xf32>
    %11 = arith.select %9, %3, %10 : vector<18x32xi1>, vector<18x32xf32>
    %c0_3 = arith.constant 0 : index
    %c0_4 = arith.constant 0 : index
    %12 = vector.load %arg2[%c0_3, %c0_4] : memref<1x32xf32, #tpu.memory_space<vmem>>, vector<1x32xf32>
    %cst_5 = arith.constant dense<0.000000e+00> : vector<32xf32>
    %13 = vector.multi_reduction <add>, %11, %cst_5 [0] : vector<18x32xf32> to vector<32xf32>
    %14 = vector.shape_cast %13 : vector<32xf32> to vector<1x32xf32>
    %15 = arith.addf %12, %14 : vector<1x32xf32>
    %c0_6 = arith.constant 0 : index
    %c0_7 = arith.constant 0 : index
    %16 = vector.load %arg2[%c0_6, %c0_7] : memref<1x32xf32, #tpu.memory_space<vmem>>, vector<1x32xf32>
    tpu.vector_store %arg2[%c0_6, %c0_7], %15 {strides = array<i32>} : memref<1x32xf32, #tpu.memory_space<vmem>>, vector<1x32xf32>,
    %c0_8 = arith.constant 0 : index
    %c0_9 = arith.constant 0 : index
    %17 = vector.load %arg3[%c0_8, %c0_9] : memref<1x32xf32, #tpu.memory_space<vmem>>, vector<1x32xf32>
    %18 = arith.mulf %11, %11 : vector<18x32xf32>
    %cst_10 = arith.constant dense<0.000000e+00> : vector<32xf32>
    %19 = vector.multi_reduction <add>, %18, %cst_10 [0] : vector<18x32xf32> to vector<32xf32>
    %20 = vector.shape_cast %19 : vector<32xf32> to vector<1x32xf32>
    %21 = arith.addf %17, %20 : vector<1x32xf32>
    %c0_11 = arith.constant 0 : index
    %c0_12 = arith.constant 0 : index
    %22 = vector.load %arg3[%c0_11, %c0_12] : memref<1x32xf32, #tpu.memory_space<vmem>>, vector<1x32xf32>
    tpu.vector_store %arg3[%c0_11, %c0_12], %21 {strides = array<i32>} : memref<1x32xf32, #tpu.memory_space<vmem>>, vector<1x32xf32>,
    return
  }
  func.func @transform_0(%arg0: i32) -> (i32, i32) {
    %c0_i32 = arith.constant 0 : i32
    %c0_i32_0 = arith.constant 0 : i32
    return %arg0, %c0_i32 : i32, i32
  }
  func.func @transform_1(%arg0: i32) -> (i32, i32) {
    %c0_i32 = arith.constant 0 : i32
    %c0_i32_0 = arith.constant 0 : i32
    %c0_i32_1 = arith.constant 0 : i32
    return %c0_i32, %c0_i32_0 : i32, i32
  }
  func.func @transform_2(%arg0: i32) -> (i32, i32) {
    %c0_i32 = arith.constant 0 : i32
    %c0_i32_0 = arith.constant 0 : i32
    %c0_i32_1 = arith.constant 0 : i32
    return %c0_i32, %c0_i32_0 : i32, i32
  }
}

module attributes {stable_mosaic.version = 11 : i64} {
  func.func @_affine_lrelu_kernel(%arg0: i32, %arg1: memref<18x32xf32, #tpu.memory_space<vmem>>, %arg2: memref<1x32xf32, #tpu.memory_space<vmem>>, %arg3: memref<1x32xf32, #tpu.memory_space<vmem>>, %arg4: memref<18x32xf32, #tpu.memory_space<vmem>>) attributes {dimension_semantics = [#tpu.dimension_semantics<parallel>], iteration_bounds = array<i64: 1>, scalar_prefetch = 0 : i64, scratch_operands = 0 : i64, tpu.core_type = #tpu.core_type<tc>, window_params = [{transform_indices = @transform_0, window_bounds = array<i64: 18, 32>}, {pipeline_mode = #tpu.pipeline_mode<synchronous>, transform_indices = @transform_1, window_bounds = array<i64: 1, 32>}, {pipeline_mode = #tpu.pipeline_mode<synchronous>, transform_indices = @transform_2, window_bounds = array<i64: 1, 32>}, {transform_indices = @transform_3, window_bounds = array<i64: 18, 32>}]} {
    %c0 = arith.constant 0 : index
    %c0_0 = arith.constant 0 : index
    %0 = vector.load %arg1[%c0, %c0_0] : memref<18x32xf32, #tpu.memory_space<vmem>>, vector<18x32xf32>
    %c0_1 = arith.constant 0 : index
    %c0_2 = arith.constant 0 : index
    %1 = vector.load %arg2[%c0_1, %c0_2] : memref<1x32xf32, #tpu.memory_space<vmem>>, vector<1x32xf32>
    %2 = vector.broadcast %1 : vector<1x32xf32> to vector<18x32xf32>
    %3 = arith.mulf %0, %2 : vector<18x32xf32>
    %c0_3 = arith.constant 0 : index
    %c0_4 = arith.constant 0 : index
    %4 = vector.load %arg3[%c0_3, %c0_4] : memref<1x32xf32, #tpu.memory_space<vmem>>, vector<1x32xf32>
    %5 = vector.broadcast %4 : vector<1x32xf32> to vector<18x32xf32>
    %6 = arith.addf %3, %5 : vector<18x32xf32>
    %cst = arith.constant 0.000000e+00 : f32
    %7 = vector.broadcast %cst : f32 to vector<18x32xf32>
    %8 = arith.cmpf oge, %6, %7 : vector<18x32xf32>
    %cst_5 = arith.constant 2.000000e-01 : f32
    %9 = vector.broadcast %cst_5 : f32 to vector<18x32xf32>
    %10 = arith.mulf %6, %9 : vector<18x32xf32>
    %11 = arith.select %8, %6, %10 : vector<18x32xi1>, vector<18x32xf32>
    %c0_6 = arith.constant 0 : index
    %c0_7 = arith.constant 0 : index
    %12 = vector.load %arg4[%c0_6, %c0_7] : memref<18x32xf32, #tpu.memory_space<vmem>>, vector<18x32xf32>
    tpu.vector_store %arg4[%c0_6, %c0_7], %11 {strides = array<i32>} : memref<18x32xf32, #tpu.memory_space<vmem>>, vector<18x32xf32>,
    return
  }
  func.func @transform_0(%arg0: i32) -> (i32, i32) {
    %c0_i32 = arith.constant 0 : i32
    %c0_i32_0 = arith.constant 0 : i32
    return %arg0, %c0_i32 : i32, i32
  }
  func.func @transform_1(%arg0: i32) -> (i32, i32) {
    %c0_i32 = arith.constant 0 : i32
    %c0_i32_0 = arith.constant 0 : i32
    %c0_i32_1 = arith.constant 0 : i32
    return %c0_i32, %c0_i32_0 : i32, i32
  }
  func.func @transform_2(%arg0: i32) -> (i32, i32) {
    %c0_i32 = arith.constant 0 : i32
    %c0_i32_0 = arith.constant 0 : i32
    %c0_i32_1 = arith.constant 0 : i32
    return %c0_i32, %c0_i32_0 : i32, i32
  }
  func.func @transform_3(%arg0: i32) -> (i32, i32) {
    %c0_i32 = arith.constant 0 : i32
    %c0_i32_0 = arith.constant 0 : i32
    return %arg0, %c0_i32 : i32, i32
  }
}

module attributes {stable_mosaic.version = 11 : i64} {
  func.func @_bn_stats_kernel(%arg0: i32, %arg1: memref<32x64xf32, #tpu.memory_space<vmem>>, %arg2: memref<1x64xf32, #tpu.memory_space<vmem>>, %arg3: memref<1x64xf32, #tpu.memory_space<vmem>>) attributes {dimension_semantics = [#tpu.dimension_semantics<arbitrary>], iteration_bounds = array<i64: 1>, scalar_prefetch = 0 : i64, scratch_operands = 0 : i64, tpu.core_type = #tpu.core_type<tc>, window_params = [{transform_indices = @transform_0, window_bounds = array<i64: 32, 64>}, {pipeline_mode = #tpu.pipeline_mode<synchronous>, transform_indices = @transform_1, window_bounds = array<i64: 1, 64>}, {pipeline_mode = #tpu.pipeline_mode<synchronous>, transform_indices = @transform_2, window_bounds = array<i64: 1, 64>}]} {
    %c0_i32 = arith.constant 0 : i32
    %0 = arith.cmpi eq, %arg0, %c0_i32 : i32
    %1 = arith.extui %0 : i1 to i32
    %c0_i32_0 = arith.constant 0 : i32
    %2 = arith.cmpi ne, %1, %c0_i32_0 : i32
    scf.if %2 {
      %cst_13 = arith.constant 0.000000e+00 : f32
      %23 = vector.broadcast %cst_13 : f32 to vector<1x64xf32>
      %c0_14 = arith.constant 0 : index
      %c0_15 = arith.constant 0 : index
      %24 = vector.load %arg2[%c0_14, %c0_15] : memref<1x64xf32, #tpu.memory_space<vmem>>, vector<1x64xf32>
      tpu.vector_store %arg2[%c0_14, %c0_15], %23 {strides = array<i32>} : memref<1x64xf32, #tpu.memory_space<vmem>>, vector<1x64xf32>,
      %cst_16 = arith.constant 0.000000e+00 : f32
      %25 = vector.broadcast %cst_16 : f32 to vector<1x64xf32>
      %c0_17 = arith.constant 0 : index
      %c0_18 = arith.constant 0 : index
      %26 = vector.load %arg3[%c0_17, %c0_18] : memref<1x64xf32, #tpu.memory_space<vmem>>, vector<1x64xf32>
      tpu.vector_store %arg3[%c0_17, %c0_18], %25 {strides = array<i32>} : memref<1x64xf32, #tpu.memory_space<vmem>>, vector<1x64xf32>,
    } else {
    }
    %c0 = arith.constant 0 : index
    %c0_1 = arith.constant 0 : index
    %3 = vector.load %arg1[%c0, %c0_1] : memref<32x64xf32, #tpu.memory_space<vmem>>, vector<32x64xf32>
    %c32_i32 = arith.constant 32 : i32
    %4 = arith.muli %arg0, %c32_i32 : i32
    %5 = tpu.iota {dimensions = array<i32: 0>} : vector<32x64xi32>
    %6 = vector.broadcast %4 : i32 to vector<32x64xi32>
    %7 = arith.addi %6, %5 : vector<32x64xi32>
    %c32_i32_2 = arith.constant 32 : i32
    %8 = vector.broadcast %c32_i32_2 : i32 to vector<32x64xi32>
    %9 = arith.cmpi slt, %7, %8 : vector<32x64xi32>
    %cst = arith.constant 0.000000e+00 : f32
    %10 = vector.broadcast %cst : f32 to vector<32x64xf32>
    %11 = arith.select %9, %3, %10 : vector<32x64xi1>, vector<32x64xf32>
    %c0_3 = arith.constant 0 : index
    %c0_4 = arith.constant 0 : index
    %12 = vector.load %arg2[%c0_3, %c0_4] : memref<1x64xf32, #tpu.memory_space<vmem>>, vector<1x64xf32>
    %cst_5 = arith.constant dense<0.000000e+00> : vector<64xf32>
    %13 = vector.multi_reduction <add>, %11, %cst_5 [0] : vector<32x64xf32> to vector<64xf32>
    %14 = vector.shape_cast %13 : vector<64xf32> to vector<1x64xf32>
    %15 = arith.addf %12, %14 : vector<1x64xf32>
    %c0_6 = arith.constant 0 : index
    %c0_7 = arith.constant 0 : index
    %16 = vector.load %arg2[%c0_6, %c0_7] : memref<1x64xf32, #tpu.memory_space<vmem>>, vector<1x64xf32>
    tpu.vector_store %arg2[%c0_6, %c0_7], %15 {strides = array<i32>} : memref<1x64xf32, #tpu.memory_space<vmem>>, vector<1x64xf32>,
    %c0_8 = arith.constant 0 : index
    %c0_9 = arith.constant 0 : index
    %17 = vector.load %arg3[%c0_8, %c0_9] : memref<1x64xf32, #tpu.memory_space<vmem>>, vector<1x64xf32>
    %18 = arith.mulf %11, %11 : vector<32x64xf32>
    %cst_10 = arith.constant dense<0.000000e+00> : vector<64xf32>
    %19 = vector.multi_reduction <add>, %18, %cst_10 [0] : vector<32x64xf32> to vector<64xf32>
    %20 = vector.shape_cast %19 : vector<64xf32> to vector<1x64xf32>
    %21 = arith.addf %17, %20 : vector<1x64xf32>
    %c0_11 = arith.constant 0 : index
    %c0_12 = arith.constant 0 : index
    %22 = vector.load %arg3[%c0_11, %c0_12] : memref<1x64xf32, #tpu.memory_space<vmem>>, vector<1x64xf32>
    tpu.vector_store %arg3[%c0_11, %c0_12], %21 {strides = array<i32>} : memref<1x64xf32, #tpu.memory_space<vmem>>, vector<1x64xf32>,
    return
  }
  func.func @transform_0(%arg0: i32) -> (i32, i32) {
    %c0_i32 = arith.constant 0 : i32
    %c0_i32_0 = arith.constant 0 : i32
    return %arg0, %c0_i32 : i32, i32
  }
  func.func @transform_1(%arg0: i32) -> (i32, i32) {
    %c0_i32 = arith.constant 0 : i32
    %c0_i32_0 = arith.constant 0 : i32
    %c0_i32_1 = arith.constant 0 : i32
    return %c0_i32, %c0_i32_0 : i32, i32
  }
  func.func @transform_2(%arg0: i32) -> (i32, i32) {
    %c0_i32 = arith.constant 0 : i32
    %c0_i32_0 = arith.constant 0 : i32
    %c0_i32_1 = arith.constant 0 : i32
    return %c0_i32, %c0_i32_0 : i32, i32
  }
}

module attributes {stable_mosaic.version = 11 : i64} {
  func.func @_mm_bias_act_kernel(%arg0: i32, %arg1: i32, %arg2: i32, %arg3: memref<32x512xbf16, #tpu.memory_space<vmem>>, %arg4: memref<512x64xbf16, #tpu.memory_space<vmem>>, %arg5: memref<1x64xf32, #tpu.memory_space<vmem>>, %arg6: memref<32x64xf32, #tpu.memory_space<vmem>>, %arg7: memref<32x64xf32, #tpu.memory_space<vmem>>) attributes {dimension_semantics = [#tpu.dimension_semantics<parallel>, #tpu.dimension_semantics<parallel>, #tpu.dimension_semantics<arbitrary>], iteration_bounds = array<i64: 1, 1, 1>, scalar_prefetch = 0 : i64, scratch_operands = 1 : i64, tpu.core_type = #tpu.core_type<tc>, window_params = [{transform_indices = @transform_0, window_bounds = array<i64: 32, 512>}, {transform_indices = @transform_1, window_bounds = array<i64: 512, 64>}, {transform_indices = @transform_2, window_bounds = array<i64: 1, 64>}, {transform_indices = @transform_3, window_bounds = array<i64: 32, 64>}]} {
    %c0_i32 = arith.constant 0 : i32
    %0 = arith.cmpi eq, %arg2, %c0_i32 : i32
    %1 = arith.extui %0 : i1 to i32
    %c0_i32_0 = arith.constant 0 : i32
    %2 = arith.cmpi ne, %1, %c0_i32_0 : i32
    scf.if %2 {
      %cst_10 = arith.constant 0.000000e+00 : f32
      %12 = vector.broadcast %cst_10 : f32 to vector<32x64xf32>
      %c0_11 = arith.constant 0 : index
      %c0_12 = arith.constant 0 : index
      %13 = vector.load %arg7[%c0_11, %c0_12] : memref<32x64xf32, #tpu.memory_space<vmem>>, vector<32x64xf32>
      tpu.vector_store %arg7[%c0_11, %c0_12], %12 {strides = array<i32>} : memref<32x64xf32, #tpu.memory_space<vmem>>, vector<32x64xf32>,
    } else {
    }
    %c0 = arith.constant 0 : index
    %c0_1 = arith.constant 0 : index
    %3 = vector.load %arg7[%c0, %c0_1] : memref<32x64xf32, #tpu.memory_space<vmem>>, vector<32x64xf32>
    %c0_2 = arith.constant 0 : index
    %c0_3 = arith.constant 0 : index
    %4 = vector.load %arg3[%c0_2, %c0_3] : memref<32x512xbf16, #tpu.memory_space<vmem>>, vector<32x512xbf16>
    %c0_4 = arith.constant 0 : index
    %c0_5 = arith.constant 0 : index
    %5 = vector.load %arg4[%c0_4, %c0_5] : memref<512x64xbf16, #tpu.memory_space<vmem>>, vector<512x64xbf16>
    %cst = arith.constant dense<0.000000e+00> : vector<32x64xf32>
    %6 = tpu.matmul %4, %5, %cst {dimension_numbers = #tpu.dot_dimension_numbers<[1], [0], [0], [1], [0, 0, 1, 1], [], []>} : vector<32x512xbf16>, vector<512x64xbf16>, vector<32x64xf32> -> vector<32x64xf32>
    %7 = arith.addf %3, %6 : vector<32x64xf32>
    %c0_6 = arith.constant 0 : index
    %c0_7 = arith.constant 0 : index
    %8 = vector.load %arg7[%c0_6, %c0_7] : memref<32x64xf32, #tpu.memory_space<vmem>>, vector<32x64xf32>
    tpu.vector_store %arg7[%c0_6, %c0_7], %7 {strides = array<i32>} : memref<32x64xf32, #tpu.memory_space<vmem>>, vector<32x64xf32>,
    %c0_i32_8 = arith.constant 0 : i32
    %9 = arith.cmpi eq, %arg2, %c0_i32_8 : i32
    %10 = arith.extui %9 : i1 to i32
    %c0_i32_9 = arith.constant 0 : i32
    %11 = arith.cmpi ne, %10, %c0_i32_9 : i32
    scf.if %11 {
      %c0_10 = arith.constant 0 : index
      %c0_11 = arith.constant 0 : index
      %12 = vector.load %arg7[%c0_10, %c0_11] : memref<32x64xf32, #tpu.memory_space<vmem>>, vector<32x64xf32>
      %c0_12 = arith.constant 0 : index
      %c0_13 = arith.constant 0 : index
      %13 = vector.load %arg5[%c0_12, %c0_13] : memref<1x64xf32, #tpu.memory_space<vmem>>, vector<1x64xf32>
      %14 = vector.broadcast %13 : vector<1x64xf32> to vector<32x64xf32>
      %15 = arith.addf %12, %14 : vector<32x64xf32>
      %c0_14 = arith.constant 0 : index
      %c0_15 = arith.constant 0 : index
      %16 = vector.load %arg6[%c0_14, %c0_15] : memref<32x64xf32, #tpu.memory_space<vmem>>, vector<32x64xf32>
      tpu.vector_store %arg6[%c0_14, %c0_15], %15 {strides = array<i32>} : memref<32x64xf32, #tpu.memory_space<vmem>>, vector<32x64xf32>,
    } else {
    }
    return
  }
  func.func @transform_0(%arg0: i32, %arg1: i32, %arg2: i32) -> (i32, i32) {
    %c0_i32 = arith.constant 0 : i32
    return %arg0, %arg2 : i32, i32
  }
  func.func @transform_1(%arg0: i32, %arg1: i32, %arg2: i32) -> (i32, i32) {
    %c0_i32 = arith.constant 0 : i32
    return %arg2, %arg1 : i32, i32
  }
  func.func @transform_2(%arg0: i32, %arg1: i32, %arg2: i32) -> (i32, i32) {
    %c0_i32 = arith.constant 0 : i32
    %c0_i32_0 = arith.constant 0 : i32
    return %c0_i32, %arg1 : i32, i32
  }
  func.func @transform_3(%arg0: i32, %arg1: i32, %arg2: i32) -> (i32, i32) {
    %c0_i32 = arith.constant 0 : i32
    return %arg0, %arg1 : i32, i32
  }
}

module attributes {stable_mosaic.version = 11 : i64} {
  func.func @_affine_lrelu_kernel(%arg0: i32, %arg1: memref<32x64xf32, #tpu.memory_space<vmem>>, %arg2: memref<1x64xf32, #tpu.memory_space<vmem>>, %arg3: memref<1x64xf32, #tpu.memory_space<vmem>>, %arg4: memref<32x64xf32, #tpu.memory_space<vmem>>) attributes {dimension_semantics = [#tpu.dimension_semantics<parallel>], iteration_bounds = array<i64: 1>, scalar_prefetch = 0 : i64, scratch_operands = 0 : i64, tpu.core_type = #tpu.core_type<tc>, window_params = [{transform_indices = @transform_0, window_bounds = array<i64: 32, 64>}, {pipeline_mode = #tpu.pipeline_mode<synchronous>, transform_indices = @transform_1, window_bounds = array<i64: 1, 64>}, {pipeline_mode = #tpu.pipeline_mode<synchronous>, transform_indices = @transform_2, window_bounds = array<i64: 1, 64>}, {transform_indices = @transform_3, window_bounds = array<i64: 32, 64>}]} {
    %c0 = arith.constant 0 : index
    %c0_0 = arith.constant 0 : index
    %0 = vector.load %arg1[%c0, %c0_0] : memref<32x64xf32, #tpu.memory_space<vmem>>, vector<32x64xf32>
    %c0_1 = arith.constant 0 : index
    %c0_2 = arith.constant 0 : index
    %1 = vector.load %arg2[%c0_1, %c0_2] : memref<1x64xf32, #tpu.memory_space<vmem>>, vector<1x64xf32>
    %2 = vector.broadcast %1 : vector<1x64xf32> to vector<32x64xf32>
    %3 = arith.mulf %0, %2 : vector<32x64xf32>
    %c0_3 = arith.constant 0 : index
    %c0_4 = arith.constant 0 : index
    %4 = vector.load %arg3[%c0_3, %c0_4] : memref<1x64xf32, #tpu.memory_space<vmem>>, vector<1x64xf32>
    %5 = vector.broadcast %4 : vector<1x64xf32> to vector<32x64xf32>
    %6 = arith.addf %3, %5 : vector<32x64xf32>
    %cst = arith.constant 0.000000e+00 : f32
    %7 = vector.broadcast %cst : f32 to vector<32x64xf32>
    %8 = arith.cmpf oge, %6, %7 : vector<32x64xf32>
    %cst_5 = arith.constant 2.000000e-01 : f32
    %9 = vector.broadcast %cst_5 : f32 to vector<32x64xf32>
    %10 = arith.mulf %6, %9 : vector<32x64xf32>
    %11 = arith.select %8, %6, %10 : vector<32x64xi1>, vector<32x64xf32>
    %c0_6 = arith.constant 0 : index
    %c0_7 = arith.constant 0 : index
    %12 = vector.load %arg4[%c0_6, %c0_7] : memref<32x64xf32, #tpu.memory_space<vmem>>, vector<32x64xf32>
    tpu.vector_store %arg4[%c0_6, %c0_7], %11 {strides = array<i32>} : memref<32x64xf32, #tpu.memory_space<vmem>>, vector<32x64xf32>,
    return
  }
  func.func @transform_0(%arg0: i32) -> (i32, i32) {
    %c0_i32 = arith.constant 0 : i32
    %c0_i32_0 = arith.constant 0 : i32
    return %arg0, %c0_i32 : i32, i32
  }
  func.func @transform_1(%arg0: i32) -> (i32, i32) {
    %c0_i32 = arith.constant 0 : i32
    %c0_i32_0 = arith.constant 0 : i32
    %c0_i32_1 = arith.constant 0 : i32
    return %c0_i32, %c0_i32_0 : i32, i32
  }
  func.func @transform_2(%arg0: i32) -> (i32, i32) {
    %c0_i32 = arith.constant 0 : i32
    %c0_i32_0 = arith.constant 0 : i32
    %c0_i32_1 = arith.constant 0 : i32
    return %c0_i32, %c0_i32_0 : i32, i32
  }
  func.func @transform_3(%arg0: i32) -> (i32, i32) {
    %c0_i32 = arith.constant 0 : i32
    %c0_i32_0 = arith.constant 0 : i32
    return %arg0, %c0_i32 : i32, i32
  }
}

module attributes {stable_mosaic.version = 11 : i64} {
  func.func @_mm_bias_act_kernel(%arg0: i32, %arg1: i32, %arg2: i32, %arg3: memref<50x512xbf16, #tpu.memory_space<vmem>>, %arg4: memref<512x128xbf16, #tpu.memory_space<vmem>>, %arg5: memref<1x128xf32, #tpu.memory_space<vmem>>, %arg6: memref<50x128xf32, #tpu.memory_space<vmem>>, %arg7: memref<50x128xf32, #tpu.memory_space<vmem>>) attributes {dimension_semantics = [#tpu.dimension_semantics<parallel>, #tpu.dimension_semantics<parallel>, #tpu.dimension_semantics<arbitrary>], iteration_bounds = array<i64: 1, 1, 2>, scalar_prefetch = 0 : i64, scratch_operands = 1 : i64, tpu.core_type = #tpu.core_type<tc>, window_params = [{transform_indices = @transform_0, window_bounds = array<i64: 50, 512>}, {transform_indices = @transform_1, window_bounds = array<i64: 512, 128>}, {transform_indices = @transform_2, window_bounds = array<i64: 1, 128>}, {transform_indices = @transform_3, window_bounds = array<i64: 50, 128>}]} {
    %c0_i32 = arith.constant 0 : i32
    %0 = arith.cmpi eq, %arg2, %c0_i32 : i32
    %1 = arith.extui %0 : i1 to i32
    %c0_i32_0 = arith.constant 0 : i32
    %2 = arith.cmpi ne, %1, %c0_i32_0 : i32
    scf.if %2 {
      %cst_9 = arith.constant 0.000000e+00 : f32
      %12 = vector.broadcast %cst_9 : f32 to vector<50x128xf32>
      %c0_10 = arith.constant 0 : index
      %c0_11 = arith.constant 0 : index
      %13 = vector.load %arg7[%c0_10, %c0_11] : memref<50x128xf32, #tpu.memory_space<vmem>>, vector<50x128xf32>
      tpu.vector_store %arg7[%c0_10, %c0_11], %12 {strides = array<i32>} : memref<50x128xf32, #tpu.memory_space<vmem>>, vector<50x128xf32>,
    } else {
    }
    %c0 = arith.constant 0 : index
    %c0_1 = arith.constant 0 : index
    %3 = vector.load %arg7[%c0, %c0_1] : memref<50x128xf32, #tpu.memory_space<vmem>>, vector<50x128xf32>
    %c0_2 = arith.constant 0 : index
    %c0_3 = arith.constant 0 : index
    %4 = vector.load %arg3[%c0_2, %c0_3] : memref<50x512xbf16, #tpu.memory_space<vmem>>, vector<50x512xbf16>
    %c0_4 = arith.constant 0 : index
    %c0_5 = arith.constant 0 : index
    %5 = vector.load %arg4[%c0_4, %c0_5] : memref<512x128xbf16, #tpu.memory_space<vmem>>, vector<512x128xbf16>
    %cst = arith.constant dense<0.000000e+00> : vector<50x128xf32>
    %6 = tpu.matmul %4, %5, %cst {dimension_numbers = #tpu.dot_dimension_numbers<[1], [0], [0], [1], [0, 0, 1, 1], [], []>} : vector<50x512xbf16>, vector<512x128xbf16>, vector<50x128xf32> -> vector<50x128xf32>
    %7 = arith.addf %3, %6 : vector<50x128xf32>
    %c0_6 = arith.constant 0 : index
    %c0_7 = arith.constant 0 : index
    %8 = vector.load %arg7[%c0_6, %c0_7] : memref<50x128xf32, #tpu.memory_space<vmem>>, vector<50x128xf32>
    tpu.vector_store %arg7[%c0_6, %c0_7], %7 {strides = array<i32>} : memref<50x128xf32, #tpu.memory_space<vmem>>, vector<50x128xf32>,
    %c1_i32 = arith.constant 1 : i32
    %9 = arith.cmpi eq, %arg2, %c1_i32 : i32
    %10 = arith.extui %9 : i1 to i32
    %c0_i32_8 = arith.constant 0 : i32
    %11 = arith.cmpi ne, %10, %c0_i32_8 : i32
    scf.if %11 {
      %c0_9 = arith.constant 0 : index
      %c0_10 = arith.constant 0 : index
      %12 = vector.load %arg7[%c0_9, %c0_10] : memref<50x128xf32, #tpu.memory_space<vmem>>, vector<50x128xf32>
      %c0_11 = arith.constant 0 : index
      %c0_12 = arith.constant 0 : index
      %13 = vector.load %arg5[%c0_11, %c0_12] : memref<1x128xf32, #tpu.memory_space<vmem>>, vector<1x128xf32>
      %14 = vector.broadcast %13 : vector<1x128xf32> to vector<50x128xf32>
      %15 = arith.addf %12, %14 : vector<50x128xf32>
      %c0_13 = arith.constant 0 : index
      %c0_14 = arith.constant 0 : index
      %16 = vector.load %arg6[%c0_13, %c0_14] : memref<50x128xf32, #tpu.memory_space<vmem>>, vector<50x128xf32>
      tpu.vector_store %arg6[%c0_13, %c0_14], %15 {strides = array<i32>} : memref<50x128xf32, #tpu.memory_space<vmem>>, vector<50x128xf32>,
    } else {
    }
    return
  }
  func.func @transform_0(%arg0: i32, %arg1: i32, %arg2: i32) -> (i32, i32) {
    %c0_i32 = arith.constant 0 : i32
    return %arg0, %arg2 : i32, i32
  }
  func.func @transform_1(%arg0: i32, %arg1: i32, %arg2: i32) -> (i32, i32) {
    %c0_i32 = arith.constant 0 : i32
    return %arg2, %arg1 : i32, i32
  }
  func.func @transform_2(%arg0: i32, %arg1: i32, %arg2: i32) -> (i32, i32) {
    %c0_i32 = arith.constant 0 : i32
    %c0_i32_0 = arith.constant 0 : i32
    return %c0_i32, %arg1 : i32, i32
  }
  func.func @transform_3(%arg0: i32, %arg1: i32, %arg2: i32) -> (i32, i32) {
    %c0_i32 = arith.constant 0 : i32
    return %arg0, %arg1 : i32, i32
  }
}

</mosaic_0001>

<llo_original>
// kernel: multiscale_forward.58
$region0: #{multiscale_forward.58}
  #allocation0 [shape = 'u32[]', space=smem, size = 0x4, offset = 0x4, fixed_abs, tag = 'smem constant byte address 0x4 - core index']
  #allocation1 [shape = 'u32[144,128]{1,0:T(1,128)}', space=vmem, size = 0x12000, scoped, tag = 'internal scratch']
  %s0 = inlined_call_operand.vmem [shape: f32[2,5,5,4], index: 0, kind: input, shape index: {}]
  %s1 = inlined_call_operand.vmem [shape: f32[2,5,5,4], index: 1, kind: input, shape index: {}]
  %s2 = inlined_call_operand.vmem [shape: f32[2,5,5,4], index: 2, kind: input, shape index: {}]
  %s3 = inlined_call_operand.vmem [shape: f32[2,5,5,4], index: 3, kind: input, shape index: {}]
  %s4 = inlined_call_operand.vmem [shape: f32[1,4,4,4], index: 4, kind: input, shape index: {}]
  %s5 = inlined_call_operand.vmem [shape: f32[2,4,4,4], index: 5, kind: output, shape index: {}]
  %s6 = sld [smem:[#allocation0]]
  $region53: #{multiscale_forward.58} parent=0
    _
  %s8 = ssub.s32 1, %s6
  %s9 = scalar_select 0, %s8, %s6
  loop: start=0, step=1, limit=4
  $region2: #{multiscale_forward.58} parent=0 // loop_pre_header
    _
  $region3: #{multiscale_forward.58} parent=0 // loop_header
    %s11 = sphi 0, %s15
    %p12 = scmp.ge.s32.totalorder %s11, 4
    %s21 = sphi 0, %s23
    %s24 = sphi 0, %s21
    %s25 = sphi 0, %s24
    %s41 = sphi 0, %s25
    %s47 = sphi 0, %s49
    %s50 = sphi 0, %s47
    %s51 = sphi 0, %s50
    %s67 = sphi 0, %s51
    %s73 = sphi 0, %s75
    %s76 = sphi 0, %s73
    %s77 = sphi 0, %s76
    %s93 = sphi 0, %s77
    %s99 = sphi 0, %s101
    %s102 = sphi 0, %s99
    %s103 = sphi 0, %s102
    %s119 = sphi 0, %s103
    %s123 = sphi 0, %s123
    %s125 = sphi 0, %s123
    %s126 = sphi 0, %s125
    %s140 = sphi 0, %s126
    %s146 = sphi 0, %s148
    %s149 = sphi 0, %s146
    %s150 = sphi 0, %s149
    %s166 = sphi 0, %s150
  $region4: #{multiscale_forward.58} parent=0 // loop_header_branch
    %14 = sbr.rel (%p12) target = $region8
  $region5: #{multiscale_forward.58} parent=0 // loop_body
    %s16 = ssub.s32 %s11, 1
    %s17 = ssub.s32 %s11, 2
    %s18 = sadd.s32 %s11, 1
    %s19 = ssub.s32 %s11, %s18
    %p20 = scmp.eq.s32.totalorder %s19, 0
    %s22 = sadd.s32 %s21, 1
    %s23 = scalar_select %p20, %s21, %s22
    %p26 = pneg %p20
    %p27 = scmp.eq.s32.totalorder %s11, 1
    %p28 = por %p26, %p27
    %p29 = scmp.ne.s32.totalorder %s21, %s24
    %p30 = scmp.eq.s32.totalorder %s11, 0
    %p31 = por %p29, %p30
    %p32 = scmp.ne.s32.totalorder %s21, %s24
    %p33 = scmp.eq.s32.totalorder %s16, 1
    %p34 = por %p32, %p33
    %p35 = scmp.ne.s32.totalorder %s24, %s25
    %p36 = scmp.eq.s32.totalorder %s16, 0
    %p37 = por %p35, %p36
    %p38 = scmp.ne.s32.totalorder %s24, %s25
    %p39 = scmp.eq.s32.totalorder %s17, 1
    %p40 = por %p38, %p39
    %p42 = scmp.ne.s32.totalorder %s25, %s41
    %p43 = scmp.eq.s32.totalorder %s17, 0
    %p44 = por %p42, %p43
    %s45 = ssub.s32 %s11, %s18
    %p46 = scmp.eq.s32.totalorder %s45, 0
    %s48 = sadd.s32 %s47, 1
    %s49 = scalar_select %p46, %s47, %s48
    %p52 = pneg %p46
    %p53 = scmp.eq.s32.totalorder %s11, 1
    %p54 = por %p52, %p53
    %p55 = scmp.ne.s32.totalorder %s47, %s50
    %p56 = scmp.eq.s32.totalorder %s11, 0
    %p57 = por %p55, %p56
    %p58 = scmp.ne.s32.totalorder %s47, %s50
    %p59 = scmp.eq.s32.totalorder %s16, 1
    %p60 = por %p58, %p59
    %p61 = scmp.ne.s32.totalorder %s50, %s51
    %p62 = scmp.eq.s32.totalorder %s16, 0
    %p63 = por %p61, %p62
    %p64 = scmp.ne.s32.totalorder %s50, %s51
    %p65 = scmp.eq.s32.totalorder %s17, 1
    %p66 = por %p64, %p65
    %p68 = scmp.ne.s32.totalorder %s51, %s67
    %p69 = scmp.eq.s32.totalorder %s17, 0
    %p70 = por %p68, %p69
    %s71 = ssub.s32 %s11, %s18
    %p72 = scmp.eq.s32.totalorder %s71, 0
    %s74 = sadd.s32 %s73, 1
    %s75 = scalar_select %p72, %s73, %s74
    %p78 = pneg %p72
    %p79 = scmp.eq.s32.totalorder %s11, 1
    %p80 = por %p78, %p79
    %p81 = scmp.ne.s32.totalorder %s73, %s76
    %p82 = scmp.eq.s32.totalorder %s11, 0
    %p83 = por %p81, %p82
    %p84 = scmp.ne.s32.totalorder %s73, %s76
    %p85 = scmp.eq.s32.totalorder %s16, 1
    %p86 = por %p84, %p85
    %p87 = scmp.ne.s32.totalorder %s76, %s77
    %p88 = scmp.eq.s32.totalorder %s16, 0
    %p89 = por %p87, %p88
    %p90 = scmp.ne.s32.totalorder %s76, %s77
    %p91 = scmp.eq.s32.totalorder %s17, 1
    %p92 = por %p90, %p91
    %p94 = scmp.ne.s32.totalorder %s77, %s93
    %p95 = scmp.eq.s32.totalorder %s17, 0
    %p96 = por %p94, %p95
    %s97 = ssub.s32 %s11, %s18
    %p98 = scmp.eq.s32.totalorder %s97, 0
    %s100 = sadd.s32 %s99, 1
    %s101 = scalar_select %p98, %s99, %s100
    %p104 = pneg %p98
    %p105 = scmp.eq.s32.totalorder %s11, 1
    %p106 = por %p104, %p105
    %p107 = scmp.ne.s32.totalorder %s99, %s102
    %p108 = scmp.eq.s32.totalorder %s11, 0
    %p109 = por %p107, %p108
    %p110 = scmp.ne.s32.totalorder %s99, %s102
    %p111 = scmp.eq.s32.totalorder %s16, 1
    %p112 = por %p110, %p111
    %p113 = scmp.ne.s32.totalorder %s102, %s103
    %p114 = scmp.eq.s32.totalorder %s16, 0
    %p115 = por %p113, %p114
    %p116 = scmp.ne.s32.totalorder %s102, %s103
    %p117 = scmp.eq.s32.totalorder %s17, 1
    %p118 = por %p116, %p117
    %p120 = scmp.ne.s32.totalorder %s103, %s119
    %p121 = scmp.eq.s32.totalorder %s17, 0
    %p122 = por %p120, %p121
    %s124 = sadd.s32 %s123, 1
    %p127 = scmp.eq.s32.totalorder %s11, 1
    %p128 = scmp.ne.s32.totalorder %s123, %s125
    %p129 = scmp.eq.s32.totalorder %s11, 0
    %p130 = por %p128, %p129
    %p131 = scmp.ne.s32.totalorder %s123, %s125
    %p132 = scmp.eq.s32.totalorder %s16, 1
    %p133 = por %p131, %p132
    %p134 = scmp.ne.s32.totalorder %s125, %s126
    %p135 = scmp.eq.s32.totalorder %s16, 0
    %p136 = por %p134, %p135
    %p137 = scmp.ne.s32.totalorder %s125, %s126
    %p138 = scmp.eq.s32.totalorder %s17, 1
    %p139 = por %p137, %p138
    %p141 = scmp.ne.s32.totalorder %s126, %s140
    %p142 = scmp.eq.s32.totalorder %s17, 0
    %p143 = por %p141, %p142
    %s144 = ssub.s32 %s11, %s18
    %p145 = scmp.eq.s32.totalorder %s144, 0
    %s147 = sadd.s32 %s146, 1
    %s148 = scalar_select %p145, %s146, %s147
    %p151 = pneg %p145
    %p152 = scmp.eq.s32.totalorder %s11, 1
    %p153 = por %p151, %p152
    %p154 = scmp.ne.s32.totalorder %s146, %s149
    %p155 = scmp.eq.s32.totalorder %s11, 0
    %p156 = por %p154, %p155
    %p157 = scmp.ne.s32.totalorder %s146, %s149
    %p158 = scmp.eq.s32.totalorder %s16, 1
    %p159 = por %p157, %p158
    %p160 = scmp.ne.s32.totalorder %s149, %s150
    %p161 = scmp.eq.s32.totalorder %s16, 0
    %p162 = por %p160, %p161
    %p163 = scmp.ne.s32.totalorder %s149, %s150
    %p164 = scmp.eq.s32.totalorder %s17, 1
    %p165 = por %p163, %p164
    %p167 = scmp.ne.s32.totalorder %s150, %s166
    %p168 = scmp.eq.s32.totalorder %s17, 0
    %p169 = por %p167, %p168
    %p170 = scmp.le.s32.totalorder 1, %s11
    %p171 = scmp.lt.s32.totalorder %s11, 3
    %p172 = pnand %p170, %p171
    %p173 = pneg %p172
    // Predicated region
    $region9: #{multiscale_forward.58} parent=5 // pred_check
      _
    $region10: #{multiscale_forward.58} parent=5 // pred_check_branch
      %175 = sbr.rel (%p172) target = $region12
    $region11: #{multiscale_forward.58} parent=5 // pred_region
      %s176 = ssub.s32 %s11, 1
      // Predicated region
      $region13: #{multiscale_forward.58} parent=11 // pred_check
        %p177 = pneg %p136
      $region14: #{multiscale_forward.58} parent=11 // pred_check_branch
        %179 = sbr.rel (%p177) target = $region16
      $region15: #{multiscale_forward.58} parent=11 // pred_region
        _
      $region16: #{multiscale_forward.58} parent=11 // pred_fallthru
        _
    $region12: #{multiscale_forward.58} parent=5 // pred_fallthru
      _
    %p180 = scmp.lt.s32.totalorder %s11, 2
    // Predicated region
    $region17: #{multiscale_forward.58} parent=5 // pred_check
      %p181 = pneg %p180
    $region18: #{multiscale_forward.58} parent=5 // pred_check_branch
      %183 = sbr.rel (%p181) target = $region20
    $region19: #{multiscale_forward.58} parent=5 // pred_region
      // Predicated region
      $region21: #{multiscale_forward.58} parent=19 // pred_check
        %p184 = pneg %p31
      $region22: #{multiscale_forward.58} parent=19 // pred_check_branch
        %186 = sbr.rel (%p184) target = $region24
      $region23: #{multiscale_forward.58} parent=19 // pred_region
        %p187 = scmp.lt.s32.totalorder %s11, 1
        %s188 = scalar_select %p187, %s11, 1
        %s189 = smul.addr %s188, 5
        %s190 = smul.addr %s189, 8
        %s191 = scalar_lea.vmem %s0, %s190
      $region24: #{multiscale_forward.58} parent=19 // pred_fallthru
        _
      // Predicated region
      $region25: #{multiscale_forward.58} parent=19 // pred_check
        %p192 = pneg %p57
      $region26: #{multiscale_forward.58} parent=19 // pred_check_branch
        %194 = sbr.rel (%p192) target = $region28
      $region27: #{multiscale_forward.58} parent=19 // pred_region
        %p195 = scmp.lt.s32.totalorder %s11, 1
        %s196 = scalar_select %p195, %s11, 1
        %s197 = smul.addr %s196, 5
        %s198 = smul.addr %s197, 8
        %s199 = scalar_lea.vmem %s1, %s198
      $region28: #{multiscale_forward.58} parent=19 // pred_fallthru
        _
      // Predicated region
      $region29: #{multiscale_forward.58} parent=19 // pred_check
        %p200 = pneg %p83
      $region30: #{multiscale_forward.58} parent=19 // pred_check_branch
        %202 = sbr.rel (%p200) target = $region32
      $region31: #{multiscale_forward.58} parent=19 // pred_region
        %p203 = scmp.lt.s32.totalorder %s11, 1
        %s204 = scalar_select %p203, %s11, 1
        %s205 = smul.addr %s204, 5
        %s206 = smul.addr %s205, 8
        %s207 = scalar_lea.vmem %s2, %s206
      $region32: #{multiscale_forward.58} parent=19 // pred_fallthru
        _
      // Predicated region
      $region33: #{multiscale_forward.58} parent=19 // pred_check
        %p208 = pneg %p109
      $region34: #{multiscale_forward.58} parent=19 // pred_check_branch
        %210 = sbr.rel (%p208) target = $region36
      $region35: #{multiscale_forward.58} parent=19 // pred_region
        %p211 = scmp.lt.s32.totalorder %s11, 1
        %s212 = scalar_select %p211, %s11, 1
        %s213 = smul.addr %s212, 5
        %s214 = smul.addr %s213, 8
        %s215 = scalar_lea.vmem %s3, %s214
      $region36: #{multiscale_forward.58} parent=19 // pred_fallthru
        _
    $region20: #{multiscale_forward.58} parent=5 // pred_fallthru
      _
    %p216 = scmp.le.s32.totalorder 1, %s11
    %p217 = scmp.lt.s32.totalorder %s11, 3
    %p218 = pnand %p216, %p217
    %p219 = pneg %p218
    // Predicated region
    $region37: #{multiscale_forward.58} parent=5 // pred_check
      _
    $region38: #{multiscale_forward.58} parent=5 // pred_check_branch
      %221 = sbr.rel (%p218) target = $region40
    $region39: #{multiscale_forward.58} parent=5 // pred_region
      %s222 = ssub.s32 %s11, 1
      %p223 = scmp.lt.s32.totalorder %s16, 1
      %s224 = scalar_select %p223, %s16, 1
      %s225 = smul.addr %s224, 5
      %s226 = smul.addr %s225, 8
      %s227 = scalar_lea.vmem %s0, %s226
      %p228 = pneg %p37
      %p229 = pneg %p34
      %p230 = scmp.lt.s32.totalorder %s16, 1
      %s231 = scalar_select %p230, %s16, 1
      %s232 = smul.addr %s231, 5
      %s233 = smul.addr %s232, 8
      %s234 = scalar_lea.vmem %s1, %s233
      %p235 = pneg %p63
      %p236 = pneg %p60
      %p237 = scmp.lt.s32.totalorder %s16, 1
      %s238 = scalar_select %p237, %s16, 1
      %s239 = smul.addr %s238, 5
      %s240 = smul.addr %s239, 8
      %s241 = scalar_lea.vmem %s2, %s240
      %p242 = pneg %p89
      %p243 = pneg %p86
      %p244 = scmp.lt.s32.totalorder %s16, 1
      %s245 = scalar_select %p244, %s16, 1
      %s246 = smul.addr %s245, 5
      %s247 = smul.addr %s246, 8
      %s248 = scalar_lea.vmem %s3, %s247
      %p249 = pneg %p115
      %p250 = pneg %p112
      %p251 = pneg %p136
      %p252 = pneg %p133
      %p253 = pneg %p162
      %p254 = pneg %p159
      %p255 = scmp.lt.s32.totalorder %s16, 1
      %s256 = scalar_select %p255, %s16, 1
      %s257 = smul.addr %s256, 4
      %s258 = smul.addr %s257, 4
      %s259 = scalar_lea.vmem %s5, %s258
      %p260 = scmp.lt.s32.totalorder %s16, 1
      %s261 = scalar_select %p260, %s16, 1
      %s262 = smul.addr %s261, 5
      %s263 = smul.addr %s262, 8
      %s264 = scalar_lea.vmem %s0, %s263
      %p265 = scmp.lt.s32.totalorder %s16, 1
      %s266 = scalar_select %p265, %s16, 1
      %s267 = smul.addr %s266, 5
      %s268 = smul.addr %s267, 8
      %s269 = scalar_lea.vmem %s1, %s268
      %p270 = scmp.lt.s32.totalorder %s16, 1
      %s271 = scalar_select %p270, %s16, 1
      %s272 = smul.addr %s271, 5
      %s273 = smul.addr %s272, 8
      %s274 = scalar_lea.vmem %s2, %s273
      %p275 = scmp.lt.s32.totalorder %s16, 1
      %s276 = scalar_select %p275, %s16, 1
      %s277 = smul.addr %s276, 5
      %s278 = smul.addr %s277, 8
      %s279 = scalar_lea.vmem %s3, %s278
      %p280 = scmp.lt.s32.totalorder %s16, 1
      %s281 = scalar_select %p280, %s16, 1
      %s282 = smul.addr %s281, 4
      %s283 = smul.addr %s282, 4
      %s284 = scalar_lea.vmem %s5, %s283
      %v285 = vld [vmem:[%s264] sm:$0x1f]
      %v286 = vld [vmem:[%s264 + $0x8] sm:$0x1f]
      %v287 = vld [vmem:[%s264 + $0x10] sm:$0x1f]
      %v288 = vld [vmem:[%s264 + $0x18] sm:$0x1f]
      %v289 = vld [vmem:[%s264 + $0x20] sm:$0x1f]
      %v290 = vld [vmem:[%s269] sm:$0x1f]
      %v291 = vld [vmem:[%s269 + $0x8] sm:$0x1f]
      %v292 = vld [vmem:[%s269 + $0x10] sm:$0x1f]
      %v293 = vld [vmem:[%s269 + $0x18] sm:$0x1f]
      %v294 = vld [vmem:[%s269 + $0x20] sm:$0x1f]
      %v295 = vld [vmem:[%s274] sm:$0x1f]
      %v296 = vld [vmem:[%s274 + $0x8] sm:$0x1f]
      %v297 = vld [vmem:[%s274 + $0x10] sm:$0x1f]
      %v298 = vld [vmem:[%s274 + $0x18] sm:$0x1f]
      %v299 = vld [vmem:[%s279] sm:$0x1f]
      %v300 = vld [vmem:[%s279 + $0x8] sm:$0x1f]
      %v301 = vld [vmem:[%s279 + $0x10] sm:$0x1f]
      %v302 = vld [vmem:[%s279 + $0x18] sm:$0x1f]
      %v307 = vrot.slane %v285, 1
      %v308 = vrot.slane %v286, 1
      %v309 = vrot.slane %v287, 1
      %v310 = vrot.slane %v288, 1
      %v315 = vadd.f32 %v285, %v307
      %v316 = vadd.f32 %v286, %v308
      %v317 = vadd.f32 %v287, %v309
      %v318 = vadd.f32 %v288, %v310
      %v319 = vadd.f32 %v315, %v286
      %v320 = vadd.f32 %v316, %v287
      %v321 = vadd.f32 %v317, %v288
      %v322 = vadd.f32 %v318, %v289
      %v324 = vrot.slane %v289, 1
      %v326 = vadd.f32 %v319, %v308
      %v327 = vadd.f32 %v320, %v309
      %v328 = vadd.f32 %v321, %v310
      %v329 = vadd.f32 %v322, %v324
      %v330 = vadd.f32 %v326, %v290
      %v331 = vadd.f32 %v327, %v291
      %v332 = vadd.f32 %v328, %v292
      %v333 = vadd.f32 %v329, %v293
      %v334 = vadd.f32 %v330, %v291
      %v335 = vadd.f32 %v331, %v292
      %v336 = vadd.f32 %v332, %v293
      %v337 = vadd.f32 %v333, %v294
      %v338 = vadd.f32 %v334, %v295
      %v339 = vadd.f32 %v335, %v296
      %v340 = vadd.f32 %v336, %v297
      %v341 = vadd.f32 %v337, %v298
      %v346 = vrot.slane %v295, 1
      %v347 = vrot.slane %v296, 1
      %v348 = vrot.slane %v297, 1
      %v349 = vrot.slane %v298, 1
      %v354 = vadd.f32 %v338, %v346
      %v355 = vadd.f32 %v339, %v347
      %v356 = vadd.f32 %v340, %v348
      %v357 = vadd.f32 %v341, %v349
      %v358 = vadd.f32 %v354, %v299
      %v359 = vadd.f32 %v355, %v300
      %v360 = vadd.f32 %v356, %v301
      %v361 = vadd.f32 %v357, %v302
      %v362 = vld [vmem:[%s4] sm:$0xf]
      %v363 = vld [vmem:[%s4 + $0x4] sm:$0xf]
      %v364 = vld [vmem:[%s4 + $0x8] sm:$0xf]
      %v365 = vld [vmem:[%s4 + $0xc] sm:$0xf]
      %v366 = vmul.f32 %v358, %v362
      %v367 = vmul.f32 %v359, %v363
      %v368 = vmul.f32 %v360, %v364
      %v369 = vmul.f32 %v361, %v365
      %vm370 = vcmask 27648
      %371 = vst.msk [vmem:[%s284] sm:$0xf] %vm370, %v366
      %372 = vst.msk [vmem:[%s284 + $0x4] sm:$0xf] %vm370, %v367
      %373 = vst.msk [vmem:[%s284 + $0x8] sm:$0xf] %vm370, %v368
      %374 = vst.msk [vmem:[%s284 + $0xc] sm:$0xf] %vm370, %v369
      %p375 = scmp.lt.s32.totalorder %s16, 1
      %s376 = scalar_select %p375, %s16, 1
      %s377 = smul.addr %s376, 4
      %s378 = smul.addr %s377, 4
      %s379 = scalar_lea.vmem %s5, %s378
      // Predicated region
      $region41: #{multiscale_forward.58} parent=39 // pred_check
        %p380 = pneg %p159
      $region42: #{multiscale_forward.58} parent=39 // pred_check_branch
        %382 = sbr.rel (%p380) target = $region44
      $region43: #{multiscale_forward.58} parent=39 // pred_region
        _
      $region44: #{multiscale_forward.58} parent=39 // pred_fallthru
        _
    $region40: #{multiscale_forward.58} parent=5 // pred_fallthru
      _
    %p383 = scmp.le.s32.totalorder 2, %s11
    // Predicated region
    $region45: #{multiscale_forward.58} parent=5 // pred_check
      %p384 = pneg %p383
    $region46: #{multiscale_forward.58} parent=5 // pred_check_branch
      %386 = sbr.rel (%p384) target = $region48
    $region47: #{multiscale_forward.58} parent=5 // pred_region
      %s387 = ssub.s32 %s11, 2
      // Predicated region
      $region49: #{multiscale_forward.58} parent=47 // pred_check
        %p388 = pneg %p165
      $region50: #{multiscale_forward.58} parent=47 // pred_check_branch
        %390 = sbr.rel (%p388) target = $region52
      $region51: #{multiscale_forward.58} parent=47 // pred_region
        %p391 = scmp.lt.s32.totalorder %s17, 1
        %s392 = scalar_select %p391, %s17, 1
        %s393 = smul.addr %s392, 4
        %s394 = smul.addr %s393, 4
        %s395 = scalar_lea.vmem %s5, %s394
      $region52: #{multiscale_forward.58} parent=47 // pred_fallthru
        _
    $region48: #{multiscale_forward.58} parent=5 // pred_fallthru
      _
  $region6: #{multiscale_forward.58} parent=0 // loop_footer
    %s15 = sadd.s32 1, %s11
  $region7: #{multiscale_forward.58} parent=0 // loop_footer_branch
    %10 = sbr.rel target = $region3
  $region8: #{multiscale_forward.58} parent=0 // loop_exit
    _

// kernel: multiscale_forward.46
$region0: #{multiscale_forward.46}
  #allocation0 [shape = 'u32[]', space=smem, size = 0x4, offset = 0x4, fixed_abs, tag = 'smem constant byte address 0x4 - core index']
  #allocation1 [shape = 'u32[144,128]{1,0:T(1,128)}', space=vmem, size = 0x12000, scoped, tag = 'internal scratch']
  %s0 = inlined_call_operand.vmem [shape: f32[2,9,9,4], index: 0, kind: input, shape index: {}]
  %s1 = inlined_call_operand.vmem [shape: f32[2,9,9,4], index: 1, kind: input, shape index: {}]
  %s2 = inlined_call_operand.vmem [shape: f32[2,9,9,4], index: 2, kind: input, shape index: {}]
  %s3 = inlined_call_operand.vmem [shape: f32[2,9,9,4], index: 3, kind: input, shape index: {}]
  %s4 = inlined_call_operand.vmem [shape: f32[1,8,8,4], index: 4, kind: input, shape index: {}]
  %s5 = inlined_call_operand.vmem [shape: f32[2,8,8,4], index: 5, kind: output, shape index: {}]
  %s6 = sld [smem:[#allocation0]]
  $region53: #{multiscale_forward.46} parent=0
    _
  %s8 = ssub.s32 1, %s6
  %s9 = scalar_select 0, %s8, %s6
  loop: start=0, step=1, limit=4
  $region2: #{multiscale_forward.46} parent=0 // loop_pre_header
    _
  $region3: #{multiscale_forward.46} parent=0 // loop_header
    %s11 = sphi 0, %s15
    %p12 = scmp.ge.s32.totalorder %s11, 4
    %s21 = sphi 0, %s23
    %s24 = sphi 0, %s21
    %s25 = sphi 0, %s24
    %s41 = sphi 0, %s25
    %s47 = sphi 0, %s49
    %s50 = sphi 0, %s47
    %s51 = sphi 0, %s50
    %s67 = sphi 0, %s51
    %s73 = sphi 0, %s75
    %s76 = sphi 0, %s73
    %s77 = sphi 0, %s76
    %s93 = sphi 0, %s77
    %s99 = sphi 0, %s101
    %s102 = sphi 0, %s99
    %s103 = sphi 0, %s102
    %s119 = sphi 0, %s103
    %s123 = sphi 0, %s123
    %s125 = sphi 0, %s123
    %s126 = sphi 0, %s125
    %s140 = sphi 0, %s126
    %s146 = sphi 0, %s148
    %s149 = sphi 0, %s146
    %s150 = sphi 0, %s149
    %s166 = sphi 0, %s150
  $region4: #{multiscale_forward.46} parent=0 // loop_header_branch
    %14 = sbr.rel (%p12) target = $region8
  $region5: #{multiscale_forward.46} parent=0 // loop_body
    %s16 = ssub.s32 %s11, 1
    %s17 = ssub.s32 %s11, 2
    %s18 = sadd.s32 %s11, 1
    %s19 = ssub.s32 %s11, %s18
    %p20 = scmp.eq.s32.totalorder %s19, 0
    %s22 = sadd.s32 %s21, 1
    %s23 = scalar_select %p20, %s21, %s22
    %p26 = pneg %p20
    %p27 = scmp.eq.s32.totalorder %s11, 1
    %p28 = por %p26, %p27
    %p29 = scmp.ne.s32.totalorder %s21, %s24
    %p30 = scmp.eq.s32.totalorder %s11, 0
    %p31 = por %p29, %p30
    %p32 = scmp.ne.s32.totalorder %s21, %s24
    %p33 = scmp.eq.s32.totalorder %s16, 1
    %p34 = por %p32, %p33
    %p35 = scmp.ne.s32.totalorder %s24, %s25
    %p36 = scmp.eq.s32.totalorder %s16, 0
    %p37 = por %p35, %p36
    %p38 = scmp.ne.s32.totalorder %s24, %s25
    %p39 = scmp.eq.s32.totalorder %s17, 1
    %p40 = por %p38, %p39
    %p42 = scmp.ne.s32.totalorder %s25, %s41
    %p43 = scmp.eq.s32.totalorder %s17, 0
    %p44 = por %p42, %p43
    %s45 = ssub.s32 %s11, %s18
    %p46 = scmp.eq.s32.totalorder %s45, 0
    %s48 = sadd.s32 %s47, 1
    %s49 = scalar_select %p46, %s47, %s48
    %p52 = pneg %p46
    %p53 = scmp.eq.s32.totalorder %s11, 1
    %p54 = por %p52, %p53
    %p55 = scmp.ne.s32.totalorder %s47, %s50
    %p56 = scmp.eq.s32.totalorder %s11, 0
    %p57 = por %p55, %p56
    %p58 = scmp.ne.s32.totalorder %s47, %s50
    %p59 = scmp.eq.s32.totalorder %s16, 1
    %p60 = por %p58, %p59
    %p61 = scmp.ne.s32.totalorder %s50, %s51
    %p62 = scmp.eq.s32.totalorder %s16, 0
    %p63 = por %p61, %p62
    %p64 = scmp.ne.s32.totalorder %s50, %s51
    %p65 = scmp.eq.s32.totalorder %s17, 1
    %p66 = por %p64, %p65
    %p68 = scmp.ne.s32.totalorder %s51, %s67
    %p69 = scmp.eq.s32.totalorder %s17, 0
    %p70 = por %p68, %p69
    %s71 = ssub.s32 %s11, %s18
    %p72 = scmp.eq.s32.totalorder %s71, 0
    %s74 = sadd.s32 %s73, 1
    %s75 = scalar_select %p72, %s73, %s74
    %p78 = pneg %p72
    %p79 = scmp.eq.s32.totalorder %s11, 1
    %p80 = por %p78, %p79
    %p81 = scmp.ne.s32.totalorder %s73, %s76
    %p82 = scmp.eq.s32.totalorder %s11, 0
    %p83 = por %p81, %p82
    %p84 = scmp.ne.s32.totalorder %s73, %s76
    %p85 = scmp.eq.s32.totalorder %s16, 1
    %p86 = por %p84, %p85
    %p87 = scmp.ne.s32.totalorder %s76, %s77
    %p88 = scmp.eq.s32.totalorder %s16, 0
    %p89 = por %p87, %p88
    %p90 = scmp.ne.s32.totalorder %s76, %s77
    %p91 = scmp.eq.s32.totalorder %s17, 1
    %p92 = por %p90, %p91
    %p94 = scmp.ne.s32.totalorder %s77, %s93
    %p95 = scmp.eq.s32.totalorder %s17, 0
    %p96 = por %p94, %p95
    %s97 = ssub.s32 %s11, %s18
    %p98 = scmp.eq.s32.totalorder %s97, 0
    %s100 = sadd.s32 %s99, 1
    %s101 = scalar_select %p98, %s99, %s100
    %p104 = pneg %p98
    %p105 = scmp.eq.s32.totalorder %s11, 1
    %p106 = por %p104, %p105
    %p107 = scmp.ne.s32.totalorder %s99, %s102
    %p108 = scmp.eq.s32.totalorder %s11, 0
    %p109 = por %p107, %p108
    %p110 = scmp.ne.s32.totalorder %s99, %s102
    %p111 = scmp.eq.s32.totalorder %s16, 1
    %p112 = por %p110, %p111
    %p113 = scmp.ne.s32.totalorder %s102, %s103
    %p114 = scmp.eq.s32.totalorder %s16, 0
    %p115 = por %p113, %p114
    %p116 = scmp.ne.s32.totalorder %s102, %s103
    %p117 = scmp.eq.s32.totalorder %s17, 1
    %p118 = por %p116, %p117
    %p120 = scmp.ne.s32.totalorder %s103, %s119
    %p121 = scmp.eq.s32.totalorder %s17, 0
    %p122 = por %p120, %p121
    %s124 = sadd.s32 %s123, 1
    %p127 = scmp.eq.s32.totalorder %s11, 1
    %p128 = scmp.ne.s32.totalorder %s123, %s125
    %p129 = scmp.eq.s32.totalorder %s11, 0
    %p130 = por %p128, %p129
    %p131 = scmp.ne.s32.totalorder %s123, %s125
    %p132 = scmp.eq.s32.totalorder %s16, 1
    %p133 = por %p131, %p132
    %p134 = scmp.ne.s32.totalorder %s125, %s126
    %p135 = scmp.eq.s32.totalorder %s16, 0
    %p136 = por %p134, %p135
    %p137 = scmp.ne.s32.totalorder %s125, %s126
    %p138 = scmp.eq.s32.totalorder %s17, 1
    %p139 = por %p137, %p138
    %p141 = scmp.ne.s32.totalorder %s126, %s140
    %p142 = scmp.eq.s32.totalorder %s17, 0
    %p143 = por %p141, %p142
    %s144 = ssub.s32 %s11, %s18
    %p145 = scmp.eq.s32.totalorder %s144, 0
    %s147 = sadd.s32 %s146, 1
    %s148 = scalar_select %p145, %s146, %s147
    %p151 = pneg %p145
    %p152 = scmp.eq.s32.totalorder %s11, 1
    %p153 = por %p151, %p152
    %p154 = scmp.ne.s32.totalorder %s146, %s149
    %p155 = scmp.eq.s32.totalorder %s11, 0
    %p156 = por %p154, %p155
    %p157 = scmp.ne.s32.totalorder %s146, %s149
    %p158 = scmp.eq.s32.totalorder %s16, 1
    %p159 = por %p157, %p158
    %p160 = scmp.ne.s32.totalorder %s149, %s150
    %p161 = scmp.eq.s32.totalorder %s16, 0
    %p162 = por %p160, %p161
    %p163 = scmp.ne.s32.totalorder %s149, %s150
    %p164 = scmp.eq.s32.totalorder %s17, 1
    %p165 = por %p163, %p164
    %p167 = scmp.ne.s32.totalorder %s150, %s166
    %p168 = scmp.eq.s32.totalorder %s17, 0
    %p169 = por %p167, %p168
    %p170 = scmp.le.s32.totalorder 1, %s11
    %p171 = scmp.lt.s32.totalorder %s11, 3
    %p172 = pnand %p170, %p171
    %p173 = pneg %p172
    // Predicated region
    $region9: #{multiscale_forward.46} parent=5 // pred_check
      _
    $region10: #{multiscale_forward.46} parent=5 // pred_check_branch
      %175 = sbr.rel (%p172) target = $region12
    $region11: #{multiscale_forward.46} parent=5 // pred_region
      %s176 = ssub.s32 %s11, 1
      // Predicated region
      $region13: #{multiscale_forward.46} parent=11 // pred_check
        %p177 = pneg %p136
      $region14: #{multiscale_forward.46} parent=11 // pred_check_branch
        %179 = sbr.rel (%p177) target = $region16
      $region15: #{multiscale_forward.46} parent=11 // pred_region
        _
      $region16: #{multiscale_forward.46} parent=11 // pred_fallthru
        _
    $region12: #{multiscale_forward.46} parent=5 // pred_fallthru
      _
    %p180 = scmp.lt.s32.totalorder %s11, 2
    // Predicated region
    $region17: #{multiscale_forward.46} parent=5 // pred_check
      %p181 = pneg %p180
    $region18: #{multiscale_forward.46} parent=5 // pred_check_branch
      %183 = sbr.rel (%p181) target = $region20
    $region19: #{multiscale_forward.46} parent=5 // pred_region
      // Predicated region
      $region21: #{multiscale_forward.46} parent=19 // pred_check
        %p184 = pneg %p31
      $region22: #{multiscale_forward.46} parent=19 // pred_check_branch
        %186 = sbr.rel (%p184) target = $region24
      $region23: #{multiscale_forward.46} parent=19 // pred_region
        %p187 = scmp.lt.s32.totalorder %s11, 1
        %s188 = scalar_select %p187, %s11, 1
        %s189 = smul.addr %s188, 18
        %s190 = smul.addr %s189, 8
        %s191 = scalar_lea.vmem %s0, %s190
      $region24: #{multiscale_forward.46} parent=19 // pred_fallthru
        _
      // Predicated region
      $region25: #{multiscale_forward.46} parent=19 // pred_check
        %p192 = pneg %p57
      $region26: #{multiscale_forward.46} parent=19 // pred_check_branch
        %194 = sbr.rel (%p192) target = $region28
      $region27: #{multiscale_forward.46} parent=19 // pred_region
        %p195 = scmp.lt.s32.totalorder %s11, 1
        %s196 = scalar_select %p195, %s11, 1
        %s197 = smul.addr %s196, 18
        %s198 = smul.addr %s197, 8
        %s199 = scalar_lea.vmem %s1, %s198
      $region28: #{multiscale_forward.46} parent=19 // pred_fallthru
        _
      // Predicated region
      $region29: #{multiscale_forward.46} parent=19 // pred_check
        %p200 = pneg %p83
      $region30: #{multiscale_forward.46} parent=19 // pred_check_branch
        %202 = sbr.rel (%p200) target = $region32
      $region31: #{multiscale_forward.46} parent=19 // pred_region
        %p203 = scmp.lt.s32.totalorder %s11, 1
        %s204 = scalar_select %p203, %s11, 1
        %s205 = smul.addr %s204, 18
        %s206 = smul.addr %s205, 8
        %s207 = scalar_lea.vmem %s2, %s206
      $region32: #{multiscale_forward.46} parent=19 // pred_fallthru
        _
      // Predicated region
      $region33: #{multiscale_forward.46} parent=19 // pred_check
        %p208 = pneg %p109
      $region34: #{multiscale_forward.46} parent=19 // pred_check_branch
        %210 = sbr.rel (%p208) target = $region36
      $region35: #{multiscale_forward.46} parent=19 // pred_region
        %p211 = scmp.lt.s32.totalorder %s11, 1
        %s212 = scalar_select %p211, %s11, 1
        %s213 = smul.addr %s212, 18
        %s214 = smul.addr %s213, 8
        %s215 = scalar_lea.vmem %s3, %s214
      $region36: #{multiscale_forward.46} parent=19 // pred_fallthru
        _
    $region20: #{multiscale_forward.46} parent=5 // pred_fallthru
      _
    %p216 = scmp.le.s32.totalorder 1, %s11
    %p217 = scmp.lt.s32.totalorder %s11, 3
    %p218 = pnand %p216, %p217
    %p219 = pneg %p218
    // Predicated region
    $region37: #{multiscale_forward.46} parent=5 // pred_check
      _
    $region38: #{multiscale_forward.46} parent=5 // pred_check_branch
      %221 = sbr.rel (%p218) target = $region40
    $region39: #{multiscale_forward.46} parent=5 // pred_region
      %s222 = ssub.s32 %s11, 1
      %p223 = scmp.lt.s32.totalorder %s16, 1
      %s224 = scalar_select %p223, %s16, 1
      %s225 = smul.addr %s224, 18
      %s226 = smul.addr %s225, 8
      %s227 = scalar_lea.vmem %s0, %s226
      %p228 = pneg %p37
      %p229 = pneg %p34
      %p230 = scmp.lt.s32.totalorder %s16, 1
      %s231 = scalar_select %p230, %s16, 1
      %s232 = smul.addr %s231, 18
      %s233 = smul.addr %s232, 8
      %s234 = scalar_lea.vmem %s1, %s233
      %p235 = pneg %p63
      %p236 = pneg %p60
      %p237 = scmp.lt.s32.totalorder %s16, 1
      %s238 = scalar_select %p237, %s16, 1
      %s239 = smul.addr %s238, 18
      %s240 = smul.addr %s239, 8
      %s241 = scalar_lea.vmem %s2, %s240
      %p242 = pneg %p89
      %p243 = pneg %p86
      %p244 = scmp.lt.s32.totalorder %s16, 1
      %s245 = scalar_select %p244, %s16, 1
      %s246 = smul.addr %s245, 18
      %s247 = smul.addr %s246, 8
      %s248 = scalar_lea.vmem %s3, %s247
      %p249 = pneg %p115
      %p250 = pneg %p112
      %p251 = pneg %p136
      %p252 = pneg %p133
      %p253 = pneg %p162
      %p254 = pneg %p159
      %p255 = scmp.lt.s32.totalorder %s16, 1
      %s256 = scalar_select %p255, %s16, 1
      %s257 = smul.addr %s256, 8
      %s258 = smul.addr %s257, 8
      %s259 = scalar_lea.vmem %s5, %s258
      %p260 = scmp.lt.s32.totalorder %s16, 1
      %s261 = scalar_select %p260, %s16, 1
      %s262 = smul.addr %s261, 18
      %s263 = smul.addr %s262, 8
      %s264 = scalar_lea.vmem %s0, %s263
      %p265 = scmp.lt.s32.totalorder %s16, 1
      %s266 = scalar_select %p265, %s16, 1
      %s267 = smul.addr %s266, 18
      %s268 = smul.addr %s267, 8
      %s269 = scalar_lea.vmem %s1, %s268
      %p270 = scmp.lt.s32.totalorder %s16, 1
      %s271 = scalar_select %p270, %s16, 1
      %s272 = smul.addr %s271, 18
      %s273 = smul.addr %s272, 8
      %s274 = scalar_lea.vmem %s2, %s273
      %p275 = scmp.lt.s32.totalorder %s16, 1
      %s276 = scalar_select %p275, %s16, 1
      %s277 = smul.addr %s276, 18
      %s278 = smul.addr %s277, 8
      %s279 = scalar_lea.vmem %s3, %s278
      %p280 = scmp.lt.s32.totalorder %s16, 1
      %s281 = scalar_select %p280, %s16, 1
      %s282 = smul.addr %s281, 8
      %s283 = smul.addr %s282, 8
      %s284 = scalar_lea.vmem %s5, %s283
      %v285 = vld [vmem:[%s264] sm:$0xff]
      %v286 = vld [vmem:[%s264 + $0x8] sm:$0x1]
      %v287 = vld [vmem:[%s264 + $0x10] sm:$0xff]
      %v288 = vld [vmem:[%s264 + $0x18] sm:$0x1]
      %v289 = vld [vmem:[%s264 + $0x20] sm:$0xff]
      %v290 = vld [vmem:[%s264 + $0x28] sm:$0x1]
      %v291 = vld [vmem:[%s264 + $0x30] sm:$0xff]
      %v292 = vld [vmem:[%s264 + $0x38] sm:$0x1]
      %v293 = vld [vmem:[%s264 + $0x40] sm:$0xff]
      %v294 = vld [vmem:[%s264 + $0x48] sm:$0x1]
      %v295 = vld [vmem:[%s264 + $0x50] sm:$0xff]
      %v296 = vld [vmem:[%s264 + $0x58] sm:$0x1]
      %v297 = vld [vmem:[%s264 + $0x60] sm:$0xff]
      %v298 = vld [vmem:[%s264 + $0x68] sm:$0x1]
      %v299 = vld [vmem:[%s264 + $0x70] sm:$0xff]
      %v300 = vld [vmem:[%s264 + $0x78] sm:$0x1]
      %v301 = vld [vmem:[%s264 + $0x80] sm:$0xff]
      %v302 = vld [vmem:[%s264 + $0x88] sm:$0x1]
      %v303 = vld [vmem:[%s269] sm:$0xff]
      %v304 = vld [vmem:[%s269 + $0x10] sm:$0xff]
      %v305 = vld [vmem:[%s269 + $0x20] sm:$0xff]
      %v306 = vld [vmem:[%s269 + $0x30] sm:$0xff]
      %v307 = vld [vmem:[%s269 + $0x40] sm:$0xff]
      %v308 = vld [vmem:[%s269 + $0x50] sm:$0xff]
      %v309 = vld [vmem:[%s269 + $0x60] sm:$0xff]
      %v310 = vld [vmem:[%s269 + $0x70] sm:$0xff]
      %v311 = vld [vmem:[%s269 + $0x80] sm:$0xff]
      %v312 = vld [vmem:[%s274] sm:$0xff]
      %v313 = vld [vmem:[%s274 + $0x8] sm:$0x1]
      %v314 = vld [vmem:[%s274 + $0x10] sm:$0xff]
      %v315 = vld [vmem:[%s274 + $0x18] sm:$0x1]
      %v316 = vld [vmem:[%s274 + $0x20] sm:$0xff]
      %v317 = vld [vmem:[%s274 + $0x28] sm:$0x1]
      %v318 = vld [vmem:[%s274 + $0x30] sm:$0xff]
      %v319 = vld [vmem:[%s274 + $0x38] sm:$0x1]
      %v320 = vld [vmem:[%s274 + $0x40] sm:$0xff]
      %v321 = vld [vmem:[%s274 + $0x48] sm:$0x1]
      %v322 = vld [vmem:[%s274 + $0x50] sm:$0xff]
      %v323 = vld [vmem:[%s274 + $0x58] sm:$0x1]
      %v324 = vld [vmem:[%s274 + $0x60] sm:$0xff]
      %v325 = vld [vmem:[%s274 + $0x68] sm:$0x1]
      %v326 = vld [vmem:[%s274 + $0x70] sm:$0xff]
      %v327 = vld [vmem:[%s274 + $0x78] sm:$0x1]
      %v328 = vld [vmem:[%s279] sm:$0xff]
      %v329 = vld [vmem:[%s279 + $0x10] sm:$0xff]
      %v330 = vld [vmem:[%s279 + $0x20] sm:$0xff]
      %v331 = vld [vmem:[%s279 + $0x30] sm:$0xff]
      %v332 = vld [vmem:[%s279 + $0x40] sm:$0xff]
      %v333 = vld [vmem:[%s279 + $0x50] sm:$0xff]
      %v334 = vld [vmem:[%s279 + $0x60] sm:$0xff]
      %v335 = vld [vmem:[%s279 + $0x70] sm:$0xff]
      %vm352 = vcmask 1046528
      %v353 = vrot.slane %v285, 1
      %v354 = vrot.slane %v286, 1
      %v355 = vsel %vm352, %v353, %v354
      %v356 = vrot.slane %v287, 1
      %v357 = vrot.slane %v288, 1
      %v358 = vsel %vm352, %v356, %v357
      %v359 = vrot.slane %v289, 1
      %v360 = vrot.slane %v290, 1
      %v361 = vsel %vm352, %v359, %v360
      %v362 = vrot.slane %v291, 1
      %v363 = vrot.slane %v292, 1
      %v364 = vsel %vm352, %v362, %v363
      %v365 = vrot.slane %v293, 1
      %v366 = vrot.slane %v294, 1
      %v367 = vsel %vm352, %v365, %v366
      %v368 = vrot.slane %v295, 1
      %v369 = vrot.slane %v296, 1
      %v370 = vsel %vm352, %v368, %v369
      %v371 = vrot.slane %v297, 1
      %v372 = vrot.slane %v298, 1
      %v373 = vsel %vm352, %v371, %v372
      %v374 = vrot.slane %v299, 1
      %v375 = vrot.slane %v300, 1
      %v376 = vsel %vm352, %v374, %v375
      %v385 = vadd.f32 %v285, %v355
      %v386 = vadd.f32 %v287, %v358
      %v387 = vadd.f32 %v289, %v361
      %v388 = vadd.f32 %v291, %v364
      %v389 = vadd.f32 %v293, %v367
      %v390 = vadd.f32 %v295, %v370
      %v391 = vadd.f32 %v297, %v373
      %v392 = vadd.f32 %v299, %v376
      %v393 = vadd.f32 %v385, %v287
      %v394 = vadd.f32 %v386, %v289
      %v395 = vadd.f32 %v387, %v291
      %v396 = vadd.f32 %v388, %v293
      %v397 = vadd.f32 %v389, %v295
      %v398 = vadd.f32 %v390, %v297
      %v399 = vadd.f32 %v391, %v299
      %v400 = vadd.f32 %v392, %v301
      %v403 = vrot.slane %v301, 1
      %v404 = vrot.slane %v302, 1
      %v405 = vsel %vm352, %v403, %v404
      %v407 = vadd.f32 %v393, %v358
      %v408 = vadd.f32 %v394, %v361
      %v409 = vadd.f32 %v395, %v364
      %v410 = vadd.f32 %v396, %v367
      %v411 = vadd.f32 %v397, %v370
      %v412 = vadd.f32 %v398, %v373
      %v413 = vadd.f32 %v399, %v376
      %v414 = vadd.f32 %v400, %v405
      %v415 = vadd.f32 %v407, %v303
      %v416 = vadd.f32 %v408, %v304
      %v417 = vadd.f32 %v409, %v305
      %v418 = vadd.f32 %v410, %v306
      %v419 = vadd.f32 %v411, %v307
      %v420 = vadd.f32 %v412, %v308
      %v421 = vadd.f32 %v413, %v309
      %v422 = vadd.f32 %v414, %v310
      %v423 = vadd.f32 %v415, %v304
      %v424 = vadd.f32 %v416, %v305
      %v425 = vadd.f32 %v417, %v306
      %v426 = vadd.f32 %v418, %v307
      %v427 = vadd.f32 %v419, %v308
      %v428 = vadd.f32 %v420, %v309
      %v429 = vadd.f32 %v421, %v310
      %v430 = vadd.f32 %v422, %v311
      %v431 = vadd.f32 %v423, %v312
      %v432 = vadd.f32 %v424, %v314
      %v433 = vadd.f32 %v425, %v316
      %v434 = vadd.f32 %v426, %v318
      %v435 = vadd.f32 %v427, %v320
      %v436 = vadd.f32 %v428, %v322
      %v437 = vadd.f32 %v429, %v324
      %v438 = vadd.f32 %v430, %v326
      %v455 = vrot.slane %v312, 1
      %v456 = vrot.slane %v313, 1
      %v457 = vsel %vm352, %v455, %v456
      %v458 = vrot.slane %v314, 1
      %v459 = vrot.slane %v315, 1
      %v460 = vsel %vm352, %v458, %v459
      %v461 = vrot.slane %v316, 1
      %v462 = vrot.slane %v317, 1
      %v463 = vsel %vm352, %v461, %v462
      %v464 = vrot.slane %v318, 1
      %v465 = vrot.slane %v319, 1
      %v466 = vsel %vm352, %v464, %v465
      %v467 = vrot.slane %v320, 1
      %v468 = vrot.slane %v321, 1
      %v469 = vsel %vm352, %v467, %v468
      %v470 = vrot.slane %v322, 1
      %v471 = vrot.slane %v323, 1
      %v472 = vsel %vm352, %v470, %v471
      %v473 = vrot.slane %v324, 1
      %v474 = vrot.slane %v325, 1
      %v475 = vsel %vm352, %v473, %v474
      %v476 = vrot.slane %v326, 1
      %v477 = vrot.slane %v327, 1
      %v478 = vsel %vm352, %v476, %v477
      %v487 = vadd.f32 %v431, %v457
      %v488 = vadd.f32 %v432, %v460
      %v489 = vadd.f32 %v433, %v463
      %v490 = vadd.f32 %v434, %v466
      %v491 = vadd.f32 %v435, %v469
      %v492 = vadd.f32 %v436, %v472
      %v493 = vadd.f32 %v437, %v475
      %v494 = vadd.f32 %v438, %v478
      %v495 = vadd.f32 %v487, %v328
      %v496 = vadd.f32 %v488, %v329
      %v497 = vadd.f32 %v489, %v330
      %v498 = vadd.f32 %v490, %v331
      %v499 = vadd.f32 %v491, %v332
      %v500 = vadd.f32 %v492, %v333
      %v501 = vadd.f32 %v493, %v334
      %v502 = vadd.f32 %v494, %v335
      %v503 = vld [vmem:[%s4] sm:$0xff]
      %v504 = vld [vmem:[%s4 + $0x8] sm:$0xff]
      %v505 = vld [vmem:[%s4 + $0x10] sm:$0xff]
      %v506 = vld [vmem:[%s4 + $0x18] sm:$0xff]
      %v507 = vld [vmem:[%s4 + $0x20] sm:$0xff]
      %v508 = vld [vmem:[%s4 + $0x28] sm:$0xff]
      %v509 = vld [vmem:[%s4 + $0x30] sm:$0xff]
      %v510 = vld [vmem:[%s4 + $0x38] sm:$0xff]
      %v511 = vmul.f32 %v495, %v503
      %v512 = vmul.f32 %v496, %v504
      %v513 = vmul.f32 %v497, %v505
      %v514 = vmul.f32 %v498, %v506
      %v515 = vmul.f32 %v499, %v507
      %v516 = vmul.f32 %v500, %v508
      %v517 = vmul.f32 %v501, %v509
      %v518 = vmul.f32 %v502, %v510
      %vm519 = vcmask 31744
      %520 = vst.msk [vmem:[%s284] sm:$0xff] %vm519, %v511
      %521 = vst.msk [vmem:[%s284 + $0x8] sm:$0xff] %vm519, %v512
      %522 = vst.msk [vmem:[%s284 + $0x10] sm:$0xff] %vm519, %v513
      %523 = vst.msk [vmem:[%s284 + $0x18] sm:$0xff] %vm519, %v514
      %524 = vst.msk [vmem:[%s284 + $0x20] sm:$0xff] %vm519, %v515
      %525 = vst.msk [vmem:[%s284 + $0x28] sm:$0xff] %vm519, %v516
      %526 = vst.msk [vmem:[%s284 + $0x30] sm:$0xff] %vm519, %v517
      %527 = vst.msk [vmem:[%s284 + $0x38] sm:$0xff] %vm519, %v518
      %p528 = scmp.lt.s32.totalorder %s16, 1
      %s529 = scalar_select %p528, %s16, 1
      %s530 = smul.addr %s529, 8
      %s531 = smul.addr %s530, 8
      %s532 = scalar_lea.vmem %s5, %s531
      // Predicated region
      $region41: #{multiscale_forward.46} parent=39 // pred_check
        %p533 = pneg %p159
      $region42: #{multiscale_forward.46} parent=39 // pred_check_branch
        %535 = sbr.rel (%p533) target = $region44
      $region43: #{multiscale_forward.46} parent=39 // pred_region
        _
      $region44: #{multiscale_forward.46} parent=39 // pred_fallthru
        _
    $region40: #{multiscale_forward.46} parent=5 // pred_fallthru
      _
    %p536 = scmp.le.s32.totalorder 2, %s11
    // Predicated region
    $region45: #{multiscale_forward.46} parent=5 // pred_check
      %p537 = pneg %p536
    $region46: #{multiscale_forward.46} parent=5 // pred_check_branch
      %539 = sbr.rel (%p537) target = $region48
    $region47: #{multiscale_forward.46} parent=5 // pred_region
      %s540 = ssub.s32 %s11, 2
      // Predicated region
      $region49: #{multiscale_forward.46} parent=47 // pred_check
        %p541 = pneg %p165
      $region50: #{multiscale_forward.46} parent=47 // pred_check_branch
        %543 = sbr.rel (%p541) target = $region52
      $region51: #{multiscale_forward.46} parent=47 // pred_region
        %p544 = scmp.lt.s32.totalorder %s17, 1
        %s545 = scalar_select %p544, %s17, 1
        %s546 = smul.addr %s545, 8
        %s547 = smul.addr %s546, 8
        %s548 = scalar_lea.vmem %s5, %s547
      $region52: #{multiscale_forward.46} parent=47 // pred_fallthru
        _
    $region48: #{multiscale_forward.46} parent=5 // pred_fallthru
      _
  $region6: #{multiscale_forward.46} parent=0 // loop_footer
    %s15 = sadd.s32 1, %s11
  $region7: #{multiscale_forward.46} parent=0 // loop_footer_branch
    %10 = sbr.rel target = $region3
  $region8: #{multiscale_forward.46} parent=0 // loop_exit
    _

// kernel: multiscale_forward.59
$region0: #{multiscale_forward.59}
  #allocation0 [shape = 'u32[]', space=smem, size = 0x4, offset = 0x4, fixed_abs, tag = 'smem constant byte address 0x4 - core index']
  #allocation1 [shape = 'u32[144,128]{1,0:T(1,128)}', space=vmem, size = 0x12000, scoped, tag = 'internal scratch']
  #allocation2 [shape = 'f32[18,8]{1,0:T(8,128)}', space=vmem, size = 0x3000, scoped, tag = 'scratch operand']
  %s0 = inlined_call_operand.vmem [shape: bf16[18,128], index: 0, kind: input, shape index: {}]
  %s1 = inlined_call_operand.vmem [shape: bf16[128,8], index: 1, kind: input, shape index: {}]
  %s2 = inlined_call_operand.vmem [shape: f32[1,8], index: 2, kind: input, shape index: {}]
  %s3 = inlined_call_operand.vmem [shape: f32[18,8], index: 3, kind: output, shape index: {}]
  %s4 = sld [smem:[#allocation0]]
  $region30: #{multiscale_forward.59} parent=0
    _
  %s6 = ssub.s32 1, %s4
  %s7 = scalar_select 0, %s6, %s4
  // Predicated region
  $region2: #{multiscale_forward.59} parent=0 // pred_check
    _
  $region3: #{multiscale_forward.59} parent=0 // pred_check_branch
    %9 = sbr.rel (0) target = $region5
  $region4: #{multiscale_forward.59} parent=0 // pred_region
    _
  $region5: #{multiscale_forward.59} parent=0 // pred_fallthru
    _
  // Predicated region
  $region6: #{multiscale_forward.59} parent=0 // pred_check
    _
  $region7: #{multiscale_forward.59} parent=0 // pred_check_branch
    %11 = sbr.rel (0) target = $region9
  $region8: #{multiscale_forward.59} parent=0 // pred_region
    _
  $region9: #{multiscale_forward.59} parent=0 // pred_fallthru
    _
  // Predicated region
  $region10: #{multiscale_forward.59} parent=0 // pred_check
    _
  $region11: #{multiscale_forward.59} parent=0 // pred_check_branch
    %13 = sbr.rel (0) target = $region13
  $region12: #{multiscale_forward.59} parent=0 // pred_region
    _
  $region13: #{multiscale_forward.59} parent=0 // pred_fallthru
    _
  %p15 = scmp.eq.s32.totalorder 0, 0
  // Predicated region
  $region14: #{multiscale_forward.59} parent=0 // pred_check
    %p16 = pneg %p15
  $region15: #{multiscale_forward.59} parent=0 // pred_check_branch
    %18 = sbr.rel (%p16) target = $region17
  $region16: #{multiscale_forward.59} parent=0 // pred_region
    %vm19 = vcmask 64512
    %20 = vst.msk [vmem:[#allocation2] sm:$0xff] %vm19, 0.0
    %21 = vst.msk [vmem:[#allocation2 + $0x8] sm:$0xff] %vm19, 0.0
    %vm22 = vcmask 58368
    %23 = vst.msk [vmem:[#allocation2 + $0x10] sm:$0x3] %vm22, 0.0
  $region17: #{multiscale_forward.59} parent=0 // pred_fallthru
    _
  %v24 = vld [vmem:[#allocation2] sm:$0xff]
  %v25 = vld [vmem:[#allocation2 + $0x8] sm:$0xff]
  %v26 = vld [vmem:[#allocation2 + $0x10] sm:$0x3]
  %v27 = vld [vmem:[%s0] sm:$0xf]
  %v28 = vld [vmem:[%s0 + $0x4] sm:$0xf]
  %v29 = vld [vmem:[%s0 + $0x8] sm:$0x1]
  %v30 = vld [vmem:[%s1] sm:$0xf]
  %v31 = vld [vmem:[%s1 + $0x4] sm:$0xf]
  %v32 = vld [vmem:[%s1 + $0x8] sm:$0xf]
  %v33 = vld [vmem:[%s1 + $0xc] sm:$0xf]
  %v34 = vld [vmem:[%s1 + $0x10] sm:$0xf]
  %v35 = vld [vmem:[%s1 + $0x14] sm:$0xf]
  %v36 = vld [vmem:[%s1 + $0x18] sm:$0xf]
  %v37 = vld [vmem:[%s1 + $0x1c] sm:$0xf]
  %v38 = vld [vmem:[%s1 + $0x20] sm:$0xf]
  %v39 = vld [vmem:[%s1 + $0x24] sm:$0xf]
  %v40 = vld [vmem:[%s1 + $0x28] sm:$0xf]
  %v41 = vld [vmem:[%s1 + $0x2c] sm:$0xf]
  %v42 = vld [vmem:[%s1 + $0x30] sm:$0xf]
  %v43 = vld [vmem:[%s1 + $0x34] sm:$0xf]
  %v44 = vld [vmem:[%s1 + $0x38] sm:$0xf]
  %v45 = vld [vmem:[%s1 + $0x3c] sm:$0xf]
  %v49 = vunpack.c.l.b16 %v27
  %v50 = vunpack.c.l.b16 %v28
  %v51 = vunpack.c.l.b16 %v29
  %v52 = vpack.c.b16 %v50, %v49
  %v53 = vpack.c.b16 %v51, %v51
  %v72 = vunpack.c.l.b16 %v30
  %v73 = vunpack.c.l.b16 %v31
  %v74 = vunpack.c.l.b16 %v32
  %v75 = vunpack.c.l.b16 %v33
  %v76 = vunpack.c.l.b16 %v34
  %v77 = vunpack.c.l.b16 %v35
  %v78 = vunpack.c.l.b16 %v36
  %v79 = vunpack.c.l.b16 %v37
  %v80 = vunpack.c.l.b16 %v38
  %v81 = vunpack.c.l.b16 %v39
  %v82 = vunpack.c.l.b16 %v40
  %v83 = vunpack.c.l.b16 %v41
  %v84 = vunpack.c.l.b16 %v42
  %v85 = vunpack.c.l.b16 %v43
  %v86 = vunpack.c.l.b16 %v44
  %v87 = vunpack.c.l.b16 %v45
  %v88 = vpack.c.b16 %v73, %v72
  %v89 = vpack.c.b16 %v75, %v74
  %v90 = vpack.c.b16 %v77, %v76
  %v91 = vpack.c.b16 %v79, %v78
  %v92 = vpack.c.b16 %v81, %v80
  %v93 = vpack.c.b16 %v83, %v82
  %v94 = vpack.c.b16 %v85, %v84
  %v95 = vpack.c.b16 %v87, %v86
  %104 = vmatprep.subr.bf16.mxu0 0
  %105 = vmatpush1.bf16.msra.mxu0 %v88
  %106 = vmatprep.subr.bf16.mxu0 0
  %107 = vmatpush1.bf16.msra.mxu0 %v89
  %108 = vmatprep.subr.bf16.mxu0 0
  %109 = vmatpush1.bf16.msra.mxu0 %v90
  %110 = vmatprep.subr.bf16.mxu0 0
  %111 = vmatpush1.bf16.msra.mxu0 %v91
  %112 = vmatprep.subr.bf16.mxu0 0
  %113 = vmatpush1.bf16.msra.mxu0 %v92
  %114 = vmatprep.subr.bf16.mxu0 0
  %115 = vmatpush1.bf16.msra.mxu0 %v93
  %116 = vmatprep.subr.bf16.mxu0 0
  %117 = vmatpush1.bf16.msra.mxu0 %v94
  %118 = vmatprep.subr.bf16.mxu0 0
  %119 = vmatpush1.bf16.msra.mxu0 %v95
  %120 = vmatprep.subr.bf16.mxu0 0
  %121 = vmatpush1.bf16.msra.mxu0 0
  %122 = vmatprep.subr.bf16.mxu0 0
  %123 = vmatpush1.bf16.msra.mxu0 0
  %124 = vmatprep.subr.bf16.mxu0 0
  %125 = vmatpush1.bf16.msra.mxu0 0
  %126 = vmatprep.subr.bf16.mxu0 0
  %127 = vmatpush1.bf16.msra.mxu0 0
  %128 = vmatprep.subr.bf16.mxu0 0
  %129 = vmatpush1.bf16.msra.mxu0 0
  %130 = vmatprep.subr.bf16.mxu0 0
  %131 = vmatpush1.bf16.msra.mxu0 0
  %132 = vmatprep.subr.bf16.mxu0 0
  %133 = vmatpush1.bf16.msra.mxu0 0
  %134 = vmatprep.subr.bf16.mxu0 0
  %135 = vmatpush1.bf16.msra.mxu0 0
  %136 = vmatprep.mubr.bf16.mxu0 0
  %137 = vmatmul.mubr.bf16.gmra.mrb[0].mxu0 %v52
  %v138 = vpop.f32.mrb[0].mxu0
  %v139 = vadd.f32 0.0, %v138
  %v140 = vpop.f32.mrb[0].mxu0
  %v141 = vpop.f32.mrb[0].mxu0
  %v142 = vadd.f32 0.0, %v141
  %v143 = vpop.f32.mrb[0].mxu0
  %144 = vmatprep.mubr.bf16.mxu0 0
  %145 = vmatmul.mubr.bf16.gmra.mrb[0].mxu0 %v53
  %v146 = vpop.f32.mrb[0].mxu0
  %v147 = vadd.f32 0.0, %v146
  %v148 = vpop.f32.mrb[0].mxu0
  %v149 = vpop.f32.mrb[0].mxu0
  %v150 = vpop.f32.mrb[0].mxu0
  %151 = vdwg.mxu0
  %v152 = vadd.f32 %v24, %v139
  %v153 = vadd.f32 %v25, %v142
  %v154 = vadd.f32 %v26, %v147
  %vm155 = vcmask 64512
  %156 = vst.msk [vmem:[#allocation2] sm:$0xff] %vm155, %v152
  %157 = vst.msk [vmem:[#allocation2 + $0x8] sm:$0xff] %vm155, %v153
  %vm158 = vcmask 58368
  %159 = vst.msk [vmem:[#allocation2 + $0x10] sm:$0x3] %vm158, %v154
  // Predicated region
  $region18: #{multiscale_forward.59} parent=0 // pred_check
    %p160 = pneg %p15
  $region19: #{multiscale_forward.59} parent=0 // pred_check_branch
    %162 = sbr.rel (%p160) target = $region21
  $region20: #{multiscale_forward.59} parent=0 // pred_region
    %v163 = vld [vmem:[#allocation2] sm:$0xff]
    %v164 = vld [vmem:[#allocation2 + $0x8] sm:$0xff]
    %v165 = vld [vmem:[#allocation2 + $0x10] sm:$0x3]
    %v166 = vld [vmem:[%s2] sm:$0x1]
    %v168 = vlaneseq
    %v169 = vshrl.u32 %v168, 7
    %v170 = vsub.s32 0, %v169
    %v171 = vrot.slane %v166, %v170
    %v173 = vadd.f32 %v163, %v171
    %v174 = vadd.f32 %v164, %v171
    %v175 = vadd.f32 %v165, %v171
    %vm176 = vcmp.ge.f32.partialorder %v173, 0.0
    %vm177 = vcmp.ge.f32.partialorder %v174, 0.0
    %vm178 = vcmp.ge.f32.partialorder %v175, 0.0
    %v179 = vmul.f32 %v173, 0.2
    %v180 = vmul.f32 %v174, 0.2
    %v181 = vmul.f32 %v175, 0.2
    %v182 = vsel %vm176, %v173, %v179
    %v183 = vsel %vm177, %v174, %v180
    %v184 = vsel %vm178, %v175, %v181
    %185 = vst.msk [vmem:[%s3] sm:$0xff] %vm155, %v182
    %186 = vst.msk [vmem:[%s3 + $0x8] sm:$0xff] %vm155, %v183
    %187 = vst.msk [vmem:[%s3 + $0x10] sm:$0x3] %vm158, %v184
  $region21: #{multiscale_forward.59} parent=0 // pred_fallthru
    _
  // Predicated region
  $region22: #{multiscale_forward.59} parent=0 // pred_check
    _
  $region23: #{multiscale_forward.59} parent=0 // pred_check_branch
    %189 = sbr.rel (0) target = $region25
  $region24: #{multiscale_forward.59} parent=0 // pred_region
    _
  $region25: #{multiscale_forward.59} parent=0 // pred_fallthru
    _
  // Predicated region
  $region26: #{multiscale_forward.59} parent=0 // pred_check
    _
  $region27: #{multiscale_forward.59} parent=0 // pred_check_branch
    %191 = sbr.rel (0) target = $region29
  $region28: #{multiscale_forward.59} parent=0 // pred_region
    _
  $region29: #{multiscale_forward.59} parent=0 // pred_fallthru
    _

// kernel: multiscale_forward.60
$region0: #{multiscale_forward.60}
  #allocation0 [shape = 'u32[]', space=smem, size = 0x4, offset = 0x4, fixed_abs, tag = 'smem constant byte address 0x4 - core index']
  #allocation1 [shape = 'u32[144,128]{1,0:T(1,128)}', space=vmem, size = 0x12000, scoped, tag = 'internal scratch']
  #allocation2 [shape = 'f32[8,16]{1,0:T(8,128)}', space=vmem, size = 0x1000, scoped, tag = 'scratch operand']
  %s0 = inlined_call_operand.vmem [shape: bf16[8,128], index: 0, kind: input, shape index: {}]
  %s1 = inlined_call_operand.vmem [shape: bf16[128,16], index: 1, kind: input, shape index: {}]
  %s2 = inlined_call_operand.vmem [shape: f32[1,16], index: 2, kind: input, shape index: {}]
  %s3 = inlined_call_operand.vmem [shape: f32[8,16], index: 3, kind: output, shape index: {}]
  %s4 = sld [smem:[#allocation0]]
  $region30: #{multiscale_forward.60} parent=0
    _
  %s6 = ssub.s32 1, %s4
  %s7 = scalar_select 0, %s6, %s4
  // Predicated region
  $region2: #{multiscale_forward.60} parent=0 // pred_check
    _
  $region3: #{multiscale_forward.60} parent=0 // pred_check_branch
    %9 = sbr.rel (0) target = $region5
  $region4: #{multiscale_forward.60} parent=0 // pred_region
    _
  $region5: #{multiscale_forward.60} parent=0 // pred_fallthru
    _
  // Predicated region
  $region6: #{multiscale_forward.60} parent=0 // pred_check
    _
  $region7: #{multiscale_forward.60} parent=0 // pred_check_branch
    %11 = sbr.rel (0) target = $region9
  $region8: #{multiscale_forward.60} parent=0 // pred_region
    _
  $region9: #{multiscale_forward.60} parent=0 // pred_fallthru
    _
  // Predicated region
  $region10: #{multiscale_forward.60} parent=0 // pred_check
    _
  $region11: #{multiscale_forward.60} parent=0 // pred_check_branch
    %13 = sbr.rel (0) target = $region13
  $region12: #{multiscale_forward.60} parent=0 // pred_region
    _
  $region13: #{multiscale_forward.60} parent=0 // pred_fallthru
    _
  %p15 = scmp.eq.s32.totalorder 0, 0
  // Predicated region
  $region14: #{multiscale_forward.60} parent=0 // pred_check
    %p16 = pneg %p15
  $region15: #{multiscale_forward.60} parent=0 // pred_check_branch
    %18 = sbr.rel (%p16) target = $region17
  $region16: #{multiscale_forward.60} parent=0 // pred_region
    %vm19 = vcmask 130048
    %20 = vst.msk [vmem:[#allocation2] sm:$0xff] %vm19, 0.0
  $region17: #{multiscale_forward.60} parent=0 // pred_fallthru
    _
  %v21 = vld [vmem:[#allocation2] sm:$0xff]
  %v22 = vld [vmem:[%s0] sm:$0xf]
  %v23 = vld [vmem:[%s1] sm:$0xf]
  %v24 = vld [vmem:[%s1 + $0x4] sm:$0xf]
  %v25 = vld [vmem:[%s1 + $0x8] sm:$0xf]
  %v26 = vld [vmem:[%s1 + $0xc] sm:$0xf]
  %v27 = vld [vmem:[%s1 + $0x10] sm:$0xf]
  %v28 = vld [vmem:[%s1 + $0x14] sm:$0xf]
  %v29 = vld [vmem:[%s1 + $0x18] sm:$0xf]
  %v30 = vld [vmem:[%s1 + $0x1c] sm:$0xf]
  %v31 = vld [vmem:[%s1 + $0x20] sm:$0xf]
  %v32 = vld [vmem:[%s1 + $0x24] sm:$0xf]
  %v33 = vld [vmem:[%s1 + $0x28] sm:$0xf]
  %v34 = vld [vmem:[%s1 + $0x2c] sm:$0xf]
  %v35 = vld [vmem:[%s1 + $0x30] sm:$0xf]
  %v36 = vld [vmem:[%s1 + $0x34] sm:$0xf]
  %v37 = vld [vmem:[%s1 + $0x38] sm:$0xf]
  %v38 = vld [vmem:[%s1 + $0x3c] sm:$0xf]
  %v55 = vunpack.c.l.b16 %v23
  %v56 = vunpack.c.l.b16 %v24
  %v57 = vunpack.c.l.b16 %v25
  %v58 = vunpack.c.l.b16 %v26
  %v59 = vunpack.c.l.b16 %v27
  %v60 = vunpack.c.l.b16 %v28
  %v61 = vunpack.c.l.b16 %v29
  %v62 = vunpack.c.l.b16 %v30
  %v63 = vunpack.c.l.b16 %v31
  %v64 = vunpack.c.l.b16 %v32
  %v65 = vunpack.c.l.b16 %v33
  %v66 = vunpack.c.l.b16 %v34
  %v67 = vunpack.c.l.b16 %v35
  %v68 = vunpack.c.l.b16 %v36
  %v69 = vunpack.c.l.b16 %v37
  %v70 = vunpack.c.l.b16 %v38
  %v71 = vpack.c.b16 %v56, %v55
  %v72 = vpack.c.b16 %v58, %v57
  %v73 = vpack.c.b16 %v60, %v59
  %v74 = vpack.c.b16 %v62, %v61
  %v75 = vpack.c.b16 %v64, %v63
  %v76 = vpack.c.b16 %v66, %v65
  %v77 = vpack.c.b16 %v68, %v67
  %v78 = vpack.c.b16 %v70, %v69
  %87 = vmatprep.subr.bf16.mxu0 0
  %88 = vmatpush1.bf16.msra.mxu0 %v71
  %89 = vmatprep.subr.bf16.mxu0 0
  %90 = vmatpush1.bf16.msra.mxu0 %v72
  %91 = vmatprep.subr.bf16.mxu0 0
  %92 = vmatpush1.bf16.msra.mxu0 %v73
  %93 = vmatprep.subr.bf16.mxu0 0
  %94 = vmatpush1.bf16.msra.mxu0 %v74
  %95 = vmatprep.subr.bf16.mxu0 0
  %96 = vmatpush1.bf16.msra.mxu0 %v75
  %97 = vmatprep.subr.bf16.mxu0 0
  %98 = vmatpush1.bf16.msra.mxu0 %v76
  %99 = vmatprep.subr.bf16.mxu0 0
  %100 = vmatpush1.bf16.msra.mxu0 %v77
  %101 = vmatprep.subr.bf16.mxu0 0
  %102 = vmatpush1.bf16.msra.mxu0 %v78
  %103 = vmatprep.subr.bf16.mxu0 0
  %104 = vmatpush1.bf16.msra.mxu0 0
  %105 = vmatprep.subr.bf16.mxu0 0
  %106 = vmatpush1.bf16.msra.mxu0 0
  %107 = vmatprep.subr.bf16.mxu0 0
  %108 = vmatpush1.bf16.msra.mxu0 0
  %109 = vmatprep.subr.bf16.mxu0 0
  %110 = vmatpush1.bf16.msra.mxu0 0
  %111 = vmatprep.subr.bf16.mxu0 0
  %112 = vmatpush1.bf16.msra.mxu0 0
  %113 = vmatprep.subr.bf16.mxu0 0
  %114 = vmatpush1.bf16.msra.mxu0 0
  %115 = vmatprep.subr.bf16.mxu0 0
  %116 = vmatpush1.bf16.msra.mxu0 0
  %117 = vmatprep.subr.bf16.mxu0 0
  %118 = vmatpush1.bf16.msra.mxu0 0
  %119 = vmatprep.mubr.bf16.mxu0 0
  %120 = vmatmul.mubr.bf16.gmra.mrb[0].mxu0 %v22
  %v121 = vpop.f32.mrb[0].mxu0
  %v122 = vadd.f32 0.0, %v121
  %v123 = vpop.f32.mrb[0].mxu0
  %v124 = vpop.f32.mrb[0].mxu0
  %v125 = vpop.f32.mrb[0].mxu0
  %126 = vdwg.mxu0
  %v127 = vadd.f32 %v21, %v122
  %vm128 = vcmask 130048
  %129 = vst.msk [vmem:[#allocation2] sm:$0xff] %vm128, %v127
  // Predicated region
  $region18: #{multiscale_forward.60} parent=0 // pred_check
    %p130 = pneg %p15
  $region19: #{multiscale_forward.60} parent=0 // pred_check_branch
    %132 = sbr.rel (%p130) target = $region21
  $region20: #{multiscale_forward.60} parent=0 // pred_region
    %v133 = vld [vmem:[#allocation2] sm:$0xff]
    %v134 = vld [vmem:[%s2] sm:$0x1]
    %v136 = vlaneseq
    %v137 = vshrl.u32 %v136, 7
    %v138 = vsub.s32 0, %v137
    %v139 = vrot.slane %v134, %v138
    %v141 = vadd.f32 %v133, %v139
    %142 = vst.msk [vmem:[%s3] sm:$0xff] %vm128, %v141
  $region21: #{multiscale_forward.60} parent=0 // pred_fallthru
    _
  // Predicated region
  $region22: #{multiscale_forward.60} parent=0 // pred_check
    _
  $region23: #{multiscale_forward.60} parent=0 // pred_check_branch
    %144 = sbr.rel (0) target = $region25
  $region24: #{multiscale_forward.60} parent=0 // pred_region
    _
  $region25: #{multiscale_forward.60} parent=0 // pred_fallthru
    _
  // Predicated region
  $region26: #{multiscale_forward.60} parent=0 // pred_check
    _
  $region27: #{multiscale_forward.60} parent=0 // pred_check_branch
    %146 = sbr.rel (0) target = $region29
  $region28: #{multiscale_forward.60} parent=0 // pred_region
    _
  $region29: #{multiscale_forward.60} parent=0 // pred_fallthru
    _

// kernel: multiscale_forward.61
$region0: #{multiscale_forward.61}
  #allocation0 [shape = 'u32[]', space=smem, size = 0x4, offset = 0x4, fixed_abs, tag = 'smem constant byte address 0x4 - core index']
  #allocation1 [shape = 'u32[144,128]{1,0:T(1,128)}', space=vmem, size = 0x12000, scoped, tag = 'internal scratch']
  %s0 = inlined_call_operand.vmem [shape: f32[8,16], index: 0, kind: input, shape index: {}]
  %s1 = inlined_call_operand.vmem [shape: f32[1,16], index: 1, kind: output, shape index: {0}]
  %s2 = inlined_call_operand.vmem [shape: f32[1,16], index: 2, kind: output, shape index: {1}]
  %3 = xla_tuple %s1, %s2
  %s4 = sld [smem:[#allocation0]]
  $region26: #{multiscale_forward.61} parent=0
    _
  %s6 = ssub.s32 1, %s4
  %s7 = scalar_select 0, %s6, %s4
  // Predicated region
  $region2: #{multiscale_forward.61} parent=0 // pred_check
    _
  $region3: #{multiscale_forward.61} parent=0 // pred_check_branch
    %9 = sbr.rel (0) target = $region5
  $region4: #{multiscale_forward.61} parent=0 // pred_region
    _
  $region5: #{multiscale_forward.61} parent=0 // pred_fallthru
    _
  %p10 = scmp.eq.s32.totalorder 0, 0
  // Predicated region
  $region6: #{multiscale_forward.61} parent=0 // pred_check
    %p11 = pneg %p10
  $region7: #{multiscale_forward.61} parent=0 // pred_check_branch
    %13 = sbr.rel (%p11) target = $region9
  $region8: #{multiscale_forward.61} parent=0 // pred_region
    %vm14 = vcmask 122880
    %15 = vst.msk [vmem:[%s1] sm:$0x1] %vm14, 0.0
    %16 = vst.msk [vmem:[%s2] sm:$0x1] %vm14, 0.0
  $region9: #{multiscale_forward.61} parent=0 // pred_fallthru
    _
  %v17 = vld [vmem:[%s0] sm:$0xff]
  %s18 = smul.u32 0, 8
  %v19 = vlaneseq
  %v20 = vshrl.u32 %v19, 7
  %v21 = vstv %s18
  %v22 = vadd.s32 %v21, %v20
  %vm23 = vcmp.lt.s32.totalorder %v22, 8
  %v24 = vsel %vm23, %v17, 0.0
  %v25 = vld [vmem:[%s1] sm:$0x1]
  %vm26 = vcmask 130048
  %v27 = vsel %vm26, %v24, 0.0
  %v28 = vrot.slane %v27, 4
  %v29 = vadd.f32 %v27, %v28
  %v30 = vrot.slane %v29, 2
  %v31 = vadd.f32 %v29, %v30
  %v32 = vrot.slane %v31, 1
  %v33 = vadd.f32 %v31, %v32
  %v34 = vadd.f32 %v25, %v33
  %vm35 = vcmask 122880
  %36 = vst.msk [vmem:[%s1] sm:$0x1] %vm35, %v34
  %v37 = vld [vmem:[%s2] sm:$0x1]
  %v38 = vmul.f32 %v24, %v24
  %v39 = vsel %vm26, %v38, 0.0
  %v40 = vrot.slane %v39, 4
  %v41 = vadd.f32 %v39, %v40
  %v42 = vrot.slane %v41, 2
  %v43 = vadd.f32 %v41, %v42
  %v44 = vrot.slane %v43, 1
  %v45 = vadd.f32 %v43, %v44
  %v46 = vadd.f32 %v37, %v45
  %47 = vst.msk [vmem:[%s2] sm:$0x1] %vm35, %v46
  // Predicated region
  $region10: #{multiscale_forward.61} parent=0 // pred_check
    _
  $region11: #{multiscale_forward.61} parent=0 // pred_check_branch
    %49 = sbr.rel (0) target = $region13
  $region12: #{multiscale_forward.61} parent=0 // pred_region
    _
  $region13: #{multiscale_forward.61} parent=0 // pred_fallthru
    _
  // Predicated region
  $region14: #{multiscale_forward.61} parent=0 // pred_check
    _
  $region15: #{multiscale_forward.61} parent=0 // pred_check_branch
    %51 = sbr.rel (0) target = $region17
  $region16: #{multiscale_forward.61} parent=0 // pred_region
    _
  $region17: #{multiscale_forward.61} parent=0 // pred_fallthru
    _
  // Predicated region
  $region18: #{multiscale_forward.61} parent=0 // pred_check
    _
  $region19: #{multiscale_forward.61} parent=0 // pred_check_branch
    %53 = sbr.rel (0) target = $region21
  $region20: #{multiscale_forward.61} parent=0 // pred_region
    _
  $region21: #{multiscale_forward.61} parent=0 // pred_fallthru
    _
  // Predicated region
  $region22: #{multiscale_forward.61} parent=0 // pred_check
    _
  $region23: #{multiscale_forward.61} parent=0 // pred_check_branch
    %55 = sbr.rel (0) target = $region25
  $region24: #{multiscale_forward.61} parent=0 // pred_region
    _
  $region25: #{multiscale_forward.61} parent=0 // pred_fallthru
    _

// kernel: multiscale_forward.62
$region0: #{multiscale_forward.62}
  #allocation0 [shape = 'u32[]', space=smem, size = 0x4, offset = 0x4, fixed_abs, tag = 'smem constant byte address 0x4 - core index']
  #allocation1 [shape = 'u32[144,128]{1,0:T(1,128)}', space=vmem, size = 0x12000, scoped, tag = 'internal scratch']
  %s0 = inlined_call_operand.vmem [shape: f32[8,16], index: 0, kind: input, shape index: {}]
  %s1 = inlined_call_operand.vmem [shape: f32[1,16], index: 1, kind: input, shape index: {}]
  %s2 = inlined_call_operand.vmem [shape: f32[1,16], index: 2, kind: input, shape index: {}]
  %s3 = inlined_call_operand.vmem [shape: f32[8,16], index: 3, kind: output, shape index: {}]
  %s4 = sld [smem:[#allocation0]]
  $region22: #{multiscale_forward.62} parent=0
    _
  %s6 = ssub.s32 1, %s4
  %s7 = scalar_select 0, %s6, %s4
  // Predicated region
  $region2: #{multiscale_forward.62} parent=0 // pred_check
    _
  $region3: #{multiscale_forward.62} parent=0 // pred_check_branch
    %9 = sbr.rel (0) target = $region5
  $region4: #{multiscale_forward.62} parent=0 // pred_region
    _
  $region5: #{multiscale_forward.62} parent=0 // pred_fallthru
    _
  // Predicated region
  $region6: #{multiscale_forward.62} parent=0 // pred_check
    _
  $region7: #{multiscale_forward.62} parent=0 // pred_check_branch
    %11 = sbr.rel (0) target = $region9
  $region8: #{multiscale_forward.62} parent=0 // pred_region
    _
  $region9: #{multiscale_forward.62} parent=0 // pred_fallthru
    _
  // Predicated region
  $region10: #{multiscale_forward.62} parent=0 // pred_check
    _
  $region11: #{multiscale_forward.62} parent=0 // pred_check_branch
    %13 = sbr.rel (0) target = $region13
  $region12: #{multiscale_forward.62} parent=0 // pred_region
    _
  $region13: #{multiscale_forward.62} parent=0 // pred_fallthru
    _
  %v14 = vld [vmem:[%s0] sm:$0xff]
  %v15 = vld [vmem:[%s1] sm:$0x1]
  %v17 = vlaneseq
  %v18 = vshrl.u32 %v17, 7
  %v19 = vsub.s32 0, %v18
  %v20 = vrot.slane %v15, %v19
  %v22 = vmul.f32 %v14, %v20
  %v23 = vld [vmem:[%s2] sm:$0x1]
  %v25 = vlaneseq
  %v26 = vshrl.u32 %v25, 7
  %v27 = vsub.s32 0, %v26
  %v28 = vrot.slane %v23, %v27
  %v30 = vadd.f32 %v22, %v28
  %vm31 = vcmp.ge.f32.partialorder %v30, 0.0
  %v32 = vmul.f32 %v30, 0.2
  %v33 = vsel %vm31, %v30, %v32
  %vm34 = vcmask 130048
  %35 = vst.msk [vmem:[%s3] sm:$0xff] %vm34, %v33
  // Predicated region
  $region14: #{multiscale_forward.62} parent=0 // pred_check
    _
  $region15: #{multiscale_forward.62} parent=0 // pred_check_branch
    %37 = sbr.rel (0) target = $region17
  $region16: #{multiscale_forward.62} parent=0 // pred_region
    _
  $region17: #{multiscale_forward.62} parent=0 // pred_fallthru
    _
  // Predicated region
  $region18: #{multiscale_forward.62} parent=0 // pred_check
    _
  $region19: #{multiscale_forward.62} parent=0 // pred_check_branch
    %39 = sbr.rel (0) target = $region21
  $region20: #{multiscale_forward.62} parent=0 // pred_region
    _
  $region21: #{multiscale_forward.62} parent=0 // pred_fallthru
    _

// kernel: multiscale_forward.64
$region0: #{multiscale_forward.64}
  #allocation0 [shape = 'u32[]', space=smem, size = 0x4, offset = 0x4, fixed_abs, tag = 'smem constant byte address 0x4 - core index']
  #allocation1 [shape = 'u32[144,128]{1,0:T(1,128)}', space=vmem, size = 0x12000, scoped, tag = 'internal scratch']
  %s0 = inlined_call_operand.vmem [shape: f32[8,32], index: 0, kind: input, shape index: {}]
  %s1 = inlined_call_operand.vmem [shape: f32[1,32], index: 1, kind: output, shape index: {0}]
  %s2 = inlined_call_operand.vmem [shape: f32[1,32], index: 2, kind: output, shape index: {1}]
  %3 = xla_tuple %s1, %s2
  %s4 = sld [smem:[#allocation0]]
  $region26: #{multiscale_forward.64} parent=0
    _
  %s6 = ssub.s32 1, %s4
  %s7 = scalar_select 0, %s6, %s4
  // Predicated region
  $region2: #{multiscale_forward.64} parent=0 // pred_check
    _
  $region3: #{multiscale_forward.64} parent=0 // pred_check_branch
    %9 = sbr.rel (0) target = $region5
  $region4: #{multiscale_forward.64} parent=0 // pred_region
    _
  $region5: #{multiscale_forward.64} parent=0 // pred_fallthru
    _
  %p10 = scmp.eq.s32.totalorder 0, 0
  // Predicated region
  $region6: #{multiscale_forward.64} parent=0 // pred_check
    %p11 = pneg %p10
  $region7: #{multiscale_forward.64} parent=0 // pred_check_branch
    %13 = sbr.rel (%p11) target = $region9
  $region8: #{multiscale_forward.64} parent=0 // pred_region
    %vm14 = vcmask 253952
    %15 = vst.msk [vmem:[%s1] sm:$0x1] %vm14, 0.0
    %16 = vst.msk [vmem:[%s2] sm:$0x1] %vm14, 0.0
  $region9: #{multiscale_forward.64} parent=0 // pred_fallthru
    _
  %v17 = vld [vmem:[%s0] sm:$0xff]
  %s18 = smul.u32 0, 8
  %v19 = vlaneseq
  %v20 = vshrl.u32 %v19, 7
  %v21 = vstv %s18
  %v22 = vadd.s32 %v21, %v20
  %vm23 = vcmp.lt.s32.totalorder %v22, 8
  %v24 = vsel %vm23, %v17, 0.0
  %v25 = vld [vmem:[%s1] sm:$0x1]
  %vm26 = vcmask 261120
  %v27 = vsel %vm26, %v24, 0.0
  %v28 = vrot.slane %v27, 4
  %v29 = vadd.f32 %v27, %v28
  %v30 = vrot.slane %v29, 2
  %v31 = vadd.f32 %v29, %v30
  %v32 = vrot.slane %v31, 1
  %v33 = vadd.f32 %v31, %v32
  %v34 = vadd.f32 %v25, %v33
  %vm35 = vcmask 253952
  %36 = vst.msk [vmem:[%s1] sm:$0x1] %vm35, %v34
  %v37 = vld [vmem:[%s2] sm:$0x1]
  %v38 = vmul.f32 %v24, %v24
  %v39 = vsel %vm26, %v38, 0.0
  %v40 = vrot.slane %v39, 4
  %v41 = vadd.f32 %v39, %v40
  %v42 = vrot.slane %v41, 2
  %v43 = vadd.f32 %v41, %v42
  %v44 = vrot.slane %v43, 1
  %v45 = vadd.f32 %v43, %v44
  %v46 = vadd.f32 %v37, %v45
  %47 = vst.msk [vmem:[%s2] sm:$0x1] %vm35, %v46
  // Predicated region
  $region10: #{multiscale_forward.64} parent=0 // pred_check
    _
  $region11: #{multiscale_forward.64} parent=0 // pred_check_branch
    %49 = sbr.rel (0) target = $region13
  $region12: #{multiscale_forward.64} parent=0 // pred_region
    _
  $region13: #{multiscale_forward.64} parent=0 // pred_fallthru
    _
  // Predicated region
  $region14: #{multiscale_forward.64} parent=0 // pred_check
    _
  $region15: #{multiscale_forward.64} parent=0 // pred_check_branch
    %51 = sbr.rel (0) target = $region17
  $region16: #{multiscale_forward.64} parent=0 // pred_region
    _
  $region17: #{multiscale_forward.64} parent=0 // pred_fallthru
    _
  // Predicated region
  $region18: #{multiscale_forward.64} parent=0 // pred_check
    _
  $region19: #{multiscale_forward.64} parent=0 // pred_check_branch
    %53 = sbr.rel (0) target = $region21
  $region20: #{multiscale_forward.64} parent=0 // pred_region
    _
  $region21: #{multiscale_forward.64} parent=0 // pred_fallthru
    _
  // Predicated region
  $region22: #{multiscale_forward.64} parent=0 // pred_check
    _
  $region23: #{multiscale_forward.64} parent=0 // pred_check_branch
    %55 = sbr.rel (0) target = $region25
  $region24: #{multiscale_forward.64} parent=0 // pred_region
    _
  $region25: #{multiscale_forward.64} parent=0 // pred_fallthru
    _

// kernel: multiscale_forward.63
$region0: #{multiscale_forward.63}
  #allocation0 [shape = 'u32[]', space=smem, size = 0x4, offset = 0x4, fixed_abs, tag = 'smem constant byte address 0x4 - core index']
  #allocation1 [shape = 'u32[144,128]{1,0:T(1,128)}', space=vmem, size = 0x12000, scoped, tag = 'internal scratch']
  #allocation2 [shape = 'f32[8,32]{1,0:T(8,128)}', space=vmem, size = 0x1000, scoped, tag = 'scratch operand']
  %s0 = inlined_call_operand.vmem [shape: bf16[8,256], index: 0, kind: input, shape index: {}]
  %s1 = inlined_call_operand.vmem [shape: bf16[256,32], index: 1, kind: input, shape index: {}]
  %s2 = inlined_call_operand.vmem [shape: f32[1,32], index: 2, kind: input, shape index: {}]
  %s3 = inlined_call_operand.vmem [shape: f32[8,32], index: 3, kind: output, shape index: {}]
  %s4 = sld [smem:[#allocation0]]
  $region30: #{multiscale_forward.63} parent=0
    _
  %s6 = ssub.s32 1, %s4
  %s7 = scalar_select 0, %s6, %s4
  // Predicated region
  $region2: #{multiscale_forward.63} parent=0 // pred_check
    _
  $region3: #{multiscale_forward.63} parent=0 // pred_check_branch
    %9 = sbr.rel (0) target = $region5
  $region4: #{multiscale_forward.63} parent=0 // pred_region
    _
  $region5: #{multiscale_forward.63} parent=0 // pred_fallthru
    _
  // Predicated region
  $region6: #{multiscale_forward.63} parent=0 // pred_check
    _
  $region7: #{multiscale_forward.63} parent=0 // pred_check_branch
    %11 = sbr.rel (0) target = $region9
  $region8: #{multiscale_forward.63} parent=0 // pred_region
    _
  $region9: #{multiscale_forward.63} parent=0 // pred_fallthru
    _
  // Predicated region
  $region10: #{multiscale_forward.63} parent=0 // pred_check
    _
  $region11: #{multiscale_forward.63} parent=0 // pred_check_branch
    %13 = sbr.rel (0) target = $region13
  $region12: #{multiscale_forward.63} parent=0 // pred_region
    _
  $region13: #{multiscale_forward.63} parent=0 // pred_fallthru
    _
  %p15 = scmp.eq.s32.totalorder 0, 0
  // Predicated region
  $region14: #{multiscale_forward.63} parent=0 // pred_check
    %p16 = pneg %p15
  $region15: #{multiscale_forward.63} parent=0 // pred_check_branch
    %18 = sbr.rel (%p16) target = $region17
  $region16: #{multiscale_forward.63} parent=0 // pred_region
    %vm19 = vcmask 261120
    %20 = vst.msk [vmem:[#allocation2] sm:$0xff] %vm19, 0.0
  $region17: #{multiscale_forward.63} parent=0 // pred_fallthru
    _
  %v21 = vld [vmem:[#allocation2] sm:$0xff]
  %v22 = vld [vmem:[%s0] sm:$0xff]
  %v23 = vld [vmem:[%s1] sm:$0xf]
  %v24 = vld [vmem:[%s1 + $0x4] sm:$0xf]
  %v25 = vld [vmem:[%s1 + $0x8] sm:$0xf]
  %v26 = vld [vmem:[%s1 + $0xc] sm:$0xf]
  %v27 = vld [vmem:[%s1 + $0x10] sm:$0xf]
  %v28 = vld [vmem:[%s1 + $0x14] sm:$0xf]
  %v29 = vld [vmem:[%s1 + $0x18] sm:$0xf]
  %v30 = vld [vmem:[%s1 + $0x1c] sm:$0xf]
  %v31 = vld [vmem:[%s1 + $0x20] sm:$0xf]
  %v32 = vld [vmem:[%s1 + $0x24] sm:$0xf]
  %v33 = vld [vmem:[%s1 + $0x28] sm:$0xf]
  %v34 = vld [vmem:[%s1 + $0x2c] sm:$0xf]
  %v35 = vld [vmem:[%s1 + $0x30] sm:$0xf]
  %v36 = vld [vmem:[%s1 + $0x34] sm:$0xf]
  %v37 = vld [vmem:[%s1 + $0x38] sm:$0xf]
  %v38 = vld [vmem:[%s1 + $0x3c] sm:$0xf]
  %v39 = vld [vmem:[%s1 + $0x40] sm:$0xf]
  %v40 = vld [vmem:[%s1 + $0x44] sm:$0xf]
  %v41 = vld [vmem:[%s1 + $0x48] sm:$0xf]
  %v42 = vld [vmem:[%s1 + $0x4c] sm:$0xf]
  %v43 = vld [vmem:[%s1 + $0x50] sm:$0xf]
  %v44 = vld [vmem:[%s1 + $0x54] sm:$0xf]
  %v45 = vld [vmem:[%s1 + $0x58] sm:$0xf]
  %v46 = vld [vmem:[%s1 + $0x5c] sm:$0xf]
  %v47 = vld [vmem:[%s1 + $0x60] sm:$0xf]
  %v48 = vld [vmem:[%s1 + $0x64] sm:$0xf]
  %v49 = vld [vmem:[%s1 + $0x68] sm:$0xf]
  %v50 = vld [vmem:[%s1 + $0x6c] sm:$0xf]
  %v51 = vld [vmem:[%s1 + $0x70] sm:$0xf]
  %v52 = vld [vmem:[%s1 + $0x74] sm:$0xf]
  %v53 = vld [vmem:[%s1 + $0x78] sm:$0xf]
  %v54 = vld [vmem:[%s1 + $0x7c] sm:$0xf]
  %v56 = vunpack.c.l.b16 %v22
  %v57 = vunpack.c.h.b16 %v22
  %v58 = vpack.c.b16 %v56, %v56
  %v59 = vpack.c.b16 %v57, %v57
  %v94 = vunpack.c.l.b16 %v23
  %v95 = vunpack.c.l.b16 %v24
  %v96 = vunpack.c.l.b16 %v25
  %v97 = vunpack.c.l.b16 %v26
  %v98 = vunpack.c.l.b16 %v27
  %v99 = vunpack.c.l.b16 %v28
  %v100 = vunpack.c.l.b16 %v29
  %v101 = vunpack.c.l.b16 %v30
  %v102 = vunpack.c.l.b16 %v31
  %v103 = vunpack.c.l.b16 %v32
  %v104 = vunpack.c.l.b16 %v33
  %v105 = vunpack.c.l.b16 %v34
  %v106 = vunpack.c.l.b16 %v35
  %v107 = vunpack.c.l.b16 %v36
  %v108 = vunpack.c.l.b16 %v37
  %v109 = vunpack.c.l.b16 %v38
  %v110 = vunpack.c.l.b16 %v39
  %v111 = vunpack.c.l.b16 %v40
  %v112 = vunpack.c.l.b16 %v41
  %v113 = vunpack.c.l.b16 %v42
  %v114 = vunpack.c.l.b16 %v43
  %v115 = vunpack.c.l.b16 %v44
  %v116 = vunpack.c.l.b16 %v45
  %v117 = vunpack.c.l.b16 %v46
  %v118 = vunpack.c.l.b16 %v47
  %v119 = vunpack.c.l.b16 %v48
  %v120 = vunpack.c.l.b16 %v49
  %v121 = vunpack.c.l.b16 %v50
  %v122 = vunpack.c.l.b16 %v51
  %v123 = vunpack.c.l.b16 %v52
  %v124 = vunpack.c.l.b16 %v53
  %v125 = vunpack.c.l.b16 %v54
  %v126 = vpack.c.b16 %v95, %v94
  %v127 = vpack.c.b16 %v97, %v96
  %v128 = vpack.c.b16 %v99, %v98
  %v129 = vpack.c.b16 %v101, %v100
  %v130 = vpack.c.b16 %v103, %v102
  %v131 = vpack.c.b16 %v105, %v104
  %v132 = vpack.c.b16 %v107, %v106
  %v133 = vpack.c.b16 %v109, %v108
  %v134 = vpack.c.b16 %v111, %v110
  %v135 = vpack.c.b16 %v113, %v112
  %v136 = vpack.c.b16 %v115, %v114
  %v137 = vpack.c.b16 %v117, %v116
  %v138 = vpack.c.b16 %v119, %v118
  %v139 = vpack.c.b16 %v121, %v120
  %v140 = vpack.c.b16 %v123, %v122
  %v141 = vpack.c.b16 %v125, %v124
  %158 = vmatprep.subr.bf16.mxu0 0
  %159 = vmatpush1.bf16.msra.mxu0 %v126
  %160 = vmatprep.subr.bf16.mxu0 0
  %161 = vmatpush1.bf16.msra.mxu0 %v127
  %162 = vmatprep.subr.bf16.mxu0 0
  %163 = vmatpush1.bf16.msra.mxu0 %v128
  %164 = vmatprep.subr.bf16.mxu0 0
  %165 = vmatpush1.bf16.msra.mxu0 %v129
  %166 = vmatprep.subr.bf16.mxu0 0
  %167 = vmatpush1.bf16.msra.mxu0 %v130
  %168 = vmatprep.subr.bf16.mxu0 0
  %169 = vmatpush1.bf16.msra.mxu0 %v131
  %170 = vmatprep.subr.bf16.mxu0 0
  %171 = vmatpush1.bf16.msra.mxu0 %v132
  %172 = vmatprep.subr.bf16.mxu0 0
  %173 = vmatpush1.bf16.msra.mxu0 %v133
  %174 = vmatprep.subr.bf16.mxu0 0
  %175 = vmatpush1.bf16.msra.mxu0 %v134
  %176 = vmatprep.subr.bf16.mxu0 0
  %177 = vmatpush1.bf16.msra.mxu0 %v135
  %178 = vmatprep.subr.bf16.mxu0 0
  %179 = vmatpush1.bf16.msra.mxu0 %v136
  %180 = vmatprep.subr.bf16.mxu0 0
  %181 = vmatpush1.bf16.msra.mxu0 %v137
  %182 = vmatprep.subr.bf16.mxu0 0
  %183 = vmatpush1.bf16.msra.mxu0 %v138
  %184 = vmatprep.subr.bf16.mxu0 0
  %185 = vmatpush1.bf16.msra.mxu0 %v139
  %186 = vmatprep.subr.bf16.mxu0 0
  %187 = vmatpush1.bf16.msra.mxu0 %v140
  %188 = vmatprep.subr.bf16.mxu0 0
  %189 = vmatpush1.bf16.msra.mxu0 %v141
  %190 = vmatprep.mubr.bf16.mxu0 %v59
  %191 = vmatmul.mubr.bf16.gmra.mrb[0].mxu0 %v58
  %v192 = vpop.f32.mrb[0].mxu0
  %v193 = vadd.f32 0.0, %v192
  %v194 = vpop.f32.mrb[0].mxu0
  %v195 = vpop.f32.mrb[0].mxu0
  %v196 = vpop.f32.mrb[0].mxu0
  %197 = vdwg.mxu0
  %v198 = vadd.f32 %v21, %v193
  %vm199 = vcmask 261120
  %200 = vst.msk [vmem:[#allocation2] sm:$0xff] %vm199, %v198
  // Predicated region
  $region18: #{multiscale_forward.63} parent=0 // pred_check
    %p201 = pneg %p15
  $region19: #{multiscale_forward.63} parent=0 // pred_check_branch
    %203 = sbr.rel (%p201) target = $region21
  $region20: #{multiscale_forward.63} parent=0 // pred_region
    %v204 = vld [vmem:[#allocation2] sm:$0xff]
    %v205 = vld [vmem:[%s2] sm:$0x1]
    %v207 = vlaneseq
    %v208 = vshrl.u32 %v207, 7
    %v209 = vsub.s32 0, %v208
    %v210 = vrot.slane %v205, %v209
    %v212 = vadd.f32 %v204, %v210
    %213 = vst.msk [vmem:[%s3] sm:$0xff] %vm199, %v212
  $region21: #{multiscale_forward.63} parent=0 // pred_fallthru
    _
  // Predicated region
  $region22: #{multiscale_forward.63} parent=0 // pred_check
    _
  $region23: #{multiscale_forward.63} parent=0 // pred_check_branch
    %215 = sbr.rel (0) target = $region25
  $region24: #{multiscale_forward.63} parent=0 // pred_region
    _
  $region25: #{multiscale_forward.63} parent=0 // pred_fallthru
    _
  // Predicated region
  $region26: #{multiscale_forward.63} parent=0 // pred_check
    _
  $region27: #{multiscale_forward.63} parent=0 // pred_check_branch
    %217 = sbr.rel (0) target = $region29
  $region28: #{multiscale_forward.63} parent=0 // pred_region
    _
  $region29: #{multiscale_forward.63} parent=0 // pred_fallthru
    _

// kernel: multiscale_forward.65
$region0: #{multiscale_forward.65}
  #allocation0 [shape = 'u32[]', space=smem, size = 0x4, offset = 0x4, fixed_abs, tag = 'smem constant byte address 0x4 - core index']
  #allocation1 [shape = 'u32[144,128]{1,0:T(1,128)}', space=vmem, size = 0x12000, scoped, tag = 'internal scratch']
  %s0 = inlined_call_operand.vmem [shape: f32[8,32], index: 0, kind: input, shape index: {}]
  %s1 = inlined_call_operand.vmem [shape: f32[1,32], index: 1, kind: input, shape index: {}]
  %s2 = inlined_call_operand.vmem [shape: f32[1,32], index: 2, kind: input, shape index: {}]
  %s3 = inlined_call_operand.vmem [shape: f32[8,32], index: 3, kind: output, shape index: {}]
  %s4 = sld [smem:[#allocation0]]
  $region22: #{multiscale_forward.65} parent=0
    _
  %s6 = ssub.s32 1, %s4
  %s7 = scalar_select 0, %s6, %s4
  // Predicated region
  $region2: #{multiscale_forward.65} parent=0 // pred_check
    _
  $region3: #{multiscale_forward.65} parent=0 // pred_check_branch
    %9 = sbr.rel (0) target = $region5
  $region4: #{multiscale_forward.65} parent=0 // pred_region
    _
  $region5: #{multiscale_forward.65} parent=0 // pred_fallthru
    _
  // Predicated region
  $region6: #{multiscale_forward.65} parent=0 // pred_check
    _
  $region7: #{multiscale_forward.65} parent=0 // pred_check_branch
    %11 = sbr.rel (0) target = $region9
  $region8: #{multiscale_forward.65} parent=0 // pred_region
    _
  $region9: #{multiscale_forward.65} parent=0 // pred_fallthru
    _
  // Predicated region
  $region10: #{multiscale_forward.65} parent=0 // pred_check
    _
  $region11: #{multiscale_forward.65} parent=0 // pred_check_branch
    %13 = sbr.rel (0) target = $region13
  $region12: #{multiscale_forward.65} parent=0 // pred_region
    _
  $region13: #{multiscale_forward.65} parent=0 // pred_fallthru
    _
  %v14 = vld [vmem:[%s0] sm:$0xff]
  %v15 = vld [vmem:[%s1] sm:$0x1]
  %v17 = vlaneseq
  %v18 = vshrl.u32 %v17, 7
  %v19 = vsub.s32 0, %v18
  %v20 = vrot.slane %v15, %v19
  %v22 = vmul.f32 %v14, %v20
  %v23 = vld [vmem:[%s2] sm:$0x1]
  %v25 = vlaneseq
  %v26 = vshrl.u32 %v25, 7
  %v27 = vsub.s32 0, %v26
  %v28 = vrot.slane %v23, %v27
  %v30 = vadd.f32 %v22, %v28
  %vm31 = vcmp.ge.f32.partialorder %v30, 0.0
  %v32 = vmul.f32 %v30, 0.2
  %v33 = vsel %vm31, %v30, %v32
  %vm34 = vcmask 261120
  %35 = vst.msk [vmem:[%s3] sm:$0xff] %vm34, %v33
  // Predicated region
  $region14: #{multiscale_forward.65} parent=0 // pred_check
    _
  $region15: #{multiscale_forward.65} parent=0 // pred_check_branch
    %37 = sbr.rel (0) target = $region17
  $region16: #{multiscale_forward.65} parent=0 // pred_region
    _
  $region17: #{multiscale_forward.65} parent=0 // pred_fallthru
    _
  // Predicated region
  $region18: #{multiscale_forward.65} parent=0 // pred_check
    _
  $region19: #{multiscale_forward.65} parent=0 // pred_check_branch
    %39 = sbr.rel (0) target = $region21
  $region20: #{multiscale_forward.65} parent=0 // pred_region
    _
  $region21: #{multiscale_forward.65} parent=0 // pred_fallthru
    _

// kernel: multiscale_forward.67
$region0: #{multiscale_forward.67}
  #allocation0 [shape = 'u32[]', space=smem, size = 0x4, offset = 0x4, fixed_abs, tag = 'smem constant byte address 0x4 - core index']
  #allocation1 [shape = 'u32[144,128]{1,0:T(1,128)}', space=vmem, size = 0x12000, scoped, tag = 'internal scratch']
  %s0 = inlined_call_operand.vmem [shape: f32[18,64], index: 0, kind: input, shape index: {}]
  %s1 = inlined_call_operand.vmem [shape: f32[1,64], index: 1, kind: output, shape index: {0}]
  %s2 = inlined_call_operand.vmem [shape: f32[1,64], index: 2, kind: output, shape index: {1}]
  %3 = xla_tuple %s1, %s2
  %s4 = sld [smem:[#allocation0]]
  $region26: #{multiscale_forward.67} parent=0
    _
  %s6 = ssub.s32 1, %s4
  %s7 = scalar_select 0, %s6, %s4
  // Predicated region
  $region2: #{multiscale_forward.67} parent=0 // pred_check
    _
  $region3: #{multiscale_forward.67} parent=0 // pred_check_branch
    %9 = sbr.rel (0) target = $region5
  $region4: #{multiscale_forward.67} parent=0 // pred_region
    _
  $region5: #{multiscale_forward.67} parent=0 // pred_fallthru
    _
  %p10 = scmp.eq.s32.totalorder 0, 0
  // Predicated region
  $region6: #{multiscale_forward.67} parent=0 // pred_check
    %p11 = pneg %p10
  $region7: #{multiscale_forward.67} parent=0 // pred_check_branch
    %13 = sbr.rel (%p11) target = $region9
  $region8: #{multiscale_forward.67} parent=0 // pred_region
    %vm14 = vcmask 516096
    %15 = vst.msk [vmem:[%s1] sm:$0x1] %vm14, 0.0
    %16 = vst.msk [vmem:[%s2] sm:$0x1] %vm14, 0.0
  $region9: #{multiscale_forward.67} parent=0 // pred_fallthru
    _
  %v17 = vld [vmem:[%s0] sm:$0xff]
  %v18 = vld [vmem:[%s0 + $0x8] sm:$0xff]
  %v19 = vld [vmem:[%s0 + $0x10] sm:$0x3]
  %s20 = smul.u32 0, 18
  %v21 = vlaneseq
  %v22 = vshrl.u32 %v21, 7
  %v23 = vadd.s32 %v22, 8
  %v24 = vadd.s32 %v22, 16
  %v25 = vstv %s20
  %v26 = vadd.s32 %v25, %v22
  %v27 = vadd.s32 %v25, %v23
  %v28 = vadd.s32 %v25, %v24
  %vm29 = vcmp.lt.s32.totalorder %v26, 18
  %vm30 = vcmp.lt.s32.totalorder %v27, 18
  %vm31 = vcmp.lt.s32.totalorder %v28, 18
  %v32 = vsel %vm29, %v17, 0.0
  %v33 = vsel %vm30, %v18, 0.0
  %v34 = vsel %vm31, %v19, 0.0
  %v35 = vld [vmem:[%s1] sm:$0x1]
  %vm36 = vcmask 523264
  %v37 = vsel %vm36, %v32, 0.0
  %v38 = vsel %vm36, %v33, 0.0
  %v39 = vadd.f32 %v37, %v38
  %vm40 = vcmask 517120
  %v41 = vsel %vm40, %v34, 0.0
  %v42 = vadd.f32 %v39, %v41
  %v43 = vrot.slane %v42, 4
  %v44 = vadd.f32 %v42, %v43
  %v45 = vrot.slane %v44, 2
  %v46 = vadd.f32 %v44, %v45
  %v47 = vrot.slane %v46, 1
  %v48 = vadd.f32 %v46, %v47
  %v49 = vadd.f32 %v35, %v48
  %vm50 = vcmask 516096
  %51 = vst.msk [vmem:[%s1] sm:$0x1] %vm50, %v49
  %v52 = vld [vmem:[%s2] sm:$0x1]
  %v53 = vmul.f32 %v32, %v32
  %v54 = vmul.f32 %v33, %v33
  %v55 = vmul.f32 %v34, %v34
  %v56 = vsel %vm36, %v53, 0.0
  %v57 = vsel %vm36, %v54, 0.0
  %v58 = vadd.f32 %v56, %v57
  %v59 = vsel %vm40, %v55, 0.0
  %v60 = vadd.f32 %v58, %v59
  %v61 = vrot.slane %v60, 4
  %v62 = vadd.f32 %v60, %v61
  %v63 = vrot.slane %v62, 2
  %v64 = vadd.f32 %v62, %v63
  %v65 = vrot.slane %v64, 1
  %v66 = vadd.f32 %v64, %v65
  %v67 = vadd.f32 %v52, %v66
  %68 = vst.msk [vmem:[%s2] sm:$0x1] %vm50, %v67
  // Predicated region
  $region10: #{multiscale_forward.67} parent=0 // pred_check
    _
  $region11: #{multiscale_forward.67} parent=0 // pred_check_branch
    %70 = sbr.rel (0) target = $region13
  $region12: #{multiscale_forward.67} parent=0 // pred_region
    _
  $region13: #{multiscale_forward.67} parent=0 // pred_fallthru
    _
  // Predicated region
  $region14: #{multiscale_forward.67} parent=0 // pred_check
    _
  $region15: #{multiscale_forward.67} parent=0 // pred_check_branch
    %72 = sbr.rel (0) target = $region17
  $region16: #{multiscale_forward.67} parent=0 // pred_region
    _
  $region17: #{multiscale_forward.67} parent=0 // pred_fallthru
    _
  // Predicated region
  $region18: #{multiscale_forward.67} parent=0 // pred_check
    _
  $region19: #{multiscale_forward.67} parent=0 // pred_check_branch
    %74 = sbr.rel (0) target = $region21
  $region20: #{multiscale_forward.67} parent=0 // pred_region
    _
  $region21: #{multiscale_forward.67} parent=0 // pred_fallthru
    _
  // Predicated region
  $region22: #{multiscale_forward.67} parent=0 // pred_check
    _
  $region23: #{multiscale_forward.67} parent=0 // pred_check_branch
    %76 = sbr.rel (0) target = $region25
  $region24: #{multiscale_forward.67} parent=0 // pred_region
    _
  $region25: #{multiscale_forward.67} parent=0 // pred_fallthru
    _

// kernel: multiscale_forward.68
$region0: #{multiscale_forward.68}
  #allocation0 [shape = 'u32[]', space=smem, size = 0x4, offset = 0x4, fixed_abs, tag = 'smem constant byte address 0x4 - core index']
  #allocation1 [shape = 'u32[144,128]{1,0:T(1,128)}', space=vmem, size = 0x12000, scoped, tag = 'internal scratch']
  %s0 = inlined_call_operand.vmem [shape: f32[18,64], index: 0, kind: input, shape index: {}]
  %s1 = inlined_call_operand.vmem [shape: f32[1,64], index: 1, kind: input, shape index: {}]
  %s2 = inlined_call_operand.vmem [shape: f32[1,64], index: 2, kind: input, shape index: {}]
  %s3 = inlined_call_operand.vmem [shape: f32[18,64], index: 3, kind: output, shape index: {}]
  %s4 = sld [smem:[#allocation0]]
  $region22: #{multiscale_forward.68} parent=0
    _
  %s6 = ssub.s32 1, %s4
  %s7 = scalar_select 0, %s6, %s4
  // Predicated region
  $region2: #{multiscale_forward.68} parent=0 // pred_check
    _
  $region3: #{multiscale_forward.68} parent=0 // pred_check_branch
    %9 = sbr.rel (0) target = $region5
  $region4: #{multiscale_forward.68} parent=0 // pred_region
    _
  $region5: #{multiscale_forward.68} parent=0 // pred_fallthru
    _
  // Predicated region
  $region6: #{multiscale_forward.68} parent=0 // pred_check
    _
  $region7: #{multiscale_forward.68} parent=0 // pred_check_branch
    %11 = sbr.rel (0) target = $region9
  $region8: #{multiscale_forward.68} parent=0 // pred_region
    _
  $region9: #{multiscale_forward.68} parent=0 // pred_fallthru
    _
  // Predicated region
  $region10: #{multiscale_forward.68} parent=0 // pred_check
    _
  $region11: #{multiscale_forward.68} parent=0 // pred_check_branch
    %13 = sbr.rel (0) target = $region13
  $region12: #{multiscale_forward.68} parent=0 // pred_region
    _
  $region13: #{multiscale_forward.68} parent=0 // pred_fallthru
    _
  %v14 = vld [vmem:[%s0] sm:$0xff]
  %v15 = vld [vmem:[%s0 + $0x8] sm:$0xff]
  %v16 = vld [vmem:[%s0 + $0x10] sm:$0x3]
  %v17 = vld [vmem:[%s1] sm:$0x1]
  %v19 = vlaneseq
  %v20 = vshrl.u32 %v19, 7
  %v21 = vsub.s32 0, %v20
  %v22 = vrot.slane %v17, %v21
  %v24 = vmul.f32 %v14, %v22
  %v25 = vmul.f32 %v15, %v22
  %v26 = vmul.f32 %v16, %v22
  %v27 = vld [vmem:[%s2] sm:$0x1]
  %v29 = vlaneseq
  %v30 = vshrl.u32 %v29, 7
  %v31 = vsub.s32 0, %v30
  %v32 = vrot.slane %v27, %v31
  %v34 = vadd.f32 %v24, %v32
  %v35 = vadd.f32 %v25, %v32
  %v36 = vadd.f32 %v26, %v32
  %vm37 = vcmp.ge.f32.partialorder %v34, 0.0
  %vm38 = vcmp.ge.f32.partialorder %v35, 0.0
  %vm39 = vcmp.ge.f32.partialorder %v36, 0.0
  %v40 = vmul.f32 %v34, 0.2
  %v41 = vmul.f32 %v35, 0.2
  %v42 = vmul.f32 %v36, 0.2
  %v43 = vsel %vm37, %v34, %v40
  %v44 = vsel %vm38, %v35, %v41
  %v45 = vsel %vm39, %v36, %v42
  %vm46 = vcmask 523264
  %47 = vst.msk [vmem:[%s3] sm:$0xff] %vm46, %v43
  %48 = vst.msk [vmem:[%s3 + $0x8] sm:$0xff] %vm46, %v44
  %vm49 = vcmask 517120
  %50 = vst.msk [vmem:[%s3 + $0x10] sm:$0x3] %vm49, %v45
  // Predicated region
  $region14: #{multiscale_forward.68} parent=0 // pred_check
    _
  $region15: #{multiscale_forward.68} parent=0 // pred_check_branch
    %52 = sbr.rel (0) target = $region17
  $region16: #{multiscale_forward.68} parent=0 // pred_region
    _
  $region17: #{multiscale_forward.68} parent=0 // pred_fallthru
    _
  // Predicated region
  $region18: #{multiscale_forward.68} parent=0 // pred_check
    _
  $region19: #{multiscale_forward.68} parent=0 // pred_check_branch
    %54 = sbr.rel (0) target = $region21
  $region20: #{multiscale_forward.68} parent=0 // pred_region
    _
  $region21: #{multiscale_forward.68} parent=0 // pred_fallthru
    _

// kernel: multiscale_forward.66
$region0: #{multiscale_forward.66}
  #allocation0 [shape = 'u32[]', space=smem, size = 0x4, offset = 0x4, fixed_abs, tag = 'smem constant byte address 0x4 - core index']
  #allocation1 [shape = 'u32[144,128]{1,0:T(1,128)}', space=vmem, size = 0x12000, scoped, tag = 'internal scratch']
  #allocation2 [shape = 'f32[18,64]{1,0:T(8,128)}', space=vmem, size = 0x3000, scoped, tag = 'scratch operand']
  %s0 = inlined_call_operand.vmem [shape: bf16[18,512], index: 0, kind: input, shape index: {}]
  %s1 = inlined_call_operand.vmem [shape: bf16[512,64], index: 1, kind: input, shape index: {}]
  %s2 = inlined_call_operand.vmem [shape: f32[1,64], index: 2, kind: input, shape index: {}]
  %s3 = inlined_call_operand.vmem [shape: f32[18,64], index: 3, kind: output, shape index: {}]
  %s4 = sld [smem:[#allocation0]]
  $region30: #{multiscale_forward.66} parent=0
    _
  %s6 = ssub.s32 1, %s4
  %s7 = scalar_select 0, %s6, %s4
  // Predicated region
  $region2: #{multiscale_forward.66} parent=0 // pred_check
    _
  $region3: #{multiscale_forward.66} parent=0 // pred_check_branch
    %9 = sbr.rel (0) target = $region5
  $region4: #{multiscale_forward.66} parent=0 // pred_region
    _
  $region5: #{multiscale_forward.66} parent=0 // pred_fallthru
    _
  // Predicated region
  $region6: #{multiscale_forward.66} parent=0 // pred_check
    _
  $region7: #{multiscale_forward.66} parent=0 // pred_check_branch
    %11 = sbr.rel (0) target = $region9
  $region8: #{multiscale_forward.66} parent=0 // pred_region
    _
  $region9: #{multiscale_forward.66} parent=0 // pred_fallthru
    _
  // Predicated region
  $region10: #{multiscale_forward.66} parent=0 // pred_check
    _
  $region11: #{multiscale_forward.66} parent=0 // pred_check_branch
    %13 = sbr.rel (0) target = $region13
  $region12: #{multiscale_forward.66} parent=0 // pred_region
    _
  $region13: #{multiscale_forward.66} parent=0 // pred_fallthru
    _
  %p15 = scmp.eq.s32.totalorder 0, 0
  // Predicated region
  $region14: #{multiscale_forward.66} parent=0 // pred_check
    %p16 = pneg %p15
  $region15: #{multiscale_forward.66} parent=0 // pred_check_branch
    %18 = sbr.rel (%p16) target = $region17
  $region16: #{multiscale_forward.66} parent=0 // pred_region
    %vm19 = vcmask 523264
    %20 = vst.msk [vmem:[#allocation2] sm:$0xff] %vm19, 0.0
    %21 = vst.msk [vmem:[#allocation2 + $0x8] sm:$0xff] %vm19, 0.0
    %vm22 = vcmask 517120
    %23 = vst.msk [vmem:[#allocation2 + $0x10] sm:$0x3] %vm22, 0.0
  $region17: #{multiscale_forward.66} parent=0 // pred_fallthru
    _
  %v24 = vld [vmem:[#allocation2] sm:$0xff]
  %v25 = vld [vmem:[#allocation2 + $0x8] sm:$0xff]
  %v26 = vld [vmem:[#allocation2 + $0x10] sm:$0x3]
  %v27 = vld [vmem:[%s0] sm:$0xff]
  %v28 = vld [vmem:[%s0 + $0x8] sm:$0xff]
  %v29 = vld [vmem:[%s0 + $0x10] sm:$0xff]
  %v30 = vld [vmem:[%s0 + $0x18] sm:$0xff]
  %v31 = vld [vmem:[%s0 + $0x20] sm:$0x11]
  %v32 = vld [vmem:[%s0 + $0x28] sm:$0x11]
  %v33 = vld [vmem:[%s1] sm:$0xf]
  %v34 = vld [vmem:[%s1 + $0x4] sm:$0xf]
  %v35 = vld [vmem:[%s1 + $0x8] sm:$0xf]
  %v36 = vld [vmem:[%s1 + $0xc] sm:$0xf]
  %v37 = vld [vmem:[%s1 + $0x10] sm:$0xf]
  %v38 = vld [vmem:[%s1 + $0x14] sm:$0xf]
  %v39 = vld [vmem:[%s1 + $0x18] sm:$0xf]
  %v40 = vld [vmem:[%s1 + $0x1c] sm:$0xf]
  %v41 = vld [vmem:[%s1 + $0x20] sm:$0xf]
  %v42 = vld [vmem:[%s1 + $0x24] sm:$0xf]
  %v43 = vld [vmem:[%s1 + $0x28] sm:$0xf]
  %v44 = vld [vmem:[%s1 + $0x2c] sm:$0xf]
  %v45 = vld [vmem:[%s1 + $0x30] sm:$0xf]
  %v46 = vld [vmem:[%s1 + $0x34] sm:$0xf]
  %v47 = vld [vmem:[%s1 + $0x38] sm:$0xf]
  %v48 = vld [vmem:[%s1 + $0x3c] sm:$0xf]
  %v49 = vld [vmem:[%s1 + $0x40] sm:$0xf]
  %v50 = vld [vmem:[%s1 + $0x44] sm:$0xf]
  %v51 = vld [vmem:[%s1 + $0x48] sm:$0xf]
  %v52 = vld [vmem:[%s1 + $0x4c] sm:$0xf]
  %v53 = vld [vmem:[%s1 + $0x50] sm:$0xf]
  %v54 = vld [vmem:[%s1 + $0x54] sm:$0xf]
  %v55 = vld [vmem:[%s1 + $0x58] sm:$0xf]
  %v56 = vld [vmem:[%s1 + $0x5c] sm:$0xf]
  %v57 = vld [vmem:[%s1 + $0x60] sm:$0xf]
  %v58 = vld [vmem:[%s1 + $0x64] sm:$0xf]
  %v59 = vld [vmem:[%s1 + $0x68] sm:$0xf]
  %v60 = vld [vmem:[%s1 + $0x6c] sm:$0xf]
  %v61 = vld [vmem:[%s1 + $0x70] sm:$0xf]
  %v62 = vld [vmem:[%s1 + $0x74] sm:$0xf]
  %v63 = vld [vmem:[%s1 + $0x78] sm:$0xf]
  %v64 = vld [vmem:[%s1 + $0x7c] sm:$0xf]
  %v65 = vld [vmem:[%s1 + $0x80] sm:$0xf]
  %v66 = vld [vmem:[%s1 + $0x84] sm:$0xf]
  %v67 = vld [vmem:[%s1 + $0x88] sm:$0xf]
  %v68 = vld [vmem:[%s1 + $0x8c] sm:$0xf]
  %v69 = vld [vmem:[%s1 + $0x90] sm:$0xf]
  %v70 = vld [vmem:[%s1 + $0x94] sm:$0xf]
  %v71 = vld [vmem:[%s1 + $0x98] sm:$0xf]
  %v72 = vld [vmem:[%s1 + $0x9c] sm:$0xf]
  %v73 = vld [vmem:[%s1 + $0xa0] sm:$0xf]
  %v74 = vld [vmem:[%s1 + $0xa4] sm:$0xf]
  %v75 = vld [vmem:[%s1 + $0xa8] sm:$0xf]
  %v76 = vld [vmem:[%s1 + $0xac] sm:$0xf]
  %v77 = vld [vmem:[%s1 + $0xb0] sm:$0xf]
  %v78 = vld [vmem:[%s1 + $0xb4] sm:$0xf]
  %v79 = vld [vmem:[%s1 + $0xb8] sm:$0xf]
  %v80 = vld [vmem:[%s1 + $0xbc] sm:$0xf]
  %v81 = vld [vmem:[%s1 + $0xc0] sm:$0xf]
  %v82 = vld [vmem:[%s1 + $0xc4] sm:$0xf]
  %v83 = vld [vmem:[%s1 + $0xc8] sm:$0xf]
  %v84 = vld [vmem:[%s1 + $0xcc] sm:$0xf]
  %v85 = vld [vmem:[%s1 + $0xd0] sm:$0xf]
  %v86 = vld [vmem:[%s1 + $0xd4] sm:$0xf]
  %v87 = vld [vmem:[%s1 + $0xd8] sm:$0xf]
  %v88 = vld [vmem:[%s1 + $0xdc] sm:$0xf]
  %v89 = vld [vmem:[%s1 + $0xe0] sm:$0xf]
  %v90 = vld [vmem:[%s1 + $0xe4] sm:$0xf]
  %v91 = vld [vmem:[%s1 + $0xe8] sm:$0xf]
  %v92 = vld [vmem:[%s1 + $0xec] sm:$0xf]
  %v93 = vld [vmem:[%s1 + $0xf0] sm:$0xf]
  %v94 = vld [vmem:[%s1 + $0xf4] sm:$0xf]
  %v95 = vld [vmem:[%s1 + $0xf8] sm:$0xf]
  %v96 = vld [vmem:[%s1 + $0xfc] sm:$0xf]
  %v103 = vunpack.c.l.b16 %v27
  %v104 = vunpack.c.h.b16 %v27
  %v105 = vunpack.c.l.b16 %v28
  %v106 = vunpack.c.h.b16 %v28
  %v107 = vunpack.c.l.b16 %v29
  %v108 = vunpack.c.h.b16 %v29
  %v109 = vunpack.c.l.b16 %v30
  %v110 = vunpack.c.h.b16 %v30
  %v111 = vunpack.c.l.b16 %v31
  %v112 = vunpack.c.h.b16 %v31
  %v113 = vunpack.c.l.b16 %v32
  %v114 = vunpack.c.h.b16 %v32
  %v115 = vpack.c.b16 %v107, %v103
  %v116 = vpack.c.b16 %v108, %v104
  %v117 = vpack.c.b16 %v109, %v105
  %v118 = vpack.c.b16 %v110, %v106
  %v119 = vpack.c.b16 %v111, %v111
  %v120 = vpack.c.b16 %v112, %v112
  %v121 = vpack.c.b16 %v113, %v113
  %v122 = vpack.c.b16 %v114, %v114
  %v195 = vunpack.c.l.b16 %v33
  %v196 = vunpack.c.l.b16 %v34
  %v197 = vunpack.c.l.b16 %v35
  %v198 = vunpack.c.l.b16 %v36
  %v199 = vunpack.c.l.b16 %v37
  %v200 = vunpack.c.l.b16 %v38
  %v201 = vunpack.c.l.b16 %v39
  %v202 = vunpack.c.l.b16 %v40
  %v203 = vunpack.c.l.b16 %v41
  %v204 = vunpack.c.l.b16 %v42
  %v205 = vunpack.c.l.b16 %v43
  %v206 = vunpack.c.l.b16 %v44
  %v207 = vunpack.c.l.b16 %v45
  %v208 = vunpack.c.l.b16 %v46
  %v209 = vunpack.c.l.b16 %v47
  %v210 = vunpack.c.l.b16 %v48
  %v211 = vunpack.c.l.b16 %v49
  %v212 = vunpack.c.l.b16 %v50
  %v213 = vunpack.c.l.b16 %v51
  %v214 = vunpack.c.l.b16 %v52
  %v215 = vunpack.c.l.b16 %v53
  %v216 = vunpack.c.l.b16 %v54
  %v217 = vunpack.c.l.b16 %v55
  %v218 = vunpack.c.l.b16 %v56
  %v219 = vunpack.c.l.b16 %v57
  %v220 = vunpack.c.l.b16 %v58
  %v221 = vunpack.c.l.b16 %v59
  %v222 = vunpack.c.l.b16 %v60
  %v223 = vunpack.c.l.b16 %v61
  %v224 = vunpack.c.l.b16 %v62
  %v225 = vunpack.c.l.b16 %v63
  %v226 = vunpack.c.l.b16 %v64
  %v227 = vunpack.c.l.b16 %v65
  %v228 = vunpack.c.l.b16 %v66
  %v229 = vunpack.c.l.b16 %v67
  %v230 = vunpack.c.l.b16 %v68
  %v231 = vunpack.c.l.b16 %v69
  %v232 = vunpack.c.l.b16 %v70
  %v233 = vunpack.c.l.b16 %v71
  %v234 = vunpack.c.l.b16 %v72
  %v235 = vunpack.c.l.b16 %v73
  %v236 = vunpack.c.l.b16 %v74
  %v237 = vunpack.c.l.b16 %v75
  %v238 = vunpack.c.l.b16 %v76
  %v239 = vunpack.c.l.b16 %v77
  %v240 = vunpack.c.l.b16 %v78
  %v241 = vunpack.c.l.b16 %v79
  %v242 = vunpack.c.l.b16 %v80
  %v243 = vunpack.c.l.b16 %v81
  %v244 = vunpack.c.l.b16 %v82
  %v245 = vunpack.c.l.b16 %v83
  %v246 = vunpack.c.l.b16 %v84
  %v247 = vunpack.c.l.b16 %v85
  %v248 = vunpack.c.l.b16 %v86
  %v249 = vunpack.c.l.b16 %v87
  %v250 = vunpack.c.l.b16 %v88
  %v251 = vunpack.c.l.b16 %v89
  %v252 = vunpack.c.l.b16 %v90
  %v253 = vunpack.c.l.b16 %v91
  %v254 = vunpack.c.l.b16 %v92
  %v255 = vunpack.c.l.b16 %v93
  %v256 = vunpack.c.l.b16 %v94
  %v257 = vunpack.c.l.b16 %v95
  %v258 = vunpack.c.l.b16 %v96
  %v259 = vpack.c.b16 %v196, %v195
  %v260 = vpack.c.b16 %v198, %v197
  %v261 = vpack.c.b16 %v200, %v199
  %v262 = vpack.c.b16 %v202, %v201
  %v263 = vpack.c.b16 %v204, %v203
  %v264 = vpack.c.b16 %v206, %v205
  %v265 = vpack.c.b16 %v208, %v207
  %v266 = vpack.c.b16 %v210, %v209
  %v267 = vpack.c.b16 %v212, %v211
  %v268 = vpack.c.b16 %v214, %v213
  %v269 = vpack.c.b16 %v216, %v215
  %v270 = vpack.c.b16 %v218, %v217
  %v271 = vpack.c.b16 %v220, %v219
  %v272 = vpack.c.b16 %v222, %v221
  %v273 = vpack.c.b16 %v224, %v223
  %v274 = vpack.c.b16 %v226, %v225
  %v275 = vpack.c.b16 %v228, %v227
  %v276 = vpack.c.b16 %v230, %v229
  %v277 = vpack.c.b16 %v232, %v231
  %v278 = vpack.c.b16 %v234, %v233
  %v279 = vpack.c.b16 %v236, %v235
  %v280 = vpack.c.b16 %v238, %v237
  %v281 = vpack.c.b16 %v240, %v239
  %v282 = vpack.c.b16 %v242, %v241
  %v283 = vpack.c.b16 %v244, %v243
  %v284 = vpack.c.b16 %v246, %v245
  %v285 = vpack.c.b16 %v248, %v247
  %v286 = vpack.c.b16 %v250, %v249
  %v287 = vpack.c.b16 %v252, %v251
  %v288 = vpack.c.b16 %v254, %v253
  %v289 = vpack.c.b16 %v256, %v255
  %v290 = vpack.c.b16 %v258, %v257
  %323 = vmatprep.subr.bf16.mxu0 0
  %324 = vmatpush1.bf16.msra.mxu0 %v259
  %325 = vmatprep.subr.bf16.mxu0 0
  %326 = vmatpush1.bf16.msra.mxu0 %v260
  %327 = vmatprep.subr.bf16.mxu0 0
  %328 = vmatpush1.bf16.msra.mxu0 %v261
  %329 = vmatprep.subr.bf16.mxu0 0
  %330 = vmatpush1.bf16.msra.mxu0 %v262
  %331 = vmatprep.subr.bf16.mxu0 0
  %332 = vmatpush1.bf16.msra.mxu0 %v263
  %333 = vmatprep.subr.bf16.mxu0 0
  %334 = vmatpush1.bf16.msra.mxu0 %v264
  %335 = vmatprep.subr.bf16.mxu0 0
  %336 = vmatpush1.bf16.msra.mxu0 %v265
  %337 = vmatprep.subr.bf16.mxu0 0
  %338 = vmatpush1.bf16.msra.mxu0 %v266
  %339 = vmatprep.subr.bf16.mxu0 0
  %340 = vmatpush1.bf16.msra.mxu0 %v267
  %341 = vmatprep.subr.bf16.mxu0 0
  %342 = vmatpush1.bf16.msra.mxu0 %v268
  %343 = vmatprep.subr.bf16.mxu0 0
  %344 = vmatpush1.bf16.msra.mxu0 %v269
  %345 = vmatprep.subr.bf16.mxu0 0
  %346 = vmatpush1.bf16.msra.mxu0 %v270
  %347 = vmatprep.subr.bf16.mxu0 0
  %348 = vmatpush1.bf16.msra.mxu0 %v271
  %349 = vmatprep.subr.bf16.mxu0 0
  %350 = vmatpush1.bf16.msra.mxu0 %v272
  %351 = vmatprep.subr.bf16.mxu0 0
  %352 = vmatpush1.bf16.msra.mxu0 %v273
  %353 = vmatprep.subr.bf16.mxu0 0
  %354 = vmatpush1.bf16.msra.mxu0 %v274
  %355 = vmatprep.mubr.bf16.mxu0 %v116
  %356 = vmatmul.mubr.bf16.gmra.mrb[0].mxu0 %v115
  %v357 = vpop.f32.mrb[0].mxu0
  %v358 = vadd.f32 0.0, %v357
  %v359 = vpop.f32.mrb[0].mxu0
  %v360 = vpop.f32.mrb[0].mxu0
  %v361 = vadd.f32 0.0, %v360
  %v362 = vpop.f32.mrb[0].mxu0
  %363 = vmatprep.mubr.bf16.mxu0 %v120
  %364 = vmatmul.mubr.bf16.gmra.mrb[0].mxu0 %v119
  %v365 = vpop.f32.mrb[0].mxu0
  %v366 = vadd.f32 0.0, %v365
  %v367 = vpop.f32.mrb[0].mxu0
  %v368 = vpop.f32.mrb[0].mxu0
  %v369 = vpop.f32.mrb[0].mxu0
  %370 = vdwg.mxu0
  %371 = vmatprep.subr.bf16.mxu0 0
  %372 = vmatpush1.bf16.msra.mxu0 %v275
  %373 = vmatprep.subr.bf16.mxu0 0
  %374 = vmatpush1.bf16.msra.mxu0 %v276
  %375 = vmatprep.subr.bf16.mxu0 0
  %376 = vmatpush1.bf16.msra.mxu0 %v277
  %377 = vmatprep.subr.bf16.mxu0 0
  %378 = vmatpush1.bf16.msra.mxu0 %v278
  %379 = vmatprep.subr.bf16.mxu0 0
  %380 = vmatpush1.bf16.msra.mxu0 %v279
  %381 = vmatprep.subr.bf16.mxu0 0
  %382 = vmatpush1.bf16.msra.mxu0 %v280
  %383 = vmatprep.subr.bf16.mxu0 0
  %384 = vmatpush1.bf16.msra.mxu0 %v281
  %385 = vmatprep.subr.bf16.mxu0 0
  %386 = vmatpush1.bf16.msra.mxu0 %v282
  %387 = vmatprep.subr.bf16.mxu0 0
  %388 = vmatpush1.bf16.msra.mxu0 %v283
  %389 = vmatprep.subr.bf16.mxu0 0
  %390 = vmatpush1.bf16.msra.mxu0 %v284
  %391 = vmatprep.subr.bf16.mxu0 0
  %392 = vmatpush1.bf16.msra.mxu0 %v285
  %393 = vmatprep.subr.bf16.mxu0 0
  %394 = vmatpush1.bf16.msra.mxu0 %v286
  %395 = vmatprep.subr.bf16.mxu0 0
  %396 = vmatpush1.bf16.msra.mxu0 %v287
  %397 = vmatprep.subr.bf16.mxu0 0
  %398 = vmatpush1.bf16.msra.mxu0 %v288
  %399 = vmatprep.subr.bf16.mxu0 0
  %400 = vmatpush1.bf16.msra.mxu0 %v289
  %401 = vmatprep.subr.bf16.mxu0 0
  %402 = vmatpush1.bf16.msra.mxu0 %v290
  %403 = vmatprep.mubr.bf16.mxu0 %v118
  %404 = vmatmul.mubr.bf16.gmra.mrb[0].mxu0 %v117
  %v405 = vpop.f32.mrb[0].mxu0
  %v406 = vadd.f32 %v358, %v405
  %v407 = vpop.f32.mrb[0].mxu0
  %v408 = vpop.f32.mrb[0].mxu0
  %v409 = vadd.f32 %v361, %v408
  %v410 = vpop.f32.mrb[0].mxu0
  %411 = vmatprep.mubr.bf16.mxu0 %v122
  %412 = vmatmul.mubr.bf16.gmra.mrb[0].mxu0 %v121
  %v413 = vpop.f32.mrb[0].mxu0
  %v414 = vadd.f32 %v366, %v413
  %v415 = vpop.f32.mrb[0].mxu0
  %v416 = vpop.f32.mrb[0].mxu0
  %v417 = vpop.f32.mrb[0].mxu0
  %418 = vdwg.mxu0
  %v419 = vadd.f32 %v24, %v406
  %v420 = vadd.f32 %v25, %v409
  %v421 = vadd.f32 %v26, %v414
  %vm422 = vcmask 523264
  %423 = vst.msk [vmem:[#allocation2] sm:$0xff] %vm422, %v419
  %424 = vst.msk [vmem:[#allocation2 + $0x8] sm:$0xff] %vm422, %v420
  %vm425 = vcmask 517120
  %426 = vst.msk [vmem:[#allocation2 + $0x10] sm:$0x3] %vm425, %v421
  // Predicated region
  $region18: #{multiscale_forward.66} parent=0 // pred_check
    %p427 = pneg %p15
  $region19: #{multiscale_forward.66} parent=0 // pred_check_branch
    %429 = sbr.rel (%p427) target = $region21
  $region20: #{multiscale_forward.66} parent=0 // pred_region
    %v430 = vld [vmem:[#allocation2] sm:$0xff]
    %v431 = vld [vmem:[#allocation2 + $0x8] sm:$0xff]
    %v432 = vld [vmem:[#allocation2 + $0x10] sm:$0x3]
    %v433 = vld [vmem:[%s2] sm:$0x1]
    %v435 = vlaneseq
    %v436 = vshrl.u32 %v435, 7
    %v437 = vsub.s32 0, %v436
    %v438 = vrot.slane %v433, %v437
    %v440 = vadd.f32 %v430, %v438
    %v441 = vadd.f32 %v431, %v438
    %v442 = vadd.f32 %v432, %v438
    %443 = vst.msk [vmem:[%s3] sm:$0xff] %vm422, %v440
    %444 = vst.msk [vmem:[%s3 + $0x8] sm:$0xff] %vm422, %v441
    %445 = vst.msk [vmem:[%s3 + $0x10] sm:$0x3] %vm425, %v442
  $region21: #{multiscale_forward.66} parent=0 // pred_fallthru
    _
  // Predicated region
  $region22: #{multiscale_forward.66} parent=0 // pred_check
    _
  $region23: #{multiscale_forward.66} parent=0 // pred_check_branch
    %447 = sbr.rel (0) target = $region25
  $region24: #{multiscale_forward.66} parent=0 // pred_region
    _
  $region25: #{multiscale_forward.66} parent=0 // pred_fallthru
    _
  // Predicated region
  $region26: #{multiscale_forward.66} parent=0 // pred_check
    _
  $region27: #{multiscale_forward.66} parent=0 // pred_check_branch
    %449 = sbr.rel (0) target = $region29
  $region28: #{multiscale_forward.66} parent=0 // pred_region
    _
  $region29: #{multiscale_forward.66} parent=0 // pred_fallthru
    _

// kernel: multiscale_forward.69
$region0: #{multiscale_forward.69}
  #allocation0 [shape = 'u32[]', space=smem, size = 0x4, offset = 0x4, fixed_abs, tag = 'smem constant byte address 0x4 - core index']
  #allocation1 [shape = 'u32[144,128]{1,0:T(1,128)}', space=vmem, size = 0x12000, scoped, tag = 'internal scratch']
  #allocation2 [shape = 'f32[32,128]{1,0:T(8,128)}', space=vmem, size = 0x4000, scoped, tag = 'scratch operand']
  %s0 = inlined_call_operand.vmem [shape: bf16[32,1024], index: 0, kind: input, shape index: {}]
  %s1 = inlined_call_operand.vmem [shape: bf16[1024,128], index: 1, kind: input, shape index: {}]
  %s2 = inlined_call_operand.vmem [shape: f32[1,128], index: 2, kind: input, shape index: {}]
  %s3 = inlined_call_operand.vmem [shape: f32[32,128], index: 3, kind: output, shape index: {}]
  %s4 = sld [smem:[#allocation0]]
  $region76: #{multiscale_forward.69} parent=0
    _
  %s6 = ssub.s32 1, %s4
  %s7 = scalar_select 0, %s6, %s4
  $region1: #{multiscale_forward.69} parent=0
    #allocation3 [shape = 'u8[65536]{0}', space=vmem, size = 0x10000, scoped, tag = 'input window, operand 0']
    loop: start=0, step=1, limit=4
    $region2: #{multiscale_forward.69} parent=1 // loop_pre_header
      _
    $region3: #{multiscale_forward.69} parent=1 // loop_header
      %s9 = sphi 0, %s13
      %p10 = scmp.ge.s32.totalorder %s9, 4
      %s16 = sphi 0, %s35
      %s17 = sphi 0, %s31
      %s18 = sphi 0, %s27
      %s19 = sphi 0, %s16
      %s20 = sphi 0, %s17
      %s21 = sphi 0, %s18
      %s22 = sphi 0, %s19
      %s23 = sphi 0, %s20
      %s24 = sphi 0, %s21
      %s40 = sphi 0, %s42
      %s43 = sphi 0, %s40
      %s44 = sphi 0, %s43
      %s60 = sphi 0, %s44
      %s68 = sphi 0, %s70
      %s71 = sphi 0, %s68
      %s72 = sphi 0, %s71
      %s88 = sphi 0, %s72
      %s94 = sphi 0, %s96
      %s97 = sphi 0, %s94
      %s98 = sphi 0, %s97
      %s114 = sphi 0, %s98
      %s122 = sphi 0, %s124
      %s125 = sphi 0, %s122
      %s126 = sphi 0, %s125
      %s142 = sphi 0, %s126
    $region4: #{multiscale_forward.69} parent=1 // loop_header_branch
      %12 = sbr.rel (%p10) target = $region8
    $region5: #{multiscale_forward.69} parent=1 // loop_body
      %s14 = ssub.s32 %s9, 1
      %s15 = ssub.s32 %s9, 2
      %s25 = sadd.s32 1, %s18
      %p26 = scmp.ge.s32.totalorder %s25, 2
      %s27 = scalar_select %p26, 0, %s25
      %s28 = sadd.s32 1, %s17
      %s29 = scalar_select %p26, %s28, %s17
      %p30 = scmp.ge.s32.totalorder %s29, 1
      %s31 = scalar_select %p30, 0, %s29
      %s32 = sadd.s32 1, %s16
      %s33 = scalar_select %p30, %s32, %s16
      %p34 = scmp.ge.s32.totalorder %s33, 1
      %s35 = scalar_select %p34, 0, %s33
      %s36 = ssub.s32 %s16, %s35
      %s37 = ssub.s32 %s18, %s27
      %s38 = sor.u32 %s36, %s37
      %p39 = scmp.eq.s32.totalorder %s38, 0
      %s41 = sadd.s32 %s40, 1
      %s42 = scalar_select %p39, %s40, %s41
      %p45 = pneg %p39
      %p46 = scmp.eq.s32.totalorder %s9, 1
      %p47 = por %p45, %p46
      %p48 = scmp.ne.s32.totalorder %s40, %s43
      %p49 = scmp.eq.s32.totalorder %s9, 0
      %p50 = por %p48, %p49
      %p51 = scmp.ne.s32.totalorder %s40, %s43
      %p52 = scmp.eq.s32.totalorder %s14, 1
      %p53 = por %p51, %p52
      %p54 = scmp.ne.s32.totalorder %s43, %s44
      %p55 = scmp.eq.s32.totalorder %s14, 0
      %p56 = por %p54, %p55
      %p57 = scmp.ne.s32.totalorder %s43, %s44
      %p58 = scmp.eq.s32.totalorder %s15, 1
      %p59 = por %p57, %p58
      %p61 = scmp.ne.s32.totalorder %s44, %s60
      %p62 = scmp.eq.s32.totalorder %s15, 0
      %p63 = por %p61, %p62
      %s64 = ssub.s32 %s18, %s27
      %s65 = ssub.s32 %s17, %s31
      %s66 = sor.u32 %s64, %s65
      %p67 = scmp.eq.s32.totalorder %s66, 0
      %s69 = sadd.s32 %s68, 1
      %s70 = scalar_select %p67, %s68, %s69
      %p73 = pneg %p67
      %p74 = scmp.eq.s32.totalorder %s9, 1
      %p75 = por %p73, %p74
      %p76 = scmp.ne.s32.totalorder %s68, %s71
      %p77 = scmp.eq.s32.totalorder %s9, 0
      %p78 = por %p76, %p77
      %p79 = scmp.ne.s32.totalorder %s68, %s71
      %p80 = scmp.eq.s32.totalorder %s14, 1
      %p81 = por %p79, %p80
      %p82 = scmp.ne.s32.totalorder %s71, %s72
      %p83 = scmp.eq.s32.totalorder %s14, 0
      %p84 = por %p82, %p83
      %p85 = scmp.ne.s32.totalorder %s71, %s72
      %p86 = scmp.eq.s32.totalorder %s15, 1
      %p87 = por %p85, %p86
      %p89 = scmp.ne.s32.totalorder %s72, %s88
      %p90 = scmp.eq.s32.totalorder %s15, 0
      %p91 = por %p89, %p90
      %s92 = ssub.s32 %s17, %s31
      %p93 = scmp.eq.s32.totalorder %s92, 0
      %s95 = sadd.s32 %s94, 1
      %s96 = scalar_select %p93, %s94, %s95
      %p99 = pneg %p93
      %p100 = scmp.eq.s32.totalorder %s9, 1
      %p101 = por %p99, %p100
      %p102 = scmp.ne.s32.totalorder %s94, %s97
      %p103 = scmp.eq.s32.totalorder %s9, 0
      %p104 = por %p102, %p103
      %p105 = scmp.ne.s32.totalorder %s94, %s97
      %p106 = scmp.eq.s32.totalorder %s14, 1
      %p107 = por %p105, %p106
      %p108 = scmp.ne.s32.totalorder %s97, %s98
      %p109 = scmp.eq.s32.totalorder %s14, 0
      %p110 = por %p108, %p109
      %p111 = scmp.ne.s32.totalorder %s97, %s98
      %p112 = scmp.eq.s32.totalorder %s15, 1
      %p113 = por %p111, %p112
      %p115 = scmp.ne.s32.totalorder %s98, %s114
      %p116 = scmp.eq.s32.totalorder %s15, 0
      %p117 = por %p115, %p116
      %s118 = ssub.s32 %s16, %s35
      %s119 = ssub.s32 %s17, %s31
      %s120 = sor.u32 %s118, %s119
      %p121 = scmp.eq.s32.totalorder %s120, 0
      %s123 = sadd.s32 %s122, 1
      %s124 = scalar_select %p121, %s122, %s123
      %p127 = pneg %p121
      %p128 = scmp.eq.s32.totalorder %s9, 1
      %p129 = por %p127, %p128
      %p130 = scmp.ne.s32.totalorder %s122, %s125
      %p131 = scmp.eq.s32.totalorder %s9, 0
      %p132 = por %p130, %p131
      %p133 = scmp.ne.s32.totalorder %s122, %s125
      %p134 = scmp.eq.s32.totalorder %s14, 1
      %p135 = por %p133, %p134
      %p136 = scmp.ne.s32.totalorder %s125, %s126
      %p137 = scmp.eq.s32.totalorder %s14, 0
      %p138 = por %p136, %p137
      %p139 = scmp.ne.s32.totalorder %s125, %s126
      %p140 = scmp.eq.s32.totalorder %s15, 1
      %p141 = por %p139, %p140
      %p143 = scmp.ne.s32.totalorder %s126, %s142
      %p144 = scmp.eq.s32.totalorder %s15, 0
      %p145 = por %p143, %p144
      %p146 = scmp.le.s32.totalorder 1, %s9
      %p147 = scmp.lt.s32.totalorder %s9, 3
      %p148 = pnand %p146, %p147
      %p149 = pneg %p148
      // Predicated region
      $region9: #{multiscale_forward.69} parent=5 // pred_check
        _
      $region10: #{multiscale_forward.69} parent=5 // pred_check_branch
        %151 = sbr.rel (%p148) target = $region12
      $region11: #{multiscale_forward.69} parent=5 // pred_region
        %s152 = ssub.s32 %s9, 1
        // Predicated region
        $region13: #{multiscale_forward.69} parent=11 // pred_check
          %p153 = pneg %p110
        $region14: #{multiscale_forward.69} parent=11 // pred_check_branch
          %155 = sbr.rel (%p153) target = $region16
        $region15: #{multiscale_forward.69} parent=11 // pred_region
          %p156 = scmp.lt.s32.totalorder %s20, 0
          %s157 = scalar_select %p156, %s20, 0
          %s158 = scalar_lea.vmem %s2, %s157
        $region16: #{multiscale_forward.69} parent=11 // pred_fallthru
          _
      $region12: #{multiscale_forward.69} parent=5 // pred_fallthru
        _
      %p159 = scmp.lt.s32.totalorder %s9, 2
      // Predicated region
      $region17: #{multiscale_forward.69} parent=5 // pred_check
        %p160 = pneg %p159
      $region18: #{multiscale_forward.69} parent=5 // pred_check_branch
        %162 = sbr.rel (%p160) target = $region20
      $region19: #{multiscale_forward.69} parent=5 // pred_region
        // Predicated region
        $region21: #{multiscale_forward.69} parent=19 // pred_check
          %p163 = pneg %p50
        $region22: #{multiscale_forward.69} parent=19 // pred_check_branch
          %165 = sbr.rel (%p163) target = $region24
        $region23: #{multiscale_forward.69} parent=19 // pred_region
          %s166 = sand.u32 %s40, 1
          %s167 = sand.u32 %s40, 1
          %s168 = smul.addr %s167, 64
          %s169 = scalar_lea.vmem [#allocation3], %s168
          %s170 = smul.u32 4, %s16
          %s171 = smul.u32 4, %s18
          %s172 = smul.addr %s170, 8
          %s173 = sadd.s32 %s171, %s172
          %s174 = smul.addr %s173, 4
          %s175 = scalar_lea.vmem %s0, %s174
          // Predicated region
          $region25: #{multiscale_forward.69} parent=23 // pred_check
            _
          $region26: #{multiscale_forward.69} parent=23 // pred_check_branch
            %177 = sbr.rel (0) target = $region28
          $region27: #{multiscale_forward.69} parent=23 // pred_region
            // Predicated region
            $region29: #{multiscale_forward.69} parent=27 // pred_check
              _
            $region30: #{multiscale_forward.69} parent=27 // pred_check_branch
              %179 = sbr.rel (0) target = $region32
            $region31: #{multiscale_forward.69} parent=27 // pred_region
              loop: start=0, step=1, limit=1
              $region33: #{multiscale_forward.69} parent=31 // loop_pre_header
                _
              $region34: #{multiscale_forward.69} parent=31 // loop_header
                %s181 = sphi 0, %s185
                %p182 = scmp.ge.s32.totalorder %s181, 1
                %s186 = sphi %s175, %s175
                %s187 = sphi %s169, %s169
              $region35: #{multiscale_forward.69} parent=31 // loop_header_branch
                %184 = sbr.rel (%p182) target = $region39
              $region36: #{multiscale_forward.69} parent=31 // loop_body
                %v188 = vld [vmem:[%s186] sm:$0xff]
                %189 = vst [vmem:[%s187] sm:$0xff] %v188
                %v190 = vld [vmem:[%s186 + $0x8] sm:$0xff]
                %191 = vst [vmem:[%s187 + $0x8] sm:$0xff] %v190
                %v192 = vld [vmem:[%s186 + $0x20] sm:$0xff]
                %193 = vst [vmem:[%s187 + $0x10] sm:$0xff] %v192
                %v194 = vld [vmem:[%s186 + $0x28] sm:$0xff]
                %195 = vst [vmem:[%s187 + $0x18] sm:$0xff] %v194
                %v196 = vld [vmem:[%s186 + $0x40] sm:$0xff]
                %197 = vst [vmem:[%s187 + $0x20] sm:$0xff] %v196
                %v198 = vld [vmem:[%s186 + $0x48] sm:$0xff]
                %199 = vst [vmem:[%s187 + $0x28] sm:$0xff] %v198
                %v200 = vld [vmem:[%s186 + $0x60] sm:$0xff]
                %201 = vst [vmem:[%s187 + $0x30] sm:$0xff] %v200
                %v202 = vld [vmem:[%s186 + $0x68] sm:$0xff]
                %203 = vst [vmem:[%s187 + $0x38] sm:$0xff] %v202
              $region37: #{multiscale_forward.69} parent=31 // loop_footer
                %s185 = sadd.s32 1, %s181
              $region38: #{multiscale_forward.69} parent=31 // loop_footer_branch
                %180 = sbr.rel target = $region34
              $region39: #{multiscale_forward.69} parent=31 // loop_exit
                _
            $region32: #{multiscale_forward.69} parent=27 // pred_fallthru
              _
            // Predicated region
            $region40: #{multiscale_forward.69} parent=27 // pred_check
              _
            $region41: #{multiscale_forward.69} parent=27 // pred_check_branch
              %205 = sbr.rel target = $region43
            $region42: #{multiscale_forward.69} parent=27 // pred_region
              _
            $region43: #{multiscale_forward.69} parent=27 // pred_fallthru
              _
          $region28: #{multiscale_forward.69} parent=23 // pred_fallthru
            _
          %206 = vnop
        $region24: #{multiscale_forward.69} parent=19 // pred_fallthru
          _
        // Predicated region
        $region44: #{multiscale_forward.69} parent=19 // pred_check
          %p207 = pneg %p78
        $region45: #{multiscale_forward.69} parent=19 // pred_check_branch
          %209 = sbr.rel (%p207) target = $region47
        $region46: #{multiscale_forward.69} parent=19 // pred_region
          %s210 = smul.u32 64, %s18
          %p211 = scmp.lt.s32.totalorder %s210, 127
          %s212 = scalar_select %p211, %s210, 127
          %p213 = scmp.lt.s32.totalorder %s17, 0
          %s214 = scalar_select %p213, %s17, 0
          %s215 = sadd.s32 %s214, %s212
          %s216 = smul.addr %s215, 4
          %s217 = scalar_lea.vmem %s1, %s216
          %s218 = smul.u32 64, %s18
        $region47: #{multiscale_forward.69} parent=19 // pred_fallthru
          _
      $region20: #{multiscale_forward.69} parent=5 // pred_fallthru
        _
      %p219 = scmp.le.s32.totalorder 1, %s9
      %p220 = scmp.lt.s32.totalorder %s9, 3
      %p221 = pnand %p219, %p220
      %p222 = pneg %p221
      // Predicated region
      $region48: #{multiscale_forward.69} parent=5 // pred_check
        _
      $region49: #{multiscale_forward.69} parent=5 // pred_check_branch
        %224 = sbr.rel (%p221) target = $region51
      $region50: #{multiscale_forward.69} parent=5 // pred_region
        %s225 = ssub.s32 %s9, 1
        %s226 = sand.u32 %s43, 1
        %s227 = sand.u32 %s43, 1
        %s228 = smul.addr %s227, 64
        %s229 = scalar_lea.vmem [#allocation3], %s228
        // Predicated region
        $region52: #{multiscale_forward.69} parent=50 // pred_check
          %p230 = pneg %p56
        $region53: #{multiscale_forward.69} parent=50 // pred_check_branch
          %232 = sbr.rel (%p230) target = $region55
        $region54: #{multiscale_forward.69} parent=50 // pred_region
          _
        $region55: #{multiscale_forward.69} parent=50 // pred_fallthru
          _
        %s233 = sand.u32 %s43, 1
        %s234 = sand.u32 %s43, 1
        %s235 = smul.addr %s234, 64
        %s236 = scalar_lea.vmem [#allocation3], %s235
        %p237 = pneg %p56
        %p238 = pneg %p53
        %s239 = smul.u32 64, %s21
        %p240 = scmp.lt.s32.totalorder %s239, 127
        %s241 = scalar_select %p240, %s239, 127
        %p242 = scmp.lt.s32.totalorder %s20, 0
        %s243 = scalar_select %p242, %s20, 0
        %s244 = sadd.s32 %s243, %s241
        %s245 = smul.addr %s244, 4
        %s246 = scalar_lea.vmem %s1, %s245
        %p247 = pneg %p84
        %p248 = pneg %p81
        %p249 = scmp.lt.s32.totalorder %s20, 0
        %s250 = scalar_select %p249, %s20, 0
        %s251 = scalar_lea.vmem %s2, %s250
        %p252 = pneg %p110
        %p253 = pneg %p107
        %p254 = pneg %p138
        %p255 = pneg %p135
        %s256 = smul.u32 4, %s19
        %p257 = scmp.lt.s32.totalorder %s256, 3
        %s258 = scalar_select %p257, %s256, 3
        %p259 = scmp.lt.s32.totalorder %s20, 0
        %s260 = scalar_select %p259, %s20, 0
        %s261 = sadd.s32 %s260, %s258
        %s262 = smul.addr %s261, 8
        %s263 = scalar_lea.vmem %s3, %s262
        %s264 = smul.u32 4, %s19
        %s265 = smul.u32 4, %s21
        %s266 = smul.u32 64, %s21
        %p267 = scmp.lt.s32.totalorder %s266, 127
        %s268 = scalar_select %p267, %s266, 127
        %p269 = scmp.lt.s32.totalorder %s20, 0
        %s270 = scalar_select %p269, %s20, 0
        %s271 = sadd.s32 %s270, %s268
        %s272 = smul.addr %s271, 4
        %s273 = scalar_lea.vmem %s1, %s272
        %s274 = smul.u32 64, %s21
        %p275 = scmp.lt.s32.totalorder %s20, 0
        %s276 = scalar_select %p275, %s20, 0
        %s277 = scalar_lea.vmem %s2, %s276
        %s278 = smul.u32 4, %s19
        %p279 = scmp.lt.s32.totalorder %s278, 3
        %s280 = scalar_select %p279, %s278, 3
        %p281 = scmp.lt.s32.totalorder %s20, 0
        %s282 = scalar_select %p281, %s20, 0
        %s283 = sadd.s32 %s282, %s280
        %s284 = smul.addr %s283, 8
        %s285 = scalar_lea.vmem %s3, %s284
        %s286 = smul.u32 4, %s19
        %p288 = scmp.eq.s32.totalorder %s21, 0
        // Predicated region
        $region56: #{multiscale_forward.69} parent=50 // pred_check
          %p289 = pneg %p288
        $region57: #{multiscale_forward.69} parent=50 // pred_check_branch
          %291 = sbr.rel (%p289) target = $region59
        $region58: #{multiscale_forward.69} parent=50 // pred_region
          %292 = vst [vmem:[#allocation2] sm:$0xff] 0.0
          %293 = vst [vmem:[#allocation2 + $0x8] sm:$0xff] 0.0
          %294 = vst [vmem:[#allocation2 + $0x10] sm:$0xff] 0.0
          %295 = vst [vmem:[#allocation2 + $0x18] sm:$0xff] 0.0
        $region59: #{multiscale_forward.69} parent=50 // pred_fallthru
          _
        %v296 = vld [vmem:[#allocation2] sm:$0xff]
        %v297 = vld [vmem:[#allocation2 + $0x8] sm:$0xff]
        %v298 = vld [vmem:[#allocation2 + $0x10] sm:$0xff]
        %v299 = vld [vmem:[#allocation2 + $0x18] sm:$0xff]
        %v300 = vld [vmem:[%s229] sm:$0xff]
        %v301 = vld [vmem:[%s229 + $0x8] sm:$0xff]
        %v302 = vld [vmem:[%s229 + $0x10] sm:$0xff]
        %v303 = vld [vmem:[%s229 + $0x18] sm:$0xff]
        %v304 = vld [vmem:[%s229 + $0x20] sm:$0xff]
        %v305 = vld [vmem:[%s229 + $0x28] sm:$0xff]
        %v306 = vld [vmem:[%s229 + $0x30] sm:$0xff]
        %v307 = vld [vmem:[%s229 + $0x38] sm:$0xff]
        %v308 = vld [vmem:[%s273] sm:$0xf]
        %v309 = vld [vmem:[%s273 + $0x4] sm:$0xf]
        %v310 = vld [vmem:[%s273 + $0x8] sm:$0xf]
        %v311 = vld [vmem:[%s273 + $0xc] sm:$0xf]
        %v312 = vld [vmem:[%s273 + $0x10] sm:$0xf]
        %v313 = vld [vmem:[%s273 + $0x14] sm:$0xf]
        %v314 = vld [vmem:[%s273 + $0x18] sm:$0xf]
        %v315 = vld [vmem:[%s273 + $0x1c] sm:$0xf]
        %v316 = vld [vmem:[%s273 + $0x20] sm:$0xf]
        %v317 = vld [vmem:[%s273 + $0x24] sm:$0xf]
        %v318 = vld [vmem:[%s273 + $0x28] sm:$0xf]
        %v319 = vld [vmem:[%s273 + $0x2c] sm:$0xf]
        %v320 = vld [vmem:[%s273 + $0x30] sm:$0xf]
        %v321 = vld [vmem:[%s273 + $0x34] sm:$0xf]
        %v322 = vld [vmem:[%s273 + $0x38] sm:$0xf]
        %v323 = vld [vmem:[%s273 + $0x3c] sm:$0xf]
        %v324 = vld [vmem:[%s273 + $0x40] sm:$0xf]
        %v325 = vld [vmem:[%s273 + $0x44] sm:$0xf]
        %v326 = vld [vmem:[%s273 + $0x48] sm:$0xf]
        %v327 = vld [vmem:[%s273 + $0x4c] sm:$0xf]
        %v328 = vld [vmem:[%s273 + $0x50] sm:$0xf]
        %v329 = vld [vmem:[%s273 + $0x54] sm:$0xf]
        %v330 = vld [vmem:[%s273 + $0x58] sm:$0xf]
        %v331 = vld [vmem:[%s273 + $0x5c] sm:$0xf]
        %v332 = vld [vmem:[%s273 + $0x60] sm:$0xf]
        %v333 = vld [vmem:[%s273 + $0x64] sm:$0xf]
        %v334 = vld [vmem:[%s273 + $0x68] sm:$0xf]
        %v335 = vld [vmem:[%s273 + $0x6c] sm:$0xf]
        %v336 = vld [vmem:[%s273 + $0x70] sm:$0xf]
        %v337 = vld [vmem:[%s273 + $0x74] sm:$0xf]
        %v338 = vld [vmem:[%s273 + $0x78] sm:$0xf]
        %v339 = vld [vmem:[%s273 + $0x7c] sm:$0xf]
        %v340 = vld [vmem:[%s273 + $0x80] sm:$0xf]
        %v341 = vld [vmem:[%s273 + $0x84] sm:$0xf]
        %v342 = vld [vmem:[%s273 + $0x88] sm:$0xf]
        %v343 = vld [vmem:[%s273 + $0x8c] sm:$0xf]
        %v344 = vld [vmem:[%s273 + $0x90] sm:$0xf]
        %v345 = vld [vmem:[%s273 + $0x94] sm:$0xf]
        %v346 = vld [vmem:[%s273 + $0x98] sm:$0xf]
        %v347 = vld [vmem:[%s273 + $0x9c] sm:$0xf]
        %v348 = vld [vmem:[%s273 + $0xa0] sm:$0xf]
        %v349 = vld [vmem:[%s273 + $0xa4] sm:$0xf]
        %v350 = vld [vmem:[%s273 + $0xa8] sm:$0xf]
        %v351 = vld [vmem:[%s273 + $0xac] sm:$0xf]
        %v352 = vld [vmem:[%s273 + $0xb0] sm:$0xf]
        %v353 = vld [vmem:[%s273 + $0xb4] sm:$0xf]
        %v354 = vld [vmem:[%s273 + $0xb8] sm:$0xf]
        %v355 = vld [vmem:[%s273 + $0xbc] sm:$0xf]
        %v356 = vld [vmem:[%s273 + $0xc0] sm:$0xf]
        %v357 = vld [vmem:[%s273 + $0xc4] sm:$0xf]
        %v358 = vld [vmem:[%s273 + $0xc8] sm:$0xf]
        %v359 = vld [vmem:[%s273 + $0xcc] sm:$0xf]
        %v360 = vld [vmem:[%s273 + $0xd0] sm:$0xf]
        %v361 = vld [vmem:[%s273 + $0xd4] sm:$0xf]
        %v362 = vld [vmem:[%s273 + $0xd8] sm:$0xf]
        %v363 = vld [vmem:[%s273 + $0xdc] sm:$0xf]
        %v364 = vld [vmem:[%s273 + $0xe0] sm:$0xf]
        %v365 = vld [vmem:[%s273 + $0xe4] sm:$0xf]
        %v366 = vld [vmem:[%s273 + $0xe8] sm:$0xf]
        %v367 = vld [vmem:[%s273 + $0xec] sm:$0xf]
        %v368 = vld [vmem:[%s273 + $0xf0] sm:$0xf]
        %v369 = vld [vmem:[%s273 + $0xf4] sm:$0xf]
        %v370 = vld [vmem:[%s273 + $0xf8] sm:$0xf]
        %v371 = vld [vmem:[%s273 + $0xfc] sm:$0xf]
        %v380 = vunpack.c.l.b16 %v300
        %v381 = vunpack.c.h.b16 %v300
        %v382 = vunpack.c.l.b16 %v301
        %v383 = vunpack.c.h.b16 %v301
        %v384 = vunpack.c.l.b16 %v302
        %v385 = vunpack.c.h.b16 %v302
        %v386 = vunpack.c.l.b16 %v303
        %v387 = vunpack.c.h.b16 %v303
        %v388 = vunpack.c.l.b16 %v304
        %v389 = vunpack.c.h.b16 %v304
        %v390 = vunpack.c.l.b16 %v305
        %v391 = vunpack.c.h.b16 %v305
        %v392 = vunpack.c.l.b16 %v306
        %v393 = vunpack.c.h.b16 %v306
        %v394 = vunpack.c.l.b16 %v307
        %v395 = vunpack.c.h.b16 %v307
        %v396 = vpack.c.b16 %v384, %v380
        %v397 = vpack.c.b16 %v385, %v381
        %v398 = vpack.c.b16 %v386, %v382
        %v399 = vpack.c.b16 %v387, %v383
        %v400 = vpack.c.b16 %v392, %v388
        %v401 = vpack.c.b16 %v393, %v389
        %v402 = vpack.c.b16 %v394, %v390
        %v403 = vpack.c.b16 %v395, %v391
        %v476 = vunpack.c.l.b16 %v308
        %v477 = vunpack.c.l.b16 %v309
        %v478 = vunpack.c.l.b16 %v310
        %v479 = vunpack.c.l.b16 %v311
        %v480 = vunpack.c.l.b16 %v312
        %v481 = vunpack.c.l.b16 %v313
        %v482 = vunpack.c.l.b16 %v314
        %v483 = vunpack.c.l.b16 %v315
        %v484 = vunpack.c.l.b16 %v316
        %v485 = vunpack.c.l.b16 %v317
        %v486 = vunpack.c.l.b16 %v318
        %v487 = vunpack.c.l.b16 %v319
        %v488 = vunpack.c.l.b16 %v320
        %v489 = vunpack.c.l.b16 %v321
        %v490 = vunpack.c.l.b16 %v322
        %v491 = vunpack.c.l.b16 %v323
        %v492 = vunpack.c.l.b16 %v324
        %v493 = vunpack.c.l.b16 %v325
        %v494 = vunpack.c.l.b16 %v326
        %v495 = vunpack.c.l.b16 %v327
        %v496 = vunpack.c.l.b16 %v328
        %v497 = vunpack.c.l.b16 %v329
        %v498 = vunpack.c.l.b16 %v330
        %v499 = vunpack.c.l.b16 %v331
        %v500 = vunpack.c.l.b16 %v332
        %v501 = vunpack.c.l.b16 %v333
        %v502 = vunpack.c.l.b16 %v334
        %v503 = vunpack.c.l.b16 %v335
        %v504 = vunpack.c.l.b16 %v336
        %v505 = vunpack.c.l.b16 %v337
        %v506 = vunpack.c.l.b16 %v338
        %v507 = vunpack.c.l.b16 %v339
        %v508 = vunpack.c.l.b16 %v340
        %v509 = vunpack.c.l.b16 %v341
        %v510 = vunpack.c.l.b16 %v342
        %v511 = vunpack.c.l.b16 %v343
        %v512 = vunpack.c.l.b16 %v344
        %v513 = vunpack.c.l.b16 %v345
        %v514 = vunpack.c.l.b16 %v346
        %v515 = vunpack.c.l.b16 %v347
        %v516 = vunpack.c.l.b16 %v348
        %v517 = vunpack.c.l.b16 %v349
        %v518 = vunpack.c.l.b16 %v350
        %v519 = vunpack.c.l.b16 %v351
        %v520 = vunpack.c.l.b16 %v352
        %v521 = vunpack.c.l.b16 %v353
        %v522 = vunpack.c.l.b16 %v354
        %v523 = vunpack.c.l.b16 %v355
        %v524 = vunpack.c.l.b16 %v356
        %v525 = vunpack.c.l.b16 %v357
        %v526 = vunpack.c.l.b16 %v358
        %v527 = vunpack.c.l.b16 %v359
        %v528 = vunpack.c.l.b16 %v360
        %v529 = vunpack.c.l.b16 %v361
        %v530 = vunpack.c.l.b16 %v362
        %v531 = vunpack.c.l.b16 %v363
        %v532 = vunpack.c.l.b16 %v364
        %v533 = vunpack.c.l.b16 %v365
        %v534 = vunpack.c.l.b16 %v366
        %v535 = vunpack.c.l.b16 %v367
        %v536 = vunpack.c.l.b16 %v368
        %v537 = vunpack.c.l.b16 %v369
        %v538 = vunpack.c.l.b16 %v370
        %v539 = vunpack.c.l.b16 %v371
        %v540 = vpack.c.b16 %v477, %v476
        %v541 = vpack.c.b16 %v479, %v478
        %v542 = vpack.c.b16 %v481, %v480
        %v543 = vpack.c.b16 %v483, %v482
        %v544 = vpack.c.b16 %v485, %v484
        %v545 = vpack.c.b16 %v487, %v486
        %v546 = vpack.c.b16 %v489, %v488
        %v547 = vpack.c.b16 %v491, %v490
        %v548 = vpack.c.b16 %v493, %v492
        %v549 = vpack.c.b16 %v495, %v494
        %v550 = vpack.c.b16 %v497, %v496
        %v551 = vpack.c.b16 %v499, %v498
        %v552 = vpack.c.b16 %v501, %v500
        %v553 = vpack.c.b16 %v503, %v502
        %v554 = vpack.c.b16 %v505, %v504
        %v555 = vpack.c.b16 %v507, %v506
        %v556 = vpack.c.b16 %v509, %v508
        %v557 = vpack.c.b16 %v511, %v510
        %v558 = vpack.c.b16 %v513, %v512
        %v559 = vpack.c.b16 %v515, %v514
        %v560 = vpack.c.b16 %v517, %v516
        %v561 = vpack.c.b16 %v519, %v518
        %v562 = vpack.c.b16 %v521, %v520
        %v563 = vpack.c.b16 %v523, %v522
        %v564 = vpack.c.b16 %v525, %v524
        %v565 = vpack.c.b16 %v527, %v526
        %v566 = vpack.c.b16 %v529, %v528
        %v567 = vpack.c.b16 %v531, %v530
        %v568 = vpack.c.b16 %v533, %v532
        %v569 = vpack.c.b16 %v535, %v534
        %v570 = vpack.c.b16 %v537, %v536
        %v571 = vpack.c.b16 %v539, %v538
        %604 = vmatprep.subr.bf16.mxu0 0
        %605 = vmatpush1.bf16.msra.mxu0 %v540
        %606 = vmatprep.subr.bf16.mxu0 0
        %607 = vmatpush1.bf16.msra.mxu0 %v541
        %608 = vmatprep.subr.bf16.mxu0 0
        %609 = vmatpush1.bf16.msra.mxu0 %v542
        %610 = vmatprep.subr.bf16.mxu0 0
        %611 = vmatpush1.bf16.msra.mxu0 %v543
        %612 = vmatprep.subr.bf16.mxu0 0
        %613 = vmatpush1.bf16.msra.mxu0 %v544
        %614 = vmatprep.subr.bf16.mxu0 0
        %615 = vmatpush1.bf16.msra.mxu0 %v545
        %616 = vmatprep.subr.bf16.mxu0 0
        %617 = vmatpush1.bf16.msra.mxu0 %v546
        %618 = vmatprep.subr.bf16.mxu0 0
        %619 = vmatpush1.bf16.msra.mxu0 %v547
        %620 = vmatprep.subr.bf16.mxu0 0
        %621 = vmatpush1.bf16.msra.mxu0 %v548
        %622 = vmatprep.subr.bf16.mxu0 0
        %623 = vmatpush1.bf16.msra.mxu0 %v549
        %624 = vmatprep.subr.bf16.mxu0 0
        %625 = vmatpush1.bf16.msra.mxu0 %v550
        %626 = vmatprep.subr.bf16.mxu0 0
        %627 = vmatpush1.bf16.msra.mxu0 %v551
        %628 = vmatprep.subr.bf16.mxu0 0
        %629 = vmatpush1.bf16.msra.mxu0 %v552
        %630 = vmatprep.subr.bf16.mxu0 0
        %631 = vmatpush1.bf16.msra.mxu0 %v553
        %632 = vmatprep.subr.bf16.mxu0 0
        %633 = vmatpush1.bf16.msra.mxu0 %v554
        %634 = vmatprep.subr.bf16.mxu0 0
        %635 = vmatpush1.bf16.msra.mxu0 %v555
        %636 = vmatprep.mubr.bf16.mxu0 %v397
        %637 = vmatmul.mubr.bf16.gmra.mrb[0].mxu0 %v396
        %v638 = vpop.f32.mrb[0].mxu0
        %v639 = vadd.f32 0.0, %v638
        %v640 = vpop.f32.mrb[0].mxu0
        %v641 = vpop.f32.mrb[0].mxu0
        %v642 = vadd.f32 0.0, %v641
        %v643 = vpop.f32.mrb[0].mxu0
        %644 = vmatprep.mubr.bf16.mxu0 %v401
        %645 = vmatmul.mubr.bf16.gmra.mrb[0].mxu0 %v400
        %v646 = vpop.f32.mrb[0].mxu0
        %v647 = vadd.f32 0.0, %v646
        %v648 = vpop.f32.mrb[0].mxu0
        %v649 = vpop.f32.mrb[0].mxu0
        %v650 = vadd.f32 0.0, %v649
        %v651 = vpop.f32.mrb[0].mxu0
        %652 = vdwg.mxu0
        %653 = vmatprep.subr.bf16.mxu0 0
        %654 = vmatpush1.bf16.msra.mxu0 %v556
        %655 = vmatprep.subr.bf16.mxu0 0
        %656 = vmatpush1.bf16.msra.mxu0 %v557
        %657 = vmatprep.subr.bf16.mxu0 0
        %658 = vmatpush1.bf16.msra.mxu0 %v558
        %659 = vmatprep.subr.bf16.mxu0 0
        %660 = vmatpush1.bf16.msra.mxu0 %v559
        %661 = vmatprep.subr.bf16.mxu0 0
        %662 = vmatpush1.bf16.msra.mxu0 %v560
        %663 = vmatprep.subr.bf16.mxu0 0
        %664 = vmatpush1.bf16.msra.mxu0 %v561
        %665 = vmatprep.subr.bf16.mxu0 0
        %666 = vmatpush1.bf16.msra.mxu0 %v562
        %667 = vmatprep.subr.bf16.mxu0 0
        %668 = vmatpush1.bf16.msra.mxu0 %v563
        %669 = vmatprep.subr.bf16.mxu0 0
        %670 = vmatpush1.bf16.msra.mxu0 %v564
        %671 = vmatprep.subr.bf16.mxu0 0
        %672 = vmatpush1.bf16.msra.mxu0 %v565
        %673 = vmatprep.subr.bf16.mxu0 0
        %674 = vmatpush1.bf16.msra.mxu0 %v566
        %675 = vmatprep.subr.bf16.mxu0 0
        %676 = vmatpush1.bf16.msra.mxu0 %v567
        %677 = vmatprep.subr.bf16.mxu0 0
        %678 = vmatpush1.bf16.msra.mxu0 %v568
        %679 = vmatprep.subr.bf16.mxu0 0
        %680 = vmatpush1.bf16.msra.mxu0 %v569
        %681 = vmatprep.subr.bf16.mxu0 0
        %682 = vmatpush1.bf16.msra.mxu0 %v570
        %683 = vmatprep.subr.bf16.mxu0 0
        %684 = vmatpush1.bf16.msra.mxu0 %v571
        %685 = vmatprep.mubr.bf16.mxu0 %v399
        %686 = vmatmul.mubr.bf16.gmra.mrb[0].mxu0 %v398
        %v687 = vpop.f32.mrb[0].mxu0
        %v688 = vadd.f32 %v639, %v687
        %v689 = vpop.f32.mrb[0].mxu0
        %v690 = vpop.f32.mrb[0].mxu0
        %v691 = vadd.f32 %v642, %v690
        %v692 = vpop.f32.mrb[0].mxu0
        %693 = vmatprep.mubr.bf16.mxu0 %v403
        %694 = vmatmul.mubr.bf16.gmra.mrb[0].mxu0 %v402
        %v695 = vpop.f32.mrb[0].mxu0
        %v696 = vadd.f32 %v647, %v695
        %v697 = vpop.f32.mrb[0].mxu0
        %v698 = vpop.f32.mrb[0].mxu0
        %v699 = vadd.f32 %v650, %v698
        %v700 = vpop.f32.mrb[0].mxu0
        %701 = vdwg.mxu0
        %v702 = vadd.f32 %v296, %v688
        %v703 = vadd.f32 %v297, %v691
        %v704 = vadd.f32 %v298, %v696
        %v705 = vadd.f32 %v299, %v699
        %706 = vst [vmem:[#allocation2] sm:$0xff] %v702
        %707 = vst [vmem:[#allocation2 + $0x8] sm:$0xff] %v703
        %708 = vst [vmem:[#allocation2 + $0x10] sm:$0xff] %v704
        %709 = vst [vmem:[#allocation2 + $0x18] sm:$0xff] %v705
        %p710 = scmp.eq.s32.totalorder %s21, 1
        // Predicated region
        $region60: #{multiscale_forward.69} parent=50 // pred_check
          %p711 = pneg %p710
        $region61: #{multiscale_forward.69} parent=50 // pred_check_branch
          %713 = sbr.rel (%p711) target = $region63
        $region62: #{multiscale_forward.69} parent=50 // pred_region
          %v714 = vld [vmem:[#allocation2] sm:$0xff]
          %v715 = vld [vmem:[#allocation2 + $0x8] sm:$0xff]
          %v716 = vld [vmem:[#allocation2 + $0x10] sm:$0xff]
          %v717 = vld [vmem:[#allocation2 + $0x18] sm:$0xff]
          %v718 = vld [vmem:[%s277] sm:$0x1]
          %v720 = vlaneseq
          %v721 = vshrl.u32 %v720, 7
          %v722 = vsub.s32 0, %v721
          %v723 = vrot.slane %v718, %v722
          %v725 = vadd.f32 %v714, %v723
          %v726 = vadd.f32 %v715, %v723
          %v727 = vadd.f32 %v716, %v723
          %v728 = vadd.f32 %v717, %v723
          %729 = vst [vmem:[%s285] sm:$0xff] %v725
          %730 = vst [vmem:[%s285 + $0x8] sm:$0xff] %v726
          %731 = vst [vmem:[%s285 + $0x10] sm:$0xff] %v727
          %732 = vst [vmem:[%s285 + $0x18] sm:$0xff] %v728
        $region63: #{multiscale_forward.69} parent=50 // pred_fallthru
          _
        %s733 = smul.u32 4, %s19
        %p734 = scmp.lt.s32.totalorder %s733, 3
        %s735 = scalar_select %p734, %s733, 3
        %p736 = scmp.lt.s32.totalorder %s20, 0
        %s737 = scalar_select %p736, %s20, 0
        %s738 = sadd.s32 %s737, %s735
        %s739 = smul.addr %s738, 8
        %s740 = scalar_lea.vmem %s3, %s739
        // Predicated region
        $region64: #{multiscale_forward.69} parent=50 // pred_check
          %p741 = pneg %p135
        $region65: #{multiscale_forward.69} parent=50 // pred_check_branch
          %743 = sbr.rel (%p741) target = $region67
        $region66: #{multiscale_forward.69} parent=50 // pred_region
          %s744 = smul.u32 4, %s19
        $region67: #{multiscale_forward.69} parent=50 // pred_fallthru
          _
        // Predicated region
        $region68: #{multiscale_forward.69} parent=50 // pred_check
          %p745 = pneg %p135
        $region69: #{multiscale_forward.69} parent=50 // pred_check_branch
          %747 = sbr.rel (%p745) target = $region71
        $region70: #{multiscale_forward.69} parent=50 // pred_region
          %s748 = smul.u32 4, %s19
          %p749 = scmp.lt.s32.totalorder %s748, 3
          %s750 = scalar_select %p749, %s748, 3
          %p751 = scmp.lt.s32.totalorder %s20, 0
          %s752 = scalar_select %p751, %s20, 0
          %s753 = sadd.s32 %s752, %s750
          %s754 = smul.addr %s753, 8
          %s755 = scalar_lea.vmem %s3, %s754
        $region71: #{multiscale_forward.69} parent=50 // pred_fallthru
          _
      $region51: #{multiscale_forward.69} parent=5 // pred_fallthru
        _
      %p756 = scmp.le.s32.totalorder 2, %s9
      // Predicated region
      $region72: #{multiscale_forward.69} parent=5 // pred_check
        %p757 = pneg %p756
      $region73: #{multiscale_forward.69} parent=5 // pred_check_branch
        %759 = sbr.rel (%p757) target = $region75
      $region74: #{multiscale_forward.69} parent=5 // pred_region
        %s760 = ssub.s32 %s9, 2
      $region75: #{multiscale_forward.69} parent=5 // pred_fallthru
        _
    $region6: #{multiscale_forward.69} parent=1 // loop_footer
      %s13 = sadd.s32 1, %s9
    $region7: #{multiscale_forward.69} parent=1 // loop_footer_branch
      %8 = sbr.rel target = $region3
    $region8: #{multiscale_forward.69} parent=1 // loop_exit
      _

// kernel: multiscale_forward.47
$region0: #{multiscale_forward.47}
  #allocation0 [shape = 'u32[]', space=smem, size = 0x4, offset = 0x4, fixed_abs, tag = 'smem constant byte address 0x4 - core index']
  #allocation1 [shape = 'u32[144,128]{1,0:T(1,128)}', space=vmem, size = 0x12000, scoped, tag = 'internal scratch']
  #allocation2 [shape = 'f32[50,8]{1,0:T(8,128)}', space=vmem, size = 0x7000, scoped, tag = 'scratch operand']
  %s0 = inlined_call_operand.vmem [shape: bf16[50,128], index: 0, kind: input, shape index: {}]
  %s1 = inlined_call_operand.vmem [shape: bf16[128,8], index: 1, kind: input, shape index: {}]
  %s2 = inlined_call_operand.vmem [shape: f32[1,8], index: 2, kind: input, shape index: {}]
  %s3 = inlined_call_operand.vmem [shape: f32[50,8], index: 3, kind: output, shape index: {}]
  %s4 = sld [smem:[#allocation0]]
  $region30: #{multiscale_forward.47} parent=0
    _
  %s6 = ssub.s32 1, %s4
  %s7 = scalar_select 0, %s6, %s4
  // Predicated region
  $region2: #{multiscale_forward.47} parent=0 // pred_check
    _
  $region3: #{multiscale_forward.47} parent=0 // pred_check_branch
    %9 = sbr.rel (0) target = $region5
  $region4: #{multiscale_forward.47} parent=0 // pred_region
    _
  $region5: #{multiscale_forward.47} parent=0 // pred_fallthru
    _
  // Predicated region
  $region6: #{multiscale_forward.47} parent=0 // pred_check
    _
  $region7: #{multiscale_forward.47} parent=0 // pred_check_branch
    %11 = sbr.rel (0) target = $region9
  $region8: #{multiscale_forward.47} parent=0 // pred_region
    _
  $region9: #{multiscale_forward.47} parent=0 // pred_fallthru
    _
  // Predicated region
  $region10: #{multiscale_forward.47} parent=0 // pred_check
    _
  $region11: #{multiscale_forward.47} parent=0 // pred_check_branch
    %13 = sbr.rel (0) target = $region13
  $region12: #{multiscale_forward.47} parent=0 // pred_region
    _
  $region13: #{multiscale_forward.47} parent=0 // pred_fallthru
    _
  %p15 = scmp.eq.s32.totalorder 0, 0
  // Predicated region
  $region14: #{multiscale_forward.47} parent=0 // pred_check
    %p16 = pneg %p15
  $region15: #{multiscale_forward.47} parent=0 // pred_check_branch
    %18 = sbr.rel (%p16) target = $region17
  $region16: #{multiscale_forward.47} parent=0 // pred_region
    %vm19 = vcmask 64512
    %20 = vst.msk [vmem:[#allocation2] sm:$0xff] %vm19, 0.0
    %21 = vst.msk [vmem:[#allocation2 + $0x8] sm:$0xff] %vm19, 0.0
    %22 = vst.msk [vmem:[#allocation2 + $0x10] sm:$0xff] %vm19, 0.0
    %23 = vst.msk [vmem:[#allocation2 + $0x18] sm:$0xff] %vm19, 0.0
    %24 = vst.msk [vmem:[#allocation2 + $0x20] sm:$0xff] %vm19, 0.0
    %25 = vst.msk [vmem:[#allocation2 + $0x28] sm:$0xff] %vm19, 0.0
    %vm26 = vcmask 58368
    %27 = vst.msk [vmem:[#allocation2 + $0x30] sm:$0x3] %vm26, 0.0
  $region17: #{multiscale_forward.47} parent=0 // pred_fallthru
    _
  %v28 = vld [vmem:[#allocation2] sm:$0xff]
  %v29 = vld [vmem:[#allocation2 + $0x8] sm:$0xff]
  %v30 = vld [vmem:[#allocation2 + $0x10] sm:$0xff]
  %v31 = vld [vmem:[#allocation2 + $0x18] sm:$0xff]
  %v32 = vld [vmem:[#allocation2 + $0x20] sm:$0xff]
  %v33 = vld [vmem:[#allocation2 + $0x28] sm:$0xff]
  %v34 = vld [vmem:[#allocation2 + $0x30] sm:$0x3]
  %v35 = vld [vmem:[%s0] sm:$0xf]
  %v36 = vld [vmem:[%s0 + $0x4] sm:$0xf]
  %v37 = vld [vmem:[%s0 + $0x8] sm:$0xf]
  %v38 = vld [vmem:[%s0 + $0xc] sm:$0xf]
  %v39 = vld [vmem:[%s0 + $0x10] sm:$0xf]
  %v40 = vld [vmem:[%s0 + $0x14] sm:$0xf]
  %v41 = vld [vmem:[%s0 + $0x18] sm:$0x1]
  %v42 = vld [vmem:[%s1] sm:$0xf]
  %v43 = vld [vmem:[%s1 + $0x4] sm:$0xf]
  %v44 = vld [vmem:[%s1 + $0x8] sm:$0xf]
  %v45 = vld [vmem:[%s1 + $0xc] sm:$0xf]
  %v46 = vld [vmem:[%s1 + $0x10] sm:$0xf]
  %v47 = vld [vmem:[%s1 + $0x14] sm:$0xf]
  %v48 = vld [vmem:[%s1 + $0x18] sm:$0xf]
  %v49 = vld [vmem:[%s1 + $0x1c] sm:$0xf]
  %v50 = vld [vmem:[%s1 + $0x20] sm:$0xf]
  %v51 = vld [vmem:[%s1 + $0x24] sm:$0xf]
  %v52 = vld [vmem:[%s1 + $0x28] sm:$0xf]
  %v53 = vld [vmem:[%s1 + $0x2c] sm:$0xf]
  %v54 = vld [vmem:[%s1 + $0x30] sm:$0xf]
  %v55 = vld [vmem:[%s1 + $0x34] sm:$0xf]
  %v56 = vld [vmem:[%s1 + $0x38] sm:$0xf]
  %v57 = vld [vmem:[%s1 + $0x3c] sm:$0xf]
  %v65 = vunpack.c.l.b16 %v35
  %v66 = vunpack.c.l.b16 %v36
  %v67 = vunpack.c.l.b16 %v37
  %v68 = vunpack.c.l.b16 %v38
  %v69 = vunpack.c.l.b16 %v39
  %v70 = vunpack.c.l.b16 %v40
  %v71 = vunpack.c.l.b16 %v41
  %v72 = vpack.c.b16 %v66, %v65
  %v73 = vpack.c.b16 %v68, %v67
  %v74 = vpack.c.b16 %v70, %v69
  %v75 = vpack.c.b16 %v71, %v71
  %v96 = vunpack.c.l.b16 %v42
  %v97 = vunpack.c.l.b16 %v43
  %v98 = vunpack.c.l.b16 %v44
  %v99 = vunpack.c.l.b16 %v45
  %v100 = vunpack.c.l.b16 %v46
  %v101 = vunpack.c.l.b16 %v47
  %v102 = vunpack.c.l.b16 %v48
  %v103 = vunpack.c.l.b16 %v49
  %v104 = vunpack.c.l.b16 %v50
  %v105 = vunpack.c.l.b16 %v51
  %v106 = vunpack.c.l.b16 %v52
  %v107 = vunpack.c.l.b16 %v53
  %v108 = vunpack.c.l.b16 %v54
  %v109 = vunpack.c.l.b16 %v55
  %v110 = vunpack.c.l.b16 %v56
  %v111 = vunpack.c.l.b16 %v57
  %v112 = vpack.c.b16 %v97, %v96
  %v113 = vpack.c.b16 %v99, %v98
  %v114 = vpack.c.b16 %v101, %v100
  %v115 = vpack.c.b16 %v103, %v102
  %v116 = vpack.c.b16 %v105, %v104
  %v117 = vpack.c.b16 %v107, %v106
  %v118 = vpack.c.b16 %v109, %v108
  %v119 = vpack.c.b16 %v111, %v110
  %128 = vmatprep.subr.bf16.mxu0 0
  %129 = vmatpush1.bf16.msra.mxu0 %v112
  %130 = vmatprep.subr.bf16.mxu0 0
  %131 = vmatpush1.bf16.msra.mxu0 %v113
  %132 = vmatprep.subr.bf16.mxu0 0
  %133 = vmatpush1.bf16.msra.mxu0 %v114
  %134 = vmatprep.subr.bf16.mxu0 0
  %135 = vmatpush1.bf16.msra.mxu0 %v115
  %136 = vmatprep.subr.bf16.mxu0 0
  %137 = vmatpush1.bf16.msra.mxu0 %v116
  %138 = vmatprep.subr.bf16.mxu0 0
  %139 = vmatpush1.bf16.msra.mxu0 %v117
  %140 = vmatprep.subr.bf16.mxu0 0
  %141 = vmatpush1.bf16.msra.mxu0 %v118
  %142 = vmatprep.subr.bf16.mxu0 0
  %143 = vmatpush1.bf16.msra.mxu0 %v119
  %144 = vmatprep.subr.bf16.mxu0 0
  %145 = vmatpush1.bf16.msra.mxu0 0
  %146 = vmatprep.subr.bf16.mxu0 0
  %147 = vmatpush1.bf16.msra.mxu0 0
  %148 = vmatprep.subr.bf16.mxu0 0
  %149 = vmatpush1.bf16.msra.mxu0 0
  %150 = vmatprep.subr.bf16.mxu0 0
  %151 = vmatpush1.bf16.msra.mxu0 0
  %152 = vmatprep.subr.bf16.mxu0 0
  %153 = vmatpush1.bf16.msra.mxu0 0
  %154 = vmatprep.subr.bf16.mxu0 0
  %155 = vmatpush1.bf16.msra.mxu0 0
  %156 = vmatprep.subr.bf16.mxu0 0
  %157 = vmatpush1.bf16.msra.mxu0 0
  %158 = vmatprep.subr.bf16.mxu0 0
  %159 = vmatpush1.bf16.msra.mxu0 0
  %160 = vmatprep.mubr.bf16.mxu0 0
  %161 = vmatmul.mubr.bf16.gmra.mrb[0].mxu0 %v72
  %v162 = vpop.f32.mrb[0].mxu0
  %v163 = vadd.f32 0.0, %v162
  %v164 = vpop.f32.mrb[0].mxu0
  %v165 = vpop.f32.mrb[0].mxu0
  %v166 = vadd.f32 0.0, %v165
  %v167 = vpop.f32.mrb[0].mxu0
  %168 = vmatprep.mubr.bf16.mxu0 0
  %169 = vmatmul.mubr.bf16.gmra.mrb[0].mxu0 %v73
  %v170 = vpop.f32.mrb[0].mxu0
  %v171 = vadd.f32 0.0, %v170
  %v172 = vpop.f32.mrb[0].mxu0
  %v173 = vpop.f32.mrb[0].mxu0
  %v174 = vadd.f32 0.0, %v173
  %v175 = vpop.f32.mrb[0].mxu0
  %176 = vmatprep.mubr.bf16.mxu0 0
  %177 = vmatmul.mubr.bf16.gmra.mrb[0].mxu0 %v74
  %v178 = vpop.f32.mrb[0].mxu0
  %v179 = vadd.f32 0.0, %v178
  %v180 = vpop.f32.mrb[0].mxu0
  %v181 = vpop.f32.mrb[0].mxu0
  %v182 = vadd.f32 0.0, %v181
  %v183 = vpop.f32.mrb[0].mxu0
  %184 = vmatprep.mubr.bf16.mxu0 0
  %185 = vmatmul.mubr.bf16.gmra.mrb[0].mxu0 %v75
  %v186 = vpop.f32.mrb[0].mxu0
  %v187 = vadd.f32 0.0, %v186
  %v188 = vpop.f32.mrb[0].mxu0
  %v189 = vpop.f32.mrb[0].mxu0
  %v190 = vpop.f32.mrb[0].mxu0
  %191 = vdwg.mxu0
  %v192 = vadd.f32 %v28, %v163
  %v193 = vadd.f32 %v29, %v166
  %v194 = vadd.f32 %v30, %v171
  %v195 = vadd.f32 %v31, %v174
  %v196 = vadd.f32 %v32, %v179
  %v197 = vadd.f32 %v33, %v182
  %v198 = vadd.f32 %v34, %v187
  %vm199 = vcmask 64512
  %200 = vst.msk [vmem:[#allocation2] sm:$0xff] %vm199, %v192
  %201 = vst.msk [vmem:[#allocation2 + $0x8] sm:$0xff] %vm199, %v193
  %202 = vst.msk [vmem:[#allocation2 + $0x10] sm:$0xff] %vm199, %v194
  %203 = vst.msk [vmem:[#allocation2 + $0x18] sm:$0xff] %vm199, %v195
  %204 = vst.msk [vmem:[#allocation2 + $0x20] sm:$0xff] %vm199, %v196
  %205 = vst.msk [vmem:[#allocation2 + $0x28] sm:$0xff] %vm199, %v197
  %vm206 = vcmask 58368
  %207 = vst.msk [vmem:[#allocation2 + $0x30] sm:$0x3] %vm206, %v198
  // Predicated region
  $region18: #{multiscale_forward.47} parent=0 // pred_check
    %p208 = pneg %p15
  $region19: #{multiscale_forward.47} parent=0 // pred_check_branch
    %210 = sbr.rel (%p208) target = $region21
  $region20: #{multiscale_forward.47} parent=0 // pred_region
    %v211 = vld [vmem:[#allocation2] sm:$0xff]
    %v212 = vld [vmem:[#allocation2 + $0x8] sm:$0xff]
    %v213 = vld [vmem:[#allocation2 + $0x10] sm:$0xff]
    %v214 = vld [vmem:[#allocation2 + $0x18] sm:$0xff]
    %v215 = vld [vmem:[#allocation2 + $0x20] sm:$0xff]
    %v216 = vld [vmem:[#allocation2 + $0x28] sm:$0xff]
    %v217 = vld [vmem:[#allocation2 + $0x30] sm:$0x3]
    %v218 = vld [vmem:[%s2] sm:$0x1]
    %v220 = vlaneseq
    %v221 = vshrl.u32 %v220, 7
    %v222 = vsub.s32 0, %v221
    %v223 = vrot.slane %v218, %v222
    %v225 = vadd.f32 %v211, %v223
    %v226 = vadd.f32 %v212, %v223
    %v227 = vadd.f32 %v213, %v223
    %v228 = vadd.f32 %v214, %v223
    %v229 = vadd.f32 %v215, %v223
    %v230 = vadd.f32 %v216, %v223
    %v231 = vadd.f32 %v217, %v223
    %vm232 = vcmp.ge.f32.partialorder %v225, 0.0
    %vm233 = vcmp.ge.f32.partialorder %v226, 0.0
    %vm234 = vcmp.ge.f32.partialorder %v227, 0.0
    %vm235 = vcmp.ge.f32.partialorder %v228, 0.0
    %vm236 = vcmp.ge.f32.partialorder %v229, 0.0
    %vm237 = vcmp.ge.f32.partialorder %v230, 0.0
    %vm238 = vcmp.ge.f32.partialorder %v231, 0.0
    %v239 = vmul.f32 %v225, 0.2
    %v240 = vmul.f32 %v226, 0.2
    %v241 = vmul.f32 %v227, 0.2
    %v242 = vmul.f32 %v228, 0.2
    %v243 = vmul.f32 %v229, 0.2
    %v244 = vmul.f32 %v230, 0.2
    %v245 = vmul.f32 %v231, 0.2
    %v246 = vsel %vm232, %v225, %v239
    %v247 = vsel %vm233, %v226, %v240
    %v248 = vsel %vm234, %v227, %v241
    %v249 = vsel %vm235, %v228, %v242
    %v250 = vsel %vm236, %v229, %v243
    %v251 = vsel %vm237, %v230, %v244
    %v252 = vsel %vm238, %v231, %v245
    %253 = vst.msk [vmem:[%s3] sm:$0xff] %vm199, %v246
    %254 = vst.msk [vmem:[%s3 + $0x8] sm:$0xff] %vm199, %v247
    %255 = vst.msk [vmem:[%s3 + $0x10] sm:$0xff] %vm199, %v248
    %256 = vst.msk [vmem:[%s3 + $0x18] sm:$0xff] %vm199, %v249
    %257 = vst.msk [vmem:[%s3 + $0x20] sm:$0xff] %vm199, %v250
    %258 = vst.msk [vmem:[%s3 + $0x28] sm:$0xff] %vm199, %v251
    %259 = vst.msk [vmem:[%s3 + $0x30] sm:$0x3] %vm206, %v252
  $region21: #{multiscale_forward.47} parent=0 // pred_fallthru
    _
  // Predicated region
  $region22: #{multiscale_forward.47} parent=0 // pred_check
    _
  $region23: #{multiscale_forward.47} parent=0 // pred_check_branch
    %261 = sbr.rel (0) target = $region25
  $region24: #{multiscale_forward.47} parent=0 // pred_region
    _
  $region25: #{multiscale_forward.47} parent=0 // pred_fallthru
    _
  // Predicated region
  $region26: #{multiscale_forward.47} parent=0 // pred_check
    _
  $region27: #{multiscale_forward.47} parent=0 // pred_check_branch
    %263 = sbr.rel (0) target = $region29
  $region28: #{multiscale_forward.47} parent=0 // pred_region
    _
  $region29: #{multiscale_forward.47} parent=0 // pred_fallthru
    _

// kernel: multiscale_forward.49
$region0: #{multiscale_forward.49}
  #allocation0 [shape = 'u32[]', space=smem, size = 0x4, offset = 0x4, fixed_abs, tag = 'smem constant byte address 0x4 - core index']
  #allocation1 [shape = 'u32[144,128]{1,0:T(1,128)}', space=vmem, size = 0x12000, scoped, tag = 'internal scratch']
  %s0 = inlined_call_operand.vmem [shape: f32[18,16], index: 0, kind: input, shape index: {}]
  %s1 = inlined_call_operand.vmem [shape: f32[1,16], index: 1, kind: output, shape index: {0}]
  %s2 = inlined_call_operand.vmem [shape: f32[1,16], index: 2, kind: output, shape index: {1}]
  %3 = xla_tuple %s1, %s2
  %s4 = sld [smem:[#allocation0]]
  $region26: #{multiscale_forward.49} parent=0
    _
  %s6 = ssub.s32 1, %s4
  %s7 = scalar_select 0, %s6, %s4
  // Predicated region
  $region2: #{multiscale_forward.49} parent=0 // pred_check
    _
  $region3: #{multiscale_forward.49} parent=0 // pred_check_branch
    %9 = sbr.rel (0) target = $region5
  $region4: #{multiscale_forward.49} parent=0 // pred_region
    _
  $region5: #{multiscale_forward.49} parent=0 // pred_fallthru
    _
  %p10 = scmp.eq.s32.totalorder 0, 0
  // Predicated region
  $region6: #{multiscale_forward.49} parent=0 // pred_check
    %p11 = pneg %p10
  $region7: #{multiscale_forward.49} parent=0 // pred_check_branch
    %13 = sbr.rel (%p11) target = $region9
  $region8: #{multiscale_forward.49} parent=0 // pred_region
    %vm14 = vcmask 122880
    %15 = vst.msk [vmem:[%s1] sm:$0x1] %vm14, 0.0
    %16 = vst.msk [vmem:[%s2] sm:$0x1] %vm14, 0.0
  $region9: #{multiscale_forward.49} parent=0 // pred_fallthru
    _
  %v17 = vld [vmem:[%s0] sm:$0xff]
  %v18 = vld [vmem:[%s0 + $0x8] sm:$0xff]
  %v19 = vld [vmem:[%s0 + $0x10] sm:$0x3]
  %s20 = smul.u32 0, 18
  %v21 = vlaneseq
  %v22 = vshrl.u32 %v21, 7
  %v23 = vadd.s32 %v22, 8
  %v24 = vadd.s32 %v22, 16
  %v25 = vstv %s20
  %v26 = vadd.s32 %v25, %v22
  %v27 = vadd.s32 %v25, %v23
  %v28 = vadd.s32 %v25, %v24
  %vm29 = vcmp.lt.s32.totalorder %v26, 18
  %vm30 = vcmp.lt.s32.totalorder %v27, 18
  %vm31 = vcmp.lt.s32.totalorder %v28, 18
  %v32 = vsel %vm29, %v17, 0.0
  %v33 = vsel %vm30, %v18, 0.0
  %v34 = vsel %vm31, %v19, 0.0
  %v35 = vld [vmem:[%s1] sm:$0x1]
  %vm36 = vcmask 130048
  %v37 = vsel %vm36, %v32, 0.0
  %v38 = vsel %vm36, %v33, 0.0
  %v39 = vadd.f32 %v37, %v38
  %vm40 = vcmask 123904
  %v41 = vsel %vm40, %v34, 0.0
  %v42 = vadd.f32 %v39, %v41
  %v43 = vrot.slane %v42, 4
  %v44 = vadd.f32 %v42, %v43
  %v45 = vrot.slane %v44, 2
  %v46 = vadd.f32 %v44, %v45
  %v47 = vrot.slane %v46, 1
  %v48 = vadd.f32 %v46, %v47
  %v49 = vadd.f32 %v35, %v48
  %vm50 = vcmask 122880
  %51 = vst.msk [vmem:[%s1] sm:$0x1] %vm50, %v49
  %v52 = vld [vmem:[%s2] sm:$0x1]
  %v53 = vmul.f32 %v32, %v32
  %v54 = vmul.f32 %v33, %v33
  %v55 = vmul.f32 %v34, %v34
  %v56 = vsel %vm36, %v53, 0.0
  %v57 = vsel %vm36, %v54, 0.0
  %v58 = vadd.f32 %v56, %v57
  %v59 = vsel %vm40, %v55, 0.0
  %v60 = vadd.f32 %v58, %v59
  %v61 = vrot.slane %v60, 4
  %v62 = vadd.f32 %v60, %v61
  %v63 = vrot.slane %v62, 2
  %v64 = vadd.f32 %v62, %v63
  %v65 = vrot.slane %v64, 1
  %v66 = vadd.f32 %v64, %v65
  %v67 = vadd.f32 %v52, %v66
  %68 = vst.msk [vmem:[%s2] sm:$0x1] %vm50, %v67
  // Predicated region
  $region10: #{multiscale_forward.49} parent=0 // pred_check
    _
  $region11: #{multiscale_forward.49} parent=0 // pred_check_branch
    %70 = sbr.rel (0) target = $region13
  $region12: #{multiscale_forward.49} parent=0 // pred_region
    _
  $region13: #{multiscale_forward.49} parent=0 // pred_fallthru
    _
  // Predicated region
  $region14: #{multiscale_forward.49} parent=0 // pred_check
    _
  $region15: #{multiscale_forward.49} parent=0 // pred_check_branch
    %72 = sbr.rel (0) target = $region17
  $region16: #{multiscale_forward.49} parent=0 // pred_region
    _
  $region17: #{multiscale_forward.49} parent=0 // pred_fallthru
    _
  // Predicated region
  $region18: #{multiscale_forward.49} parent=0 // pred_check
    _
  $region19: #{multiscale_forward.49} parent=0 // pred_check_branch
    %74 = sbr.rel (0) target = $region21
  $region20: #{multiscale_forward.49} parent=0 // pred_region
    _
  $region21: #{multiscale_forward.49} parent=0 // pred_fallthru
    _
  // Predicated region
  $region22: #{multiscale_forward.49} parent=0 // pred_check
    _
  $region23: #{multiscale_forward.49} parent=0 // pred_check_branch
    %76 = sbr.rel (0) target = $region25
  $region24: #{multiscale_forward.49} parent=0 // pred_region
    _
  $region25: #{multiscale_forward.49} parent=0 // pred_fallthru
    _

// kernel: multiscale_forward.48
$region0: #{multiscale_forward.48}
  #allocation0 [shape = 'u32[]', space=smem, size = 0x4, offset = 0x4, fixed_abs, tag = 'smem constant byte address 0x4 - core index']
  #allocation1 [shape = 'u32[144,128]{1,0:T(1,128)}', space=vmem, size = 0x12000, scoped, tag = 'internal scratch']
  #allocation2 [shape = 'f32[18,16]{1,0:T(8,128)}', space=vmem, size = 0x3000, scoped, tag = 'scratch operand']
  %s0 = inlined_call_operand.vmem [shape: bf16[18,128], index: 0, kind: input, shape index: {}]
  %s1 = inlined_call_operand.vmem [shape: bf16[128,16], index: 1, kind: input, shape index: {}]
  %s2 = inlined_call_operand.vmem [shape: f32[1,16], index: 2, kind: input, shape index: {}]
  %s3 = inlined_call_operand.vmem [shape: f32[18,16], index: 3, kind: output, shape index: {}]
  %s4 = sld [smem:[#allocation0]]
  $region30: #{multiscale_forward.48} parent=0
    _
  %s6 = ssub.s32 1, %s4
  %s7 = scalar_select 0, %s6, %s4
  // Predicated region
  $region2: #{multiscale_forward.48} parent=0 // pred_check
    _
  $region3: #{multiscale_forward.48} parent=0 // pred_check_branch
    %9 = sbr.rel (0) target = $region5
  $region4: #{multiscale_forward.48} parent=0 // pred_region
    _
  $region5: #{multiscale_forward.48} parent=0 // pred_fallthru
    _
  // Predicated region
  $region6: #{multiscale_forward.48} parent=0 // pred_check
    _
  $region7: #{multiscale_forward.48} parent=0 // pred_check_branch
    %11 = sbr.rel (0) target = $region9
  $region8: #{multiscale_forward.48} parent=0 // pred_region
    _
  $region9: #{multiscale_forward.48} parent=0 // pred_fallthru
    _
  // Predicated region
  $region10: #{multiscale_forward.48} parent=0 // pred_check
    _
  $region11: #{multiscale_forward.48} parent=0 // pred_check_branch
    %13 = sbr.rel (0) target = $region13
  $region12: #{multiscale_forward.48} parent=0 // pred_region
    _
  $region13: #{multiscale_forward.48} parent=0 // pred_fallthru
    _
  %p15 = scmp.eq.s32.totalorder 0, 0
  // Predicated region
  $region14: #{multiscale_forward.48} parent=0 // pred_check
    %p16 = pneg %p15
  $region15: #{multiscale_forward.48} parent=0 // pred_check_branch
    %18 = sbr.rel (%p16) target = $region17
  $region16: #{multiscale_forward.48} parent=0 // pred_region
    %vm19 = vcmask 130048
    %20 = vst.msk [vmem:[#allocation2] sm:$0xff] %vm19, 0.0
    %21 = vst.msk [vmem:[#allocation2 + $0x8] sm:$0xff] %vm19, 0.0
    %vm22 = vcmask 123904
    %23 = vst.msk [vmem:[#allocation2 + $0x10] sm:$0x3] %vm22, 0.0
  $region17: #{multiscale_forward.48} parent=0 // pred_fallthru
    _
  %v24 = vld [vmem:[#allocation2] sm:$0xff]
  %v25 = vld [vmem:[#allocation2 + $0x8] sm:$0xff]
  %v26 = vld [vmem:[#allocation2 + $0x10] sm:$0x3]
  %v27 = vld [vmem:[%s0] sm:$0xf]
  %v28 = vld [vmem:[%s0 + $0x4] sm:$0xf]
  %v29 = vld [vmem:[%s0 + $0x8] sm:$0x1]
  %v30 = vld [vmem:[%s1] sm:$0xf]
  %v31 = vld [vmem:[%s1 + $0x4] sm:$0xf]
  %v32 = vld [vmem:[%s1 + $0x8] sm:$0xf]
  %v33 = vld [vmem:[%s1 + $0xc] sm:$0xf]
  %v34 = vld [vmem:[%s1 + $0x10] sm:$0xf]
  %v35 = vld [vmem:[%s1 + $0x14] sm:$0xf]
  %v36 = vld [vmem:[%s1 + $0x18] sm:$0xf]
  %v37 = vld [vmem:[%s1 + $0x1c] sm:$0xf]
  %v38 = vld [vmem:[%s1 + $0x20] sm:$0xf]
  %v39 = vld [vmem:[%s1 + $0x24] sm:$0xf]
  %v40 = vld [vmem:[%s1 + $0x28] sm:$0xf]
  %v41 = vld [vmem:[%s1 + $0x2c] sm:$0xf]
  %v42 = vld [vmem:[%s1 + $0x30] sm:$0xf]
  %v43 = vld [vmem:[%s1 + $0x34] sm:$0xf]
  %v44 = vld [vmem:[%s1 + $0x38] sm:$0xf]
  %v45 = vld [vmem:[%s1 + $0x3c] sm:$0xf]
  %v49 = vunpack.c.l.b16 %v27
  %v50 = vunpack.c.l.b16 %v28
  %v51 = vunpack.c.l.b16 %v29
  %v52 = vpack.c.b16 %v50, %v49
  %v53 = vpack.c.b16 %v51, %v51
  %v72 = vunpack.c.l.b16 %v30
  %v73 = vunpack.c.l.b16 %v31
  %v74 = vunpack.c.l.b16 %v32
  %v75 = vunpack.c.l.b16 %v33
  %v76 = vunpack.c.l.b16 %v34
  %v77 = vunpack.c.l.b16 %v35
  %v78 = vunpack.c.l.b16 %v36
  %v79 = vunpack.c.l.b16 %v37
  %v80 = vunpack.c.l.b16 %v38
  %v81 = vunpack.c.l.b16 %v39
  %v82 = vunpack.c.l.b16 %v40
  %v83 = vunpack.c.l.b16 %v41
  %v84 = vunpack.c.l.b16 %v42
  %v85 = vunpack.c.l.b16 %v43
  %v86 = vunpack.c.l.b16 %v44
  %v87 = vunpack.c.l.b16 %v45
  %v88 = vpack.c.b16 %v73, %v72
  %v89 = vpack.c.b16 %v75, %v74
  %v90 = vpack.c.b16 %v77, %v76
  %v91 = vpack.c.b16 %v79, %v78
  %v92 = vpack.c.b16 %v81, %v80
  %v93 = vpack.c.b16 %v83, %v82
  %v94 = vpack.c.b16 %v85, %v84
  %v95 = vpack.c.b16 %v87, %v86
  %104 = vmatprep.subr.bf16.mxu0 0
  %105 = vmatpush1.bf16.msra.mxu0 %v88
  %106 = vmatprep.subr.bf16.mxu0 0
  %107 = vmatpush1.bf16.msra.mxu0 %v89
  %108 = vmatprep.subr.bf16.mxu0 0
  %109 = vmatpush1.bf16.msra.mxu0 %v90
  %110 = vmatprep.subr.bf16.mxu0 0
  %111 = vmatpush1.bf16.msra.mxu0 %v91
  %112 = vmatprep.subr.bf16.mxu0 0
  %113 = vmatpush1.bf16.msra.mxu0 %v92
  %114 = vmatprep.subr.bf16.mxu0 0
  %115 = vmatpush1.bf16.msra.mxu0 %v93
  %116 = vmatprep.subr.bf16.mxu0 0
  %117 = vmatpush1.bf16.msra.mxu0 %v94
  %118 = vmatprep.subr.bf16.mxu0 0
  %119 = vmatpush1.bf16.msra.mxu0 %v95
  %120 = vmatprep.subr.bf16.mxu0 0
  %121 = vmatpush1.bf16.msra.mxu0 0
  %122 = vmatprep.subr.bf16.mxu0 0
  %123 = vmatpush1.bf16.msra.mxu0 0
  %124 = vmatprep.subr.bf16.mxu0 0
  %125 = vmatpush1.bf16.msra.mxu0 0
  %126 = vmatprep.subr.bf16.mxu0 0
  %127 = vmatpush1.bf16.msra.mxu0 0
  %128 = vmatprep.subr.bf16.mxu0 0
  %129 = vmatpush1.bf16.msra.mxu0 0
  %130 = vmatprep.subr.bf16.mxu0 0
  %131 = vmatpush1.bf16.msra.mxu0 0
  %132 = vmatprep.subr.bf16.mxu0 0
  %133 = vmatpush1.bf16.msra.mxu0 0
  %134 = vmatprep.subr.bf16.mxu0 0
  %135 = vmatpush1.bf16.msra.mxu0 0
  %136 = vmatprep.mubr.bf16.mxu0 0
  %137 = vmatmul.mubr.bf16.gmra.mrb[0].mxu0 %v52
  %v138 = vpop.f32.mrb[0].mxu0
  %v139 = vadd.f32 0.0, %v138
  %v140 = vpop.f32.mrb[0].mxu0
  %v141 = vpop.f32.mrb[0].mxu0
  %v142 = vadd.f32 0.0, %v141
  %v143 = vpop.f32.mrb[0].mxu0
  %144 = vmatprep.mubr.bf16.mxu0 0
  %145 = vmatmul.mubr.bf16.gmra.mrb[0].mxu0 %v53
  %v146 = vpop.f32.mrb[0].mxu0
  %v147 = vadd.f32 0.0, %v146
  %v148 = vpop.f32.mrb[0].mxu0
  %v149 = vpop.f32.mrb[0].mxu0
  %v150 = vpop.f32.mrb[0].mxu0
  %151 = vdwg.mxu0
  %v152 = vadd.f32 %v24, %v139
  %v153 = vadd.f32 %v25, %v142
  %v154 = vadd.f32 %v26, %v147
  %vm155 = vcmask 130048
  %156 = vst.msk [vmem:[#allocation2] sm:$0xff] %vm155, %v152
  %157 = vst.msk [vmem:[#allocation2 + $0x8] sm:$0xff] %vm155, %v153
  %vm158 = vcmask 123904
  %159 = vst.msk [vmem:[#allocation2 + $0x10] sm:$0x3] %vm158, %v154
  // Predicated region
  $region18: #{multiscale_forward.48} parent=0 // pred_check
    %p160 = pneg %p15
  $region19: #{multiscale_forward.48} parent=0 // pred_check_branch
    %162 = sbr.rel (%p160) target = $region21
  $region20: #{multiscale_forward.48} parent=0 // pred_region
    %v163 = vld [vmem:[#allocation2] sm:$0xff]
    %v164 = vld [vmem:[#allocation2 + $0x8] sm:$0xff]
    %v165 = vld [vmem:[#allocation2 + $0x10] sm:$0x3]
    %v166 = vld [vmem:[%s2] sm:$0x1]
    %v168 = vlaneseq
    %v169 = vshrl.u32 %v168, 7
    %v170 = vsub.s32 0, %v169
    %v171 = vrot.slane %v166, %v170
    %v173 = vadd.f32 %v163, %v171
    %v174 = vadd.f32 %v164, %v171
    %v175 = vadd.f32 %v165, %v171
    %176 = vst.msk [vmem:[%s3] sm:$0xff] %vm155, %v173
    %177 = vst.msk [vmem:[%s3 + $0x8] sm:$0xff] %vm155, %v174
    %178 = vst.msk [vmem:[%s3 + $0x10] sm:$0x3] %vm158, %v175
  $region21: #{multiscale_forward.48} parent=0 // pred_fallthru
    _
  // Predicated region
  $region22: #{multiscale_forward.48} parent=0 // pred_check
    _
  $region23: #{multiscale_forward.48} parent=0 // pred_check_branch
    %180 = sbr.rel (0) target = $region25
  $region24: #{multiscale_forward.48} parent=0 // pred_region
    _
  $region25: #{multiscale_forward.48} parent=0 // pred_fallthru
    _
  // Predicated region
  $region26: #{multiscale_forward.48} parent=0 // pred_check
    _
  $region27: #{multiscale_forward.48} parent=0 // pred_check_branch
    %182 = sbr.rel (0) target = $region29
  $region28: #{multiscale_forward.48} parent=0 // pred_region
    _
  $region29: #{multiscale_forward.48} parent=0 // pred_fallthru
    _

// kernel: multiscale_forward.50
$region0: #{multiscale_forward.50}
  #allocation0 [shape = 'u32[]', space=smem, size = 0x4, offset = 0x4, fixed_abs, tag = 'smem constant byte address 0x4 - core index']
  #allocation1 [shape = 'u32[144,128]{1,0:T(1,128)}', space=vmem, size = 0x12000, scoped, tag = 'internal scratch']
  %s0 = inlined_call_operand.vmem [shape: f32[18,16], index: 0, kind: input, shape index: {}]
  %s1 = inlined_call_operand.vmem [shape: f32[1,16], index: 1, kind: input, shape index: {}]
  %s2 = inlined_call_operand.vmem [shape: f32[1,16], index: 2, kind: input, shape index: {}]
  %s3 = inlined_call_operand.vmem [shape: f32[18,16], index: 3, kind: output, shape index: {}]
  %s4 = sld [smem:[#allocation0]]
  $region22: #{multiscale_forward.50} parent=0
    _
  %s6 = ssub.s32 1, %s4
  %s7 = scalar_select 0, %s6, %s4
  // Predicated region
  $region2: #{multiscale_forward.50} parent=0 // pred_check
    _
  $region3: #{multiscale_forward.50} parent=0 // pred_check_branch
    %9 = sbr.rel (0) target = $region5
  $region4: #{multiscale_forward.50} parent=0 // pred_region
    _
  $region5: #{multiscale_forward.50} parent=0 // pred_fallthru
    _
  // Predicated region
  $region6: #{multiscale_forward.50} parent=0 // pred_check
    _
  $region7: #{multiscale_forward.50} parent=0 // pred_check_branch
    %11 = sbr.rel (0) target = $region9
  $region8: #{multiscale_forward.50} parent=0 // pred_region
    _
  $region9: #{multiscale_forward.50} parent=0 // pred_fallthru
    _
  // Predicated region
  $region10: #{multiscale_forward.50} parent=0 // pred_check
    _
  $region11: #{multiscale_forward.50} parent=0 // pred_check_branch
    %13 = sbr.rel (0) target = $region13
  $region12: #{multiscale_forward.50} parent=0 // pred_region
    _
  $region13: #{multiscale_forward.50} parent=0 // pred_fallthru
    _
  %v14 = vld [vmem:[%s0] sm:$0xff]
  %v15 = vld [vmem:[%s0 + $0x8] sm:$0xff]
  %v16 = vld [vmem:[%s0 + $0x10] sm:$0x3]
  %v17 = vld [vmem:[%s1] sm:$0x1]
  %v19 = vlaneseq
  %v20 = vshrl.u32 %v19, 7
  %v21 = vsub.s32 0, %v20
  %v22 = vrot.slane %v17, %v21
  %v24 = vmul.f32 %v14, %v22
  %v25 = vmul.f32 %v15, %v22
  %v26 = vmul.f32 %v16, %v22
  %v27 = vld [vmem:[%s2] sm:$0x1]
  %v29 = vlaneseq
  %v30 = vshrl.u32 %v29, 7
  %v31 = vsub.s32 0, %v30
  %v32 = vrot.slane %v27, %v31
  %v34 = vadd.f32 %v24, %v32
  %v35 = vadd.f32 %v25, %v32
  %v36 = vadd.f32 %v26, %v32
  %vm37 = vcmp.ge.f32.partialorder %v34, 0.0
  %vm38 = vcmp.ge.f32.partialorder %v35, 0.0
  %vm39 = vcmp.ge.f32.partialorder %v36, 0.0
  %v40 = vmul.f32 %v34, 0.2
  %v41 = vmul.f32 %v35, 0.2
  %v42 = vmul.f32 %v36, 0.2
  %v43 = vsel %vm37, %v34, %v40
  %v44 = vsel %vm38, %v35, %v41
  %v45 = vsel %vm39, %v36, %v42
  %vm46 = vcmask 130048
  %47 = vst.msk [vmem:[%s3] sm:$0xff] %vm46, %v43
  %48 = vst.msk [vmem:[%s3 + $0x8] sm:$0xff] %vm46, %v44
  %vm49 = vcmask 123904
  %50 = vst.msk [vmem:[%s3 + $0x10] sm:$0x3] %vm49, %v45
  // Predicated region
  $region14: #{multiscale_forward.50} parent=0 // pred_check
    _
  $region15: #{multiscale_forward.50} parent=0 // pred_check_branch
    %52 = sbr.rel (0) target = $region17
  $region16: #{multiscale_forward.50} parent=0 // pred_region
    _
  $region17: #{multiscale_forward.50} parent=0 // pred_fallthru
    _
  // Predicated region
  $region18: #{multiscale_forward.50} parent=0 // pred_check
    _
  $region19: #{multiscale_forward.50} parent=0 // pred_check_branch
    %54 = sbr.rel (0) target = $region21
  $region20: #{multiscale_forward.50} parent=0 // pred_region
    _
  $region21: #{multiscale_forward.50} parent=0 // pred_fallthru
    _

// kernel: multiscale_forward.35
$region0: #{multiscale_forward.35}
  #allocation0 [shape = 'u32[]', space=smem, size = 0x4, offset = 0x4, fixed_abs, tag = 'smem constant byte address 0x4 - core index']
  #allocation1 [shape = 'u32[144,128]{1,0:T(1,128)}', space=vmem, size = 0x12000, scoped, tag = 'internal scratch']
  #allocation2 [shape = 'f32[162,8]{1,0:T(8,128)}', space=vmem, size = 0x15000, scoped, tag = 'scratch operand']
  %s0 = inlined_call_operand.vmem [shape: bf16[162,128], index: 0, kind: input, shape index: {}]
  %s1 = inlined_call_operand.vmem [shape: bf16[128,8], index: 1, kind: input, shape index: {}]
  %s2 = inlined_call_operand.vmem [shape: f32[1,8], index: 2, kind: input, shape index: {}]
  %s3 = inlined_call_operand.vmem [shape: f32[162,8], index: 3, kind: output, shape index: {}]
  %s4 = sld [smem:[#allocation0]]
  $region30: #{multiscale_forward.35} parent=0
    _
  %s6 = ssub.s32 1, %s4
  %s7 = scalar_select 0, %s6, %s4
  // Predicated region
  $region2: #{multiscale_forward.35} parent=0 // pred_check
    _
  $region3: #{multiscale_forward.35} parent=0 // pred_check_branch
    %9 = sbr.rel (0) target = $region5
  $region4: #{multiscale_forward.35} parent=0 // pred_region
    _
  $region5: #{multiscale_forward.35} parent=0 // pred_fallthru
    _
  // Predicated region
  $region6: #{multiscale_forward.35} parent=0 // pred_check
    _
  $region7: #{multiscale_forward.35} parent=0 // pred_check_branch
    %11 = sbr.rel (0) target = $region9
  $region8: #{multiscale_forward.35} parent=0 // pred_region
    _
  $region9: #{multiscale_forward.35} parent=0 // pred_fallthru
    _
  // Predicated region
  $region10: #{multiscale_forward.35} parent=0 // pred_check
    _
  $region11: #{multiscale_forward.35} parent=0 // pred_check_branch
    %13 = sbr.rel (0) target = $region13
  $region12: #{multiscale_forward.35} parent=0 // pred_region
    _
  $region13: #{multiscale_forward.35} parent=0 // pred_fallthru
    _
  %p15 = scmp.eq.s32.totalorder 0, 0
  // Predicated region
  $region14: #{multiscale_forward.35} parent=0 // pred_check
    %p16 = pneg %p15
  $region15: #{multiscale_forward.35} parent=0 // pred_check_branch
    %18 = sbr.rel (%p16) target = $region17
  $region16: #{multiscale_forward.35} parent=0 // pred_region
    %vm19 = vcmask 64512
    %20 = vst.msk [vmem:[#allocation2] sm:$0xff] %vm19, 0.0
    %21 = vst.msk [vmem:[#allocation2 + $0x8] sm:$0xff] %vm19, 0.0
    %22 = vst.msk [vmem:[#allocation2 + $0x10] sm:$0xff] %vm19, 0.0
    %23 = vst.msk [vmem:[#allocation2 + $0x18] sm:$0xff] %vm19, 0.0
    %24 = vst.msk [vmem:[#allocation2 + $0x20] sm:$0xff] %vm19, 0.0
    %25 = vst.msk [vmem:[#allocation2 + $0x28] sm:$0xff] %vm19, 0.0
    %26 = vst.msk [vmem:[#allocation2 + $0x30] sm:$0xff] %vm19, 0.0
    %27 = vst.msk [vmem:[#allocation2 + $0x38] sm:$0xff] %vm19, 0.0
    %28 = vst.msk [vmem:[#allocation2 + $0x40] sm:$0xff] %vm19, 0.0
    %29 = vst.msk [vmem:[#allocation2 + $0x48] sm:$0xff] %vm19, 0.0
    %30 = vst.msk [vmem:[#allocation2 + $0x50] sm:$0xff] %vm19, 0.0
    %31 = vst.msk [vmem:[#allocation2 + $0x58] sm:$0xff] %vm19, 0.0
    %32 = vst.msk [vmem:[#allocation2 + $0x60] sm:$0xff] %vm19, 0.0
    %33 = vst.msk [vmem:[#allocation2 + $0x68] sm:$0xff] %vm19, 0.0
    %34 = vst.msk [vmem:[#allocation2 + $0x70] sm:$0xff] %vm19, 0.0
    %35 = vst.msk [vmem:[#allocation2 + $0x78] sm:$0xff] %vm19, 0.0
    %36 = vst.msk [vmem:[#allocation2 + $0x80] sm:$0xff] %vm19, 0.0
    %37 = vst.msk [vmem:[#allocation2 + $0x88] sm:$0xff] %vm19, 0.0
    %38 = vst.msk [vmem:[#allocation2 + $0x90] sm:$0xff] %vm19, 0.0
    %39 = vst.msk [vmem:[#allocation2 + $0x98] sm:$0xff] %vm19, 0.0
    %vm40 = vcmask 58368
    %41 = vst.msk [vmem:[#allocation2 + $0xa0] sm:$0x3] %vm40, 0.0
  $region17: #{multiscale_forward.35} parent=0 // pred_fallthru
    _
  %v42 = vld [vmem:[#allocation2] sm:$0xff]
  %v43 = vld [vmem:[#allocation2 + $0x8] sm:$0xff]
  %v44 = vld [vmem:[#allocation2 + $0x10] sm:$0xff]
  %v45 = vld [vmem:[#allocation2 + $0x18] sm:$0xff]
  %v46 = vld [vmem:[#allocation2 + $0x20] sm:$0xff]
  %v47 = vld [vmem:[#allocation2 + $0x28] sm:$0xff]
  %v48 = vld [vmem:[#allocation2 + $0x30] sm:$0xff]
  %v49 = vld [vmem:[#allocation2 + $0x38] sm:$0xff]
  %v50 = vld [vmem:[#allocation2 + $0x40] sm:$0xff]
  %v51 = vld [vmem:[#allocation2 + $0x48] sm:$0xff]
  %v52 = vld [vmem:[#allocation2 + $0x50] sm:$0xff]
  %v53 = vld [vmem:[#allocation2 + $0x58] sm:$0xff]
  %v54 = vld [vmem:[#allocation2 + $0x60] sm:$0xff]
  %v55 = vld [vmem:[#allocation2 + $0x68] sm:$0xff]
  %v56 = vld [vmem:[#allocation2 + $0x70] sm:$0xff]
  %v57 = vld [vmem:[#allocation2 + $0x78] sm:$0xff]
  %v58 = vld [vmem:[#allocation2 + $0x80] sm:$0xff]
  %v59 = vld [vmem:[#allocation2 + $0x88] sm:$0xff]
  %v60 = vld [vmem:[#allocation2 + $0x90] sm:$0xff]
  %v61 = vld [vmem:[#allocation2 + $0x98] sm:$0xff]
  %v62 = vld [vmem:[#allocation2 + $0xa0] sm:$0x3]
  %v63 = vld [vmem:[%s0] sm:$0xf]
  %v64 = vld [vmem:[%s0 + $0x4] sm:$0xf]
  %v65 = vld [vmem:[%s0 + $0x8] sm:$0xf]
  %v66 = vld [vmem:[%s0 + $0xc] sm:$0xf]
  %v67 = vld [vmem:[%s0 + $0x10] sm:$0xf]
  %v68 = vld [vmem:[%s0 + $0x14] sm:$0xf]
  %v69 = vld [vmem:[%s0 + $0x18] sm:$0xf]
  %v70 = vld [vmem:[%s0 + $0x1c] sm:$0xf]
  %v71 = vld [vmem:[%s0 + $0x20] sm:$0xf]
  %v72 = vld [vmem:[%s0 + $0x24] sm:$0xf]
  %v73 = vld [vmem:[%s0 + $0x28] sm:$0xf]
  %v74 = vld [vmem:[%s0 + $0x2c] sm:$0xf]
  %v75 = vld [vmem:[%s0 + $0x30] sm:$0xf]
  %v76 = vld [vmem:[%s0 + $0x34] sm:$0xf]
  %v77 = vld [vmem:[%s0 + $0x38] sm:$0xf]
  %v78 = vld [vmem:[%s0 + $0x3c] sm:$0xf]
  %v79 = vld [vmem:[%s0 + $0x40] sm:$0xf]
  %v80 = vld [vmem:[%s0 + $0x44] sm:$0xf]
  %v81 = vld [vmem:[%s0 + $0x48] sm:$0xf]
  %v82 = vld [vmem:[%s0 + $0x4c] sm:$0xf]
  %v83 = vld [vmem:[%s0 + $0x50] sm:$0x1]
  %v84 = vld [vmem:[%s1] sm:$0xf]
  %v85 = vld [vmem:[%s1 + $0x4] sm:$0xf]
  %v86 = vld [vmem:[%s1 + $0x8] sm:$0xf]
  %v87 = vld [vmem:[%s1 + $0xc] sm:$0xf]
  %v88 = vld [vmem:[%s1 + $0x10] sm:$0xf]
  %v89 = vld [vmem:[%s1 + $0x14] sm:$0xf]
  %v90 = vld [vmem:[%s1 + $0x18] sm:$0xf]
  %v91 = vld [vmem:[%s1 + $0x1c] sm:$0xf]
  %v92 = vld [vmem:[%s1 + $0x20] sm:$0xf]
  %v93 = vld [vmem:[%s1 + $0x24] sm:$0xf]
  %v94 = vld [vmem:[%s1 + $0x28] sm:$0xf]
  %v95 = vld [vmem:[%s1 + $0x2c] sm:$0xf]
  %v96 = vld [vmem:[%s1 + $0x30] sm:$0xf]
  %v97 = vld [vmem:[%s1 + $0x34] sm:$0xf]
  %v98 = vld [vmem:[%s1 + $0x38] sm:$0xf]
  %v99 = vld [vmem:[%s1 + $0x3c] sm:$0xf]
  %v121 = vunpack.c.l.b16 %v63
  %v122 = vunpack.c.l.b16 %v64
  %v123 = vunpack.c.l.b16 %v65
  %v124 = vunpack.c.l.b16 %v66
  %v125 = vunpack.c.l.b16 %v67
  %v126 = vunpack.c.l.b16 %v68
  %v127 = vunpack.c.l.b16 %v69
  %v128 = vunpack.c.l.b16 %v70
  %v129 = vunpack.c.l.b16 %v71
  %v130 = vunpack.c.l.b16 %v72
  %v131 = vunpack.c.l.b16 %v73
  %v132 = vunpack.c.l.b16 %v74
  %v133 = vunpack.c.l.b16 %v75
  %v134 = vunpack.c.l.b16 %v76
  %v135 = vunpack.c.l.b16 %v77
  %v136 = vunpack.c.l.b16 %v78
  %v137 = vunpack.c.l.b16 %v79
  %v138 = vunpack.c.l.b16 %v80
  %v139 = vunpack.c.l.b16 %v81
  %v140 = vunpack.c.l.b16 %v82
  %v141 = vunpack.c.l.b16 %v83
  %v142 = vpack.c.b16 %v122, %v121
  %v143 = vpack.c.b16 %v124, %v123
  %v144 = vpack.c.b16 %v126, %v125
  %v145 = vpack.c.b16 %v128, %v127
  %v146 = vpack.c.b16 %v130, %v129
  %v147 = vpack.c.b16 %v132, %v131
  %v148 = vpack.c.b16 %v134, %v133
  %v149 = vpack.c.b16 %v136, %v135
  %v150 = vpack.c.b16 %v138, %v137
  %v151 = vpack.c.b16 %v140, %v139
  %v152 = vpack.c.b16 %v141, %v141
  %v180 = vunpack.c.l.b16 %v84
  %v181 = vunpack.c.l.b16 %v85
  %v182 = vunpack.c.l.b16 %v86
  %v183 = vunpack.c.l.b16 %v87
  %v184 = vunpack.c.l.b16 %v88
  %v185 = vunpack.c.l.b16 %v89
  %v186 = vunpack.c.l.b16 %v90
  %v187 = vunpack.c.l.b16 %v91
  %v188 = vunpack.c.l.b16 %v92
  %v189 = vunpack.c.l.b16 %v93
  %v190 = vunpack.c.l.b16 %v94
  %v191 = vunpack.c.l.b16 %v95
  %v192 = vunpack.c.l.b16 %v96
  %v193 = vunpack.c.l.b16 %v97
  %v194 = vunpack.c.l.b16 %v98
  %v195 = vunpack.c.l.b16 %v99
  %v196 = vpack.c.b16 %v181, %v180
  %v197 = vpack.c.b16 %v183, %v182
  %v198 = vpack.c.b16 %v185, %v184
  %v199 = vpack.c.b16 %v187, %v186
  %v200 = vpack.c.b16 %v189, %v188
  %v201 = vpack.c.b16 %v191, %v190
  %v202 = vpack.c.b16 %v193, %v192
  %v203 = vpack.c.b16 %v195, %v194
  %212 = vmatprep.subr.bf16.mxu0 0
  %213 = vmatpush1.bf16.msra.mxu0 %v196
  %214 = vmatprep.subr.bf16.mxu0 0
  %215 = vmatpush1.bf16.msra.mxu0 %v197
  %216 = vmatprep.subr.bf16.mxu0 0
  %217 = vmatpush1.bf16.msra.mxu0 %v198
  %218 = vmatprep.subr.bf16.mxu0 0
  %219 = vmatpush1.bf16.msra.mxu0 %v199
  %220 = vmatprep.subr.bf16.mxu0 0
  %221 = vmatpush1.bf16.msra.mxu0 %v200
  %222 = vmatprep.subr.bf16.mxu0 0
  %223 = vmatpush1.bf16.msra.mxu0 %v201
  %224 = vmatprep.subr.bf16.mxu0 0
  %225 = vmatpush1.bf16.msra.mxu0 %v202
  %226 = vmatprep.subr.bf16.mxu0 0
  %227 = vmatpush1.bf16.msra.mxu0 %v203
  %228 = vmatprep.subr.bf16.mxu0 0
  %229 = vmatpush1.bf16.msra.mxu0 0
  %230 = vmatprep.subr.bf16.mxu0 0
  %231 = vmatpush1.bf16.msra.mxu0 0
  %232 = vmatprep.subr.bf16.mxu0 0
  %233 = vmatpush1.bf16.msra.mxu0 0
  %234 = vmatprep.subr.bf16.mxu0 0
  %235 = vmatpush1.bf16.msra.mxu0 0
  %236 = vmatprep.subr.bf16.mxu0 0
  %237 = vmatpush1.bf16.msra.mxu0 0
  %238 = vmatprep.subr.bf16.mxu0 0
  %239 = vmatpush1.bf16.msra.mxu0 0
  %240 = vmatprep.subr.bf16.mxu0 0
  %241 = vmatpush1.bf16.msra.mxu0 0
  %242 = vmatprep.subr.bf16.mxu0 0
  %243 = vmatpush1.bf16.msra.mxu0 0
  %244 = vmatprep.mubr.bf16.mxu0 0
  %245 = vmatmul.mubr.bf16.gmra.mrb[0].mxu0 %v142
  %v246 = vpop.f32.mrb[0].mxu0
  %v247 = vadd.f32 0.0, %v246
  %v248 = vpop.f32.mrb[0].mxu0
  %v249 = vpop.f32.mrb[0].mxu0
  %v250 = vadd.f32 0.0, %v249
  %v251 = vpop.f32.mrb[0].mxu0
  %252 = vmatprep.mubr.bf16.mxu0 0
  %253 = vmatmul.mubr.bf16.gmra.mrb[0].mxu0 %v143
  %v254 = vpop.f32.mrb[0].mxu0
  %v255 = vadd.f32 0.0, %v254
  %v256 = vpop.f32.mrb[0].mxu0
  %v257 = vpop.f32.mrb[0].mxu0
  %v258 = vadd.f32 0.0, %v257
  %v259 = vpop.f32.mrb[0].mxu0
  %260 = vmatprep.mubr.bf16.mxu0 0
  %261 = vmatmul.mubr.bf16.gmra.mrb[0].mxu0 %v144
  %v262 = vpop.f32.mrb[0].mxu0
  %v263 = vadd.f32 0.0, %v262
  %v264 = vpop.f32.mrb[0].mxu0
  %v265 = vpop.f32.mrb[0].mxu0
  %v266 = vadd.f32 0.0, %v265
  %v267 = vpop.f32.mrb[0].mxu0
  %268 = vmatprep.mubr.bf16.mxu0 0
  %269 = vmatmul.mubr.bf16.gmra.mrb[0].mxu0 %v145
  %v270 = vpop.f32.mrb[0].mxu0
  %v271 = vadd.f32 0.0, %v270
  %v272 = vpop.f32.mrb[0].mxu0
  %v273 = vpop.f32.mrb[0].mxu0
  %v274 = vadd.f32 0.0, %v273
  %v275 = vpop.f32.mrb[0].mxu0
  %276 = vmatprep.mubr.bf16.mxu0 0
  %277 = vmatmul.mubr.bf16.gmra.mrb[0].mxu0 %v146
  %v278 = vpop.f32.mrb[0].mxu0
  %v279 = vadd.f32 0.0, %v278
  %v280 = vpop.f32.mrb[0].mxu0
  %v281 = vpop.f32.mrb[0].mxu0
  %v282 = vadd.f32 0.0, %v281
  %v283 = vpop.f32.mrb[0].mxu0
  %284 = vmatprep.mubr.bf16.mxu0 0
  %285 = vmatmul.mubr.bf16.gmra.mrb[0].mxu0 %v147
  %v286 = vpop.f32.mrb[0].mxu0
  %v287 = vadd.f32 0.0, %v286
  %v288 = vpop.f32.mrb[0].mxu0
  %v289 = vpop.f32.mrb[0].mxu0
  %v290 = vadd.f32 0.0, %v289
  %v291 = vpop.f32.mrb[0].mxu0
  %292 = vmatprep.mubr.bf16.mxu0 0
  %293 = vmatmul.mubr.bf16.gmra.mrb[0].mxu0 %v148
  %v294 = vpop.f32.mrb[0].mxu0
  %v295 = vadd.f32 0.0, %v294
  %v296 = vpop.f32.mrb[0].mxu0
  %v297 = vpop.f32.mrb[0].mxu0
  %v298 = vadd.f32 0.0, %v297
  %v299 = vpop.f32.mrb[0].mxu0
  %300 = vmatprep.mubr.bf16.mxu0 0
  %301 = vmatmul.mubr.bf16.gmra.mrb[0].mxu0 %v149
  %v302 = vpop.f32.mrb[0].mxu0
  %v303 = vadd.f32 0.0, %v302
  %v304 = vpop.f32.mrb[0].mxu0
  %v305 = vpop.f32.mrb[0].mxu0
  %v306 = vadd.f32 0.0, %v305
  %v307 = vpop.f32.mrb[0].mxu0
  %308 = vmatprep.mubr.bf16.mxu0 0
  %309 = vmatmul.mubr.bf16.gmra.mrb[0].mxu0 %v150
  %v310 = vpop.f32.mrb[0].mxu0
  %v311 = vadd.f32 0.0, %v310
  %v312 = vpop.f32.mrb[0].mxu0
  %v313 = vpop.f32.mrb[0].mxu0
  %v314 = vadd.f32 0.0, %v313
  %v315 = vpop.f32.mrb[0].mxu0
  %316 = vmatprep.mubr.bf16.mxu0 0
  %317 = vmatmul.mubr.bf16.gmra.mrb[0].mxu0 %v151
  %v318 = vpop.f32.mrb[0].mxu0
  %v319 = vadd.f32 0.0, %v318
  %v320 = vpop.f32.mrb[0].mxu0
  %v321 = vpop.f32.mrb[0].mxu0
  %v322 = vadd.f32 0.0, %v321
  %v323 = vpop.f32.mrb[0].mxu0
  %324 = vmatprep.mubr.bf16.mxu0 0
  %325 = vmatmul.mubr.bf16.gmra.mrb[0].mxu0 %v152
  %v326 = vpop.f32.mrb[0].mxu0
  %v327 = vadd.f32 0.0, %v326
  %v328 = vpop.f32.mrb[0].mxu0
  %v329 = vpop.f32.mrb[0].mxu0
  %v330 = vpop.f32.mrb[0].mxu0
  %331 = vdwg.mxu0
  %v332 = vadd.f32 %v42, %v247
  %v333 = vadd.f32 %v43, %v250
  %v334 = vadd.f32 %v44, %v255
  %v335 = vadd.f32 %v45, %v258
  %v336 = vadd.f32 %v46, %v263
  %v337 = vadd.f32 %v47, %v266
  %v338 = vadd.f32 %v48, %v271
  %v339 = vadd.f32 %v49, %v274
  %v340 = vadd.f32 %v50, %v279
  %v341 = vadd.f32 %v51, %v282
  %v342 = vadd.f32 %v52, %v287
  %v343 = vadd.f32 %v53, %v290
  %v344 = vadd.f32 %v54, %v295
  %v345 = vadd.f32 %v55, %v298
  %v346 = vadd.f32 %v56, %v303
  %v347 = vadd.f32 %v57, %v306
  %v348 = vadd.f32 %v58, %v311
  %v349 = vadd.f32 %v59, %v314
  %v350 = vadd.f32 %v60, %v319
  %v351 = vadd.f32 %v61, %v322
  %v352 = vadd.f32 %v62, %v327
  %vm353 = vcmask 64512
  %354 = vst.msk [vmem:[#allocation2] sm:$0xff] %vm353, %v332
  %355 = vst.msk [vmem:[#allocation2 + $0x8] sm:$0xff] %vm353, %v333
  %356 = vst.msk [vmem:[#allocation2 + $0x10] sm:$0xff] %vm353, %v334
  %357 = vst.msk [vmem:[#allocation2 + $0x18] sm:$0xff] %vm353, %v335
  %358 = vst.msk [vmem:[#allocation2 + $0x20] sm:$0xff] %vm353, %v336
  %359 = vst.msk [vmem:[#allocation2 + $0x28] sm:$0xff] %vm353, %v337
  %360 = vst.msk [vmem:[#allocation2 + $0x30] sm:$0xff] %vm353, %v338
  %361 = vst.msk [vmem:[#allocation2 + $0x38] sm:$0xff] %vm353, %v339
  %362 = vst.msk [vmem:[#allocation2 + $0x40] sm:$0xff] %vm353, %v340
  %363 = vst.msk [vmem:[#allocation2 + $0x48] sm:$0xff] %vm353, %v341
  %364 = vst.msk [vmem:[#allocation2 + $0x50] sm:$0xff] %vm353, %v342
  %365 = vst.msk [vmem:[#allocation2 + $0x58] sm:$0xff] %vm353, %v343
  %366 = vst.msk [vmem:[#allocation2 + $0x60] sm:$0xff] %vm353, %v344
  %367 = vst.msk [vmem:[#allocation2 + $0x68] sm:$0xff] %vm353, %v345
  %368 = vst.msk [vmem:[#allocation2 + $0x70] sm:$0xff] %vm353, %v346
  %369 = vst.msk [vmem:[#allocation2 + $0x78] sm:$0xff] %vm353, %v347
  %370 = vst.msk [vmem:[#allocation2 + $0x80] sm:$0xff] %vm353, %v348
  %371 = vst.msk [vmem:[#allocation2 + $0x88] sm:$0xff] %vm353, %v349
  %372 = vst.msk [vmem:[#allocation2 + $0x90] sm:$0xff] %vm353, %v350
  %373 = vst.msk [vmem:[#allocation2 + $0x98] sm:$0xff] %vm353, %v351
  %vm374 = vcmask 58368
  %375 = vst.msk [vmem:[#allocation2 + $0xa0] sm:$0x3] %vm374, %v352
  // Predicated region
  $region18: #{multiscale_forward.35} parent=0 // pred_check
    %p376 = pneg %p15
  $region19: #{multiscale_forward.35} parent=0 // pred_check_branch
    %378 = sbr.rel (%p376) target = $region21
  $region20: #{multiscale_forward.35} parent=0 // pred_region
    %v379 = vld [vmem:[#allocation2] sm:$0xff]
    %v380 = vld [vmem:[#allocation2 + $0x8] sm:$0xff]
    %v381 = vld [vmem:[#allocation2 + $0x10] sm:$0xff]
    %v382 = vld [vmem:[#allocation2 + $0x18] sm:$0xff]
    %v383 = vld [vmem:[#allocation2 + $0x20] sm:$0xff]
    %v384 = vld [vmem:[#allocation2 + $0x28] sm:$0xff]
    %v385 = vld [vmem:[#allocation2 + $0x30] sm:$0xff]
    %v386 = vld [vmem:[#allocation2 + $0x38] sm:$0xff]
    %v387 = vld [vmem:[#allocation2 + $0x40] sm:$0xff]
    %v388 = vld [vmem:[#allocation2 + $0x48] sm:$0xff]
    %v389 = vld [vmem:[#allocation2 + $0x50] sm:$0xff]
    %v390 = vld [vmem:[#allocation2 + $0x58] sm:$0xff]
    %v391 = vld [vmem:[#allocation2 + $0x60] sm:$0xff]
    %v392 = vld [vmem:[#allocation2 + $0x68] sm:$0xff]
    %v393 = vld [vmem:[#allocation2 + $0x70] sm:$0xff]
    %v394 = vld [vmem:[#allocation2 + $0x78] sm:$0xff]
    %v395 = vld [vmem:[#allocation2 + $0x80] sm:$0xff]
    %v396 = vld [vmem:[#allocation2 + $0x88] sm:$0xff]
    %v397 = vld [vmem:[#allocation2 + $0x90] sm:$0xff]
    %v398 = vld [vmem:[#allocation2 + $0x98] sm:$0xff]
    %v399 = vld [vmem:[#allocation2 + $0xa0] sm:$0x3]
    %v400 = vld [vmem:[%s2] sm:$0x1]
    %v402 = vlaneseq
    %v403 = vshrl.u32 %v402, 7
    %v404 = vsub.s32 0, %v403
    %v405 = vrot.slane %v400, %v404
    %v407 = vadd.f32 %v379, %v405
    %v408 = vadd.f32 %v380, %v405
    %v409 = vadd.f32 %v381, %v405
    %v410 = vadd.f32 %v382, %v405
    %v411 = vadd.f32 %v383, %v405
    %v412 = vadd.f32 %v384, %v405
    %v413 = vadd.f32 %v385, %v405
    %v414 = vadd.f32 %v386, %v405
    %v415 = vadd.f32 %v387, %v405
    %v416 = vadd.f32 %v388, %v405
    %v417 = vadd.f32 %v389, %v405
    %v418 = vadd.f32 %v390, %v405
    %v419 = vadd.f32 %v391, %v405
    %v420 = vadd.f32 %v392, %v405
    %v421 = vadd.f32 %v393, %v405
    %v422 = vadd.f32 %v394, %v405
    %v423 = vadd.f32 %v395, %v405
    %v424 = vadd.f32 %v396, %v405
    %v425 = vadd.f32 %v397, %v405
    %v426 = vadd.f32 %v398, %v405
    %v427 = vadd.f32 %v399, %v405
    %vm428 = vcmp.ge.f32.partialorder %v407, 0.0
    %vm429 = vcmp.ge.f32.partialorder %v408, 0.0
    %vm430 = vcmp.ge.f32.partialorder %v409, 0.0
    %vm431 = vcmp.ge.f32.partialorder %v410, 0.0
    %vm432 = vcmp.ge.f32.partialorder %v411, 0.0
    %vm433 = vcmp.ge.f32.partialorder %v412, 0.0
    %vm434 = vcmp.ge.f32.partialorder %v413, 0.0
    %vm435 = vcmp.ge.f32.partialorder %v414, 0.0
    %vm436 = vcmp.ge.f32.partialorder %v415, 0.0
    %vm437 = vcmp.ge.f32.partialorder %v416, 0.0
    %vm438 = vcmp.ge.f32.partialorder %v417, 0.0
    %vm439 = vcmp.ge.f32.partialorder %v418, 0.0
    %vm440 = vcmp.ge.f32.partialorder %v419, 0.0
    %vm441 = vcmp.ge.f32.partialorder %v420, 0.0
    %vm442 = vcmp.ge.f32.partialorder %v421, 0.0
    %vm443 = vcmp.ge.f32.partialorder %v422, 0.0
    %vm444 = vcmp.ge.f32.partialorder %v423, 0.0
    %vm445 = vcmp.ge.f32.partialorder %v424, 0.0
    %vm446 = vcmp.ge.f32.partialorder %v425, 0.0
    %vm447 = vcmp.ge.f32.partialorder %v426, 0.0
    %vm448 = vcmp.ge.f32.partialorder %v427, 0.0
    %v449 = vmul.f32 %v407, 0.2
    %v450 = vmul.f32 %v408, 0.2
    %v451 = vmul.f32 %v409, 0.2
    %v452 = vmul.f32 %v410, 0.2
    %v453 = vmul.f32 %v411, 0.2
    %v454 = vmul.f32 %v412, 0.2
    %v455 = vmul.f32 %v413, 0.2
    %v456 = vmul.f32 %v414, 0.2
    %v457 = vmul.f32 %v415, 0.2
    %v458 = vmul.f32 %v416, 0.2
    %v459 = vmul.f32 %v417, 0.2
    %v460 = vmul.f32 %v418, 0.2
    %v461 = vmul.f32 %v419, 0.2
    %v462 = vmul.f32 %v420, 0.2
    %v463 = vmul.f32 %v421, 0.2
    %v464 = vmul.f32 %v422, 0.2
    %v465 = vmul.f32 %v423, 0.2
    %v466 = vmul.f32 %v424, 0.2
    %v467 = vmul.f32 %v425, 0.2
    %v468 = vmul.f32 %v426, 0.2
    %v469 = vmul.f32 %v427, 0.2
    %v470 = vsel %vm428, %v407, %v449
    %v471 = vsel %vm429, %v408, %v450
    %v472 = vsel %vm430, %v409, %v451
    %v473 = vsel %vm431, %v410, %v452
    %v474 = vsel %vm432, %v411, %v453
    %v475 = vsel %vm433, %v412, %v454
    %v476 = vsel %vm434, %v413, %v455
    %v477 = vsel %vm435, %v414, %v456
    %v478 = vsel %vm436, %v415, %v457
    %v479 = vsel %vm437, %v416, %v458
    %v480 = vsel %vm438, %v417, %v459
    %v481 = vsel %vm439, %v418, %v460
    %v482 = vsel %vm440, %v419, %v461
    %v483 = vsel %vm441, %v420, %v462
    %v484 = vsel %vm442, %v421, %v463
    %v485 = vsel %vm443, %v422, %v464
    %v486 = vsel %vm444, %v423, %v465
    %v487 = vsel %vm445, %v424, %v466
    %v488 = vsel %vm446, %v425, %v467
    %v489 = vsel %vm447, %v426, %v468
    %v490 = vsel %vm448, %v427, %v469
    %491 = vst.msk [vmem:[%s3] sm:$0xff] %vm353, %v470
    %492 = vst.msk [vmem:[%s3 + $0x8] sm:$0xff] %vm353, %v471
    %493 = vst.msk [vmem:[%s3 + $0x10] sm:$0xff] %vm353, %v472
    %494 = vst.msk [vmem:[%s3 + $0x18] sm:$0xff] %vm353, %v473
    %495 = vst.msk [vmem:[%s3 + $0x20] sm:$0xff] %vm353, %v474
    %496 = vst.msk [vmem:[%s3 + $0x28] sm:$0xff] %vm353, %v475
    %497 = vst.msk [vmem:[%s3 + $0x30] sm:$0xff] %vm353, %v476
    %498 = vst.msk [vmem:[%s3 + $0x38] sm:$0xff] %vm353, %v477
    %499 = vst.msk [vmem:[%s3 + $0x40] sm:$0xff] %vm353, %v478
    %500 = vst.msk [vmem:[%s3 + $0x48] sm:$0xff] %vm353, %v479
    %501 = vst.msk [vmem:[%s3 + $0x50] sm:$0xff] %vm353, %v480
    %502 = vst.msk [vmem:[%s3 + $0x58] sm:$0xff] %vm353, %v481
    %503 = vst.msk [vmem:[%s3 + $0x60] sm:$0xff] %vm353, %v482
    %504 = vst.msk [vmem:[%s3 + $0x68] sm:$0xff] %vm353, %v483
    %505 = vst.msk [vmem:[%s3 + $0x70] sm:$0xff] %vm353, %v484
    %506 = vst.msk [vmem:[%s3 + $0x78] sm:$0xff] %vm353, %v485
    %507 = vst.msk [vmem:[%s3 + $0x80] sm:$0xff] %vm353, %v486
    %508 = vst.msk [vmem:[%s3 + $0x88] sm:$0xff] %vm353, %v487
    %509 = vst.msk [vmem:[%s3 + $0x90] sm:$0xff] %vm353, %v488
    %510 = vst.msk [vmem:[%s3 + $0x98] sm:$0xff] %vm353, %v489
    %511 = vst.msk [vmem:[%s3 + $0xa0] sm:$0x3] %vm374, %v490
  $region21: #{multiscale_forward.35} parent=0 // pred_fallthru
    _
  // Predicated region
  $region22: #{multiscale_forward.35} parent=0 // pred_check
    _
  $region23: #{multiscale_forward.35} parent=0 // pred_check_branch
    %513 = sbr.rel (0) target = $region25
  $region24: #{multiscale_forward.35} parent=0 // pred_region
    _
  $region25: #{multiscale_forward.35} parent=0 // pred_fallthru
    _
  // Predicated region
  $region26: #{multiscale_forward.35} parent=0 // pred_check
    _
  $region27: #{multiscale_forward.35} parent=0 // pred_check_branch
    %515 = sbr.rel (0) target = $region29
  $region28: #{multiscale_forward.35} parent=0 // pred_region
    _
  $region29: #{multiscale_forward.35} parent=0 // pred_fallthru
    _

// kernel: multiscale_forward.36
$region0: #{multiscale_forward.36}
  #allocation0 [shape = 'u32[]', space=smem, size = 0x4, offset = 0x4, fixed_abs, tag = 'smem constant byte address 0x4 - core index']
  #allocation1 [shape = 'u32[144,128]{1,0:T(1,128)}', space=vmem, size = 0x12000, scoped, tag = 'internal scratch']
  #allocation2 [shape = 'f32[50,16]{1,0:T(8,128)}', space=vmem, size = 0x7000, scoped, tag = 'scratch operand']
  %s0 = inlined_call_operand.vmem [shape: bf16[50,128], index: 0, kind: input, shape index: {}]
  %s1 = inlined_call_operand.vmem [shape: bf16[128,16], index: 1, kind: input, shape index: {}]
  %s2 = inlined_call_operand.vmem [shape: f32[1,16], index: 2, kind: input, shape index: {}]
  %s3 = inlined_call_operand.vmem [shape: f32[50,16], index: 3, kind: output, shape index: {}]
  %s4 = sld [smem:[#allocation0]]
  $region30: #{multiscale_forward.36} parent=0
    _
  %s6 = ssub.s32 1, %s4
  %s7 = scalar_select 0, %s6, %s4
  // Predicated region
  $region2: #{multiscale_forward.36} parent=0 // pred_check
    _
  $region3: #{multiscale_forward.36} parent=0 // pred_check_branch
    %9 = sbr.rel (0) target = $region5
  $region4: #{multiscale_forward.36} parent=0 // pred_region
    _
  $region5: #{multiscale_forward.36} parent=0 // pred_fallthru
    _
  // Predicated region
  $region6: #{multiscale_forward.36} parent=0 // pred_check
    _
  $region7: #{multiscale_forward.36} parent=0 // pred_check_branch
    %11 = sbr.rel (0) target = $region9
  $region8: #{multiscale_forward.36} parent=0 // pred_region
    _
  $region9: #{multiscale_forward.36} parent=0 // pred_fallthru
    _
  // Predicated region
  $region10: #{multiscale_forward.36} parent=0 // pred_check
    _
  $region11: #{multiscale_forward.36} parent=0 // pred_check_branch
    %13 = sbr.rel (0) target = $region13
  $region12: #{multiscale_forward.36} parent=0 // pred_region
    _
  $region13: #{multiscale_forward.36} parent=0 // pred_fallthru
    _
  %p15 = scmp.eq.s32.totalorder 0, 0
  // Predicated region
  $region14: #{multiscale_forward.36} parent=0 // pred_check
    %p16 = pneg %p15
  $region15: #{multiscale_forward.36} parent=0 // pred_check_branch
    %18 = sbr.rel (%p16) target = $region17
  $region16: #{multiscale_forward.36} parent=0 // pred_region
    %vm19 = vcmask 130048
    %20 = vst.msk [vmem:[#allocation2] sm:$0xff] %vm19, 0.0
    %21 = vst.msk [vmem:[#allocation2 + $0x8] sm:$0xff] %vm19, 0.0
    %22 = vst.msk [vmem:[#allocation2 + $0x10] sm:$0xff] %vm19, 0.0
    %23 = vst.msk [vmem:[#allocation2 + $0x18] sm:$0xff] %vm19, 0.0
    %24 = vst.msk [vmem:[#allocation2 + $0x20] sm:$0xff] %vm19, 0.0
    %25 = vst.msk [vmem:[#allocation2 + $0x28] sm:$0xff] %vm19, 0.0
    %vm26 = vcmask 123904
    %27 = vst.msk [vmem:[#allocation2 + $0x30] sm:$0x3] %vm26, 0.0
  $region17: #{multiscale_forward.36} parent=0 // pred_fallthru
    _
  %v28 = vld [vmem:[#allocation2] sm:$0xff]
  %v29 = vld [vmem:[#allocation2 + $0x8] sm:$0xff]
  %v30 = vld [vmem:[#allocation2 + $0x10] sm:$0xff]
  %v31 = vld [vmem:[#allocation2 + $0x18] sm:$0xff]
  %v32 = vld [vmem:[#allocation2 + $0x20] sm:$0xff]
  %v33 = vld [vmem:[#allocation2 + $0x28] sm:$0xff]
  %v34 = vld [vmem:[#allocation2 + $0x30] sm:$0x3]
  %v35 = vld [vmem:[%s0] sm:$0xf]
  %v36 = vld [vmem:[%s0 + $0x4] sm:$0xf]
  %v37 = vld [vmem:[%s0 + $0x8] sm:$0xf]
  %v38 = vld [vmem:[%s0 + $0xc] sm:$0xf]
  %v39 = vld [vmem:[%s0 + $0x10] sm:$0xf]
  %v40 = vld [vmem:[%s0 + $0x14] sm:$0xf]
  %v41 = vld [vmem:[%s0 + $0x18] sm:$0x1]
  %v42 = vld [vmem:[%s1] sm:$0xf]
  %v43 = vld [vmem:[%s1 + $0x4] sm:$0xf]
  %v44 = vld [vmem:[%s1 + $0x8] sm:$0xf]
  %v45 = vld [vmem:[%s1 + $0xc] sm:$0xf]
  %v46 = vld [vmem:[%s1 + $0x10] sm:$0xf]
  %v47 = vld [vmem:[%s1 + $0x14] sm:$0xf]
  %v48 = vld [vmem:[%s1 + $0x18] sm:$0xf]
  %v49 = vld [vmem:[%s1 + $0x1c] sm:$0xf]
  %v50 = vld [vmem:[%s1 + $0x20] sm:$0xf]
  %v51 = vld [vmem:[%s1 + $0x24] sm:$0xf]
  %v52 = vld [vmem:[%s1 + $0x28] sm:$0xf]
  %v53 = vld [vmem:[%s1 + $0x2c] sm:$0xf]
  %v54 = vld [vmem:[%s1 + $0x30] sm:$0xf]
  %v55 = vld [vmem:[%s1 + $0x34] sm:$0xf]
  %v56 = vld [vmem:[%s1 + $0x38] sm:$0xf]
  %v57 = vld [vmem:[%s1 + $0x3c] sm:$0xf]
  %v65 = vunpack.c.l.b16 %v35
  %v66 = vunpack.c.l.b16 %v36
  %v67 = vunpack.c.l.b16 %v37
  %v68 = vunpack.c.l.b16 %v38
  %v69 = vunpack.c.l.b16 %v39
  %v70 = vunpack.c.l.b16 %v40
  %v71 = vunpack.c.l.b16 %v41
  %v72 = vpack.c.b16 %v66, %v65
  %v73 = vpack.c.b16 %v68, %v67
  %v74 = vpack.c.b16 %v70, %v69
  %v75 = vpack.c.b16 %v71, %v71
  %v96 = vunpack.c.l.b16 %v42
  %v97 = vunpack.c.l.b16 %v43
  %v98 = vunpack.c.l.b16 %v44
  %v99 = vunpack.c.l.b16 %v45
  %v100 = vunpack.c.l.b16 %v46
  %v101 = vunpack.c.l.b16 %v47
  %v102 = vunpack.c.l.b16 %v48
  %v103 = vunpack.c.l.b16 %v49
  %v104 = vunpack.c.l.b16 %v50
  %v105 = vunpack.c.l.b16 %v51
  %v106 = vunpack.c.l.b16 %v52
  %v107 = vunpack.c.l.b16 %v53
  %v108 = vunpack.c.l.b16 %v54
  %v109 = vunpack.c.l.b16 %v55
  %v110 = vunpack.c.l.b16 %v56
  %v111 = vunpack.c.l.b16 %v57
  %v112 = vpack.c.b16 %v97, %v96
  %v113 = vpack.c.b16 %v99, %v98
  %v114 = vpack.c.b16 %v101, %v100
  %v115 = vpack.c.b16 %v103, %v102
  %v116 = vpack.c.b16 %v105, %v104
  %v117 = vpack.c.b16 %v107, %v106
  %v118 = vpack.c.b16 %v109, %v108
  %v119 = vpack.c.b16 %v111, %v110
  %128 = vmatprep.subr.bf16.mxu0 0
  %129 = vmatpush1.bf16.msra.mxu0 %v112
  %130 = vmatprep.subr.bf16.mxu0 0
  %131 = vmatpush1.bf16.msra.mxu0 %v113
  %132 = vmatprep.subr.bf16.mxu0 0
  %133 = vmatpush1.bf16.msra.mxu0 %v114
  %134 = vmatprep.subr.bf16.mxu0 0
  %135 = vmatpush1.bf16.msra.mxu0 %v115
  %136 = vmatprep.subr.bf16.mxu0 0
  %137 = vmatpush1.bf16.msra.mxu0 %v116
  %138 = vmatprep.subr.bf16.mxu0 0
  %139 = vmatpush1.bf16.msra.mxu0 %v117
  %140 = vmatprep.subr.bf16.mxu0 0
  %141 = vmatpush1.bf16.msra.mxu0 %v118
  %142 = vmatprep.subr.bf16.mxu0 0
  %143 = vmatpush1.bf16.msra.mxu0 %v119
  %144 = vmatprep.subr.bf16.mxu0 0
  %145 = vmatpush1.bf16.msra.mxu0 0
  %146 = vmatprep.subr.bf16.mxu0 0
  %147 = vmatpush1.bf16.msra.mxu0 0
  %148 = vmatprep.subr.bf16.mxu0 0
  %149 = vmatpush1.bf16.msra.mxu0 0
  %150 = vmatprep.subr.bf16.mxu0 0
  %151 = vmatpush1.bf16.msra.mxu0 0
  %152 = vmatprep.subr.bf16.mxu0 0
  %153 = vmatpush1.bf16.msra.mxu0 0
  %154 = vmatprep.subr.bf16.mxu0 0
  %155 = vmatpush1.bf16.msra.mxu0 0
  %156 = vmatprep.subr.bf16.mxu0 0
  %157 = vmatpush1.bf16.msra.mxu0 0
  %158 = vmatprep.subr.bf16.mxu0 0
  %159 = vmatpush1.bf16.msra.mxu0 0
  %160 = vmatprep.mubr.bf16.mxu0 0
  %161 = vmatmul.mubr.bf16.gmra.mrb[0].mxu0 %v72
  %v162 = vpop.f32.mrb[0].mxu0
  %v163 = vadd.f32 0.0, %v162
  %v164 = vpop.f32.mrb[0].mxu0
  %v165 = vpop.f32.mrb[0].mxu0
  %v166 = vadd.f32 0.0, %v165
  %v167 = vpop.f32.mrb[0].mxu0
  %168 = vmatprep.mubr.bf16.mxu0 0
  %169 = vmatmul.mubr.bf16.gmra.mrb[0].mxu0 %v73
  %v170 = vpop.f32.mrb[0].mxu0
  %v171 = vadd.f32 0.0, %v170
  %v172 = vpop.f32.mrb[0].mxu0
  %v173 = vpop.f32.mrb[0].mxu0
  %v174 = vadd.f32 0.0, %v173
  %v175 = vpop.f32.mrb[0].mxu0
  %176 = vmatprep.mubr.bf16.mxu0 0
  %177 = vmatmul.mubr.bf16.gmra.mrb[0].mxu0 %v74
  %v178 = vpop.f32.mrb[0].mxu0
  %v179 = vadd.f32 0.0, %v178
  %v180 = vpop.f32.mrb[0].mxu0
  %v181 = vpop.f32.mrb[0].mxu0
  %v182 = vadd.f32 0.0, %v181
  %v183 = vpop.f32.mrb[0].mxu0
  %184 = vmatprep.mubr.bf16.mxu0 0
  %185 = vmatmul.mubr.bf16.gmra.mrb[0].mxu0 %v75
  %v186 = vpop.f32.mrb[0].mxu0
  %v187 = vadd.f32 0.0, %v186
  %v188 = vpop.f32.mrb[0].mxu0
  %v189 = vpop.f32.mrb[0].mxu0
  %v190 = vpop.f32.mrb[0].mxu0
  %191 = vdwg.mxu0
  %v192 = vadd.f32 %v28, %v163
  %v193 = vadd.f32 %v29, %v166
  %v194 = vadd.f32 %v30, %v171
  %v195 = vadd.f32 %v31, %v174
  %v196 = vadd.f32 %v32, %v179
  %v197 = vadd.f32 %v33, %v182
  %v198 = vadd.f32 %v34, %v187
  %vm199 = vcmask 130048
  %200 = vst.msk [vmem:[#allocation2] sm:$0xff] %vm199, %v192
  %201 = vst.msk [vmem:[#allocation2 + $0x8] sm:$0xff] %vm199, %v193
  %202 = vst.msk [vmem:[#allocation2 + $0x10] sm:$0xff] %vm199, %v194
  %203 = vst.msk [vmem:[#allocation2 + $0x18] sm:$0xff] %vm199, %v195
  %204 = vst.msk [vmem:[#allocation2 + $0x20] sm:$0xff] %vm199, %v196
  %205 = vst.msk [vmem:[#allocation2 + $0x28] sm:$0xff] %vm199, %v197
  %vm206 = vcmask 123904
  %207 = vst.msk [vmem:[#allocation2 + $0x30] sm:$0x3] %vm206, %v198
  // Predicated region
  $region18: #{multiscale_forward.36} parent=0 // pred_check
    %p208 = pneg %p15
  $region19: #{multiscale_forward.36} parent=0 // pred_check_branch
    %210 = sbr.rel (%p208) target = $region21
  $region20: #{multiscale_forward.36} parent=0 // pred_region
    %v211 = vld [vmem:[#allocation2] sm:$0xff]
    %v212 = vld [vmem:[#allocation2 + $0x8] sm:$0xff]
    %v213 = vld [vmem:[#allocation2 + $0x10] sm:$0xff]
    %v214 = vld [vmem:[#allocation2 + $0x18] sm:$0xff]
    %v215 = vld [vmem:[#allocation2 + $0x20] sm:$0xff]
    %v216 = vld [vmem:[#allocation2 + $0x28] sm:$0xff]
    %v217 = vld [vmem:[#allocation2 + $0x30] sm:$0x3]
    %v218 = vld [vmem:[%s2] sm:$0x1]
    %v220 = vlaneseq
    %v221 = vshrl.u32 %v220, 7
    %v222 = vsub.s32 0, %v221
    %v223 = vrot.slane %v218, %v222
    %v225 = vadd.f32 %v211, %v223
    %v226 = vadd.f32 %v212, %v223
    %v227 = vadd.f32 %v213, %v223
    %v228 = vadd.f32 %v214, %v223
    %v229 = vadd.f32 %v215, %v223
    %v230 = vadd.f32 %v216, %v223
    %v231 = vadd.f32 %v217, %v223
    %232 = vst.msk [vmem:[%s3] sm:$0xff] %vm199, %v225
    %233 = vst.msk [vmem:[%s3 + $0x8] sm:$0xff] %vm199, %v226
    %234 = vst.msk [vmem:[%s3 + $0x10] sm:$0xff] %vm199, %v227
    %235 = vst.msk [vmem:[%s3 + $0x18] sm:$0xff] %vm199, %v228
    %236 = vst.msk [vmem:[%s3 + $0x20] sm:$0xff] %vm199, %v229
    %237 = vst.msk [vmem:[%s3 + $0x28] sm:$0xff] %vm199, %v230
    %238 = vst.msk [vmem:[%s3 + $0x30] sm:$0x3] %vm206, %v231
  $region21: #{multiscale_forward.36} parent=0 // pred_fallthru
    _
  // Predicated region
  $region22: #{multiscale_forward.36} parent=0 // pred_check
    _
  $region23: #{multiscale_forward.36} parent=0 // pred_check_branch
    %240 = sbr.rel (0) target = $region25
  $region24: #{multiscale_forward.36} parent=0 // pred_region
    _
  $region25: #{multiscale_forward.36} parent=0 // pred_fallthru
    _
  // Predicated region
  $region26: #{multiscale_forward.36} parent=0 // pred_check
    _
  $region27: #{multiscale_forward.36} parent=0 // pred_check_branch
    %242 = sbr.rel (0) target = $region29
  $region28: #{multiscale_forward.36} parent=0 // pred_region
    _
  $region29: #{multiscale_forward.36} parent=0 // pred_fallthru
    _

// kernel: multiscale_forward.38
$region0: #{multiscale_forward.38}
  #allocation0 [shape = 'u32[]', space=smem, size = 0x4, offset = 0x4, fixed_abs, tag = 'smem constant byte address 0x4 - core index']
  #allocation1 [shape = 'u32[144,128]{1,0:T(1,128)}', space=vmem, size = 0x12000, scoped, tag = 'internal scratch']
  %s0 = inlined_call_operand.vmem [shape: f32[50,16], index: 0, kind: input, shape index: {}]
  %s1 = inlined_call_operand.vmem [shape: f32[1,16], index: 1, kind: input, shape index: {}]
  %s2 = inlined_call_operand.vmem [shape: f32[1,16], index: 2, kind: input, shape index: {}]
  %s3 = inlined_call_operand.vmem [shape: f32[50,16], index: 3, kind: output, shape index: {}]
  %s4 = sld [smem:[#allocation0]]
  $region22: #{multiscale_forward.38} parent=0
    _
  %s6 = ssub.s32 1, %s4
  %s7 = scalar_select 0, %s6, %s4
  // Predicated region
  $region2: #{multiscale_forward.38} parent=0 // pred_check
    _
  $region3: #{multiscale_forward.38} parent=0 // pred_check_branch
    %9 = sbr.rel (0) target = $region5
  $region4: #{multiscale_forward.38} parent=0 // pred_region
    _
  $region5: #{multiscale_forward.38} parent=0 // pred_fallthru
    _
  // Predicated region
  $region6: #{multiscale_forward.38} parent=0 // pred_check
    _
  $region7: #{multiscale_forward.38} parent=0 // pred_check_branch
    %11 = sbr.rel (0) target = $region9
  $region8: #{multiscale_forward.38} parent=0 // pred_region
    _
  $region9: #{multiscale_forward.38} parent=0 // pred_fallthru
    _
  // Predicated region
  $region10: #{multiscale_forward.38} parent=0 // pred_check
    _
  $region11: #{multiscale_forward.38} parent=0 // pred_check_branch
    %13 = sbr.rel (0) target = $region13
  $region12: #{multiscale_forward.38} parent=0 // pred_region
    _
  $region13: #{multiscale_forward.38} parent=0 // pred_fallthru
    _
  %v14 = vld [vmem:[%s0] sm:$0xff]
  %v15 = vld [vmem:[%s0 + $0x8] sm:$0xff]
  %v16 = vld [vmem:[%s0 + $0x10] sm:$0xff]
  %v17 = vld [vmem:[%s0 + $0x18] sm:$0xff]
  %v18 = vld [vmem:[%s0 + $0x20] sm:$0xff]
  %v19 = vld [vmem:[%s0 + $0x28] sm:$0xff]
  %v20 = vld [vmem:[%s0 + $0x30] sm:$0x3]
  %v21 = vld [vmem:[%s1] sm:$0x1]
  %v23 = vlaneseq
  %v24 = vshrl.u32 %v23, 7
  %v25 = vsub.s32 0, %v24
  %v26 = vrot.slane %v21, %v25
  %v28 = vmul.f32 %v14, %v26
  %v29 = vmul.f32 %v15, %v26
  %v30 = vmul.f32 %v16, %v26
  %v31 = vmul.f32 %v17, %v26
  %v32 = vmul.f32 %v18, %v26
  %v33 = vmul.f32 %v19, %v26
  %v34 = vmul.f32 %v20, %v26
  %v35 = vld [vmem:[%s2] sm:$0x1]
  %v37 = vlaneseq
  %v38 = vshrl.u32 %v37, 7
  %v39 = vsub.s32 0, %v38
  %v40 = vrot.slane %v35, %v39
  %v42 = vadd.f32 %v28, %v40
  %v43 = vadd.f32 %v29, %v40
  %v44 = vadd.f32 %v30, %v40
  %v45 = vadd.f32 %v31, %v40
  %v46 = vadd.f32 %v32, %v40
  %v47 = vadd.f32 %v33, %v40
  %v48 = vadd.f32 %v34, %v40
  %vm49 = vcmp.ge.f32.partialorder %v42, 0.0
  %vm50 = vcmp.ge.f32.partialorder %v43, 0.0
  %vm51 = vcmp.ge.f32.partialorder %v44, 0.0
  %vm52 = vcmp.ge.f32.partialorder %v45, 0.0
  %vm53 = vcmp.ge.f32.partialorder %v46, 0.0
  %vm54 = vcmp.ge.f32.partialorder %v47, 0.0
  %vm55 = vcmp.ge.f32.partialorder %v48, 0.0
  %v56 = vmul.f32 %v42, 0.2
  %v57 = vmul.f32 %v43, 0.2
  %v58 = vmul.f32 %v44, 0.2
  %v59 = vmul.f32 %v45, 0.2
  %v60 = vmul.f32 %v46, 0.2
  %v61 = vmul.f32 %v47, 0.2
  %v62 = vmul.f32 %v48, 0.2
  %v63 = vsel %vm49, %v42, %v56
  %v64 = vsel %vm50, %v43, %v57
  %v65 = vsel %vm51, %v44, %v58
  %v66 = vsel %vm52, %v45, %v59
  %v67 = vsel %vm53, %v46, %v60
  %v68 = vsel %vm54, %v47, %v61
  %v69 = vsel %vm55, %v48, %v62
  %vm70 = vcmask 130048
  %71 = vst.msk [vmem:[%s3] sm:$0xff] %vm70, %v63
  %72 = vst.msk [vmem:[%s3 + $0x8] sm:$0xff] %vm70, %v64
  %73 = vst.msk [vmem:[%s3 + $0x10] sm:$0xff] %vm70, %v65
  %74 = vst.msk [vmem:[%s3 + $0x18] sm:$0xff] %vm70, %v66
  %75 = vst.msk [vmem:[%s3 + $0x20] sm:$0xff] %vm70, %v67
  %76 = vst.msk [vmem:[%s3 + $0x28] sm:$0xff] %vm70, %v68
  %vm77 = vcmask 123904
  %78 = vst.msk [vmem:[%s3 + $0x30] sm:$0x3] %vm77, %v69
  // Predicated region
  $region14: #{multiscale_forward.38} parent=0 // pred_check
    _
  $region15: #{multiscale_forward.38} parent=0 // pred_check_branch
    %80 = sbr.rel (0) target = $region17
  $region16: #{multiscale_forward.38} parent=0 // pred_region
    _
  $region17: #{multiscale_forward.38} parent=0 // pred_fallthru
    _
  // Predicated region
  $region18: #{multiscale_forward.38} parent=0 // pred_check
    _
  $region19: #{multiscale_forward.38} parent=0 // pred_check_branch
    %82 = sbr.rel (0) target = $region21
  $region20: #{multiscale_forward.38} parent=0 // pred_region
    _
  $region21: #{multiscale_forward.38} parent=0 // pred_fallthru
    _

// kernel: multiscale_forward.37
$region0: #{multiscale_forward.37}
  #allocation0 [shape = 'u32[]', space=smem, size = 0x4, offset = 0x4, fixed_abs, tag = 'smem constant byte address 0x4 - core index']
  #allocation1 [shape = 'u32[144,128]{1,0:T(1,128)}', space=vmem, size = 0x12000, scoped, tag = 'internal scratch']
  %s0 = inlined_call_operand.vmem [shape: f32[50,16], index: 0, kind: input, shape index: {}]
  %s1 = inlined_call_operand.vmem [shape: f32[1,16], index: 1, kind: output, shape index: {0}]
  %s2 = inlined_call_operand.vmem [shape: f32[1,16], index: 2, kind: output, shape index: {1}]
  %3 = xla_tuple %s1, %s2
  %s4 = sld [smem:[#allocation0]]
  $region26: #{multiscale_forward.37} parent=0
    _
  %s6 = ssub.s32 1, %s4
  %s7 = scalar_select 0, %s6, %s4
  // Predicated region
  $region2: #{multiscale_forward.37} parent=0 // pred_check
    _
  $region3: #{multiscale_forward.37} parent=0 // pred_check_branch
    %9 = sbr.rel (0) target = $region5
  $region4: #{multiscale_forward.37} parent=0 // pred_region
    _
  $region5: #{multiscale_forward.37} parent=0 // pred_fallthru
    _
  %p10 = scmp.eq.s32.totalorder 0, 0
  // Predicated region
  $region6: #{multiscale_forward.37} parent=0 // pred_check
    %p11 = pneg %p10
  $region7: #{multiscale_forward.37} parent=0 // pred_check_branch
    %13 = sbr.rel (%p11) target = $region9
  $region8: #{multiscale_forward.37} parent=0 // pred_region
    %vm14 = vcmask 122880
    %15 = vst.msk [vmem:[%s1] sm:$0x1] %vm14, 0.0
    %16 = vst.msk [vmem:[%s2] sm:$0x1] %vm14, 0.0
  $region9: #{multiscale_forward.37} parent=0 // pred_fallthru
    _
  %v17 = vld [vmem:[%s0] sm:$0xff]
  %v18 = vld [vmem:[%s0 + $0x8] sm:$0xff]
  %v19 = vld [vmem:[%s0 + $0x10] sm:$0xff]
  %v20 = vld [vmem:[%s0 + $0x18] sm:$0xff]
  %v21 = vld [vmem:[%s0 + $0x20] sm:$0xff]
  %v22 = vld [vmem:[%s0 + $0x28] sm:$0xff]
  %v23 = vld [vmem:[%s0 + $0x30] sm:$0x3]
  %s24 = smul.u32 0, 50
  %v25 = vlaneseq
  %v26 = vshrl.u32 %v25, 7
  %v27 = vadd.s32 %v26, 8
  %v28 = vadd.s32 %v26, 16
  %v29 = vadd.s32 %v26, 24
  %v30 = vadd.s32 %v26, 32
  %v31 = vadd.s32 %v26, 40
  %v32 = vadd.s32 %v26, 48
  %v33 = vstv %s24
  %v34 = vadd.s32 %v33, %v26
  %v35 = vadd.s32 %v33, %v27
  %v36 = vadd.s32 %v33, %v28
  %v37 = vadd.s32 %v33, %v29
  %v38 = vadd.s32 %v33, %v30
  %v39 = vadd.s32 %v33, %v31
  %v40 = vadd.s32 %v33, %v32
  %vm41 = vcmp.lt.s32.totalorder %v34, 50
  %vm42 = vcmp.lt.s32.totalorder %v35, 50
  %vm43 = vcmp.lt.s32.totalorder %v36, 50
  %vm44 = vcmp.lt.s32.totalorder %v37, 50
  %vm45 = vcmp.lt.s32.totalorder %v38, 50
  %vm46 = vcmp.lt.s32.totalorder %v39, 50
  %vm47 = vcmp.lt.s32.totalorder %v40, 50
  %v48 = vsel %vm41, %v17, 0.0
  %v49 = vsel %vm42, %v18, 0.0
  %v50 = vsel %vm43, %v19, 0.0
  %v51 = vsel %vm44, %v20, 0.0
  %v52 = vsel %vm45, %v21, 0.0
  %v53 = vsel %vm46, %v22, 0.0
  %v54 = vsel %vm47, %v23, 0.0
  %v55 = vld [vmem:[%s1] sm:$0x1]
  %vm56 = vcmask 130048
  %v57 = vsel %vm56, %v48, 0.0
  %v58 = vsel %vm56, %v49, 0.0
  %v59 = vadd.f32 %v57, %v58
  %v60 = vsel %vm56, %v50, 0.0
  %v61 = vadd.f32 %v59, %v60
  %v62 = vsel %vm56, %v51, 0.0
  %v63 = vadd.f32 %v61, %v62
  %v64 = vsel %vm56, %v52, 0.0
  %v65 = vadd.f32 %v63, %v64
  %v66 = vsel %vm56, %v53, 0.0
  %v67 = vadd.f32 %v65, %v66
  %vm68 = vcmask 123904
  %v69 = vsel %vm68, %v54, 0.0
  %v70 = vadd.f32 %v67, %v69
  %v71 = vrot.slane %v70, 4
  %v72 = vadd.f32 %v70, %v71
  %v73 = vrot.slane %v72, 2
  %v74 = vadd.f32 %v72, %v73
  %v75 = vrot.slane %v74, 1
  %v76 = vadd.f32 %v74, %v75
  %v77 = vadd.f32 %v55, %v76
  %vm78 = vcmask 122880
  %79 = vst.msk [vmem:[%s1] sm:$0x1] %vm78, %v77
  %v80 = vld [vmem:[%s2] sm:$0x1]
  %v81 = vmul.f32 %v48, %v48
  %v82 = vmul.f32 %v49, %v49
  %v83 = vmul.f32 %v50, %v50
  %v84 = vmul.f32 %v51, %v51
  %v85 = vmul.f32 %v52, %v52
  %v86 = vmul.f32 %v53, %v53
  %v87 = vmul.f32 %v54, %v54
  %v88 = vsel %vm56, %v81, 0.0
  %v89 = vsel %vm56, %v82, 0.0
  %v90 = vadd.f32 %v88, %v89
  %v91 = vsel %vm56, %v83, 0.0
  %v92 = vadd.f32 %v90, %v91
  %v93 = vsel %vm56, %v84, 0.0
  %v94 = vadd.f32 %v92, %v93
  %v95 = vsel %vm56, %v85, 0.0
  %v96 = vadd.f32 %v94, %v95
  %v97 = vsel %vm56, %v86, 0.0
  %v98 = vadd.f32 %v96, %v97
  %v99 = vsel %vm68, %v87, 0.0
  %v100 = vadd.f32 %v98, %v99
  %v101 = vrot.slane %v100, 4
  %v102 = vadd.f32 %v100, %v101
  %v103 = vrot.slane %v102, 2
  %v104 = vadd.f32 %v102, %v103
  %v105 = vrot.slane %v104, 1
  %v106 = vadd.f32 %v104, %v105
  %v107 = vadd.f32 %v80, %v106
  %108 = vst.msk [vmem:[%s2] sm:$0x1] %vm78, %v107
  // Predicated region
  $region10: #{multiscale_forward.37} parent=0 // pred_check
    _
  $region11: #{multiscale_forward.37} parent=0 // pred_check_branch
    %110 = sbr.rel (0) target = $region13
  $region12: #{multiscale_forward.37} parent=0 // pred_region
    _
  $region13: #{multiscale_forward.37} parent=0 // pred_fallthru
    _
  // Predicated region
  $region14: #{multiscale_forward.37} parent=0 // pred_check
    _
  $region15: #{multiscale_forward.37} parent=0 // pred_check_branch
    %112 = sbr.rel (0) target = $region17
  $region16: #{multiscale_forward.37} parent=0 // pred_region
    _
  $region17: #{multiscale_forward.37} parent=0 // pred_fallthru
    _
  // Predicated region
  $region18: #{multiscale_forward.37} parent=0 // pred_check
    _
  $region19: #{multiscale_forward.37} parent=0 // pred_check_branch
    %114 = sbr.rel (0) target = $region21
  $region20: #{multiscale_forward.37} parent=0 // pred_region
    _
  $region21: #{multiscale_forward.37} parent=0 // pred_fallthru
    _
  // Predicated region
  $region22: #{multiscale_forward.37} parent=0 // pred_check
    _
  $region23: #{multiscale_forward.37} parent=0 // pred_check_branch
    %116 = sbr.rel (0) target = $region25
  $region24: #{multiscale_forward.37} parent=0 // pred_region
    _
  $region25: #{multiscale_forward.37} parent=0 // pred_fallthru
    _

// kernel: multiscale_forward.40
$region0: #{multiscale_forward.40}
  #allocation0 [shape = 'u32[]', space=smem, size = 0x4, offset = 0x4, fixed_abs, tag = 'smem constant byte address 0x4 - core index']
  #allocation1 [shape = 'u32[144,128]{1,0:T(1,128)}', space=vmem, size = 0x12000, scoped, tag = 'internal scratch']
  %s0 = inlined_call_operand.vmem [shape: f32[18,32], index: 0, kind: input, shape index: {}]
  %s1 = inlined_call_operand.vmem [shape: f32[1,32], index: 1, kind: output, shape index: {0}]
  %s2 = inlined_call_operand.vmem [shape: f32[1,32], index: 2, kind: output, shape index: {1}]
  %3 = xla_tuple %s1, %s2
  %s4 = sld [smem:[#allocation0]]
  $region26: #{multiscale_forward.40} parent=0
    _
  %s6 = ssub.s32 1, %s4
  %s7 = scalar_select 0, %s6, %s4
  // Predicated region
  $region2: #{multiscale_forward.40} parent=0 // pred_check
    _
  $region3: #{multiscale_forward.40} parent=0 // pred_check_branch
    %9 = sbr.rel (0) target = $region5
  $region4: #{multiscale_forward.40} parent=0 // pred_region
    _
  $region5: #{multiscale_forward.40} parent=0 // pred_fallthru
    _
  %p10 = scmp.eq.s32.totalorder 0, 0
  // Predicated region
  $region6: #{multiscale_forward.40} parent=0 // pred_check
    %p11 = pneg %p10
  $region7: #{multiscale_forward.40} parent=0 // pred_check_branch
    %13 = sbr.rel (%p11) target = $region9
  $region8: #{multiscale_forward.40} parent=0 // pred_region
    %vm14 = vcmask 253952
    %15 = vst.msk [vmem:[%s1] sm:$0x1] %vm14, 0.0
    %16 = vst.msk [vmem:[%s2] sm:$0x1] %vm14, 0.0
  $region9: #{multiscale_forward.40} parent=0 // pred_fallthru
    _
  %v17 = vld [vmem:[%s0] sm:$0xff]
  %v18 = vld [vmem:[%s0 + $0x8] sm:$0xff]
  %v19 = vld [vmem:[%s0 + $0x10] sm:$0x3]
  %s20 = smul.u32 0, 18
  %v21 = vlaneseq
  %v22 = vshrl.u32 %v21, 7
  %v23 = vadd.s32 %v22, 8
  %v24 = vadd.s32 %v22, 16
  %v25 = vstv %s20
  %v26 = vadd.s32 %v25, %v22
  %v27 = vadd.s32 %v25, %v23
  %v28 = vadd.s32 %v25, %v24
  %vm29 = vcmp.lt.s32.totalorder %v26, 18
  %vm30 = vcmp.lt.s32.totalorder %v27, 18
  %vm31 = vcmp.lt.s32.totalorder %v28, 18
  %v32 = vsel %vm29, %v17, 0.0
  %v33 = vsel %vm30, %v18, 0.0
  %v34 = vsel %vm31, %v19, 0.0
  %v35 = vld [vmem:[%s1] sm:$0x1]
  %vm36 = vcmask 261120
  %v37 = vsel %vm36, %v32, 0.0
  %v38 = vsel %vm36, %v33, 0.0
  %v39 = vadd.f32 %v37, %v38
  %vm40 = vcmask 254976
  %v41 = vsel %vm40, %v34, 0.0
  %v42 = vadd.f32 %v39, %v41
  %v43 = vrot.slane %v42, 4
  %v44 = vadd.f32 %v42, %v43
  %v45 = vrot.slane %v44, 2
  %v46 = vadd.f32 %v44, %v45
  %v47 = vrot.slane %v46, 1
  %v48 = vadd.f32 %v46, %v47
  %v49 = vadd.f32 %v35, %v48
  %vm50 = vcmask 253952
  %51 = vst.msk [vmem:[%s1] sm:$0x1] %vm50, %v49
  %v52 = vld [vmem:[%s2] sm:$0x1]
  %v53 = vmul.f32 %v32, %v32
  %v54 = vmul.f32 %v33, %v33
  %v55 = vmul.f32 %v34, %v34
  %v56 = vsel %vm36, %v53, 0.0
  %v57 = vsel %vm36, %v54, 0.0
  %v58 = vadd.f32 %v56, %v57
  %v59 = vsel %vm40, %v55, 0.0
  %v60 = vadd.f32 %v58, %v59
  %v61 = vrot.slane %v60, 4
  %v62 = vadd.f32 %v60, %v61
  %v63 = vrot.slane %v62, 2
  %v64 = vadd.f32 %v62, %v63
  %v65 = vrot.slane %v64, 1
  %v66 = vadd.f32 %v64, %v65
  %v67 = vadd.f32 %v52, %v66
  %68 = vst.msk [vmem:[%s2] sm:$0x1] %vm50, %v67
  // Predicated region
  $region10: #{multiscale_forward.40} parent=0 // pred_check
    _
  $region11: #{multiscale_forward.40} parent=0 // pred_check_branch
    %70 = sbr.rel (0) target = $region13
  $region12: #{multiscale_forward.40} parent=0 // pred_region
    _
  $region13: #{multiscale_forward.40} parent=0 // pred_fallthru
    _
  // Predicated region
  $region14: #{multiscale_forward.40} parent=0 // pred_check
    _
  $region15: #{multiscale_forward.40} parent=0 // pred_check_branch
    %72 = sbr.rel (0) target = $region17
  $region16: #{multiscale_forward.40} parent=0 // pred_region
    _
  $region17: #{multiscale_forward.40} parent=0 // pred_fallthru
    _
  // Predicated region
  $region18: #{multiscale_forward.40} parent=0 // pred_check
    _
  $region19: #{multiscale_forward.40} parent=0 // pred_check_branch
    %74 = sbr.rel (0) target = $region21
  $region20: #{multiscale_forward.40} parent=0 // pred_region
    _
  $region21: #{multiscale_forward.40} parent=0 // pred_fallthru
    _
  // Predicated region
  $region22: #{multiscale_forward.40} parent=0 // pred_check
    _
  $region23: #{multiscale_forward.40} parent=0 // pred_check_branch
    %76 = sbr.rel (0) target = $region25
  $region24: #{multiscale_forward.40} parent=0 // pred_region
    _
  $region25: #{multiscale_forward.40} parent=0 // pred_fallthru
    _

// kernel: multiscale_forward.39
$region0: #{multiscale_forward.39}
  #allocation0 [shape = 'u32[]', space=smem, size = 0x4, offset = 0x4, fixed_abs, tag = 'smem constant byte address 0x4 - core index']
  #allocation1 [shape = 'u32[144,128]{1,0:T(1,128)}', space=vmem, size = 0x12000, scoped, tag = 'internal scratch']
  #allocation2 [shape = 'f32[18,32]{1,0:T(8,128)}', space=vmem, size = 0x3000, scoped, tag = 'scratch operand']
  %s0 = inlined_call_operand.vmem [shape: bf16[18,256], index: 0, kind: input, shape index: {}]
  %s1 = inlined_call_operand.vmem [shape: bf16[256,32], index: 1, kind: input, shape index: {}]
  %s2 = inlined_call_operand.vmem [shape: f32[1,32], index: 2, kind: input, shape index: {}]
  %s3 = inlined_call_operand.vmem [shape: f32[18,32], index: 3, kind: output, shape index: {}]
  %s4 = sld [smem:[#allocation0]]
  $region30: #{multiscale_forward.39} parent=0
    _
  %s6 = ssub.s32 1, %s4
  %s7 = scalar_select 0, %s6, %s4
  // Predicated region
  $region2: #{multiscale_forward.39} parent=0 // pred_check
    _
  $region3: #{multiscale_forward.39} parent=0 // pred_check_branch
    %9 = sbr.rel (0) target = $region5
  $region4: #{multiscale_forward.39} parent=0 // pred_region
    _
  $region5: #{multiscale_forward.39} parent=0 // pred_fallthru
    _
  // Predicated region
  $region6: #{multiscale_forward.39} parent=0 // pred_check
    _
  $region7: #{multiscale_forward.39} parent=0 // pred_check_branch
    %11 = sbr.rel (0) target = $region9
  $region8: #{multiscale_forward.39} parent=0 // pred_region
    _
  $region9: #{multiscale_forward.39} parent=0 // pred_fallthru
    _
  // Predicated region
  $region10: #{multiscale_forward.39} parent=0 // pred_check
    _
  $region11: #{multiscale_forward.39} parent=0 // pred_check_branch
    %13 = sbr.rel (0) target = $region13
  $region12: #{multiscale_forward.39} parent=0 // pred_region
    _
  $region13: #{multiscale_forward.39} parent=0 // pred_fallthru
    _
  %p15 = scmp.eq.s32.totalorder 0, 0
  // Predicated region
  $region14: #{multiscale_forward.39} parent=0 // pred_check
    %p16 = pneg %p15
  $region15: #{multiscale_forward.39} parent=0 // pred_check_branch
    %18 = sbr.rel (%p16) target = $region17
  $region16: #{multiscale_forward.39} parent=0 // pred_region
    %vm19 = vcmask 261120
    %20 = vst.msk [vmem:[#allocation2] sm:$0xff] %vm19, 0.0
    %21 = vst.msk [vmem:[#allocation2 + $0x8] sm:$0xff] %vm19, 0.0
    %vm22 = vcmask 254976
    %23 = vst.msk [vmem:[#allocation2 + $0x10] sm:$0x3] %vm22, 0.0
  $region17: #{multiscale_forward.39} parent=0 // pred_fallthru
    _
  %v24 = vld [vmem:[#allocation2] sm:$0xff]
  %v25 = vld [vmem:[#allocation2 + $0x8] sm:$0xff]
  %v26 = vld [vmem:[#allocation2 + $0x10] sm:$0x3]
  %v27 = vld [vmem:[%s0] sm:$0xff]
  %v28 = vld [vmem:[%s0 + $0x8] sm:$0xff]
  %v29 = vld [vmem:[%s0 + $0x10] sm:$0x11]
  %v30 = vld [vmem:[%s1] sm:$0xf]
  %v31 = vld [vmem:[%s1 + $0x4] sm:$0xf]
  %v32 = vld [vmem:[%s1 + $0x8] sm:$0xf]
  %v33 = vld [vmem:[%s1 + $0xc] sm:$0xf]
  %v34 = vld [vmem:[%s1 + $0x10] sm:$0xf]
  %v35 = vld [vmem:[%s1 + $0x14] sm:$0xf]
  %v36 = vld [vmem:[%s1 + $0x18] sm:$0xf]
  %v37 = vld [vmem:[%s1 + $0x1c] sm:$0xf]
  %v38 = vld [vmem:[%s1 + $0x20] sm:$0xf]
  %v39 = vld [vmem:[%s1 + $0x24] sm:$0xf]
  %v40 = vld [vmem:[%s1 + $0x28] sm:$0xf]
  %v41 = vld [vmem:[%s1 + $0x2c] sm:$0xf]
  %v42 = vld [vmem:[%s1 + $0x30] sm:$0xf]
  %v43 = vld [vmem:[%s1 + $0x34] sm:$0xf]
  %v44 = vld [vmem:[%s1 + $0x38] sm:$0xf]
  %v45 = vld [vmem:[%s1 + $0x3c] sm:$0xf]
  %v46 = vld [vmem:[%s1 + $0x40] sm:$0xf]
  %v47 = vld [vmem:[%s1 + $0x44] sm:$0xf]
  %v48 = vld [vmem:[%s1 + $0x48] sm:$0xf]
  %v49 = vld [vmem:[%s1 + $0x4c] sm:$0xf]
  %v50 = vld [vmem:[%s1 + $0x50] sm:$0xf]
  %v51 = vld [vmem:[%s1 + $0x54] sm:$0xf]
  %v52 = vld [vmem:[%s1 + $0x58] sm:$0xf]
  %v53 = vld [vmem:[%s1 + $0x5c] sm:$0xf]
  %v54 = vld [vmem:[%s1 + $0x60] sm:$0xf]
  %v55 = vld [vmem:[%s1 + $0x64] sm:$0xf]
  %v56 = vld [vmem:[%s1 + $0x68] sm:$0xf]
  %v57 = vld [vmem:[%s1 + $0x6c] sm:$0xf]
  %v58 = vld [vmem:[%s1 + $0x70] sm:$0xf]
  %v59 = vld [vmem:[%s1 + $0x74] sm:$0xf]
  %v60 = vld [vmem:[%s1 + $0x78] sm:$0xf]
  %v61 = vld [vmem:[%s1 + $0x7c] sm:$0xf]
  %v65 = vunpack.c.l.b16 %v27
  %v66 = vunpack.c.h.b16 %v27
  %v67 = vunpack.c.l.b16 %v28
  %v68 = vunpack.c.h.b16 %v28
  %v69 = vunpack.c.l.b16 %v29
  %v70 = vunpack.c.h.b16 %v29
  %v71 = vpack.c.b16 %v67, %v65
  %v72 = vpack.c.b16 %v68, %v66
  %v73 = vpack.c.b16 %v69, %v69
  %v74 = vpack.c.b16 %v70, %v70
  %v111 = vunpack.c.l.b16 %v30
  %v112 = vunpack.c.l.b16 %v31
  %v113 = vunpack.c.l.b16 %v32
  %v114 = vunpack.c.l.b16 %v33
  %v115 = vunpack.c.l.b16 %v34
  %v116 = vunpack.c.l.b16 %v35
  %v117 = vunpack.c.l.b16 %v36
  %v118 = vunpack.c.l.b16 %v37
  %v119 = vunpack.c.l.b16 %v38
  %v120 = vunpack.c.l.b16 %v39
  %v121 = vunpack.c.l.b16 %v40
  %v122 = vunpack.c.l.b16 %v41
  %v123 = vunpack.c.l.b16 %v42
  %v124 = vunpack.c.l.b16 %v43
  %v125 = vunpack.c.l.b16 %v44
  %v126 = vunpack.c.l.b16 %v45
  %v127 = vunpack.c.l.b16 %v46
  %v128 = vunpack.c.l.b16 %v47
  %v129 = vunpack.c.l.b16 %v48
  %v130 = vunpack.c.l.b16 %v49
  %v131 = vunpack.c.l.b16 %v50
  %v132 = vunpack.c.l.b16 %v51
  %v133 = vunpack.c.l.b16 %v52
  %v134 = vunpack.c.l.b16 %v53
  %v135 = vunpack.c.l.b16 %v54
  %v136 = vunpack.c.l.b16 %v55
  %v137 = vunpack.c.l.b16 %v56
  %v138 = vunpack.c.l.b16 %v57
  %v139 = vunpack.c.l.b16 %v58
  %v140 = vunpack.c.l.b16 %v59
  %v141 = vunpack.c.l.b16 %v60
  %v142 = vunpack.c.l.b16 %v61
  %v143 = vpack.c.b16 %v112, %v111
  %v144 = vpack.c.b16 %v114, %v113
  %v145 = vpack.c.b16 %v116, %v115
  %v146 = vpack.c.b16 %v118, %v117
  %v147 = vpack.c.b16 %v120, %v119
  %v148 = vpack.c.b16 %v122, %v121
  %v149 = vpack.c.b16 %v124, %v123
  %v150 = vpack.c.b16 %v126, %v125
  %v151 = vpack.c.b16 %v128, %v127
  %v152 = vpack.c.b16 %v130, %v129
  %v153 = vpack.c.b16 %v132, %v131
  %v154 = vpack.c.b16 %v134, %v133
  %v155 = vpack.c.b16 %v136, %v135
  %v156 = vpack.c.b16 %v138, %v137
  %v157 = vpack.c.b16 %v140, %v139
  %v158 = vpack.c.b16 %v142, %v141
  %175 = vmatprep.subr.bf16.mxu0 0
  %176 = vmatpush1.bf16.msra.mxu0 %v143
  %177 = vmatprep.subr.bf16.mxu0 0
  %178 = vmatpush1.bf16.msra.mxu0 %v144
  %179 = vmatprep.subr.bf16.mxu0 0
  %180 = vmatpush1.bf16.msra.mxu0 %v145
  %181 = vmatprep.subr.bf16.mxu0 0
  %182 = vmatpush1.bf16.msra.mxu0 %v146
  %183 = vmatprep.subr.bf16.mxu0 0
  %184 = vmatpush1.bf16.msra.mxu0 %v147
  %185 = vmatprep.subr.bf16.mxu0 0
  %186 = vmatpush1.bf16.msra.mxu0 %v148
  %187 = vmatprep.subr.bf16.mxu0 0
  %188 = vmatpush1.bf16.msra.mxu0 %v149
  %189 = vmatprep.subr.bf16.mxu0 0
  %190 = vmatpush1.bf16.msra.mxu0 %v150
  %191 = vmatprep.subr.bf16.mxu0 0
  %192 = vmatpush1.bf16.msra.mxu0 %v151
  %193 = vmatprep.subr.bf16.mxu0 0
  %194 = vmatpush1.bf16.msra.mxu0 %v152
  %195 = vmatprep.subr.bf16.mxu0 0
  %196 = vmatpush1.bf16.msra.mxu0 %v153
  %197 = vmatprep.subr.bf16.mxu0 0
  %198 = vmatpush1.bf16.msra.mxu0 %v154
  %199 = vmatprep.subr.bf16.mxu0 0
  %200 = vmatpush1.bf16.msra.mxu0 %v155
  %201 = vmatprep.subr.bf16.mxu0 0
  %202 = vmatpush1.bf16.msra.mxu0 %v156
  %203 = vmatprep.subr.bf16.mxu0 0
  %204 = vmatpush1.bf16.msra.mxu0 %v157
  %205 = vmatprep.subr.bf16.mxu0 0
  %206 = vmatpush1.bf16.msra.mxu0 %v158
  %207 = vmatprep.mubr.bf16.mxu0 %v72
  %208 = vmatmul.mubr.bf16.gmra.mrb[0].mxu0 %v71
  %v209 = vpop.f32.mrb[0].mxu0
  %v210 = vadd.f32 0.0, %v209
  %v211 = vpop.f32.mrb[0].mxu0
  %v212 = vpop.f32.mrb[0].mxu0
  %v213 = vadd.f32 0.0, %v212
  %v214 = vpop.f32.mrb[0].mxu0
  %215 = vmatprep.mubr.bf16.mxu0 %v74
  %216 = vmatmul.mubr.bf16.gmra.mrb[0].mxu0 %v73
  %v217 = vpop.f32.mrb[0].mxu0
  %v218 = vadd.f32 0.0, %v217
  %v219 = vpop.f32.mrb[0].mxu0
  %v220 = vpop.f32.mrb[0].mxu0
  %v221 = vpop.f32.mrb[0].mxu0
  %222 = vdwg.mxu0
  %v223 = vadd.f32 %v24, %v210
  %v224 = vadd.f32 %v25, %v213
  %v225 = vadd.f32 %v26, %v218
  %vm226 = vcmask 261120
  %227 = vst.msk [vmem:[#allocation2] sm:$0xff] %vm226, %v223
  %228 = vst.msk [vmem:[#allocation2 + $0x8] sm:$0xff] %vm226, %v224
  %vm229 = vcmask 254976
  %230 = vst.msk [vmem:[#allocation2 + $0x10] sm:$0x3] %vm229, %v225
  // Predicated region
  $region18: #{multiscale_forward.39} parent=0 // pred_check
    %p231 = pneg %p15
  $region19: #{multiscale_forward.39} parent=0 // pred_check_branch
    %233 = sbr.rel (%p231) target = $region21
  $region20: #{multiscale_forward.39} parent=0 // pred_region
    %v234 = vld [vmem:[#allocation2] sm:$0xff]
    %v235 = vld [vmem:[#allocation2 + $0x8] sm:$0xff]
    %v236 = vld [vmem:[#allocation2 + $0x10] sm:$0x3]
    %v237 = vld [vmem:[%s2] sm:$0x1]
    %v239 = vlaneseq
    %v240 = vshrl.u32 %v239, 7
    %v241 = vsub.s32 0, %v240
    %v242 = vrot.slane %v237, %v241
    %v244 = vadd.f32 %v234, %v242
    %v245 = vadd.f32 %v235, %v242
    %v246 = vadd.f32 %v236, %v242
    %247 = vst.msk [vmem:[%s3] sm:$0xff] %vm226, %v244
    %248 = vst.msk [vmem:[%s3 + $0x8] sm:$0xff] %vm226, %v245
    %249 = vst.msk [vmem:[%s3 + $0x10] sm:$0x3] %vm229, %v246
  $region21: #{multiscale_forward.39} parent=0 // pred_fallthru
    _
  // Predicated region
  $region22: #{multiscale_forward.39} parent=0 // pred_check
    _
  $region23: #{multiscale_forward.39} parent=0 // pred_check_branch
    %251 = sbr.rel (0) target = $region25
  $region24: #{multiscale_forward.39} parent=0 // pred_region
    _
  $region25: #{multiscale_forward.39} parent=0 // pred_fallthru
    _
  // Predicated region
  $region26: #{multiscale_forward.39} parent=0 // pred_check
    _
  $region27: #{multiscale_forward.39} parent=0 // pred_check_branch
    %253 = sbr.rel (0) target = $region29
  $region28: #{multiscale_forward.39} parent=0 // pred_region
    _
  $region29: #{multiscale_forward.39} parent=0 // pred_fallthru
    _

// kernel: multiscale_forward.41
$region0: #{multiscale_forward.41}
  #allocation0 [shape = 'u32[]', space=smem, size = 0x4, offset = 0x4, fixed_abs, tag = 'smem constant byte address 0x4 - core index']
  #allocation1 [shape = 'u32[144,128]{1,0:T(1,128)}', space=vmem, size = 0x12000, scoped, tag = 'internal scratch']
  %s0 = inlined_call_operand.vmem [shape: f32[18,32], index: 0, kind: input, shape index: {}]
  %s1 = inlined_call_operand.vmem [shape: f32[1,32], index: 1, kind: input, shape index: {}]
  %s2 = inlined_call_operand.vmem [shape: f32[1,32], index: 2, kind: input, shape index: {}]
  %s3 = inlined_call_operand.vmem [shape: f32[18,32], index: 3, kind: output, shape index: {}]
  %s4 = sld [smem:[#allocation0]]
  $region22: #{multiscale_forward.41} parent=0
    _
  %s6 = ssub.s32 1, %s4
  %s7 = scalar_select 0, %s6, %s4
  // Predicated region
  $region2: #{multiscale_forward.41} parent=0 // pred_check
    _
  $region3: #{multiscale_forward.41} parent=0 // pred_check_branch
    %9 = sbr.rel (0) target = $region5
  $region4: #{multiscale_forward.41} parent=0 // pred_region
    _
  $region5: #{multiscale_forward.41} parent=0 // pred_fallthru
    _
  // Predicated region
  $region6: #{multiscale_forward.41} parent=0 // pred_check
    _
  $region7: #{multiscale_forward.41} parent=0 // pred_check_branch
    %11 = sbr.rel (0) target = $region9
  $region8: #{multiscale_forward.41} parent=0 // pred_region
    _
  $region9: #{multiscale_forward.41} parent=0 // pred_fallthru
    _
  // Predicated region
  $region10: #{multiscale_forward.41} parent=0 // pred_check
    _
  $region11: #{multiscale_forward.41} parent=0 // pred_check_branch
    %13 = sbr.rel (0) target = $region13
  $region12: #{multiscale_forward.41} parent=0 // pred_region
    _
  $region13: #{multiscale_forward.41} parent=0 // pred_fallthru
    _
  %v14 = vld [vmem:[%s0] sm:$0xff]
  %v15 = vld [vmem:[%s0 + $0x8] sm:$0xff]
  %v16 = vld [vmem:[%s0 + $0x10] sm:$0x3]
  %v17 = vld [vmem:[%s1] sm:$0x1]
  %v19 = vlaneseq
  %v20 = vshrl.u32 %v19, 7
  %v21 = vsub.s32 0, %v20
  %v22 = vrot.slane %v17, %v21
  %v24 = vmul.f32 %v14, %v22
  %v25 = vmul.f32 %v15, %v22
  %v26 = vmul.f32 %v16, %v22
  %v27 = vld [vmem:[%s2] sm:$0x1]
  %v29 = vlaneseq
  %v30 = vshrl.u32 %v29, 7
  %v31 = vsub.s32 0, %v30
  %v32 = vrot.slane %v27, %v31
  %v34 = vadd.f32 %v24, %v32
  %v35 = vadd.f32 %v25, %v32
  %v36 = vadd.f32 %v26, %v32
  %vm37 = vcmp.ge.f32.partialorder %v34, 0.0
  %vm38 = vcmp.ge.f32.partialorder %v35, 0.0
  %vm39 = vcmp.ge.f32.partialorder %v36, 0.0
  %v40 = vmul.f32 %v34, 0.2
  %v41 = vmul.f32 %v35, 0.2
  %v42 = vmul.f32 %v36, 0.2
  %v43 = vsel %vm37, %v34, %v40
  %v44 = vsel %vm38, %v35, %v41
  %v45 = vsel %vm39, %v36, %v42
  %vm46 = vcmask 261120
  %47 = vst.msk [vmem:[%s3] sm:$0xff] %vm46, %v43
  %48 = vst.msk [vmem:[%s3 + $0x8] sm:$0xff] %vm46, %v44
  %vm49 = vcmask 254976
  %50 = vst.msk [vmem:[%s3 + $0x10] sm:$0x3] %vm49, %v45
  // Predicated region
  $region14: #{multiscale_forward.41} parent=0 // pred_check
    _
  $region15: #{multiscale_forward.41} parent=0 // pred_check_branch
    %52 = sbr.rel (0) target = $region17
  $region16: #{multiscale_forward.41} parent=0 // pred_region
    _
  $region17: #{multiscale_forward.41} parent=0 // pred_fallthru
    _
  // Predicated region
  $region18: #{multiscale_forward.41} parent=0 // pred_check
    _
  $region19: #{multiscale_forward.41} parent=0 // pred_check_branch
    %54 = sbr.rel (0) target = $region21
  $region20: #{multiscale_forward.41} parent=0 // pred_region
    _
  $region21: #{multiscale_forward.41} parent=0 // pred_fallthru
    _

// kernel: multiscale_forward.43
$region0: #{multiscale_forward.43}
  #allocation0 [shape = 'u32[]', space=smem, size = 0x4, offset = 0x4, fixed_abs, tag = 'smem constant byte address 0x4 - core index']
  #allocation1 [shape = 'u32[144,128]{1,0:T(1,128)}', space=vmem, size = 0x12000, scoped, tag = 'internal scratch']
  %s0 = inlined_call_operand.vmem [shape: f32[32,64], index: 0, kind: input, shape index: {}]
  %s1 = inlined_call_operand.vmem [shape: f32[1,64], index: 1, kind: output, shape index: {0}]
  %s2 = inlined_call_operand.vmem [shape: f32[1,64], index: 2, kind: output, shape index: {1}]
  %3 = xla_tuple %s1, %s2
  %s4 = sld [smem:[#allocation0]]
  $region26: #{multiscale_forward.43} parent=0
    _
  %s6 = ssub.s32 1, %s4
  %s7 = scalar_select 0, %s6, %s4
  // Predicated region
  $region2: #{multiscale_forward.43} parent=0 // pred_check
    _
  $region3: #{multiscale_forward.43} parent=0 // pred_check_branch
    %9 = sbr.rel (0) target = $region5
  $region4: #{multiscale_forward.43} parent=0 // pred_region
    _
  $region5: #{multiscale_forward.43} parent=0 // pred_fallthru
    _
  %p10 = scmp.eq.s32.totalorder 0, 0
  // Predicated region
  $region6: #{multiscale_forward.43} parent=0 // pred_check
    %p11 = pneg %p10
  $region7: #{multiscale_forward.43} parent=0 // pred_check_branch
    %13 = sbr.rel (%p11) target = $region9
  $region8: #{multiscale_forward.43} parent=0 // pred_region
    %vm14 = vcmask 516096
    %15 = vst.msk [vmem:[%s1] sm:$0x1] %vm14, 0.0
    %16 = vst.msk [vmem:[%s2] sm:$0x1] %vm14, 0.0
  $region9: #{multiscale_forward.43} parent=0 // pred_fallthru
    _
  %v17 = vld [vmem:[%s0] sm:$0xff]
  %v18 = vld [vmem:[%s0 + $0x8] sm:$0xff]
  %v19 = vld [vmem:[%s0 + $0x10] sm:$0xff]
  %v20 = vld [vmem:[%s0 + $0x18] sm:$0xff]
  %s21 = smul.u32 0, 32
  %v22 = vlaneseq
  %v23 = vshrl.u32 %v22, 7
  %v24 = vadd.s32 %v23, 8
  %v25 = vadd.s32 %v23, 16
  %v26 = vadd.s32 %v23, 24
  %v27 = vstv %s21
  %v28 = vadd.s32 %v27, %v23
  %v29 = vadd.s32 %v27, %v24
  %v30 = vadd.s32 %v27, %v25
  %v31 = vadd.s32 %v27, %v26
  %vm32 = vcmp.lt.s32.totalorder %v28, 32
  %vm33 = vcmp.lt.s32.totalorder %v29, 32
  %vm34 = vcmp.lt.s32.totalorder %v30, 32
  %vm35 = vcmp.lt.s32.totalorder %v31, 32
  %v36 = vsel %vm32, %v17, 0.0
  %v37 = vsel %vm33, %v18, 0.0
  %v38 = vsel %vm34, %v19, 0.0
  %v39 = vsel %vm35, %v20, 0.0
  %v40 = vld [vmem:[%s1] sm:$0x1]
  %vm41 = vcmask 523264
  %v42 = vsel %vm41, %v36, 0.0
  %v43 = vsel %vm41, %v37, 0.0
  %v44 = vadd.f32 %v42, %v43
  %v45 = vsel %vm41, %v38, 0.0
  %v46 = vadd.f32 %v44, %v45
  %v47 = vsel %vm41, %v39, 0.0
  %v48 = vadd.f32 %v46, %v47
  %v49 = vrot.slane %v48, 4
  %v50 = vadd.f32 %v48, %v49
  %v51 = vrot.slane %v50, 2
  %v52 = vadd.f32 %v50, %v51
  %v53 = vrot.slane %v52, 1
  %v54 = vadd.f32 %v52, %v53
  %v55 = vadd.f32 %v40, %v54
  %vm56 = vcmask 516096
  %57 = vst.msk [vmem:[%s1] sm:$0x1] %vm56, %v55
  %v58 = vld [vmem:[%s2] sm:$0x1]
  %v59 = vmul.f32 %v36, %v36
  %v60 = vmul.f32 %v37, %v37
  %v61 = vmul.f32 %v38, %v38
  %v62 = vmul.f32 %v39, %v39
  %v63 = vsel %vm41, %v59, 0.0
  %v64 = vsel %vm41, %v60, 0.0
  %v65 = vadd.f32 %v63, %v64
  %v66 = vsel %vm41, %v61, 0.0
  %v67 = vadd.f32 %v65, %v66
  %v68 = vsel %vm41, %v62, 0.0
  %v69 = vadd.f32 %v67, %v68
  %v70 = vrot.slane %v69, 4
  %v71 = vadd.f32 %v69, %v70
  %v72 = vrot.slane %v71, 2
  %v73 = vadd.f32 %v71, %v72
  %v74 = vrot.slane %v73, 1
  %v75 = vadd.f32 %v73, %v74
  %v76 = vadd.f32 %v58, %v75
  %77 = vst.msk [vmem:[%s2] sm:$0x1] %vm56, %v76
  // Predicated region
  $region10: #{multiscale_forward.43} parent=0 // pred_check
    _
  $region11: #{multiscale_forward.43} parent=0 // pred_check_branch
    %79 = sbr.rel (0) target = $region13
  $region12: #{multiscale_forward.43} parent=0 // pred_region
    _
  $region13: #{multiscale_forward.43} parent=0 // pred_fallthru
    _
  // Predicated region
  $region14: #{multiscale_forward.43} parent=0 // pred_check
    _
  $region15: #{multiscale_forward.43} parent=0 // pred_check_branch
    %81 = sbr.rel (0) target = $region17
  $region16: #{multiscale_forward.43} parent=0 // pred_region
    _
  $region17: #{multiscale_forward.43} parent=0 // pred_fallthru
    _
  // Predicated region
  $region18: #{multiscale_forward.43} parent=0 // pred_check
    _
  $region19: #{multiscale_forward.43} parent=0 // pred_check_branch
    %83 = sbr.rel (0) target = $region21
  $region20: #{multiscale_forward.43} parent=0 // pred_region
    _
  $region21: #{multiscale_forward.43} parent=0 // pred_fallthru
    _
  // Predicated region
  $region22: #{multiscale_forward.43} parent=0 // pred_check
    _
  $region23: #{multiscale_forward.43} parent=0 // pred_check_branch
    %85 = sbr.rel (0) target = $region25
  $region24: #{multiscale_forward.43} parent=0 // pred_region
    _
  $region25: #{multiscale_forward.43} parent=0 // pred_fallthru
    _

// kernel: multiscale_forward.44
$region0: #{multiscale_forward.44}
  #allocation0 [shape = 'u32[]', space=smem, size = 0x4, offset = 0x4, fixed_abs, tag = 'smem constant byte address 0x4 - core index']
  #allocation1 [shape = 'u32[144,128]{1,0:T(1,128)}', space=vmem, size = 0x12000, scoped, tag = 'internal scratch']
  %s0 = inlined_call_operand.vmem [shape: f32[32,64], index: 0, kind: input, shape index: {}]
  %s1 = inlined_call_operand.vmem [shape: f32[1,64], index: 1, kind: input, shape index: {}]
  %s2 = inlined_call_operand.vmem [shape: f32[1,64], index: 2, kind: input, shape index: {}]
  %s3 = inlined_call_operand.vmem [shape: f32[32,64], index: 3, kind: output, shape index: {}]
  %s4 = sld [smem:[#allocation0]]
  $region22: #{multiscale_forward.44} parent=0
    _
  %s6 = ssub.s32 1, %s4
  %s7 = scalar_select 0, %s6, %s4
  // Predicated region
  $region2: #{multiscale_forward.44} parent=0 // pred_check
    _
  $region3: #{multiscale_forward.44} parent=0 // pred_check_branch
    %9 = sbr.rel (0) target = $region5
  $region4: #{multiscale_forward.44} parent=0 // pred_region
    _
  $region5: #{multiscale_forward.44} parent=0 // pred_fallthru
    _
  // Predicated region
  $region6: #{multiscale_forward.44} parent=0 // pred_check
    _
  $region7: #{multiscale_forward.44} parent=0 // pred_check_branch
    %11 = sbr.rel (0) target = $region9
  $region8: #{multiscale_forward.44} parent=0 // pred_region
    _
  $region9: #{multiscale_forward.44} parent=0 // pred_fallthru
    _
  // Predicated region
  $region10: #{multiscale_forward.44} parent=0 // pred_check
    _
  $region11: #{multiscale_forward.44} parent=0 // pred_check_branch
    %13 = sbr.rel (0) target = $region13
  $region12: #{multiscale_forward.44} parent=0 // pred_region
    _
  $region13: #{multiscale_forward.44} parent=0 // pred_fallthru
    _
  %v14 = vld [vmem:[%s0] sm:$0xff]
  %v15 = vld [vmem:[%s0 + $0x8] sm:$0xff]
  %v16 = vld [vmem:[%s0 + $0x10] sm:$0xff]
  %v17 = vld [vmem:[%s0 + $0x18] sm:$0xff]
  %v18 = vld [vmem:[%s1] sm:$0x1]
  %v20 = vlaneseq
  %v21 = vshrl.u32 %v20, 7
  %v22 = vsub.s32 0, %v21
  %v23 = vrot.slane %v18, %v22
  %v25 = vmul.f32 %v14, %v23
  %v26 = vmul.f32 %v15, %v23
  %v27 = vmul.f32 %v16, %v23
  %v28 = vmul.f32 %v17, %v23
  %v29 = vld [vmem:[%s2] sm:$0x1]
  %v31 = vlaneseq
  %v32 = vshrl.u32 %v31, 7
  %v33 = vsub.s32 0, %v32
  %v34 = vrot.slane %v29, %v33
  %v36 = vadd.f32 %v25, %v34
  %v37 = vadd.f32 %v26, %v34
  %v38 = vadd.f32 %v27, %v34
  %v39 = vadd.f32 %v28, %v34
  %vm40 = vcmp.ge.f32.partialorder %v36, 0.0
  %vm41 = vcmp.ge.f32.partialorder %v37, 0.0
  %vm42 = vcmp.ge.f32.partialorder %v38, 0.0
  %vm43 = vcmp.ge.f32.partialorder %v39, 0.0
  %v44 = vmul.f32 %v36, 0.2
  %v45 = vmul.f32 %v37, 0.2
  %v46 = vmul.f32 %v38, 0.2
  %v47 = vmul.f32 %v39, 0.2
  %v48 = vsel %vm40, %v36, %v44
  %v49 = vsel %vm41, %v37, %v45
  %v50 = vsel %vm42, %v38, %v46
  %v51 = vsel %vm43, %v39, %v47
  %vm52 = vcmask 523264
  %53 = vst.msk [vmem:[%s3] sm:$0xff] %vm52, %v48
  %54 = vst.msk [vmem:[%s3 + $0x8] sm:$0xff] %vm52, %v49
  %55 = vst.msk [vmem:[%s3 + $0x10] sm:$0xff] %vm52, %v50
  %56 = vst.msk [vmem:[%s3 + $0x18] sm:$0xff] %vm52, %v51
  // Predicated region
  $region14: #{multiscale_forward.44} parent=0 // pred_check
    _
  $region15: #{multiscale_forward.44} parent=0 // pred_check_branch
    %58 = sbr.rel (0) target = $region17
  $region16: #{multiscale_forward.44} parent=0 // pred_region
    _
  $region17: #{multiscale_forward.44} parent=0 // pred_fallthru
    _
  // Predicated region
  $region18: #{multiscale_forward.44} parent=0 // pred_check
    _
  $region19: #{multiscale_forward.44} parent=0 // pred_check_branch
    %60 = sbr.rel (0) target = $region21
  $region20: #{multiscale_forward.44} parent=0 // pred_region
    _
  $region21: #{multiscale_forward.44} parent=0 // pred_fallthru
    _

// kernel: multiscale_forward.42
$region0: #{multiscale_forward.42}
  #allocation0 [shape = 'u32[]', space=smem, size = 0x4, offset = 0x4, fixed_abs, tag = 'smem constant byte address 0x4 - core index']
  #allocation1 [shape = 'u32[144,128]{1,0:T(1,128)}', space=vmem, size = 0x12000, scoped, tag = 'internal scratch']
  #allocation2 [shape = 'f32[32,64]{1,0:T(8,128)}', space=vmem, size = 0x4000, scoped, tag = 'scratch operand']
  %s0 = inlined_call_operand.vmem [shape: bf16[32,512], index: 0, kind: input, shape index: {}]
  %s1 = inlined_call_operand.vmem [shape: bf16[512,64], index: 1, kind: input, shape index: {}]
  %s2 = inlined_call_operand.vmem [shape: f32[1,64], index: 2, kind: input, shape index: {}]
  %s3 = inlined_call_operand.vmem [shape: f32[32,64], index: 3, kind: output, shape index: {}]
  %s4 = sld [smem:[#allocation0]]
  $region30: #{multiscale_forward.42} parent=0
    _
  %s6 = ssub.s32 1, %s4
  %s7 = scalar_select 0, %s6, %s4
  // Predicated region
  $region2: #{multiscale_forward.42} parent=0 // pred_check
    _
  $region3: #{multiscale_forward.42} parent=0 // pred_check_branch
    %9 = sbr.rel (0) target = $region5
  $region4: #{multiscale_forward.42} parent=0 // pred_region
    _
  $region5: #{multiscale_forward.42} parent=0 // pred_fallthru
    _
  // Predicated region
  $region6: #{multiscale_forward.42} parent=0 // pred_check
    _
  $region7: #{multiscale_forward.42} parent=0 // pred_check_branch
    %11 = sbr.rel (0) target = $region9
  $region8: #{multiscale_forward.42} parent=0 // pred_region
    _
  $region9: #{multiscale_forward.42} parent=0 // pred_fallthru
    _
  // Predicated region
  $region10: #{multiscale_forward.42} parent=0 // pred_check
    _
  $region11: #{multiscale_forward.42} parent=0 // pred_check_branch
    %13 = sbr.rel (0) target = $region13
  $region12: #{multiscale_forward.42} parent=0 // pred_region
    _
  $region13: #{multiscale_forward.42} parent=0 // pred_fallthru
    _
  %p15 = scmp.eq.s32.totalorder 0, 0
  // Predicated region
  $region14: #{multiscale_forward.42} parent=0 // pred_check
    %p16 = pneg %p15
  $region15: #{multiscale_forward.42} parent=0 // pred_check_branch
    %18 = sbr.rel (%p16) target = $region17
  $region16: #{multiscale_forward.42} parent=0 // pred_region
    %vm19 = vcmask 523264
    %20 = vst.msk [vmem:[#allocation2] sm:$0xff] %vm19, 0.0
    %21 = vst.msk [vmem:[#allocation2 + $0x8] sm:$0xff] %vm19, 0.0
    %22 = vst.msk [vmem:[#allocation2 + $0x10] sm:$0xff] %vm19, 0.0
    %23 = vst.msk [vmem:[#allocation2 + $0x18] sm:$0xff] %vm19, 0.0
  $region17: #{multiscale_forward.42} parent=0 // pred_fallthru
    _
  %v24 = vld [vmem:[#allocation2] sm:$0xff]
  %v25 = vld [vmem:[#allocation2 + $0x8] sm:$0xff]
  %v26 = vld [vmem:[#allocation2 + $0x10] sm:$0xff]
  %v27 = vld [vmem:[#allocation2 + $0x18] sm:$0xff]
  %v28 = vld [vmem:[%s0] sm:$0xff]
  %v29 = vld [vmem:[%s0 + $0x8] sm:$0xff]
  %v30 = vld [vmem:[%s0 + $0x10] sm:$0xff]
  %v31 = vld [vmem:[%s0 + $0x18] sm:$0xff]
  %v32 = vld [vmem:[%s0 + $0x20] sm:$0xff]
  %v33 = vld [vmem:[%s0 + $0x28] sm:$0xff]
  %v34 = vld [vmem:[%s0 + $0x30] sm:$0xff]
  %v35 = vld [vmem:[%s0 + $0x38] sm:$0xff]
  %v36 = vld [vmem:[%s1] sm:$0xf]
  %v37 = vld [vmem:[%s1 + $0x4] sm:$0xf]
  %v38 = vld [vmem:[%s1 + $0x8] sm:$0xf]
  %v39 = vld [vmem:[%s1 + $0xc] sm:$0xf]
  %v40 = vld [vmem:[%s1 + $0x10] sm:$0xf]
  %v41 = vld [vmem:[%s1 + $0x14] sm:$0xf]
  %v42 = vld [vmem:[%s1 + $0x18] sm:$0xf]
  %v43 = vld [vmem:[%s1 + $0x1c] sm:$0xf]
  %v44 = vld [vmem:[%s1 + $0x20] sm:$0xf]
  %v45 = vld [vmem:[%s1 + $0x24] sm:$0xf]
  %v46 = vld [vmem:[%s1 + $0x28] sm:$0xf]
  %v47 = vld [vmem:[%s1 + $0x2c] sm:$0xf]
  %v48 = vld [vmem:[%s1 + $0x30] sm:$0xf]
  %v49 = vld [vmem:[%s1 + $0x34] sm:$0xf]
  %v50 = vld [vmem:[%s1 + $0x38] sm:$0xf]
  %v51 = vld [vmem:[%s1 + $0x3c] sm:$0xf]
  %v52 = vld [vmem:[%s1 + $0x40] sm:$0xf]
  %v53 = vld [vmem:[%s1 + $0x44] sm:$0xf]
  %v54 = vld [vmem:[%s1 + $0x48] sm:$0xf]
  %v55 = vld [vmem:[%s1 + $0x4c] sm:$0xf]
  %v56 = vld [vmem:[%s1 + $0x50] sm:$0xf]
  %v57 = vld [vmem:[%s1 + $0x54] sm:$0xf]
  %v58 = vld [vmem:[%s1 + $0x58] sm:$0xf]
  %v59 = vld [vmem:[%s1 + $0x5c] sm:$0xf]
  %v60 = vld [vmem:[%s1 + $0x60] sm:$0xf]
  %v61 = vld [vmem:[%s1 + $0x64] sm:$0xf]
  %v62 = vld [vmem:[%s1 + $0x68] sm:$0xf]
  %v63 = vld [vmem:[%s1 + $0x6c] sm:$0xf]
  %v64 = vld [vmem:[%s1 + $0x70] sm:$0xf]
  %v65 = vld [vmem:[%s1 + $0x74] sm:$0xf]
  %v66 = vld [vmem:[%s1 + $0x78] sm:$0xf]
  %v67 = vld [vmem:[%s1 + $0x7c] sm:$0xf]
  %v68 = vld [vmem:[%s1 + $0x80] sm:$0xf]
  %v69 = vld [vmem:[%s1 + $0x84] sm:$0xf]
  %v70 = vld [vmem:[%s1 + $0x88] sm:$0xf]
  %v71 = vld [vmem:[%s1 + $0x8c] sm:$0xf]
  %v72 = vld [vmem:[%s1 + $0x90] sm:$0xf]
  %v73 = vld [vmem:[%s1 + $0x94] sm:$0xf]
  %v74 = vld [vmem:[%s1 + $0x98] sm:$0xf]
  %v75 = vld [vmem:[%s1 + $0x9c] sm:$0xf]
  %v76 = vld [vmem:[%s1 + $0xa0] sm:$0xf]
  %v77 = vld [vmem:[%s1 + $0xa4] sm:$0xf]
  %v78 = vld [vmem:[%s1 + $0xa8] sm:$0xf]
  %v79 = vld [vmem:[%s1 + $0xac] sm:$0xf]
  %v80 = vld [vmem:[%s1 + $0xb0] sm:$0xf]
  %v81 = vld [vmem:[%s1 + $0xb4] sm:$0xf]
  %v82 = vld [vmem:[%s1 + $0xb8] sm:$0xf]
  %v83 = vld [vmem:[%s1 + $0xbc] sm:$0xf]
  %v84 = vld [vmem:[%s1 + $0xc0] sm:$0xf]
  %v85 = vld [vmem:[%s1 + $0xc4] sm:$0xf]
  %v86 = vld [vmem:[%s1 + $0xc8] sm:$0xf]
  %v87 = vld [vmem:[%s1 + $0xcc] sm:$0xf]
  %v88 = vld [vmem:[%s1 + $0xd0] sm:$0xf]
  %v89 = vld [vmem:[%s1 + $0xd4] sm:$0xf]
  %v90 = vld [vmem:[%s1 + $0xd8] sm:$0xf]
  %v91 = vld [vmem:[%s1 + $0xdc] sm:$0xf]
  %v92 = vld [vmem:[%s1 + $0xe0] sm:$0xf]
  %v93 = vld [vmem:[%s1 + $0xe4] sm:$0xf]
  %v94 = vld [vmem:[%s1 + $0xe8] sm:$0xf]
  %v95 = vld [vmem:[%s1 + $0xec] sm:$0xf]
  %v96 = vld [vmem:[%s1 + $0xf0] sm:$0xf]
  %v97 = vld [vmem:[%s1 + $0xf4] sm:$0xf]
  %v98 = vld [vmem:[%s1 + $0xf8] sm:$0xf]
  %v99 = vld [vmem:[%s1 + $0xfc] sm:$0xf]
  %v108 = vunpack.c.l.b16 %v28
  %v109 = vunpack.c.h.b16 %v28
  %v110 = vunpack.c.l.b16 %v29
  %v111 = vunpack.c.h.b16 %v29
  %v112 = vunpack.c.l.b16 %v30
  %v113 = vunpack.c.h.b16 %v30
  %v114 = vunpack.c.l.b16 %v31
  %v115 = vunpack.c.h.b16 %v31
  %v116 = vunpack.c.l.b16 %v32
  %v117 = vunpack.c.h.b16 %v32
  %v118 = vunpack.c.l.b16 %v33
  %v119 = vunpack.c.h.b16 %v33
  %v120 = vunpack.c.l.b16 %v34
  %v121 = vunpack.c.h.b16 %v34
  %v122 = vunpack.c.l.b16 %v35
  %v123 = vunpack.c.h.b16 %v35
  %v124 = vpack.c.b16 %v112, %v108
  %v125 = vpack.c.b16 %v113, %v109
  %v126 = vpack.c.b16 %v114, %v110
  %v127 = vpack.c.b16 %v115, %v111
  %v128 = vpack.c.b16 %v120, %v116
  %v129 = vpack.c.b16 %v121, %v117
  %v130 = vpack.c.b16 %v122, %v118
  %v131 = vpack.c.b16 %v123, %v119
  %v204 = vunpack.c.l.b16 %v36
  %v205 = vunpack.c.l.b16 %v37
  %v206 = vunpack.c.l.b16 %v38
  %v207 = vunpack.c.l.b16 %v39
  %v208 = vunpack.c.l.b16 %v40
  %v209 = vunpack.c.l.b16 %v41
  %v210 = vunpack.c.l.b16 %v42
  %v211 = vunpack.c.l.b16 %v43
  %v212 = vunpack.c.l.b16 %v44
  %v213 = vunpack.c.l.b16 %v45
  %v214 = vunpack.c.l.b16 %v46
  %v215 = vunpack.c.l.b16 %v47
  %v216 = vunpack.c.l.b16 %v48
  %v217 = vunpack.c.l.b16 %v49
  %v218 = vunpack.c.l.b16 %v50
  %v219 = vunpack.c.l.b16 %v51
  %v220 = vunpack.c.l.b16 %v52
  %v221 = vunpack.c.l.b16 %v53
  %v222 = vunpack.c.l.b16 %v54
  %v223 = vunpack.c.l.b16 %v55
  %v224 = vunpack.c.l.b16 %v56
  %v225 = vunpack.c.l.b16 %v57
  %v226 = vunpack.c.l.b16 %v58
  %v227 = vunpack.c.l.b16 %v59
  %v228 = vunpack.c.l.b16 %v60
  %v229 = vunpack.c.l.b16 %v61
  %v230 = vunpack.c.l.b16 %v62
  %v231 = vunpack.c.l.b16 %v63
  %v232 = vunpack.c.l.b16 %v64
  %v233 = vunpack.c.l.b16 %v65
  %v234 = vunpack.c.l.b16 %v66
  %v235 = vunpack.c.l.b16 %v67
  %v236 = vunpack.c.l.b16 %v68
  %v237 = vunpack.c.l.b16 %v69
  %v238 = vunpack.c.l.b16 %v70
  %v239 = vunpack.c.l.b16 %v71
  %v240 = vunpack.c.l.b16 %v72
  %v241 = vunpack.c.l.b16 %v73
  %v242 = vunpack.c.l.b16 %v74
  %v243 = vunpack.c.l.b16 %v75
  %v244 = vunpack.c.l.b16 %v76
  %v245 = vunpack.c.l.b16 %v77
  %v246 = vunpack.c.l.b16 %v78
  %v247 = vunpack.c.l.b16 %v79
  %v248 = vunpack.c.l.b16 %v80
  %v249 = vunpack.c.l.b16 %v81
  %v250 = vunpack.c.l.b16 %v82
  %v251 = vunpack.c.l.b16 %v83
  %v252 = vunpack.c.l.b16 %v84
  %v253 = vunpack.c.l.b16 %v85
  %v254 = vunpack.c.l.b16 %v86
  %v255 = vunpack.c.l.b16 %v87
  %v256 = vunpack.c.l.b16 %v88
  %v257 = vunpack.c.l.b16 %v89
  %v258 = vunpack.c.l.b16 %v90
  %v259 = vunpack.c.l.b16 %v91
  %v260 = vunpack.c.l.b16 %v92
  %v261 = vunpack.c.l.b16 %v93
  %v262 = vunpack.c.l.b16 %v94
  %v263 = vunpack.c.l.b16 %v95
  %v264 = vunpack.c.l.b16 %v96
  %v265 = vunpack.c.l.b16 %v97
  %v266 = vunpack.c.l.b16 %v98
  %v267 = vunpack.c.l.b16 %v99
  %v268 = vpack.c.b16 %v205, %v204
  %v269 = vpack.c.b16 %v207, %v206
  %v270 = vpack.c.b16 %v209, %v208
  %v271 = vpack.c.b16 %v211, %v210
  %v272 = vpack.c.b16 %v213, %v212
  %v273 = vpack.c.b16 %v215, %v214
  %v274 = vpack.c.b16 %v217, %v216
  %v275 = vpack.c.b16 %v219, %v218
  %v276 = vpack.c.b16 %v221, %v220
  %v277 = vpack.c.b16 %v223, %v222
  %v278 = vpack.c.b16 %v225, %v224
  %v279 = vpack.c.b16 %v227, %v226
  %v280 = vpack.c.b16 %v229, %v228
  %v281 = vpack.c.b16 %v231, %v230
  %v282 = vpack.c.b16 %v233, %v232
  %v283 = vpack.c.b16 %v235, %v234
  %v284 = vpack.c.b16 %v237, %v236
  %v285 = vpack.c.b16 %v239, %v238
  %v286 = vpack.c.b16 %v241, %v240
  %v287 = vpack.c.b16 %v243, %v242
  %v288 = vpack.c.b16 %v245, %v244
  %v289 = vpack.c.b16 %v247, %v246
  %v290 = vpack.c.b16 %v249, %v248
  %v291 = vpack.c.b16 %v251, %v250
  %v292 = vpack.c.b16 %v253, %v252
  %v293 = vpack.c.b16 %v255, %v254
  %v294 = vpack.c.b16 %v257, %v256
  %v295 = vpack.c.b16 %v259, %v258
  %v296 = vpack.c.b16 %v261, %v260
  %v297 = vpack.c.b16 %v263, %v262
  %v298 = vpack.c.b16 %v265, %v264
  %v299 = vpack.c.b16 %v267, %v266
  %332 = vmatprep.subr.bf16.mxu0 0
  %333 = vmatpush1.bf16.msra.mxu0 %v268
  %334 = vmatprep.subr.bf16.mxu0 0
  %335 = vmatpush1.bf16.msra.mxu0 %v269
  %336 = vmatprep.subr.bf16.mxu0 0
  %337 = vmatpush1.bf16.msra.mxu0 %v270
  %338 = vmatprep.subr.bf16.mxu0 0
  %339 = vmatpush1.bf16.msra.mxu0 %v271
  %340 = vmatprep.subr.bf16.mxu0 0
  %341 = vmatpush1.bf16.msra.mxu0 %v272
  %342 = vmatprep.subr.bf16.mxu0 0
  %343 = vmatpush1.bf16.msra.mxu0 %v273
  %344 = vmatprep.subr.bf16.mxu0 0
  %345 = vmatpush1.bf16.msra.mxu0 %v274
  %346 = vmatprep.subr.bf16.mxu0 0
  %347 = vmatpush1.bf16.msra.mxu0 %v275
  %348 = vmatprep.subr.bf16.mxu0 0
  %349 = vmatpush1.bf16.msra.mxu0 %v276
  %350 = vmatprep.subr.bf16.mxu0 0
  %351 = vmatpush1.bf16.msra.mxu0 %v277
  %352 = vmatprep.subr.bf16.mxu0 0
  %353 = vmatpush1.bf16.msra.mxu0 %v278
  %354 = vmatprep.subr.bf16.mxu0 0
  %355 = vmatpush1.bf16.msra.mxu0 %v279
  %356 = vmatprep.subr.bf16.mxu0 0
  %357 = vmatpush1.bf16.msra.mxu0 %v280
  %358 = vmatprep.subr.bf16.mxu0 0
  %359 = vmatpush1.bf16.msra.mxu0 %v281
  %360 = vmatprep.subr.bf16.mxu0 0
  %361 = vmatpush1.bf16.msra.mxu0 %v282
  %362 = vmatprep.subr.bf16.mxu0 0
  %363 = vmatpush1.bf16.msra.mxu0 %v283
  %364 = vmatprep.mubr.bf16.mxu0 %v125
  %365 = vmatmul.mubr.bf16.gmra.mrb[0].mxu0 %v124
  %v366 = vpop.f32.mrb[0].mxu0
  %v367 = vadd.f32 0.0, %v366
  %v368 = vpop.f32.mrb[0].mxu0
  %v369 = vpop.f32.mrb[0].mxu0
  %v370 = vadd.f32 0.0, %v369
  %v371 = vpop.f32.mrb[0].mxu0
  %372 = vmatprep.mubr.bf16.mxu0 %v129
  %373 = vmatmul.mubr.bf16.gmra.mrb[0].mxu0 %v128
  %v374 = vpop.f32.mrb[0].mxu0
  %v375 = vadd.f32 0.0, %v374
  %v376 = vpop.f32.mrb[0].mxu0
  %v377 = vpop.f32.mrb[0].mxu0
  %v378 = vadd.f32 0.0, %v377
  %v379 = vpop.f32.mrb[0].mxu0
  %380 = vdwg.mxu0
  %381 = vmatprep.subr.bf16.mxu0 0
  %382 = vmatpush1.bf16.msra.mxu0 %v284
  %383 = vmatprep.subr.bf16.mxu0 0
  %384 = vmatpush1.bf16.msra.mxu0 %v285
  %385 = vmatprep.subr.bf16.mxu0 0
  %386 = vmatpush1.bf16.msra.mxu0 %v286
  %387 = vmatprep.subr.bf16.mxu0 0
  %388 = vmatpush1.bf16.msra.mxu0 %v287
  %389 = vmatprep.subr.bf16.mxu0 0
  %390 = vmatpush1.bf16.msra.mxu0 %v288
  %391 = vmatprep.subr.bf16.mxu0 0
  %392 = vmatpush1.bf16.msra.mxu0 %v289
  %393 = vmatprep.subr.bf16.mxu0 0
  %394 = vmatpush1.bf16.msra.mxu0 %v290
  %395 = vmatprep.subr.bf16.mxu0 0
  %396 = vmatpush1.bf16.msra.mxu0 %v291
  %397 = vmatprep.subr.bf16.mxu0 0
  %398 = vmatpush1.bf16.msra.mxu0 %v292
  %399 = vmatprep.subr.bf16.mxu0 0
  %400 = vmatpush1.bf16.msra.mxu0 %v293
  %401 = vmatprep.subr.bf16.mxu0 0
  %402 = vmatpush1.bf16.msra.mxu0 %v294
  %403 = vmatprep.subr.bf16.mxu0 0
  %404 = vmatpush1.bf16.msra.mxu0 %v295
  %405 = vmatprep.subr.bf16.mxu0 0
  %406 = vmatpush1.bf16.msra.mxu0 %v296
  %407 = vmatprep.subr.bf16.mxu0 0
  %408 = vmatpush1.bf16.msra.mxu0 %v297
  %409 = vmatprep.subr.bf16.mxu0 0
  %410 = vmatpush1.bf16.msra.mxu0 %v298
  %411 = vmatprep.subr.bf16.mxu0 0
  %412 = vmatpush1.bf16.msra.mxu0 %v299
  %413 = vmatprep.mubr.bf16.mxu0 %v127
  %414 = vmatmul.mubr.bf16.gmra.mrb[0].mxu0 %v126
  %v415 = vpop.f32.mrb[0].mxu0
  %v416 = vadd.f32 %v367, %v415
  %v417 = vpop.f32.mrb[0].mxu0
  %v418 = vpop.f32.mrb[0].mxu0
  %v419 = vadd.f32 %v370, %v418
  %v420 = vpop.f32.mrb[0].mxu0
  %421 = vmatprep.mubr.bf16.mxu0 %v131
  %422 = vmatmul.mubr.bf16.gmra.mrb[0].mxu0 %v130
  %v423 = vpop.f32.mrb[0].mxu0
  %v424 = vadd.f32 %v375, %v423
  %v425 = vpop.f32.mrb[0].mxu0
  %v426 = vpop.f32.mrb[0].mxu0
  %v427 = vadd.f32 %v378, %v426
  %v428 = vpop.f32.mrb[0].mxu0
  %429 = vdwg.mxu0
  %v430 = vadd.f32 %v24, %v416
  %v431 = vadd.f32 %v25, %v419
  %v432 = vadd.f32 %v26, %v424
  %v433 = vadd.f32 %v27, %v427
  %vm434 = vcmask 523264
  %435 = vst.msk [vmem:[#allocation2] sm:$0xff] %vm434, %v430
  %436 = vst.msk [vmem:[#allocation2 + $0x8] sm:$0xff] %vm434, %v431
  %437 = vst.msk [vmem:[#allocation2 + $0x10] sm:$0xff] %vm434, %v432
  %438 = vst.msk [vmem:[#allocation2 + $0x18] sm:$0xff] %vm434, %v433
  // Predicated region
  $region18: #{multiscale_forward.42} parent=0 // pred_check
    %p439 = pneg %p15
  $region19: #{multiscale_forward.42} parent=0 // pred_check_branch
    %441 = sbr.rel (%p439) target = $region21
  $region20: #{multiscale_forward.42} parent=0 // pred_region
    %v442 = vld [vmem:[#allocation2] sm:$0xff]
    %v443 = vld [vmem:[#allocation2 + $0x8] sm:$0xff]
    %v444 = vld [vmem:[#allocation2 + $0x10] sm:$0xff]
    %v445 = vld [vmem:[#allocation2 + $0x18] sm:$0xff]
    %v446 = vld [vmem:[%s2] sm:$0x1]
    %v448 = vlaneseq
    %v449 = vshrl.u32 %v448, 7
    %v450 = vsub.s32 0, %v449
    %v451 = vrot.slane %v446, %v450
    %v453 = vadd.f32 %v442, %v451
    %v454 = vadd.f32 %v443, %v451
    %v455 = vadd.f32 %v444, %v451
    %v456 = vadd.f32 %v445, %v451
    %457 = vst.msk [vmem:[%s3] sm:$0xff] %vm434, %v453
    %458 = vst.msk [vmem:[%s3 + $0x8] sm:$0xff] %vm434, %v454
    %459 = vst.msk [vmem:[%s3 + $0x10] sm:$0xff] %vm434, %v455
    %460 = vst.msk [vmem:[%s3 + $0x18] sm:$0xff] %vm434, %v456
  $region21: #{multiscale_forward.42} parent=0 // pred_fallthru
    _
  // Predicated region
  $region22: #{multiscale_forward.42} parent=0 // pred_check
    _
  $region23: #{multiscale_forward.42} parent=0 // pred_check_branch
    %462 = sbr.rel (0) target = $region25
  $region24: #{multiscale_forward.42} parent=0 // pred_region
    _
  $region25: #{multiscale_forward.42} parent=0 // pred_fallthru
    _
  // Predicated region
  $region26: #{multiscale_forward.42} parent=0 // pred_check
    _
  $region27: #{multiscale_forward.42} parent=0 // pred_check_branch
    %464 = sbr.rel (0) target = $region29
  $region28: #{multiscale_forward.42} parent=0 // pred_region
    _
  $region29: #{multiscale_forward.42} parent=0 // pred_fallthru
    _

// kernel: multiscale_forward.45
$region0: #{multiscale_forward.45}
  #allocation0 [shape = 'u32[]', space=smem, size = 0x4, offset = 0x4, fixed_abs, tag = 'smem constant byte address 0x4 - core index']
  #allocation1 [shape = 'u32[144,128]{1,0:T(1,128)}', space=vmem, size = 0x12000, scoped, tag = 'internal scratch']
  #allocation2 [shape = 'f32[50,128]{1,0:T(8,128)}', space=vmem, size = 0x7000, scoped, tag = 'scratch operand']
  %s0 = inlined_call_operand.vmem [shape: bf16[50,1024], index: 0, kind: input, shape index: {}]
  %s1 = inlined_call_operand.vmem [shape: bf16[1024,128], index: 1, kind: input, shape index: {}]
  %s2 = inlined_call_operand.vmem [shape: f32[1,128], index: 2, kind: input, shape index: {}]
  %s3 = inlined_call_operand.vmem [shape: f32[50,128], index: 3, kind: output, shape index: {}]
  %s4 = sld [smem:[#allocation0]]
  $region76: #{multiscale_forward.45} parent=0
    _
  %s6 = ssub.s32 1, %s4
  %s7 = scalar_select 0, %s6, %s4
  $region1: #{multiscale_forward.45} parent=0
    #allocation3 [shape = 'u8[114688]{0}', space=vmem, size = 0x1c000, scoped, tag = 'input window, operand 0']
    loop: start=0, step=1, limit=4
    $region2: #{multiscale_forward.45} parent=1 // loop_pre_header
      _
    $region3: #{multiscale_forward.45} parent=1 // loop_header
      %s9 = sphi 0, %s13
      %p10 = scmp.ge.s32.totalorder %s9, 4
      %s16 = sphi 0, %s35
      %s17 = sphi 0, %s31
      %s18 = sphi 0, %s27
      %s19 = sphi 0, %s16
      %s20 = sphi 0, %s17
      %s21 = sphi 0, %s18
      %s22 = sphi 0, %s19
      %s23 = sphi 0, %s20
      %s24 = sphi 0, %s21
      %s40 = sphi 0, %s42
      %s43 = sphi 0, %s40
      %s44 = sphi 0, %s43
      %s60 = sphi 0, %s44
      %s68 = sphi 0, %s70
      %s71 = sphi 0, %s68
      %s72 = sphi 0, %s71
      %s88 = sphi 0, %s72
      %s94 = sphi 0, %s96
      %s97 = sphi 0, %s94
      %s98 = sphi 0, %s97
      %s114 = sphi 0, %s98
      %s122 = sphi 0, %s124
      %s125 = sphi 0, %s122
      %s126 = sphi 0, %s125
      %s142 = sphi 0, %s126
    $region4: #{multiscale_forward.45} parent=1 // loop_header_branch
      %12 = sbr.rel (%p10) target = $region8
    $region5: #{multiscale_forward.45} parent=1 // loop_body
      %s14 = ssub.s32 %s9, 1
      %s15 = ssub.s32 %s9, 2
      %s25 = sadd.s32 1, %s18
      %p26 = scmp.ge.s32.totalorder %s25, 2
      %s27 = scalar_select %p26, 0, %s25
      %s28 = sadd.s32 1, %s17
      %s29 = scalar_select %p26, %s28, %s17
      %p30 = scmp.ge.s32.totalorder %s29, 1
      %s31 = scalar_select %p30, 0, %s29
      %s32 = sadd.s32 1, %s16
      %s33 = scalar_select %p30, %s32, %s16
      %p34 = scmp.ge.s32.totalorder %s33, 1
      %s35 = scalar_select %p34, 0, %s33
      %s36 = ssub.s32 %s16, %s35
      %s37 = ssub.s32 %s18, %s27
      %s38 = sor.u32 %s36, %s37
      %p39 = scmp.eq.s32.totalorder %s38, 0
      %s41 = sadd.s32 %s40, 1
      %s42 = scalar_select %p39, %s40, %s41
      %p45 = pneg %p39
      %p46 = scmp.eq.s32.totalorder %s9, 1
      %p47 = por %p45, %p46
      %p48 = scmp.ne.s32.totalorder %s40, %s43
      %p49 = scmp.eq.s32.totalorder %s9, 0
      %p50 = por %p48, %p49
      %p51 = scmp.ne.s32.totalorder %s40, %s43
      %p52 = scmp.eq.s32.totalorder %s14, 1
      %p53 = por %p51, %p52
      %p54 = scmp.ne.s32.totalorder %s43, %s44
      %p55 = scmp.eq.s32.totalorder %s14, 0
      %p56 = por %p54, %p55
      %p57 = scmp.ne.s32.totalorder %s43, %s44
      %p58 = scmp.eq.s32.totalorder %s15, 1
      %p59 = por %p57, %p58
      %p61 = scmp.ne.s32.totalorder %s44, %s60
      %p62 = scmp.eq.s32.totalorder %s15, 0
      %p63 = por %p61, %p62
      %s64 = ssub.s32 %s18, %s27
      %s65 = ssub.s32 %s17, %s31
      %s66 = sor.u32 %s64, %s65
      %p67 = scmp.eq.s32.totalorder %s66, 0
      %s69 = sadd.s32 %s68, 1
      %s70 = scalar_select %p67, %s68, %s69
      %p73 = pneg %p67
      %p74 = scmp.eq.s32.totalorder %s9, 1
      %p75 = por %p73, %p74
      %p76 = scmp.ne.s32.totalorder %s68, %s71
      %p77 = scmp.eq.s32.totalorder %s9, 0
      %p78 = por %p76, %p77
      %p79 = scmp.ne.s32.totalorder %s68, %s71
      %p80 = scmp.eq.s32.totalorder %s14, 1
      %p81 = por %p79, %p80
      %p82 = scmp.ne.s32.totalorder %s71, %s72
      %p83 = scmp.eq.s32.totalorder %s14, 0
      %p84 = por %p82, %p83
      %p85 = scmp.ne.s32.totalorder %s71, %s72
      %p86 = scmp.eq.s32.totalorder %s15, 1
      %p87 = por %p85, %p86
      %p89 = scmp.ne.s32.totalorder %s72, %s88
      %p90 = scmp.eq.s32.totalorder %s15, 0
      %p91 = por %p89, %p90
      %s92 = ssub.s32 %s17, %s31
      %p93 = scmp.eq.s32.totalorder %s92, 0
      %s95 = sadd.s32 %s94, 1
      %s96 = scalar_select %p93, %s94, %s95
      %p99 = pneg %p93
      %p100 = scmp.eq.s32.totalorder %s9, 1
      %p101 = por %p99, %p100
      %p102 = scmp.ne.s32.totalorder %s94, %s97
      %p103 = scmp.eq.s32.totalorder %s9, 0
      %p104 = por %p102, %p103
      %p105 = scmp.ne.s32.totalorder %s94, %s97
      %p106 = scmp.eq.s32.totalorder %s14, 1
      %p107 = por %p105, %p106
      %p108 = scmp.ne.s32.totalorder %s97, %s98
      %p109 = scmp.eq.s32.totalorder %s14, 0
      %p110 = por %p108, %p109
      %p111 = scmp.ne.s32.totalorder %s97, %s98
      %p112 = scmp.eq.s32.totalorder %s15, 1
      %p113 = por %p111, %p112
      %p115 = scmp.ne.s32.totalorder %s98, %s114
      %p116 = scmp.eq.s32.totalorder %s15, 0
      %p117 = por %p115, %p116
      %s118 = ssub.s32 %s16, %s35
      %s119 = ssub.s32 %s17, %s31
      %s120 = sor.u32 %s118, %s119
      %p121 = scmp.eq.s32.totalorder %s120, 0
      %s123 = sadd.s32 %s122, 1
      %s124 = scalar_select %p121, %s122, %s123
      %p127 = pneg %p121
      %p128 = scmp.eq.s32.totalorder %s9, 1
      %p129 = por %p127, %p128
      %p130 = scmp.ne.s32.totalorder %s122, %s125
      %p131 = scmp.eq.s32.totalorder %s9, 0
      %p132 = por %p130, %p131
      %p133 = scmp.ne.s32.totalorder %s122, %s125
      %p134 = scmp.eq.s32.totalorder %s14, 1
      %p135 = por %p133, %p134
      %p136 = scmp.ne.s32.totalorder %s125, %s126
      %p137 = scmp.eq.s32.totalorder %s14, 0
      %p138 = por %p136, %p137
      %p139 = scmp.ne.s32.totalorder %s125, %s126
      %p140 = scmp.eq.s32.totalorder %s15, 1
      %p141 = por %p139, %p140
      %p143 = scmp.ne.s32.totalorder %s126, %s142
      %p144 = scmp.eq.s32.totalorder %s15, 0
      %p145 = por %p143, %p144
      %p146 = scmp.le.s32.totalorder 1, %s9
      %p147 = scmp.lt.s32.totalorder %s9, 3
      %p148 = pnand %p146, %p147
      %p149 = pneg %p148
      // Predicated region
      $region9: #{multiscale_forward.45} parent=5 // pred_check
        _
      $region10: #{multiscale_forward.45} parent=5 // pred_check_branch
        %151 = sbr.rel (%p148) target = $region12
      $region11: #{multiscale_forward.45} parent=5 // pred_region
        %s152 = ssub.s32 %s9, 1
        // Predicated region
        $region13: #{multiscale_forward.45} parent=11 // pred_check
          %p153 = pneg %p110
        $region14: #{multiscale_forward.45} parent=11 // pred_check_branch
          %155 = sbr.rel (%p153) target = $region16
        $region15: #{multiscale_forward.45} parent=11 // pred_region
          %p156 = scmp.lt.s32.totalorder %s20, 0
          %s157 = scalar_select %p156, %s20, 0
          %s158 = scalar_lea.vmem %s2, %s157
        $region16: #{multiscale_forward.45} parent=11 // pred_fallthru
          _
      $region12: #{multiscale_forward.45} parent=5 // pred_fallthru
        _
      %p159 = scmp.lt.s32.totalorder %s9, 2
      // Predicated region
      $region17: #{multiscale_forward.45} parent=5 // pred_check
        %p160 = pneg %p159
      $region18: #{multiscale_forward.45} parent=5 // pred_check_branch
        %162 = sbr.rel (%p160) target = $region20
      $region19: #{multiscale_forward.45} parent=5 // pred_region
        // Predicated region
        $region21: #{multiscale_forward.45} parent=19 // pred_check
          %p163 = pneg %p50
        $region22: #{multiscale_forward.45} parent=19 // pred_check_branch
          %165 = sbr.rel (%p163) target = $region24
        $region23: #{multiscale_forward.45} parent=19 // pred_region
          %s166 = sand.u32 %s40, 1
          %s167 = sand.u32 %s40, 1
          %s168 = smul.addr %s167, 112
          %s169 = scalar_lea.vmem [#allocation3], %s168
          %s170 = smul.u32 7, %s16
          %s171 = smul.u32 4, %s18
          %s172 = smul.addr %s170, 8
          %s173 = sadd.s32 %s171, %s172
          %s174 = smul.addr %s173, 4
          %s175 = scalar_lea.vmem %s0, %s174
          // Predicated region
          $region25: #{multiscale_forward.45} parent=23 // pred_check
            _
          $region26: #{multiscale_forward.45} parent=23 // pred_check_branch
            %177 = sbr.rel (0) target = $region28
          $region27: #{multiscale_forward.45} parent=23 // pred_region
            // Predicated region
            $region29: #{multiscale_forward.45} parent=27 // pred_check
              _
            $region30: #{multiscale_forward.45} parent=27 // pred_check_branch
              %179 = sbr.rel (0) target = $region32
            $region31: #{multiscale_forward.45} parent=27 // pred_region
              loop: start=0, step=1, limit=1
              $region33: #{multiscale_forward.45} parent=31 // loop_pre_header
                _
              $region34: #{multiscale_forward.45} parent=31 // loop_header
                %s181 = sphi 0, %s185
                %p182 = scmp.ge.s32.totalorder %s181, 1
                %s186 = sphi %s175, %s175
                %s187 = sphi %s169, %s169
              $region35: #{multiscale_forward.45} parent=31 // loop_header_branch
                %184 = sbr.rel (%p182) target = $region39
              $region36: #{multiscale_forward.45} parent=31 // loop_body
                %v188 = vld [vmem:[%s186] sm:$0xff]
                %189 = vst [vmem:[%s187] sm:$0xff] %v188
                %v190 = vld [vmem:[%s186 + $0x8] sm:$0xff]
                %191 = vst [vmem:[%s187 + $0x8] sm:$0xff] %v190
                %v192 = vld [vmem:[%s186 + $0x20] sm:$0xff]
                %193 = vst [vmem:[%s187 + $0x10] sm:$0xff] %v192
                %v194 = vld [vmem:[%s186 + $0x28] sm:$0xff]
                %195 = vst [vmem:[%s187 + $0x18] sm:$0xff] %v194
                %v196 = vld [vmem:[%s186 + $0x40] sm:$0xff]
                %197 = vst [vmem:[%s187 + $0x20] sm:$0xff] %v196
                %v198 = vld [vmem:[%s186 + $0x48] sm:$0xff]
                %199 = vst [vmem:[%s187 + $0x28] sm:$0xff] %v198
                %v200 = vld [vmem:[%s186 + $0x60] sm:$0xff]
                %201 = vst [vmem:[%s187 + $0x30] sm:$0xff] %v200
                %v202 = vld [vmem:[%s186 + $0x68] sm:$0xff]
                %203 = vst [vmem:[%s187 + $0x38] sm:$0xff] %v202
                %v204 = vld [vmem:[%s186 + $0x80] sm:$0xff]
                %205 = vst [vmem:[%s187 + $0x40] sm:$0xff] %v204
                %v206 = vld [vmem:[%s186 + $0x88] sm:$0xff]
                %207 = vst [vmem:[%s187 + $0x48] sm:$0xff] %v206
                %v208 = vld [vmem:[%s186 + $0xa0] sm:$0xff]
                %209 = vst [vmem:[%s187 + $0x50] sm:$0xff] %v208
                %v210 = vld [vmem:[%s186 + $0xa8] sm:$0xff]
                %211 = vst [vmem:[%s187 + $0x58] sm:$0xff] %v210
                %v212 = vld [vmem:[%s186 + $0xc0] sm:$0xff]
                %213 = vst [vmem:[%s187 + $0x60] sm:$0xff] %v212
                %v214 = vld [vmem:[%s186 + $0xc8] sm:$0xff]
                %215 = vst [vmem:[%s187 + $0x68] sm:$0xff] %v214
              $region37: #{multiscale_forward.45} parent=31 // loop_footer
                %s185 = sadd.s32 1, %s181
              $region38: #{multiscale_forward.45} parent=31 // loop_footer_branch
                %180 = sbr.rel target = $region34
              $region39: #{multiscale_forward.45} parent=31 // loop_exit
                _
            $region32: #{multiscale_forward.45} parent=27 // pred_fallthru
              _
            // Predicated region
            $region40: #{multiscale_forward.45} parent=27 // pred_check
              _
            $region41: #{multiscale_forward.45} parent=27 // pred_check_branch
              %217 = sbr.rel target = $region43
            $region42: #{multiscale_forward.45} parent=27 // pred_region
              _
            $region43: #{multiscale_forward.45} parent=27 // pred_fallthru
              _
          $region28: #{multiscale_forward.45} parent=23 // pred_fallthru
            _
          %218 = vnop
        $region24: #{multiscale_forward.45} parent=19 // pred_fallthru
          _
        // Predicated region
        $region44: #{multiscale_forward.45} parent=19 // pred_check
          %p219 = pneg %p78
        $region45: #{multiscale_forward.45} parent=19 // pred_check_branch
          %221 = sbr.rel (%p219) target = $region47
        $region46: #{multiscale_forward.45} parent=19 // pred_region
          %s222 = smul.u32 64, %s18
          %p223 = scmp.lt.s32.totalorder %s222, 127
          %s224 = scalar_select %p223, %s222, 127
          %p225 = scmp.lt.s32.totalorder %s17, 0
          %s226 = scalar_select %p225, %s17, 0
          %s227 = sadd.s32 %s226, %s224
          %s228 = smul.addr %s227, 4
          %s229 = scalar_lea.vmem %s1, %s228
          %s230 = smul.u32 64, %s18
        $region47: #{multiscale_forward.45} parent=19 // pred_fallthru
          _
      $region20: #{multiscale_forward.45} parent=5 // pred_fallthru
        _
      %p231 = scmp.le.s32.totalorder 1, %s9
      %p232 = scmp.lt.s32.totalorder %s9, 3
      %p233 = pnand %p231, %p232
      %p234 = pneg %p233
      // Predicated region
      $region48: #{multiscale_forward.45} parent=5 // pred_check
        _
      $region49: #{multiscale_forward.45} parent=5 // pred_check_branch
        %236 = sbr.rel (%p233) target = $region51
      $region50: #{multiscale_forward.45} parent=5 // pred_region
        %s237 = ssub.s32 %s9, 1
        %s238 = sand.u32 %s43, 1
        %s239 = sand.u32 %s43, 1
        %s240 = smul.addr %s239, 112
        %s241 = scalar_lea.vmem [#allocation3], %s240
        // Predicated region
        $region52: #{multiscale_forward.45} parent=50 // pred_check
          %p242 = pneg %p56
        $region53: #{multiscale_forward.45} parent=50 // pred_check_branch
          %244 = sbr.rel (%p242) target = $region55
        $region54: #{multiscale_forward.45} parent=50 // pred_region
          _
        $region55: #{multiscale_forward.45} parent=50 // pred_fallthru
          _
        %s245 = sand.u32 %s43, 1
        %s246 = sand.u32 %s43, 1
        %s247 = smul.addr %s246, 112
        %s248 = scalar_lea.vmem [#allocation3], %s247
        %p249 = pneg %p56
        %p250 = pneg %p53
        %s251 = smul.u32 64, %s21
        %p252 = scmp.lt.s32.totalorder %s251, 127
        %s253 = scalar_select %p252, %s251, 127
        %p254 = scmp.lt.s32.totalorder %s20, 0
        %s255 = scalar_select %p254, %s20, 0
        %s256 = sadd.s32 %s255, %s253
        %s257 = smul.addr %s256, 4
        %s258 = scalar_lea.vmem %s1, %s257
        %p259 = pneg %p84
        %p260 = pneg %p81
        %p261 = scmp.lt.s32.totalorder %s20, 0
        %s262 = scalar_select %p261, %s20, 0
        %s263 = scalar_lea.vmem %s2, %s262
        %p264 = pneg %p110
        %p265 = pneg %p107
        %p266 = pneg %p138
        %p267 = pneg %p135
        %s268 = smul.u32 7, %s19
        %p269 = scmp.lt.s32.totalorder %s268, 6
        %s270 = scalar_select %p269, %s268, 6
        %p271 = scmp.lt.s32.totalorder %s20, 0
        %s272 = scalar_select %p271, %s20, 0
        %s273 = sadd.s32 %s272, %s270
        %s274 = smul.addr %s273, 8
        %s275 = scalar_lea.vmem %s3, %s274
        %s276 = smul.u32 7, %s19
        %s277 = smul.u32 4, %s21
        %s278 = smul.u32 64, %s21
        %p279 = scmp.lt.s32.totalorder %s278, 127
        %s280 = scalar_select %p279, %s278, 127
        %p281 = scmp.lt.s32.totalorder %s20, 0
        %s282 = scalar_select %p281, %s20, 0
        %s283 = sadd.s32 %s282, %s280
        %s284 = smul.addr %s283, 4
        %s285 = scalar_lea.vmem %s1, %s284
        %s286 = smul.u32 64, %s21
        %p287 = scmp.lt.s32.totalorder %s20, 0
        %s288 = scalar_select %p287, %s20, 0
        %s289 = scalar_lea.vmem %s2, %s288
        %s290 = smul.u32 7, %s19
        %p291 = scmp.lt.s32.totalorder %s290, 6
        %s292 = scalar_select %p291, %s290, 6
        %p293 = scmp.lt.s32.totalorder %s20, 0
        %s294 = scalar_select %p293, %s20, 0
        %s295 = sadd.s32 %s294, %s292
        %s296 = smul.addr %s295, 8
        %s297 = scalar_lea.vmem %s3, %s296
        %s298 = smul.u32 7, %s19
        %p300 = scmp.eq.s32.totalorder %s21, 0
        // Predicated region
        $region56: #{multiscale_forward.45} parent=50 // pred_check
          %p301 = pneg %p300
        $region57: #{multiscale_forward.45} parent=50 // pred_check_branch
          %303 = sbr.rel (%p301) target = $region59
        $region58: #{multiscale_forward.45} parent=50 // pred_region
          %304 = vst [vmem:[#allocation2] sm:$0xff] 0.0
          %305 = vst [vmem:[#allocation2 + $0x8] sm:$0xff] 0.0
          %306 = vst [vmem:[#allocation2 + $0x10] sm:$0xff] 0.0
          %307 = vst [vmem:[#allocation2 + $0x18] sm:$0xff] 0.0
          %308 = vst [vmem:[#allocation2 + $0x20] sm:$0xff] 0.0
          %309 = vst [vmem:[#allocation2 + $0x28] sm:$0xff] 0.0
          %310 = vst [vmem:[#allocation2 + $0x30] sm:$0x3] 0.0
        $region59: #{multiscale_forward.45} parent=50 // pred_fallthru
          _
        %v311 = vld [vmem:[#allocation2] sm:$0xff]
        %v312 = vld [vmem:[#allocation2 + $0x8] sm:$0xff]
        %v313 = vld [vmem:[#allocation2 + $0x10] sm:$0xff]
        %v314 = vld [vmem:[#allocation2 + $0x18] sm:$0xff]
        %v315 = vld [vmem:[#allocation2 + $0x20] sm:$0xff]
        %v316 = vld [vmem:[#allocation2 + $0x28] sm:$0xff]
        %v317 = vld [vmem:[#allocation2 + $0x30] sm:$0x3]
        %v318 = vld [vmem:[%s241] sm:$0xff]
        %v319 = vld [vmem:[%s241 + $0x8] sm:$0xff]
        %v320 = vld [vmem:[%s241 + $0x10] sm:$0xff]
        %v321 = vld [vmem:[%s241 + $0x18] sm:$0xff]
        %v322 = vld [vmem:[%s241 + $0x20] sm:$0xff]
        %v323 = vld [vmem:[%s241 + $0x28] sm:$0xff]
        %v324 = vld [vmem:[%s241 + $0x30] sm:$0xff]
        %v325 = vld [vmem:[%s241 + $0x38] sm:$0xff]
        %v326 = vld [vmem:[%s241 + $0x40] sm:$0xff]
        %v327 = vld [vmem:[%s241 + $0x48] sm:$0xff]
        %v328 = vld [vmem:[%s241 + $0x50] sm:$0xff]
        %v329 = vld [vmem:[%s241 + $0x58] sm:$0xff]
        %v330 = vld [vmem:[%s241 + $0x60] sm:$0x11]
        %v331 = vld [vmem:[%s241 + $0x68] sm:$0x11]
        %v332 = vld [vmem:[%s285] sm:$0xf]
        %v333 = vld [vmem:[%s285 + $0x4] sm:$0xf]
        %v334 = vld [vmem:[%s285 + $0x8] sm:$0xf]
        %v335 = vld [vmem:[%s285 + $0xc] sm:$0xf]
        %v336 = vld [vmem:[%s285 + $0x10] sm:$0xf]
        %v337 = vld [vmem:[%s285 + $0x14] sm:$0xf]
        %v338 = vld [vmem:[%s285 + $0x18] sm:$0xf]
        %v339 = vld [vmem:[%s285 + $0x1c] sm:$0xf]
        %v340 = vld [vmem:[%s285 + $0x20] sm:$0xf]
        %v341 = vld [vmem:[%s285 + $0x24] sm:$0xf]
        %v342 = vld [vmem:[%s285 + $0x28] sm:$0xf]
        %v343 = vld [vmem:[%s285 + $0x2c] sm:$0xf]
        %v344 = vld [vmem:[%s285 + $0x30] sm:$0xf]
        %v345 = vld [vmem:[%s285 + $0x34] sm:$0xf]
        %v346 = vld [vmem:[%s285 + $0x38] sm:$0xf]
        %v347 = vld [vmem:[%s285 + $0x3c] sm:$0xf]
        %v348 = vld [vmem:[%s285 + $0x40] sm:$0xf]
        %v349 = vld [vmem:[%s285 + $0x44] sm:$0xf]
        %v350 = vld [vmem:[%s285 + $0x48] sm:$0xf]
        %v351 = vld [vmem:[%s285 + $0x4c] sm:$0xf]
        %v352 = vld [vmem:[%s285 + $0x50] sm:$0xf]
        %v353 = vld [vmem:[%s285 + $0x54] sm:$0xf]
        %v354 = vld [vmem:[%s285 + $0x58] sm:$0xf]
        %v355 = vld [vmem:[%s285 + $0x5c] sm:$0xf]
        %v356 = vld [vmem:[%s285 + $0x60] sm:$0xf]
        %v357 = vld [vmem:[%s285 + $0x64] sm:$0xf]
        %v358 = vld [vmem:[%s285 + $0x68] sm:$0xf]
        %v359 = vld [vmem:[%s285 + $0x6c] sm:$0xf]
        %v360 = vld [vmem:[%s285 + $0x70] sm:$0xf]
        %v361 = vld [vmem:[%s285 + $0x74] sm:$0xf]
        %v362 = vld [vmem:[%s285 + $0x78] sm:$0xf]
        %v363 = vld [vmem:[%s285 + $0x7c] sm:$0xf]
        %v364 = vld [vmem:[%s285 + $0x80] sm:$0xf]
        %v365 = vld [vmem:[%s285 + $0x84] sm:$0xf]
        %v366 = vld [vmem:[%s285 + $0x88] sm:$0xf]
        %v367 = vld [vmem:[%s285 + $0x8c] sm:$0xf]
        %v368 = vld [vmem:[%s285 + $0x90] sm:$0xf]
        %v369 = vld [vmem:[%s285 + $0x94] sm:$0xf]
        %v370 = vld [vmem:[%s285 + $0x98] sm:$0xf]
        %v371 = vld [vmem:[%s285 + $0x9c] sm:$0xf]
        %v372 = vld [vmem:[%s285 + $0xa0] sm:$0xf]
        %v373 = vld [vmem:[%s285 + $0xa4] sm:$0xf]
        %v374 = vld [vmem:[%s285 + $0xa8] sm:$0xf]
        %v375 = vld [vmem:[%s285 + $0xac] sm:$0xf]
        %v376 = vld [vmem:[%s285 + $0xb0] sm:$0xf]
        %v377 = vld [vmem:[%s285 + $0xb4] sm:$0xf]
        %v378 = vld [vmem:[%s285 + $0xb8] sm:$0xf]
        %v379 = vld [vmem:[%s285 + $0xbc] sm:$0xf]
        %v380 = vld [vmem:[%s285 + $0xc0] sm:$0xf]
        %v381 = vld [vmem:[%s285 + $0xc4] sm:$0xf]
        %v382 = vld [vmem:[%s285 + $0xc8] sm:$0xf]
        %v383 = vld [vmem:[%s285 + $0xcc] sm:$0xf]
        %v384 = vld [vmem:[%s285 + $0xd0] sm:$0xf]
        %v385 = vld [vmem:[%s285 + $0xd4] sm:$0xf]
        %v386 = vld [vmem:[%s285 + $0xd8] sm:$0xf]
        %v387 = vld [vmem:[%s285 + $0xdc] sm:$0xf]
        %v388 = vld [vmem:[%s285 + $0xe0] sm:$0xf]
        %v389 = vld [vmem:[%s285 + $0xe4] sm:$0xf]
        %v390 = vld [vmem:[%s285 + $0xe8] sm:$0xf]
        %v391 = vld [vmem:[%s285 + $0xec] sm:$0xf]
        %v392 = vld [vmem:[%s285 + $0xf0] sm:$0xf]
        %v393 = vld [vmem:[%s285 + $0xf4] sm:$0xf]
        %v394 = vld [vmem:[%s285 + $0xf8] sm:$0xf]
        %v395 = vld [vmem:[%s285 + $0xfc] sm:$0xf]
        %v410 = vunpack.c.l.b16 %v318
        %v411 = vunpack.c.h.b16 %v318
        %v412 = vunpack.c.l.b16 %v319
        %v413 = vunpack.c.h.b16 %v319
        %v414 = vunpack.c.l.b16 %v320
        %v415 = vunpack.c.h.b16 %v320
        %v416 = vunpack.c.l.b16 %v321
        %v417 = vunpack.c.h.b16 %v321
        %v418 = vunpack.c.l.b16 %v322
        %v419 = vunpack.c.h.b16 %v322
        %v420 = vunpack.c.l.b16 %v323
        %v421 = vunpack.c.h.b16 %v323
        %v422 = vunpack.c.l.b16 %v324
        %v423 = vunpack.c.h.b16 %v324
        %v424 = vunpack.c.l.b16 %v325
        %v425 = vunpack.c.h.b16 %v325
        %v426 = vunpack.c.l.b16 %v326
        %v427 = vunpack.c.h.b16 %v326
        %v428 = vunpack.c.l.b16 %v327
        %v429 = vunpack.c.h.b16 %v327
        %v430 = vunpack.c.l.b16 %v328
        %v431 = vunpack.c.h.b16 %v328
        %v432 = vunpack.c.l.b16 %v329
        %v433 = vunpack.c.h.b16 %v329
        %v434 = vunpack.c.l.b16 %v330
        %v435 = vunpack.c.h.b16 %v330
        %v436 = vunpack.c.l.b16 %v331
        %v437 = vunpack.c.h.b16 %v331
        %v438 = vpack.c.b16 %v414, %v410
        %v439 = vpack.c.b16 %v415, %v411
        %v440 = vpack.c.b16 %v416, %v412
        %v441 = vpack.c.b16 %v417, %v413
        %v442 = vpack.c.b16 %v422, %v418
        %v443 = vpack.c.b16 %v423, %v419
        %v444 = vpack.c.b16 %v424, %v420
        %v445 = vpack.c.b16 %v425, %v421
        %v446 = vpack.c.b16 %v430, %v426
        %v447 = vpack.c.b16 %v431, %v427
        %v448 = vpack.c.b16 %v432, %v428
        %v449 = vpack.c.b16 %v433, %v429
        %v450 = vpack.c.b16 %v434, %v434
        %v451 = vpack.c.b16 %v435, %v435
        %v452 = vpack.c.b16 %v436, %v436
        %v453 = vpack.c.b16 %v437, %v437
        %v534 = vunpack.c.l.b16 %v332
        %v535 = vunpack.c.l.b16 %v333
        %v536 = vunpack.c.l.b16 %v334
        %v537 = vunpack.c.l.b16 %v335
        %v538 = vunpack.c.l.b16 %v336
        %v539 = vunpack.c.l.b16 %v337
        %v540 = vunpack.c.l.b16 %v338
        %v541 = vunpack.c.l.b16 %v339
        %v542 = vunpack.c.l.b16 %v340
        %v543 = vunpack.c.l.b16 %v341
        %v544 = vunpack.c.l.b16 %v342
        %v545 = vunpack.c.l.b16 %v343
        %v546 = vunpack.c.l.b16 %v344
        %v547 = vunpack.c.l.b16 %v345
        %v548 = vunpack.c.l.b16 %v346
        %v549 = vunpack.c.l.b16 %v347
        %v550 = vunpack.c.l.b16 %v348
        %v551 = vunpack.c.l.b16 %v349
        %v552 = vunpack.c.l.b16 %v350
        %v553 = vunpack.c.l.b16 %v351
        %v554 = vunpack.c.l.b16 %v352
        %v555 = vunpack.c.l.b16 %v353
        %v556 = vunpack.c.l.b16 %v354
        %v557 = vunpack.c.l.b16 %v355
        %v558 = vunpack.c.l.b16 %v356
        %v559 = vunpack.c.l.b16 %v357
        %v560 = vunpack.c.l.b16 %v358
        %v561 = vunpack.c.l.b16 %v359
        %v562 = vunpack.c.l.b16 %v360
        %v563 = vunpack.c.l.b16 %v361
        %v564 = vunpack.c.l.b16 %v362
        %v565 = vunpack.c.l.b16 %v363
        %v566 = vunpack.c.l.b16 %v364
        %v567 = vunpack.c.l.b16 %v365
        %v568 = vunpack.c.l.b16 %v366
        %v569 = vunpack.c.l.b16 %v367
        %v570 = vunpack.c.l.b16 %v368
        %v571 = vunpack.c.l.b16 %v369
        %v572 = vunpack.c.l.b16 %v370
        %v573 = vunpack.c.l.b16 %v371
        %v574 = vunpack.c.l.b16 %v372
        %v575 = vunpack.c.l.b16 %v373
        %v576 = vunpack.c.l.b16 %v374
        %v577 = vunpack.c.l.b16 %v375
        %v578 = vunpack.c.l.b16 %v376
        %v579 = vunpack.c.l.b16 %v377
        %v580 = vunpack.c.l.b16 %v378
        %v581 = vunpack.c.l.b16 %v379
        %v582 = vunpack.c.l.b16 %v380
        %v583 = vunpack.c.l.b16 %v381
        %v584 = vunpack.c.l.b16 %v382
        %v585 = vunpack.c.l.b16 %v383
        %v586 = vunpack.c.l.b16 %v384
        %v587 = vunpack.c.l.b16 %v385
        %v588 = vunpack.c.l.b16 %v386
        %v589 = vunpack.c.l.b16 %v387
        %v590 = vunpack.c.l.b16 %v388
        %v591 = vunpack.c.l.b16 %v389
        %v592 = vunpack.c.l.b16 %v390
        %v593 = vunpack.c.l.b16 %v391
        %v594 = vunpack.c.l.b16 %v392
        %v595 = vunpack.c.l.b16 %v393
        %v596 = vunpack.c.l.b16 %v394
        %v597 = vunpack.c.l.b16 %v395
        %v598 = vpack.c.b16 %v535, %v534
        %v599 = vpack.c.b16 %v537, %v536
        %v600 = vpack.c.b16 %v539, %v538
        %v601 = vpack.c.b16 %v541, %v540
        %v602 = vpack.c.b16 %v543, %v542
        %v603 = vpack.c.b16 %v545, %v544
        %v604 = vpack.c.b16 %v547, %v546
        %v605 = vpack.c.b16 %v549, %v548
        %v606 = vpack.c.b16 %v551, %v550
        %v607 = vpack.c.b16 %v553, %v552
        %v608 = vpack.c.b16 %v555, %v554
        %v609 = vpack.c.b16 %v557, %v556
        %v610 = vpack.c.b16 %v559, %v558
        %v611 = vpack.c.b16 %v561, %v560
        %v612 = vpack.c.b16 %v563, %v562
        %v613 = vpack.c.b16 %v565, %v564
        %v614 = vpack.c.b16 %v567, %v566
        %v615 = vpack.c.b16 %v569, %v568
        %v616 = vpack.c.b16 %v571, %v570
        %v617 = vpack.c.b16 %v573, %v572
        %v618 = vpack.c.b16 %v575, %v574
        %v619 = vpack.c.b16 %v577, %v576
        %v620 = vpack.c.b16 %v579, %v578
        %v621 = vpack.c.b16 %v581, %v580
        %v622 = vpack.c.b16 %v583, %v582
        %v623 = vpack.c.b16 %v585, %v584
        %v624 = vpack.c.b16 %v587, %v586
        %v625 = vpack.c.b16 %v589, %v588
        %v626 = vpack.c.b16 %v591, %v590
        %v627 = vpack.c.b16 %v593, %v592
        %v628 = vpack.c.b16 %v595, %v594
        %v629 = vpack.c.b16 %v597, %v596
        %662 = vmatprep.subr.bf16.mxu0 0
        %663 = vmatpush1.bf16.msra.mxu0 %v598
        %664 = vmatprep.subr.bf16.mxu0 0
        %665 = vmatpush1.bf16.msra.mxu0 %v599
        %666 = vmatprep.subr.bf16.mxu0 0
        %667 = vmatpush1.bf16.msra.mxu0 %v600
        %668 = vmatprep.subr.bf16.mxu0 0
        %669 = vmatpush1.bf16.msra.mxu0 %v601
        %670 = vmatprep.subr.bf16.mxu0 0
        %671 = vmatpush1.bf16.msra.mxu0 %v602
        %672 = vmatprep.subr.bf16.mxu0 0
        %673 = vmatpush1.bf16.msra.mxu0 %v603
        %674 = vmatprep.subr.bf16.mxu0 0
        %675 = vmatpush1.bf16.msra.mxu0 %v604
        %676 = vmatprep.subr.bf16.mxu0 0
        %677 = vmatpush1.bf16.msra.mxu0 %v605
        %678 = vmatprep.subr.bf16.mxu0 0
        %679 = vmatpush1.bf16.msra.mxu0 %v606
        %680 = vmatprep.subr.bf16.mxu0 0
        %681 = vmatpush1.bf16.msra.mxu0 %v607
        %682 = vmatprep.subr.bf16.mxu0 0
        %683 = vmatpush1.bf16.msra.mxu0 %v608
        %684 = vmatprep.subr.bf16.mxu0 0
        %685 = vmatpush1.bf16.msra.mxu0 %v609
        %686 = vmatprep.subr.bf16.mxu0 0
        %687 = vmatpush1.bf16.msra.mxu0 %v610
        %688 = vmatprep.subr.bf16.mxu0 0
        %689 = vmatpush1.bf16.msra.mxu0 %v611
        %690 = vmatprep.subr.bf16.mxu0 0
        %691 = vmatpush1.bf16.msra.mxu0 %v612
        %692 = vmatprep.subr.bf16.mxu0 0
        %693 = vmatpush1.bf16.msra.mxu0 %v613
        %694 = vmatprep.mubr.bf16.mxu0 %v439
        %695 = vmatmul.mubr.bf16.gmra.mrb[0].mxu0 %v438
        %v696 = vpop.f32.mrb[0].mxu0
        %v697 = vadd.f32 0.0, %v696
        %v698 = vpop.f32.mrb[0].mxu0
        %v699 = vpop.f32.mrb[0].mxu0
        %v700 = vadd.f32 0.0, %v699
        %v701 = vpop.f32.mrb[0].mxu0
        %702 = vmatprep.mubr.bf16.mxu0 %v443
        %703 = vmatmul.mubr.bf16.gmra.mrb[0].mxu0 %v442
        %v704 = vpop.f32.mrb[0].mxu0
        %v705 = vadd.f32 0.0, %v704
        %v706 = vpop.f32.mrb[0].mxu0
        %v707 = vpop.f32.mrb[0].mxu0
        %v708 = vadd.f32 0.0, %v707
        %v709 = vpop.f32.mrb[0].mxu0
        %710 = vmatprep.mubr.bf16.mxu0 %v447
        %711 = vmatmul.mubr.bf16.gmra.mrb[0].mxu0 %v446
        %v712 = vpop.f32.mrb[0].mxu0
        %v713 = vadd.f32 0.0, %v712
        %v714 = vpop.f32.mrb[0].mxu0
        %v715 = vpop.f32.mrb[0].mxu0
        %v716 = vadd.f32 0.0, %v715
        %v717 = vpop.f32.mrb[0].mxu0
        %718 = vmatprep.mubr.bf16.mxu0 %v451
        %719 = vmatmul.mubr.bf16.gmra.mrb[0].mxu0 %v450
        %v720 = vpop.f32.mrb[0].mxu0
        %v721 = vadd.f32 0.0, %v720
        %v722 = vpop.f32.mrb[0].mxu0
        %v723 = vpop.f32.mrb[0].mxu0
        %v724 = vpop.f32.mrb[0].mxu0
        %725 = vdwg.mxu0
        %726 = vmatprep.subr.bf16.mxu0 0
        %727 = vmatpush1.bf16.msra.mxu0 %v614
        %728 = vmatprep.subr.bf16.mxu0 0
        %729 = vmatpush1.bf16.msra.mxu0 %v615
        %730 = vmatprep.subr.bf16.mxu0 0
        %731 = vmatpush1.bf16.msra.mxu0 %v616
        %732 = vmatprep.subr.bf16.mxu0 0
        %733 = vmatpush1.bf16.msra.mxu0 %v617
        %734 = vmatprep.subr.bf16.mxu0 0
        %735 = vmatpush1.bf16.msra.mxu0 %v618
        %736 = vmatprep.subr.bf16.mxu0 0
        %737 = vmatpush1.bf16.msra.mxu0 %v619
        %738 = vmatprep.subr.bf16.mxu0 0
        %739 = vmatpush1.bf16.msra.mxu0 %v620
        %740 = vmatprep.subr.bf16.mxu0 0
        %741 = vmatpush1.bf16.msra.mxu0 %v621
        %742 = vmatprep.subr.bf16.mxu0 0
        %743 = vmatpush1.bf16.msra.mxu0 %v622
        %744 = vmatprep.subr.bf16.mxu0 0
        %745 = vmatpush1.bf16.msra.mxu0 %v623
        %746 = vmatprep.subr.bf16.mxu0 0
        %747 = vmatpush1.bf16.msra.mxu0 %v624
        %748 = vmatprep.subr.bf16.mxu0 0
        %749 = vmatpush1.bf16.msra.mxu0 %v625
        %750 = vmatprep.subr.bf16.mxu0 0
        %751 = vmatpush1.bf16.msra.mxu0 %v626
        %752 = vmatprep.subr.bf16.mxu0 0
        %753 = vmatpush1.bf16.msra.mxu0 %v627
        %754 = vmatprep.subr.bf16.mxu0 0
        %755 = vmatpush1.bf16.msra.mxu0 %v628
        %756 = vmatprep.subr.bf16.mxu0 0
        %757 = vmatpush1.bf16.msra.mxu0 %v629
        %758 = vmatprep.mubr.bf16.mxu0 %v441
        %759 = vmatmul.mubr.bf16.gmra.mrb[0].mxu0 %v440
        %v760 = vpop.f32.mrb[0].mxu0
        %v761 = vadd.f32 %v697, %v760
        %v762 = vpop.f32.mrb[0].mxu0
        %v763 = vpop.f32.mrb[0].mxu0
        %v764 = vadd.f32 %v700, %v763
        %v765 = vpop.f32.mrb[0].mxu0
        %766 = vmatprep.mubr.bf16.mxu0 %v445
        %767 = vmatmul.mubr.bf16.gmra.mrb[0].mxu0 %v444
        %v768 = vpop.f32.mrb[0].mxu0
        %v769 = vadd.f32 %v705, %v768
        %v770 = vpop.f32.mrb[0].mxu0
        %v771 = vpop.f32.mrb[0].mxu0
        %v772 = vadd.f32 %v708, %v771
        %v773 = vpop.f32.mrb[0].mxu0
        %774 = vmatprep.mubr.bf16.mxu0 %v449
        %775 = vmatmul.mubr.bf16.gmra.mrb[0].mxu0 %v448
        %v776 = vpop.f32.mrb[0].mxu0
        %v777 = vadd.f32 %v713, %v776
        %v778 = vpop.f32.mrb[0].mxu0
        %v779 = vpop.f32.mrb[0].mxu0
        %v780 = vadd.f32 %v716, %v779
        %v781 = vpop.f32.mrb[0].mxu0
        %782 = vmatprep.mubr.bf16.mxu0 %v453
        %783 = vmatmul.mubr.bf16.gmra.mrb[0].mxu0 %v452
        %v784 = vpop.f32.mrb[0].mxu0
        %v785 = vadd.f32 %v721, %v784
        %v786 = vpop.f32.mrb[0].mxu0
        %v787 = vpop.f32.mrb[0].mxu0
        %v788 = vpop.f32.mrb[0].mxu0
        %789 = vdwg.mxu0
        %v790 = vadd.f32 %v311, %v761
        %v791 = vadd.f32 %v312, %v764
        %v792 = vadd.f32 %v313, %v769
        %v793 = vadd.f32 %v314, %v772
        %v794 = vadd.f32 %v315, %v777
        %v795 = vadd.f32 %v316, %v780
        %v796 = vadd.f32 %v317, %v785
        %797 = vst [vmem:[#allocation2] sm:$0xff] %v790
        %798 = vst [vmem:[#allocation2 + $0x8] sm:$0xff] %v791
        %799 = vst [vmem:[#allocation2 + $0x10] sm:$0xff] %v792
        %800 = vst [vmem:[#allocation2 + $0x18] sm:$0xff] %v793
        %801 = vst [vmem:[#allocation2 + $0x20] sm:$0xff] %v794
        %802 = vst [vmem:[#allocation2 + $0x28] sm:$0xff] %v795
        %803 = vst [vmem:[#allocation2 + $0x30] sm:$0x3] %v796
        %p804 = scmp.eq.s32.totalorder %s21, 1
        // Predicated region
        $region60: #{multiscale_forward.45} parent=50 // pred_check
          %p805 = pneg %p804
        $region61: #{multiscale_forward.45} parent=50 // pred_check_branch
          %807 = sbr.rel (%p805) target = $region63
        $region62: #{multiscale_forward.45} parent=50 // pred_region
          %v808 = vld [vmem:[#allocation2] sm:$0xff]
          %v809 = vld [vmem:[#allocation2 + $0x8] sm:$0xff]
          %v810 = vld [vmem:[#allocation2 + $0x10] sm:$0xff]
          %v811 = vld [vmem:[#allocation2 + $0x18] sm:$0xff]
          %v812 = vld [vmem:[#allocation2 + $0x20] sm:$0xff]
          %v813 = vld [vmem:[#allocation2 + $0x28] sm:$0xff]
          %v814 = vld [vmem:[#allocation2 + $0x30] sm:$0x3]
          %v815 = vld [vmem:[%s289] sm:$0x1]
          %v817 = vlaneseq
          %v818 = vshrl.u32 %v817, 7
          %v819 = vsub.s32 0, %v818
          %v820 = vrot.slane %v815, %v819
          %v822 = vadd.f32 %v808, %v820
          %v823 = vadd.f32 %v809, %v820
          %v824 = vadd.f32 %v810, %v820
          %v825 = vadd.f32 %v811, %v820
          %v826 = vadd.f32 %v812, %v820
          %v827 = vadd.f32 %v813, %v820
          %v828 = vadd.f32 %v814, %v820
          %829 = vst [vmem:[%s297] sm:$0xff] %v822
          %830 = vst [vmem:[%s297 + $0x8] sm:$0xff] %v823
          %831 = vst [vmem:[%s297 + $0x10] sm:$0xff] %v824
          %832 = vst [vmem:[%s297 + $0x18] sm:$0xff] %v825
          %833 = vst [vmem:[%s297 + $0x20] sm:$0xff] %v826
          %834 = vst [vmem:[%s297 + $0x28] sm:$0xff] %v827
          %835 = vst [vmem:[%s297 + $0x30] sm:$0x3] %v828
        $region63: #{multiscale_forward.45} parent=50 // pred_fallthru
          _
        %s836 = smul.u32 7, %s19
        %p837 = scmp.lt.s32.totalorder %s836, 6
        %s838 = scalar_select %p837, %s836, 6
        %p839 = scmp.lt.s32.totalorder %s20, 0
        %s840 = scalar_select %p839, %s20, 0
        %s841 = sadd.s32 %s840, %s838
        %s842 = smul.addr %s841, 8
        %s843 = scalar_lea.vmem %s3, %s842
        // Predicated region
        $region64: #{multiscale_forward.45} parent=50 // pred_check
          %p844 = pneg %p135
        $region65: #{multiscale_forward.45} parent=50 // pred_check_branch
          %846 = sbr.rel (%p844) target = $region67
        $region66: #{multiscale_forward.45} parent=50 // pred_region
          %s847 = smul.u32 7, %s19
        $region67: #{multiscale_forward.45} parent=50 // pred_fallthru
          _
        // Predicated region
        $region68: #{multiscale_forward.45} parent=50 // pred_check
          %p848 = pneg %p135
        $region69: #{multiscale_forward.45} parent=50 // pred_check_branch
          %850 = sbr.rel (%p848) target = $region71
        $region70: #{multiscale_forward.45} parent=50 // pred_region
          %s851 = smul.u32 7, %s19
          %p852 = scmp.lt.s32.totalorder %s851, 6
          %s853 = scalar_select %p852, %s851, 6
          %p854 = scmp.lt.s32.totalorder %s20, 0
          %s855 = scalar_select %p854, %s20, 0
          %s856 = sadd.s32 %s855, %s853
          %s857 = smul.addr %s856, 8
          %s858 = scalar_lea.vmem %s3, %s857
        $region71: #{multiscale_forward.45} parent=50 // pred_fallthru
          _
      $region51: #{multiscale_forward.45} parent=5 // pred_fallthru
        _
      %p859 = scmp.le.s32.totalorder 2, %s9
      // Predicated region
      $region72: #{multiscale_forward.45} parent=5 // pred_check
        %p860 = pneg %p859
      $region73: #{multiscale_forward.45} parent=5 // pred_check_branch
        %862 = sbr.rel (%p860) target = $region75
      $region74: #{multiscale_forward.45} parent=5 // pred_region
        %s863 = ssub.s32 %s9, 2
      $region75: #{multiscale_forward.45} parent=5 // pred_fallthru
        _
    $region6: #{multiscale_forward.45} parent=1 // loop_footer
      %s13 = sadd.s32 1, %s9
    $region7: #{multiscale_forward.45} parent=1 // loop_footer_branch
      %8 = sbr.rel target = $region3
    $region8: #{multiscale_forward.45} parent=1 // loop_exit
      _

</llo_original>
